<compile_context>
chip_gen: v7x
topology: tpu7x:2x2x1
jax: 0.10.0
libtpu: 0.0.40
codegen_flags: <defaults>
</compile_context>

<pallas_src>
import jax
import jax.numpy as jnp
from jax.experimental import pallas as pl
from jax.experimental.pallas import tpu as pltpu

# ----- small, self-consistent config (ViT shrunk for a demo) -----
IMG = 16          # img_size
PATCH = 4         # patch_size
CIN = 4           # in_channels
EMBED = 32        # embed_dim
HEADS = 4         # num_heads
DEPTH = 2         # depth
MLP = 64          # mlp_dim
NCLS = 8          # num_classes
BATCH = 2

NPATCH = (IMG // PATCH) ** 2          # 16
SEQ = NPATCH + 1                      # 17 (cls token + patches)
S_PAD = 24                            # seq padded to a multiple of 8
CPP = CIN * PATCH * PATCH             # 64 flattened patch length
HEAD_DIM = EMBED // HEADS             # 8
EPS = 1e-5
NOUT = 128                            # logits padded to a lane-dense store width

# grid layout: one grid step per TensorCore (v7x has 2); remaining batch folded
GRID = 2 if BATCH % 2 == 0 else 1
BPB = BATCH // GRID                   # batch elements folded into one grid step
assert GRID * BPB == BATCH


# --------------------------------------------------------------------------
# Pallas kernel (entire forward; BPB batch elements per grid step)
# --------------------------------------------------------------------------
def _layernorm(x, w, b):
    mu = jnp.mean(x, axis=-1, keepdims=True)
    var = jnp.mean((x - mu) ** 2, axis=-1, keepdims=True)
    return (x - mu) * jax.lax.rsqrt(var + EPS) * w + b


def vit_kernel(p_ref, pemb_ref, wattn_ref, bq_ref, ctab_ref,
               wffn1_ref, wffn2_ref, whead_ref, o_ref):
    R = BPB * S_PAD

    def _row(ref, i):                     # (1, width) static row slice
        return ref[i:i + 1, :]

    # ---- patch embedding on the whole (BPB*S_PAD, CPP) row slab.
    # CLS / padded patch rows are zero -> contribute nothing; the packed
    # token-bias rows add conv bias, cls token and positional embedding.
    x = (jnp.dot(p_ref[0], pemb_ref[0:CPP, :], preferred_element_type=jnp.float32)
         + pemb_ref[CPP:CPP + R, :])                         # (R, D)

    # additive key mask for padded sequence positions (no extra operand):
    # 0 for real tokens, -1e30 for pad columns.
    kpos = jax.lax.broadcasted_iota(jnp.int32, (1, S_PAD), 1)
    abias = jnp.where(kpos < SEQ, 0.0, -1e30)

    for l in range(DEPTH):                                   # static, DEPTH=2
        # ---------- multi-head self-attention ----------
        # Per-(batch, head) static loops over weight-side pre-split (and
        # hd->D zero-padded) projections: no lane-axis slicing / stacking of
        # activations, head merge folded into the out-projection accumulate.
        rows = []
        for b in range(BPB):
            xb = x[b * S_PAD:(b + 1) * S_PAD, :]             # 8-aligned rows
            yb = None
            for h in range(HEADS):
                i0 = (l * 4) * HEADS + h                     # static indices
                q = (jnp.dot(xb, wattn_ref[i0],
                             preferred_element_type=jnp.float32)
                     + _row(bq_ref, l * HEADS + h))          # scale pre-folded
                k = jnp.dot(xb, wattn_ref[i0 + HEADS],
                            preferred_element_type=jnp.float32)
                v = jnp.dot(xb, wattn_ref[i0 + 2 * HEADS],
                            preferred_element_type=jnp.float32)
                s = jnp.einsum('qd,kd->qk', q, k,
                               preferred_element_type=jnp.float32) + abias
                s = s - jnp.max(s, axis=-1, keepdims=True)
                p = jnp.exp(s)
                # exact reciprocal keeps the folded V-bias identity exact and
                # the validation tolerance tight (use approx=True for perf).
                p = p * pl.reciprocal(jnp.sum(p, axis=-1, keepdims=True),
                                      approx=False)
                ctx = jnp.dot(p, v, preferred_element_type=jnp.float32)
                yh = jnp.dot(ctx, wattn_ref[i0 + 3 * HEADS],
                             preferred_element_type=jnp.float32)
                yb = yh if yb is None else yb + yh
            rows.append(yb)
        y = rows[0] if BPB == 1 else jnp.concatenate(rows, axis=0)

        # post-norm residual 1; ctab row 0 = out-proj bias (+ folded V bias)
        x = _layernorm(x + y + _row(ctab_ref, l * 8 + 0),
                       _row(ctab_ref, l * 8 + 1), _row(ctab_ref, l * 8 + 2))

        # ---------- feed-forward (ReLU), post-norm residual 2 ----------
        h1 = jnp.maximum(
            jnp.dot(x, wffn1_ref[l, 0:EMBED, :],
                    preferred_element_type=jnp.float32)
            + wffn1_ref[l, EMBED:EMBED + 1, :], 0.0)
        h2 = (jnp.dot(h1, wffn2_ref[l, 0:MLP, :],
                      preferred_element_type=jnp.float32)
              + wffn2_ref[l, MLP:MLP + 1, :])
        x = _layernorm(x + h2,
                       _row(ctab_ref, l * 8 + 3), _row(ctab_ref, l * 8 + 4))

    # ---------- classification head on the CLS rows ----------
    # NOTE invariant: padded token rows (SEQ..S_PAD-1) only influence real
    # rows through attention, where they are masked; the head reads CLS only.
    if BPB == 1:
        cls = x[0:1, :]
    else:
        cls = jnp.concatenate([x[b * S_PAD:b * S_PAD + 1, :]
                               for b in range(BPB)], axis=0)
    cls = _layernorm(cls, _row(ctab_ref, 5), _row(ctab_ref, 6))  # head LN rows
    o_ref[0] = (jnp.dot(cls, whead_ref[0:EMBED, :],
                        preferred_element_type=jnp.float32)
                + whead_ref[EMBED:EMBED + 1, :])                 # (BPB, NOUT)


# --------------------------------------------------------------------------
# JAX glue / wrappers
# --------------------------------------------------------------------------
def extract_patches(x):
    # x: (B, C, H, W) NCHW -> (B, N, C*P*P); per-patch flattening order
    # (c, ph, pw) matches Conv2d(kernel=stride=P) weight flattening.
    B, C, H, W = x.shape
    x = x.reshape(B, C, H // PATCH, PATCH, W // PATCH, PATCH)
    x = x.transpose(0, 2, 4, 1, 3, 5)               # (B, Hp, Wp, C, P, P)
    return x.reshape(B, NPATCH, CPP)


def preprocess_params(params):
    """One-time weight re-layout / packing (hoisted out of the hot path)."""
    D, hd = EMBED, HEAD_DIM
    scale = 1.0 / (hd ** 0.5)
    lys = params["layers"]

    # ---- patch-embed weight + per-token bias table, packed into one slab.
    # row 0 = cls + pos[0]; rows 1..NPATCH = pos + conv bias; pad rows stay 0.
    pos = params["pos"][0]
    tok_bias = jnp.zeros((S_PAD, D), jnp.float32)
    tok_bias = tok_bias.at[0].set(params["cls"][0, 0] + pos[0])
    tok_bias = tok_bias.at[1:SEQ].set(pos[1:] + params["conv_b"][None, :])
    tok_bias = jnp.tile(tok_bias, (BPB, 1))                      # (BPB*S_PAD, D)
    patch_w = params["conv_w"].reshape(D, CPP).T                 # (CPP, D)
    pemb = jnp.concatenate([patch_w, tok_bias], axis=0)

    # ---- per-head attention weights, zero-padded hd->D, packed (L*4*H, D, D)
    # order per layer: q heads | k heads | v heads | o heads.
    # 1/sqrt(hd) folded into Wq/bq; K bias dropped (softmax shift-invariance);
    # V bias folded into the out-proj bias (softmax rows sum to 1).
    wattn, bq_rows, ctab_rows = [], [], []
    for lp in lys:
        wi, bi = lp["in_proj_w"], lp["in_proj_b"]        # (3D, D), (3D,)
        wo_full = lp["out_proj_w"].T                     # (D, D): x @ wo_full
        for j in range(3):                               # q, k, v
            sc = scale if j == 0 else 1.0
            for h in range(HEADS):
                w = wi[j * D + h * hd: j * D + (h + 1) * hd, :].T * sc  # (D,hd)
                wattn.append(jnp.pad(w, ((0, 0), (0, D - hd))))
        for h in range(HEADS):                           # per-head out-proj
            wattn.append(jnp.pad(wo_full[h * hd:(h + 1) * hd, :],
                                 ((0, D - hd), (0, 0))))
        bq_rows.append(jnp.pad((bi[:D] * scale).reshape(HEADS, hd),
                               ((0, 0), (0, D - hd))))
        bo_fold = lp["out_proj_b"] + bi[2 * D:] @ wo_full
        ctab_rows += [bo_fold, lp["ln1_w"], lp["ln1_b"], lp["ln2_w"], lp["ln2_b"],
                      jnp.zeros((D,), jnp.float32), jnp.zeros((D,), jnp.float32),
                      jnp.zeros((D,), jnp.float32)]
    ctab = jnp.stack(ctab_rows)                                  # (L*8, D)
    # spare rows 5/6 of layer-0's table hold the head LayerNorm params
    ctab = ctab.at[5].set(params["head_ln_w"]).at[6].set(params["head_ln_b"])

    wffn1 = jnp.stack([jnp.concatenate(
        [lp["w1"].T, lp["b1"].reshape(1, MLP),
         jnp.zeros((7, MLP), jnp.float32)], axis=0) for lp in lys])   # (L,D+8,MLP)
    wffn2 = jnp.stack([jnp.concatenate(
        [lp["w2"].T, lp["b2"].reshape(1, D),
         jnp.zeros((7, D), jnp.float32)], axis=0) for lp in lys])     # (L,MLP+8,D)

    whead = jnp.concatenate([
        jnp.pad(params["head_w"].T, ((0, 0), (0, NOUT - NCLS))),      # (D, NOUT)
        jnp.pad(params["head_b"].reshape(1, NCLS), ((0, 0), (0, NOUT - NCLS))),
        jnp.zeros((7, NOUT), jnp.float32)], axis=0)                   # (D+8, NOUT)

    return {"pemb": pemb,
            "wattn": jnp.stack(wattn),                                # (L*4*H,D,D)
            "bq": jnp.concatenate(bq_rows, axis=0),                   # (L*H, D)
            "ctab": ctab, "wffn1": wffn1, "wffn2": wffn2, "whead": whead}


_WEIGHT_ORDER = ("pemb", "wattn", "bq", "ctab", "wffn1", "wffn2", "whead")


def _rep_spec(arr):
    # full-array block, same block for every grid step -> fetched into VMEM once
    zeros = (0,) * arr.ndim
    return pl.BlockSpec(arr.shape, lambda g, _z=zeros: _z)


def vit_forward(x, prep):
    B = x.shape[0]
    assert B == BATCH
    # patches padded to S_PAD rows: row 0 reserved for CLS, tail rows zero.
    patches = jnp.pad(extract_patches(x),
                      ((0, 0), (1, S_PAD - 1 - NPATCH), (0, 0)))
    patches = patches.reshape(GRID, BPB * S_PAD, CPP)
    weights = [prep[k] for k in _WEIGHT_ORDER]
    out = pl.pallas_call(
        vit_kernel,
        out_shape=jax.ShapeDtypeStruct((GRID, BPB, NOUT), jnp.float32),
        grid=(GRID,),
        in_specs=[pl.BlockSpec((1, BPB * S_PAD, CPP), lambda g: (g, 0, 0))]
                 + [_rep_spec(w) for w in weights],
        out_specs=pl.BlockSpec((1, BPB, NOUT), lambda g: (g, 0, 0)),
        compiler_params=pltpu.CompilerParams(
            dimension_semantics=("parallel",)),   # v7x: one step per TensorCore
    )(patches, *weights)
    return out.reshape(B, NOUT)[:, :NCLS]


# --------------------------------------------------------------------------
# pure-JAX reference on the RAW (torch-layout) params  — cross-checks both
# the kernel math and the one-time weight preprocessing / bias folding.
# --------------------------------------------------------------------------
def _ln_ref(x, w, b):
    mu = jnp.mean(x, axis=-1, keepdims=True)
    var = jnp.mean((x - mu) ** 2, axis=-1, keepdims=True)
    return (x - mu) * jax.lax.rsqrt(var + EPS) * w + b


def vit_reference(x, params):
    B = x.shape[0]
    patches = extract_patches(x)
    wp = params["conv_w"].reshape(EMBED, CPP).T
    emb = patches @ wp + params["conv_b"]
    cls = jnp.broadcast_to(params["cls"], (B, 1, EMBED))
    t = jnp.concatenate([cls, emb], axis=1) + params["pos"]
    for lp in params["layers"]:
        qkv = t @ lp["in_proj_w"].T + lp["in_proj_b"]
        q, k, v = jnp.split(qkv, 3, axis=-1)
        sh = lambda z: z.reshape(B, SEQ, HEADS, HEAD_DIM).transpose(0, 2, 1, 3)
        qh, kh, vh = sh(q), sh(k), sh(v)
        s = jnp.einsum('bhqd,bhkd->bhqk', qh, kh) / (HEAD_DIM ** 0.5)
        p = jax.nn.softmax(s, axis=-1)
        ctx = jnp.einsum('bhqk,bhkd->bhqd', p, vh)
        ctx = ctx.transpose(0, 2, 1, 3).reshape(B, SEQ, EMBED)
        attn = ctx @ lp["out_proj_w"].T + lp["out_proj_b"]
        t = _ln_ref(t + attn, lp["ln1_w"], lp["ln1_b"])
        ff = jnp.maximum(t @ lp["w1"].T + lp["b1"], 0.0) @ lp["w2"].T + lp["b2"]
        t = _ln_ref(t + ff, lp["ln2_w"], lp["ln2_b"])
    h = _ln_ref(t[:, 0], params["head_ln_w"], params["head_ln_b"])
    return h @ params["head_w"].T + params["head_b"]


# --------------------------------------------------------------------------
# deterministic parameter init (shapes follow the PyTorch module)
# --------------------------------------------------------------------------
def init_params(key):
    keys = iter(jax.random.split(key, 64))

    def nrm(shape, std=0.02):
        return (std * jax.random.normal(next(keys), shape)).astype(jnp.float32)

    params = {
        "conv_w": nrm((EMBED, CIN, PATCH, PATCH)),
        "conv_b": nrm((EMBED,)),
        "cls": nrm((1, 1, EMBED), std=1.0),       # torch.randn
        "pos": nrm((1, SEQ, EMBED), std=1.0),     # torch.randn
        "head_ln_w": jnp.ones((EMBED,), jnp.float32),
        "head_ln_b": jnp.zeros((EMBED,), jnp.float32),
        "head_w": nrm((NCLS, EMBED)),
        "head_b": nrm((NCLS,)),
        "layers": [],
    }
    for _ in range(DEPTH):
        params["layers"].append(dict(
            in_proj_w=nrm((3 * EMBED, EMBED)),
            in_proj_b=nrm((3 * EMBED,)),
            out_proj_w=nrm((EMBED, EMBED)),
            out_proj_b=nrm((EMBED,)),
            ln1_w=jnp.ones((EMBED,), jnp.float32),
            ln1_b=jnp.zeros((EMBED,), jnp.float32),
            ln2_w=jnp.ones((EMBED,), jnp.float32),
            ln2_b=jnp.zeros((EMBED,), jnp.float32),
            w1=nrm((MLP, EMBED)),
            b1=nrm((MLP,)),
            w2=nrm((EMBED, MLP)),
            b2=nrm((EMBED,)),
        ))
    return params


if __name__ == "__main__":
    key = jax.random.PRNGKey(0)
    kx, kp = jax.random.split(key)
    x = jax.random.normal(kx, (BATCH, CIN, IMG, IMG), dtype=jnp.float32)
    params = init_params(kp)

    prep = preprocess_params(params)            # one-time weight re-layout
    fwd = jax.jit(vit_forward)
    out = jax.block_until_ready(fwd(x, prep))

    assert out.shape == (BATCH, NCLS), out.shape
    assert bool(jnp.all(jnp.isfinite(out)))

    ref = vit_reference(x, params)
    err = float(jnp.max(jnp.abs(out - ref)))
    # exact softmax reciprocal -> tight tolerance (1e-3 covers fp reordering)
    assert err < 1e-3, f"kernel/reference mismatch: max abs err {err}"
    print("KERNEL_OK")
</pallas_src>

<mosaic_0001>
module attributes {stable_mosaic.version = 11 : i64} {
  func.func @vit_kernel(%arg0: i32, %arg1: memref<1x24x64xf32, #tpu.memory_space<vmem>>, %arg2: memref<88x32xf32, #tpu.memory_space<vmem>>, %arg3: memref<32x32x32xf32, #tpu.memory_space<vmem>>, %arg4: memref<8x32xf32, #tpu.memory_space<vmem>>, %arg5: memref<16x32xf32, #tpu.memory_space<vmem>>, %arg6: memref<2x40x64xf32, #tpu.memory_space<vmem>>, %arg7: memref<2x72x32xf32, #tpu.memory_space<vmem>>, %arg8: memref<40x128xf32, #tpu.memory_space<vmem>>, %arg9: memref<1x1x128xf32, #tpu.memory_space<vmem>>) attributes {dimension_semantics = [#tpu.dimension_semantics<parallel>], iteration_bounds = array<i64: 2>, scalar_prefetch = 0 : i64, scratch_operands = 0 : i64, tpu.core_type = #tpu.core_type<tc>, window_params = [{transform_indices = @transform_0, window_bounds = array<i64: 1, 24, 64>}, {pipeline_mode = #tpu.pipeline_mode<synchronous>, transform_indices = @transform_1, window_bounds = array<i64: 88, 32>}, {pipeline_mode = #tpu.pipeline_mode<synchronous>, transform_indices = @transform_2, window_bounds = array<i64: 32, 32, 32>}, {pipeline_mode = #tpu.pipeline_mode<synchronous>, transform_indices = @transform_3, window_bounds = array<i64: 8, 32>}, {pipeline_mode = #tpu.pipeline_mode<synchronous>, transform_indices = @transform_4, window_bounds = array<i64: 16, 32>}, {pipeline_mode = #tpu.pipeline_mode<synchronous>, transform_indices = @transform_5, window_bounds = array<i64: 2, 40, 64>}, {pipeline_mode = #tpu.pipeline_mode<synchronous>, transform_indices = @transform_6, window_bounds = array<i64: 2, 72, 32>}, {pipeline_mode = #tpu.pipeline_mode<synchronous>, transform_indices = @transform_7, window_bounds = array<i64: 40, 128>}, {transform_indices = @transform_8, window_bounds = array<i64: 1, 1, 128>}]} {
    %c0 = arith.constant 0 : index
    %c0_0 = arith.constant 0 : index
    %c0_1 = arith.constant 0 : index
    %0 = vector.load %arg1[%c0, %c0_0, %c0_1] : memref<1x24x64xf32, #tpu.memory_space<vmem>>, vector<1x24x64xf32>
    %1 = vector.shape_cast %0 : vector<1x24x64xf32> to vector<24x64xf32>
    %c0_2 = arith.constant 0 : index
    %c0_3 = arith.constant 0 : index
    %2 = vector.load %arg2[%c0_2, %c0_3] : memref<88x32xf32, #tpu.memory_space<vmem>>, vector<64x32xf32>
    %cst = arith.constant dense<0.000000e+00> : vector<24x32xf32>
    %3 = tpu.matmul %1, %2, %cst {dimension_numbers = #tpu.dot_dimension_numbers<[1], [0], [0], [1], [0, 0, 1, 1], [], []>} : vector<24x64xf32>, vector<64x32xf32>, vector<24x32xf32> -> vector<24x32xf32>
    %c64 = arith.constant 64 : index
    %c0_4 = arith.constant 0 : index
    %4 = vector.load %arg2[%c64, %c0_4] : memref<88x32xf32, #tpu.memory_space<vmem>>, vector<24x32xf32>
    %5 = arith.addf %3, %4 : vector<24x32xf32>
    %6 = tpu.iota {dimensions = array<i32: 1>} : vector<1x24xi32>
    %c17_i32 = arith.constant 17 : i32
    %7 = vector.broadcast %c17_i32 : i32 to vector<1x24xi32>
    %8 = arith.cmpi slt, %6, %7 : vector<1x24xi32>
    %cst_5 = arith.constant 0.000000e+00 : f32
    %cst_6 = arith.constant -1.000000e+30 : f32
    %9 = vector.broadcast %cst_5 : f32 to vector<1x24xf32>
    %10 = vector.broadcast %cst_6 : f32 to vector<1x24xf32>
    %11 = arith.select %8, %9, %10 : vector<1x24xi1>, vector<1x24xf32>
    %c0_7 = arith.constant 0 : index
    %c0_8 = arith.constant 0 : index
    %c0_9 = arith.constant 0 : index
    %12 = vector.load %arg3[%c0_7, %c0_8, %c0_9] : memref<32x32x32xf32, #tpu.memory_space<vmem>>, vector<1x32x32xf32>
    %13 = vector.shape_cast %12 : vector<1x32x32xf32> to vector<32x32xf32>
    %cst_10 = arith.constant dense<0.000000e+00> : vector<24x32xf32>
    %14 = tpu.matmul %5, %13, %cst_10 {dimension_numbers = #tpu.dot_dimension_numbers<[1], [0], [0], [1], [0, 0, 1, 1], [], []>} : vector<24x32xf32>, vector<32x32xf32>, vector<24x32xf32> -> vector<24x32xf32>
    %c0_11 = arith.constant 0 : index
    %c0_12 = arith.constant 0 : index
    %15 = vector.load %arg4[%c0_11, %c0_12] : memref<8x32xf32, #tpu.memory_space<vmem>>, vector<1x32xf32>
    %16 = vector.broadcast %15 : vector<1x32xf32> to vector<24x32xf32>
    %17 = arith.addf %14, %16 : vector<24x32xf32>
    %c4 = arith.constant 4 : index
    %c0_13 = arith.constant 0 : index
    %c0_14 = arith.constant 0 : index
    %18 = vector.load %arg3[%c4, %c0_13, %c0_14] : memref<32x32x32xf32, #tpu.memory_space<vmem>>, vector<1x32x32xf32>
    %19 = vector.shape_cast %18 : vector<1x32x32xf32> to vector<32x32xf32>
    %cst_15 = arith.constant dense<0.000000e+00> : vector<24x32xf32>
    %20 = tpu.matmul %5, %19, %cst_15 {dimension_numbers = #tpu.dot_dimension_numbers<[1], [0], [0], [1], [0, 0, 1, 1], [], []>} : vector<24x32xf32>, vector<32x32xf32>, vector<24x32xf32> -> vector<24x32xf32>
    %c8 = arith.constant 8 : index
    %c0_16 = arith.constant 0 : index
    %c0_17 = arith.constant 0 : index
    %21 = vector.load %arg3[%c8, %c0_16, %c0_17] : memref<32x32x32xf32, #tpu.memory_space<vmem>>, vector<1x32x32xf32>
    %22 = vector.shape_cast %21 : vector<1x32x32xf32> to vector<32x32xf32>
    %cst_18 = arith.constant dense<0.000000e+00> : vector<24x32xf32>
    %23 = tpu.matmul %5, %22, %cst_18 {dimension_numbers = #tpu.dot_dimension_numbers<[1], [0], [0], [1], [0, 0, 1, 1], [], []>} : vector<24x32xf32>, vector<32x32xf32>, vector<24x32xf32> -> vector<24x32xf32>
    "tpu.trace_start"() <{level = 10 : i32, message = "qd,kd->qk"}> : () -> ()
    %cst_19 = arith.constant dense<0.000000e+00> : vector<24x24xf32>
    %24 = tpu.matmul %17, %20, %cst_19 {dimension_numbers = #tpu.dot_dimension_numbers<[1], [1], [0], [0], [0, 0, 1, 0], [], []>} : vector<24x32xf32>, vector<24x32xf32>, vector<24x24xf32> -> vector<24x24xf32>
    "tpu.trace_stop"() : () -> ()
    %25 = vector.broadcast %11 : vector<1x24xf32> to vector<24x24xf32>
    %26 = arith.addf %24, %25 : vector<24x24xf32>
    %cst_20 = arith.constant dense<0xFF800000> : vector<24xf32>
    %27 = vector.multi_reduction <maximumf>, %26, %cst_20 [1] : vector<24x24xf32> to vector<24xf32>
    %28 = vector.shape_cast %27 : vector<24xf32> to vector<24x1xf32>
    %29 = vector.broadcast %28 : vector<24x1xf32> to vector<24x24xf32>
    %30 = arith.subf %26, %29 : vector<24x24xf32>
    %31 = math.exp %30 : vector<24x24xf32>
    %cst_21 = arith.constant dense<0.000000e+00> : vector<24xf32>
    %32 = vector.multi_reduction <add>, %31, %cst_21 [1] : vector<24x24xf32> to vector<24xf32>
    %33 = vector.shape_cast %32 : vector<24xf32> to vector<24x1xf32>
    %34 = tpu.reciprocal %33 : vector<24x1xf32> -> vector<24x1xf32>
    %35 = vector.broadcast %34 : vector<24x1xf32> to vector<24x24xf32>
    %36 = arith.mulf %31, %35 : vector<24x24xf32>
    %cst_22 = arith.constant dense<0.000000e+00> : vector<24x32xf32>
    %37 = tpu.matmul %36, %23, %cst_22 {dimension_numbers = #tpu.dot_dimension_numbers<[1], [0], [0], [1], [0, 0, 1, 1], [], []>} : vector<24x24xf32>, vector<24x32xf32>, vector<24x32xf32> -> vector<24x32xf32>
    %c12 = arith.constant 12 : index
    %c0_23 = arith.constant 0 : index
    %c0_24 = arith.constant 0 : index
    %38 = vector.load %arg3[%c12, %c0_23, %c0_24] : memref<32x32x32xf32, #tpu.memory_space<vmem>>, vector<1x32x32xf32>
    %39 = vector.shape_cast %38 : vector<1x32x32xf32> to vector<32x32xf32>
    %cst_25 = arith.constant dense<0.000000e+00> : vector<24x32xf32>
    %40 = tpu.matmul %37, %39, %cst_25 {dimension_numbers = #tpu.dot_dimension_numbers<[1], [0], [0], [1], [0, 0, 1, 1], [], []>} : vector<24x32xf32>, vector<32x32xf32>, vector<24x32xf32> -> vector<24x32xf32>
    %c1 = arith.constant 1 : index
    %c0_26 = arith.constant 0 : index
    %c0_27 = arith.constant 0 : index
    %41 = vector.load %arg3[%c1, %c0_26, %c0_27] : memref<32x32x32xf32, #tpu.memory_space<vmem>>, vector<1x32x32xf32>
    %42 = vector.shape_cast %41 : vector<1x32x32xf32> to vector<32x32xf32>
    %cst_28 = arith.constant dense<0.000000e+00> : vector<24x32xf32>
    %43 = tpu.matmul %5, %42, %cst_28 {dimension_numbers = #tpu.dot_dimension_numbers<[1], [0], [0], [1], [0, 0, 1, 1], [], []>} : vector<24x32xf32>, vector<32x32xf32>, vector<24x32xf32> -> vector<24x32xf32>
    %c1_29 = arith.constant 1 : index
    %c0_30 = arith.constant 0 : index
    %44 = vector.load %arg4[%c1_29, %c0_30] : memref<8x32xf32, #tpu.memory_space<vmem>>, vector<1x32xf32>
    %45 = vector.broadcast %44 : vector<1x32xf32> to vector<24x32xf32>
    %46 = arith.addf %43, %45 : vector<24x32xf32>
    %c5 = arith.constant 5 : index
    %c0_31 = arith.constant 0 : index
    %c0_32 = arith.constant 0 : index
    %47 = vector.load %arg3[%c5, %c0_31, %c0_32] : memref<32x32x32xf32, #tpu.memory_space<vmem>>, vector<1x32x32xf32>
    %48 = vector.shape_cast %47 : vector<1x32x32xf32> to vector<32x32xf32>
    %cst_33 = arith.constant dense<0.000000e+00> : vector<24x32xf32>
    %49 = tpu.matmul %5, %48, %cst_33 {dimension_numbers = #tpu.dot_dimension_numbers<[1], [0], [0], [1], [0, 0, 1, 1], [], []>} : vector<24x32xf32>, vector<32x32xf32>, vector<24x32xf32> -> vector<24x32xf32>
    %c9 = arith.constant 9 : index
    %c0_34 = arith.constant 0 : index
    %c0_35 = arith.constant 0 : index
    %50 = vector.load %arg3[%c9, %c0_34, %c0_35] : memref<32x32x32xf32, #tpu.memory_space<vmem>>, vector<1x32x32xf32>
    %51 = vector.shape_cast %50 : vector<1x32x32xf32> to vector<32x32xf32>
    %cst_36 = arith.constant dense<0.000000e+00> : vector<24x32xf32>
    %52 = tpu.matmul %5, %51, %cst_36 {dimension_numbers = #tpu.dot_dimension_numbers<[1], [0], [0], [1], [0, 0, 1, 1], [], []>} : vector<24x32xf32>, vector<32x32xf32>, vector<24x32xf32> -> vector<24x32xf32>
    "tpu.trace_start"() <{level = 10 : i32, message = "qd,kd->qk"}> : () -> ()
    %cst_37 = arith.constant dense<0.000000e+00> : vector<24x24xf32>
    %53 = tpu.matmul %46, %49, %cst_37 {dimension_numbers = #tpu.dot_dimension_numbers<[1], [1], [0], [0], [0, 0, 1, 0], [], []>} : vector<24x32xf32>, vector<24x32xf32>, vector<24x24xf32> -> vector<24x24xf32>
    "tpu.trace_stop"() : () -> ()
    %54 = vector.broadcast %11 : vector<1x24xf32> to vector<24x24xf32>
    %55 = arith.addf %53, %54 : vector<24x24xf32>
    %cst_38 = arith.constant dense<0xFF800000> : vector<24xf32>
    %56 = vector.multi_reduction <maximumf>, %55, %cst_38 [1] : vector<24x24xf32> to vector<24xf32>
    %57 = vector.shape_cast %56 : vector<24xf32> to vector<24x1xf32>
    %58 = vector.broadcast %57 : vector<24x1xf32> to vector<24x24xf32>
    %59 = arith.subf %55, %58 : vector<24x24xf32>
    %60 = math.exp %59 : vector<24x24xf32>
    %cst_39 = arith.constant dense<0.000000e+00> : vector<24xf32>
    %61 = vector.multi_reduction <add>, %60, %cst_39 [1] : vector<24x24xf32> to vector<24xf32>
    %62 = vector.shape_cast %61 : vector<24xf32> to vector<24x1xf32>
    %63 = tpu.reciprocal %62 : vector<24x1xf32> -> vector<24x1xf32>
    %64 = vector.broadcast %63 : vector<24x1xf32> to vector<24x24xf32>
    %65 = arith.mulf %60, %64 : vector<24x24xf32>
    %cst_40 = arith.constant dense<0.000000e+00> : vector<24x32xf32>
    %66 = tpu.matmul %65, %52, %cst_40 {dimension_numbers = #tpu.dot_dimension_numbers<[1], [0], [0], [1], [0, 0, 1, 1], [], []>} : vector<24x24xf32>, vector<24x32xf32>, vector<24x32xf32> -> vector<24x32xf32>
    %c13 = arith.constant 13 : index
    %c0_41 = arith.constant 0 : index
    %c0_42 = arith.constant 0 : index
    %67 = vector.load %arg3[%c13, %c0_41, %c0_42] : memref<32x32x32xf32, #tpu.memory_space<vmem>>, vector<1x32x32xf32>
    %68 = vector.shape_cast %67 : vector<1x32x32xf32> to vector<32x32xf32>
    %cst_43 = arith.constant dense<0.000000e+00> : vector<24x32xf32>
    %69 = tpu.matmul %66, %68, %cst_43 {dimension_numbers = #tpu.dot_dimension_numbers<[1], [0], [0], [1], [0, 0, 1, 1], [], []>} : vector<24x32xf32>, vector<32x32xf32>, vector<24x32xf32> -> vector<24x32xf32>
    %70 = arith.addf %40, %69 : vector<24x32xf32>
    %c2 = arith.constant 2 : index
    %c0_44 = arith.constant 0 : index
    %c0_45 = arith.constant 0 : index
    %71 = vector.load %arg3[%c2, %c0_44, %c0_45] : memref<32x32x32xf32, #tpu.memory_space<vmem>>, vector<1x32x32xf32>
    %72 = vector.shape_cast %71 : vector<1x32x32xf32> to vector<32x32xf32>
    %cst_46 = arith.constant dense<0.000000e+00> : vector<24x32xf32>
    %73 = tpu.matmul %5, %72, %cst_46 {dimension_numbers = #tpu.dot_dimension_numbers<[1], [0], [0], [1], [0, 0, 1, 1], [], []>} : vector<24x32xf32>, vector<32x32xf32>, vector<24x32xf32> -> vector<24x32xf32>
    %c2_47 = arith.constant 2 : index
    %c0_48 = arith.constant 0 : index
    %74 = vector.load %arg4[%c2_47, %c0_48] : memref<8x32xf32, #tpu.memory_space<vmem>>, vector<1x32xf32>
    %75 = vector.broadcast %74 : vector<1x32xf32> to vector<24x32xf32>
    %76 = arith.addf %73, %75 : vector<24x32xf32>
    %c6 = arith.constant 6 : index
    %c0_49 = arith.constant 0 : index
    %c0_50 = arith.constant 0 : index
    %77 = vector.load %arg3[%c6, %c0_49, %c0_50] : memref<32x32x32xf32, #tpu.memory_space<vmem>>, vector<1x32x32xf32>
    %78 = vector.shape_cast %77 : vector<1x32x32xf32> to vector<32x32xf32>
    %cst_51 = arith.constant dense<0.000000e+00> : vector<24x32xf32>
    %79 = tpu.matmul %5, %78, %cst_51 {dimension_numbers = #tpu.dot_dimension_numbers<[1], [0], [0], [1], [0, 0, 1, 1], [], []>} : vector<24x32xf32>, vector<32x32xf32>, vector<24x32xf32> -> vector<24x32xf32>
    %c10 = arith.constant 10 : index
    %c0_52 = arith.constant 0 : index
    %c0_53 = arith.constant 0 : index
    %80 = vector.load %arg3[%c10, %c0_52, %c0_53] : memref<32x32x32xf32, #tpu.memory_space<vmem>>, vector<1x32x32xf32>
    %81 = vector.shape_cast %80 : vector<1x32x32xf32> to vector<32x32xf32>
    %cst_54 = arith.constant dense<0.000000e+00> : vector<24x32xf32>
    %82 = tpu.matmul %5, %81, %cst_54 {dimension_numbers = #tpu.dot_dimension_numbers<[1], [0], [0], [1], [0, 0, 1, 1], [], []>} : vector<24x32xf32>, vector<32x32xf32>, vector<24x32xf32> -> vector<24x32xf32>
    "tpu.trace_start"() <{level = 10 : i32, message = "qd,kd->qk"}> : () -> ()
    %cst_55 = arith.constant dense<0.000000e+00> : vector<24x24xf32>
    %83 = tpu.matmul %76, %79, %cst_55 {dimension_numbers = #tpu.dot_dimension_numbers<[1], [1], [0], [0], [0, 0, 1, 0], [], []>} : vector<24x32xf32>, vector<24x32xf32>, vector<24x24xf32> -> vector<24x24xf32>
    "tpu.trace_stop"() : () -> ()
    %84 = vector.broadcast %11 : vector<1x24xf32> to vector<24x24xf32>
    %85 = arith.addf %83, %84 : vector<24x24xf32>
    %cst_56 = arith.constant dense<0xFF800000> : vector<24xf32>
    %86 = vector.multi_reduction <maximumf>, %85, %cst_56 [1] : vector<24x24xf32> to vector<24xf32>
    %87 = vector.shape_cast %86 : vector<24xf32> to vector<24x1xf32>
    %88 = vector.broadcast %87 : vector<24x1xf32> to vector<24x24xf32>
    %89 = arith.subf %85, %88 : vector<24x24xf32>
    %90 = math.exp %89 : vector<24x24xf32>
    %cst_57 = arith.constant dense<0.000000e+00> : vector<24xf32>
    %91 = vector.multi_reduction <add>, %90, %cst_57 [1] : vector<24x24xf32> to vector<24xf32>
    %92 = vector.shape_cast %91 : vector<24xf32> to vector<24x1xf32>
    %93 = tpu.reciprocal %92 : vector<24x1xf32> -> vector<24x1xf32>
    %94 = vector.broadcast %93 : vector<24x1xf32> to vector<24x24xf32>
    %95 = arith.mulf %90, %94 : vector<24x24xf32>
    %cst_58 = arith.constant dense<0.000000e+00> : vector<24x32xf32>
    %96 = tpu.matmul %95, %82, %cst_58 {dimension_numbers = #tpu.dot_dimension_numbers<[1], [0], [0], [1], [0, 0, 1, 1], [], []>} : vector<24x24xf32>, vector<24x32xf32>, vector<24x32xf32> -> vector<24x32xf32>
    %c14 = arith.constant 14 : index
    %c0_59 = arith.constant 0 : index
    %c0_60 = arith.constant 0 : index
    %97 = vector.load %arg3[%c14, %c0_59, %c0_60] : memref<32x32x32xf32, #tpu.memory_space<vmem>>, vector<1x32x32xf32>
    %98 = vector.shape_cast %97 : vector<1x32x32xf32> to vector<32x32xf32>
    %cst_61 = arith.constant dense<0.000000e+00> : vector<24x32xf32>
    %99 = tpu.matmul %96, %98, %cst_61 {dimension_numbers = #tpu.dot_dimension_numbers<[1], [0], [0], [1], [0, 0, 1, 1], [], []>} : vector<24x32xf32>, vector<32x32xf32>, vector<24x32xf32> -> vector<24x32xf32>
    %100 = arith.addf %70, %99 : vector<24x32xf32>
    %c3 = arith.constant 3 : index
    %c0_62 = arith.constant 0 : index
    %c0_63 = arith.constant 0 : index
    %101 = vector.load %arg3[%c3, %c0_62, %c0_63] : memref<32x32x32xf32, #tpu.memory_space<vmem>>, vector<1x32x32xf32>
    %102 = vector.shape_cast %101 : vector<1x32x32xf32> to vector<32x32xf32>
    %cst_64 = arith.constant dense<0.000000e+00> : vector<24x32xf32>
    %103 = tpu.matmul %5, %102, %cst_64 {dimension_numbers = #tpu.dot_dimension_numbers<[1], [0], [0], [1], [0, 0, 1, 1], [], []>} : vector<24x32xf32>, vector<32x32xf32>, vector<24x32xf32> -> vector<24x32xf32>
    %c3_65 = arith.constant 3 : index
    %c0_66 = arith.constant 0 : index
    %104 = vector.load %arg4[%c3_65, %c0_66] : memref<8x32xf32, #tpu.memory_space<vmem>>, vector<1x32xf32>
    %105 = vector.broadcast %104 : vector<1x32xf32> to vector<24x32xf32>
    %106 = arith.addf %103, %105 : vector<24x32xf32>
    %c7 = arith.constant 7 : index
    %c0_67 = arith.constant 0 : index
    %c0_68 = arith.constant 0 : index
    %107 = vector.load %arg3[%c7, %c0_67, %c0_68] : memref<32x32x32xf32, #tpu.memory_space<vmem>>, vector<1x32x32xf32>
    %108 = vector.shape_cast %107 : vector<1x32x32xf32> to vector<32x32xf32>
    %cst_69 = arith.constant dense<0.000000e+00> : vector<24x32xf32>
    %109 = tpu.matmul %5, %108, %cst_69 {dimension_numbers = #tpu.dot_dimension_numbers<[1], [0], [0], [1], [0, 0, 1, 1], [], []>} : vector<24x32xf32>, vector<32x32xf32>, vector<24x32xf32> -> vector<24x32xf32>
    %c11 = arith.constant 11 : index
    %c0_70 = arith.constant 0 : index
    %c0_71 = arith.constant 0 : index
    %110 = vector.load %arg3[%c11, %c0_70, %c0_71] : memref<32x32x32xf32, #tpu.memory_space<vmem>>, vector<1x32x32xf32>
    %111 = vector.shape_cast %110 : vector<1x32x32xf32> to vector<32x32xf32>
    %cst_72 = arith.constant dense<0.000000e+00> : vector<24x32xf32>
    %112 = tpu.matmul %5, %111, %cst_72 {dimension_numbers = #tpu.dot_dimension_numbers<[1], [0], [0], [1], [0, 0, 1, 1], [], []>} : vector<24x32xf32>, vector<32x32xf32>, vector<24x32xf32> -> vector<24x32xf32>
    "tpu.trace_start"() <{level = 10 : i32, message = "qd,kd->qk"}> : () -> ()
    %cst_73 = arith.constant dense<0.000000e+00> : vector<24x24xf32>
    %113 = tpu.matmul %106, %109, %cst_73 {dimension_numbers = #tpu.dot_dimension_numbers<[1], [1], [0], [0], [0, 0, 1, 0], [], []>} : vector<24x32xf32>, vector<24x32xf32>, vector<24x24xf32> -> vector<24x24xf32>
    "tpu.trace_stop"() : () -> ()
    %114 = vector.broadcast %11 : vector<1x24xf32> to vector<24x24xf32>
    %115 = arith.addf %113, %114 : vector<24x24xf32>
    %cst_74 = arith.constant dense<0xFF800000> : vector<24xf32>
    %116 = vector.multi_reduction <maximumf>, %115, %cst_74 [1] : vector<24x24xf32> to vector<24xf32>
    %117 = vector.shape_cast %116 : vector<24xf32> to vector<24x1xf32>
    %118 = vector.broadcast %117 : vector<24x1xf32> to vector<24x24xf32>
    %119 = arith.subf %115, %118 : vector<24x24xf32>
    %120 = math.exp %119 : vector<24x24xf32>
    %cst_75 = arith.constant dense<0.000000e+00> : vector<24xf32>
    %121 = vector.multi_reduction <add>, %120, %cst_75 [1] : vector<24x24xf32> to vector<24xf32>
    %122 = vector.shape_cast %121 : vector<24xf32> to vector<24x1xf32>
    %123 = tpu.reciprocal %122 : vector<24x1xf32> -> vector<24x1xf32>
    %124 = vector.broadcast %123 : vector<24x1xf32> to vector<24x24xf32>
    %125 = arith.mulf %120, %124 : vector<24x24xf32>
    %cst_76 = arith.constant dense<0.000000e+00> : vector<24x32xf32>
    %126 = tpu.matmul %125, %112, %cst_76 {dimension_numbers = #tpu.dot_dimension_numbers<[1], [0], [0], [1], [0, 0, 1, 1], [], []>} : vector<24x24xf32>, vector<24x32xf32>, vector<24x32xf32> -> vector<24x32xf32>
    %c15 = arith.constant 15 : index
    %c0_77 = arith.constant 0 : index
    %c0_78 = arith.constant 0 : index
    %127 = vector.load %arg3[%c15, %c0_77, %c0_78] : memref<32x32x32xf32, #tpu.memory_space<vmem>>, vector<1x32x32xf32>
    %128 = vector.shape_cast %127 : vector<1x32x32xf32> to vector<32x32xf32>
    %cst_79 = arith.constant dense<0.000000e+00> : vector<24x32xf32>
    %129 = tpu.matmul %126, %128, %cst_79 {dimension_numbers = #tpu.dot_dimension_numbers<[1], [0], [0], [1], [0, 0, 1, 1], [], []>} : vector<24x32xf32>, vector<32x32xf32>, vector<24x32xf32> -> vector<24x32xf32>
    %130 = arith.addf %100, %129 : vector<24x32xf32>
    %131 = arith.addf %5, %130 : vector<24x32xf32>
    %c0_80 = arith.constant 0 : index
    %c0_81 = arith.constant 0 : index
    %132 = vector.load %arg5[%c0_80, %c0_81] : memref<16x32xf32, #tpu.memory_space<vmem>>, vector<1x32xf32>
    %133 = vector.broadcast %132 : vector<1x32xf32> to vector<24x32xf32>
    %134 = arith.addf %131, %133 : vector<24x32xf32>
    %c1_82 = arith.constant 1 : index
    %c0_83 = arith.constant 0 : index
    %135 = vector.load %arg5[%c1_82, %c0_83] : memref<16x32xf32, #tpu.memory_space<vmem>>, vector<1x32xf32>
    %c2_84 = arith.constant 2 : index
    %c0_85 = arith.constant 0 : index
    %136 = vector.load %arg5[%c2_84, %c0_85] : memref<16x32xf32, #tpu.memory_space<vmem>>, vector<1x32xf32>
    %cst_86 = arith.constant dense<0.000000e+00> : vector<24xf32>
    %137 = vector.multi_reduction <add>, %134, %cst_86 [1] : vector<24x32xf32> to vector<24xf32>
    %138 = vector.shape_cast %137 : vector<24xf32> to vector<24x1xf32>
    %cst_87 = arith.constant 3.200000e+01 : f32
    %139 = vector.broadcast %cst_87 : f32 to vector<24x1xf32>
    %140 = arith.divf %138, %139 : vector<24x1xf32>
    %141 = vector.broadcast %140 : vector<24x1xf32> to vector<24x32xf32>
    %142 = arith.subf %134, %141 : vector<24x32xf32>
    %143 = arith.mulf %142, %142 : vector<24x32xf32>
    %cst_88 = arith.constant dense<0.000000e+00> : vector<24xf32>
    %144 = vector.multi_reduction <add>, %143, %cst_88 [1] : vector<24x32xf32> to vector<24xf32>
    %145 = vector.shape_cast %144 : vector<24xf32> to vector<24x1xf32>
    %cst_89 = arith.constant 3.200000e+01 : f32
    %146 = vector.broadcast %cst_89 : f32 to vector<24x1xf32>
    %147 = arith.divf %145, %146 : vector<24x1xf32>
    %148 = vector.broadcast %140 : vector<24x1xf32> to vector<24x32xf32>
    %149 = arith.subf %134, %148 : vector<24x32xf32>
    %cst_90 = arith.constant 9.99999974E-6 : f32
    %150 = vector.broadcast %cst_90 : f32 to vector<24x1xf32>
    %151 = arith.addf %147, %150 : vector<24x1xf32>
    %152 = math.rsqrt %151 : vector<24x1xf32>
    %153 = vector.broadcast %152 : vector<24x1xf32> to vector<24x32xf32>
    %154 = arith.mulf %149, %153 : vector<24x32xf32>
    %155 = vector.broadcast %135 : vector<1x32xf32> to vector<24x32xf32>
    %156 = arith.mulf %154, %155 : vector<24x32xf32>
    %157 = vector.broadcast %136 : vector<1x32xf32> to vector<24x32xf32>
    %158 = arith.addf %156, %157 : vector<24x32xf32>
    %c0_91 = arith.constant 0 : index
    %c0_92 = arith.constant 0 : index
    %c0_93 = arith.constant 0 : index
    %159 = vector.load %arg6[%c0_91, %c0_92, %c0_93] : memref<2x40x64xf32, #tpu.memory_space<vmem>>, vector<1x32x64xf32>
    %160 = vector.shape_cast %159 : vector<1x32x64xf32> to vector<32x64xf32>
    %cst_94 = arith.constant dense<0.000000e+00> : vector<24x64xf32>
    %161 = tpu.matmul %158, %160, %cst_94 {dimension_numbers = #tpu.dot_dimension_numbers<[1], [0], [0], [1], [0, 0, 1, 1], [], []>} : vector<24x32xf32>, vector<32x64xf32>, vector<24x64xf32> -> vector<24x64xf32>
    %c0_95 = arith.constant 0 : index
    %c32 = arith.constant 32 : index
    %c0_96 = arith.constant 0 : index
    %162 = vector.load %arg6[%c0_95, %c32, %c0_96] : memref<2x40x64xf32, #tpu.memory_space<vmem>>, vector<1x1x64xf32>
    %163 = vector.shape_cast %162 : vector<1x1x64xf32> to vector<1x64xf32>
    %164 = vector.broadcast %163 : vector<1x64xf32> to vector<24x64xf32>
    %165 = arith.addf %161, %164 : vector<24x64xf32>
    %cst_97 = arith.constant 0.000000e+00 : f32
    %166 = vector.broadcast %cst_97 : f32 to vector<24x64xf32>
    %167 = arith.maximumf %165, %166 : vector<24x64xf32>
    %c0_98 = arith.constant 0 : index
    %c0_99 = arith.constant 0 : index
    %c0_100 = arith.constant 0 : index
    %168 = vector.load %arg7[%c0_98, %c0_99, %c0_100] : memref<2x72x32xf32, #tpu.memory_space<vmem>>, vector<1x64x32xf32>
    %169 = vector.shape_cast %168 : vector<1x64x32xf32> to vector<64x32xf32>
    %cst_101 = arith.constant dense<0.000000e+00> : vector<24x32xf32>
    %170 = tpu.matmul %167, %169, %cst_101 {dimension_numbers = #tpu.dot_dimension_numbers<[1], [0], [0], [1], [0, 0, 1, 1], [], []>} : vector<24x64xf32>, vector<64x32xf32>, vector<24x32xf32> -> vector<24x32xf32>
    %c0_102 = arith.constant 0 : index
    %c64_103 = arith.constant 64 : index
    %c0_104 = arith.constant 0 : index
    %171 = vector.load %arg7[%c0_102, %c64_103, %c0_104] : memref<2x72x32xf32, #tpu.memory_space<vmem>>, vector<1x1x32xf32>
    %172 = vector.shape_cast %171 : vector<1x1x32xf32> to vector<1x32xf32>
    %173 = vector.broadcast %172 : vector<1x32xf32> to vector<24x32xf32>
    %174 = arith.addf %170, %173 : vector<24x32xf32>
    %175 = arith.addf %158, %174 : vector<24x32xf32>
    %c3_105 = arith.constant 3 : index
    %c0_106 = arith.constant 0 : index
    %176 = vector.load %arg5[%c3_105, %c0_106] : memref<16x32xf32, #tpu.memory_space<vmem>>, vector<1x32xf32>
    %c4_107 = arith.constant 4 : index
    %c0_108 = arith.constant 0 : index
    %177 = vector.load %arg5[%c4_107, %c0_108] : memref<16x32xf32, #tpu.memory_space<vmem>>, vector<1x32xf32>
    %cst_109 = arith.constant dense<0.000000e+00> : vector<24xf32>
    %178 = vector.multi_reduction <add>, %175, %cst_109 [1] : vector<24x32xf32> to vector<24xf32>
    %179 = vector.shape_cast %178 : vector<24xf32> to vector<24x1xf32>
    %cst_110 = arith.constant 3.200000e+01 : f32
    %180 = vector.broadcast %cst_110 : f32 to vector<24x1xf32>
    %181 = arith.divf %179, %180 : vector<24x1xf32>
    %182 = vector.broadcast %181 : vector<24x1xf32> to vector<24x32xf32>
    %183 = arith.subf %175, %182 : vector<24x32xf32>
    %184 = arith.mulf %183, %183 : vector<24x32xf32>
    %cst_111 = arith.constant dense<0.000000e+00> : vector<24xf32>
    %185 = vector.multi_reduction <add>, %184, %cst_111 [1] : vector<24x32xf32> to vector<24xf32>
    %186 = vector.shape_cast %185 : vector<24xf32> to vector<24x1xf32>
    %cst_112 = arith.constant 3.200000e+01 : f32
    %187 = vector.broadcast %cst_112 : f32 to vector<24x1xf32>
    %188 = arith.divf %186, %187 : vector<24x1xf32>
    %189 = vector.broadcast %181 : vector<24x1xf32> to vector<24x32xf32>
    %190 = arith.subf %175, %189 : vector<24x32xf32>
    %cst_113 = arith.constant 9.99999974E-6 : f32
    %191 = vector.broadcast %cst_113 : f32 to vector<24x1xf32>
    %192 = arith.addf %188, %191 : vector<24x1xf32>
    %193 = math.rsqrt %192 : vector<24x1xf32>
    %194 = vector.broadcast %193 : vector<24x1xf32> to vector<24x32xf32>
    %195 = arith.mulf %190, %194 : vector<24x32xf32>
    %196 = vector.broadcast %176 : vector<1x32xf32> to vector<24x32xf32>
    %197 = arith.mulf %195, %196 : vector<24x32xf32>
    %198 = vector.broadcast %177 : vector<1x32xf32> to vector<24x32xf32>
    %199 = arith.addf %197, %198 : vector<24x32xf32>
    %c16 = arith.constant 16 : index
    %c0_114 = arith.constant 0 : index
    %c0_115 = arith.constant 0 : index
    %200 = vector.load %arg3[%c16, %c0_114, %c0_115] : memref<32x32x32xf32, #tpu.memory_space<vmem>>, vector<1x32x32xf32>
    %201 = vector.shape_cast %200 : vector<1x32x32xf32> to vector<32x32xf32>
    %cst_116 = arith.constant dense<0.000000e+00> : vector<24x32xf32>
    %202 = tpu.matmul %199, %201, %cst_116 {dimension_numbers = #tpu.dot_dimension_numbers<[1], [0], [0], [1], [0, 0, 1, 1], [], []>} : vector<24x32xf32>, vector<32x32xf32>, vector<24x32xf32> -> vector<24x32xf32>
    %c4_117 = arith.constant 4 : index
    %c0_118 = arith.constant 0 : index
    %203 = vector.load %arg4[%c4_117, %c0_118] : memref<8x32xf32, #tpu.memory_space<vmem>>, vector<1x32xf32>
    %204 = vector.broadcast %203 : vector<1x32xf32> to vector<24x32xf32>
    %205 = arith.addf %202, %204 : vector<24x32xf32>
    %c20 = arith.constant 20 : index
    %c0_119 = arith.constant 0 : index
    %c0_120 = arith.constant 0 : index
    %206 = vector.load %arg3[%c20, %c0_119, %c0_120] : memref<32x32x32xf32, #tpu.memory_space<vmem>>, vector<1x32x32xf32>
    %207 = vector.shape_cast %206 : vector<1x32x32xf32> to vector<32x32xf32>
    %cst_121 = arith.constant dense<0.000000e+00> : vector<24x32xf32>
    %208 = tpu.matmul %199, %207, %cst_121 {dimension_numbers = #tpu.dot_dimension_numbers<[1], [0], [0], [1], [0, 0, 1, 1], [], []>} : vector<24x32xf32>, vector<32x32xf32>, vector<24x32xf32> -> vector<24x32xf32>
    %c24 = arith.constant 24 : index
    %c0_122 = arith.constant 0 : index
    %c0_123 = arith.constant 0 : index
    %209 = vector.load %arg3[%c24, %c0_122, %c0_123] : memref<32x32x32xf32, #tpu.memory_space<vmem>>, vector<1x32x32xf32>
    %210 = vector.shape_cast %209 : vector<1x32x32xf32> to vector<32x32xf32>
    %cst_124 = arith.constant dense<0.000000e+00> : vector<24x32xf32>
    %211 = tpu.matmul %199, %210, %cst_124 {dimension_numbers = #tpu.dot_dimension_numbers<[1], [0], [0], [1], [0, 0, 1, 1], [], []>} : vector<24x32xf32>, vector<32x32xf32>, vector<24x32xf32> -> vector<24x32xf32>
    "tpu.trace_start"() <{level = 10 : i32, message = "qd,kd->qk"}> : () -> ()
    %cst_125 = arith.constant dense<0.000000e+00> : vector<24x24xf32>
    %212 = tpu.matmul %205, %208, %cst_125 {dimension_numbers = #tpu.dot_dimension_numbers<[1], [1], [0], [0], [0, 0, 1, 0], [], []>} : vector<24x32xf32>, vector<24x32xf32>, vector<24x24xf32> -> vector<24x24xf32>
    "tpu.trace_stop"() : () -> ()
    %213 = vector.broadcast %11 : vector<1x24xf32> to vector<24x24xf32>
    %214 = arith.addf %212, %213 : vector<24x24xf32>
    %cst_126 = arith.constant dense<0xFF800000> : vector<24xf32>
    %215 = vector.multi_reduction <maximumf>, %214, %cst_126 [1] : vector<24x24xf32> to vector<24xf32>
    %216 = vector.shape_cast %215 : vector<24xf32> to vector<24x1xf32>
    %217 = vector.broadcast %216 : vector<24x1xf32> to vector<24x24xf32>
    %218 = arith.subf %214, %217 : vector<24x24xf32>
    %219 = math.exp %218 : vector<24x24xf32>
    %cst_127 = arith.constant dense<0.000000e+00> : vector<24xf32>
    %220 = vector.multi_reduction <add>, %219, %cst_127 [1] : vector<24x24xf32> to vector<24xf32>
    %221 = vector.shape_cast %220 : vector<24xf32> to vector<24x1xf32>
    %222 = tpu.reciprocal %221 : vector<24x1xf32> -> vector<24x1xf32>
    %223 = vector.broadcast %222 : vector<24x1xf32> to vector<24x24xf32>
    %224 = arith.mulf %219, %223 : vector<24x24xf32>
    %cst_128 = arith.constant dense<0.000000e+00> : vector<24x32xf32>
    %225 = tpu.matmul %224, %211, %cst_128 {dimension_numbers = #tpu.dot_dimension_numbers<[1], [0], [0], [1], [0, 0, 1, 1], [], []>} : vector<24x24xf32>, vector<24x32xf32>, vector<24x32xf32> -> vector<24x32xf32>
    %c28 = arith.constant 28 : index
    %c0_129 = arith.constant 0 : index
    %c0_130 = arith.constant 0 : index
    %226 = vector.load %arg3[%c28, %c0_129, %c0_130] : memref<32x32x32xf32, #tpu.memory_space<vmem>>, vector<1x32x32xf32>
    %227 = vector.shape_cast %226 : vector<1x32x32xf32> to vector<32x32xf32>
    %cst_131 = arith.constant dense<0.000000e+00> : vector<24x32xf32>
    %228 = tpu.matmul %225, %227, %cst_131 {dimension_numbers = #tpu.dot_dimension_numbers<[1], [0], [0], [1], [0, 0, 1, 1], [], []>} : vector<24x32xf32>, vector<32x32xf32>, vector<24x32xf32> -> vector<24x32xf32>
    %c17 = arith.constant 17 : index
    %c0_132 = arith.constant 0 : index
    %c0_133 = arith.constant 0 : index
    %229 = vector.load %arg3[%c17, %c0_132, %c0_133] : memref<32x32x32xf32, #tpu.memory_space<vmem>>, vector<1x32x32xf32>
    %230 = vector.shape_cast %229 : vector<1x32x32xf32> to vector<32x32xf32>
    %cst_134 = arith.constant dense<0.000000e+00> : vector<24x32xf32>
    %231 = tpu.matmul %199, %230, %cst_134 {dimension_numbers = #tpu.dot_dimension_numbers<[1], [0], [0], [1], [0, 0, 1, 1], [], []>} : vector<24x32xf32>, vector<32x32xf32>, vector<24x32xf32> -> vector<24x32xf32>
    %c5_135 = arith.constant 5 : index
    %c0_136 = arith.constant 0 : index
    %232 = vector.load %arg4[%c5_135, %c0_136] : memref<8x32xf32, #tpu.memory_space<vmem>>, vector<1x32xf32>
    %233 = vector.broadcast %232 : vector<1x32xf32> to vector<24x32xf32>
    %234 = arith.addf %231, %233 : vector<24x32xf32>
    %c21 = arith.constant 21 : index
    %c0_137 = arith.constant 0 : index
    %c0_138 = arith.constant 0 : index
    %235 = vector.load %arg3[%c21, %c0_137, %c0_138] : memref<32x32x32xf32, #tpu.memory_space<vmem>>, vector<1x32x32xf32>
    %236 = vector.shape_cast %235 : vector<1x32x32xf32> to vector<32x32xf32>
    %cst_139 = arith.constant dense<0.000000e+00> : vector<24x32xf32>
    %237 = tpu.matmul %199, %236, %cst_139 {dimension_numbers = #tpu.dot_dimension_numbers<[1], [0], [0], [1], [0, 0, 1, 1], [], []>} : vector<24x32xf32>, vector<32x32xf32>, vector<24x32xf32> -> vector<24x32xf32>
    %c25 = arith.constant 25 : index
    %c0_140 = arith.constant 0 : index
    %c0_141 = arith.constant 0 : index
    %238 = vector.load %arg3[%c25, %c0_140, %c0_141] : memref<32x32x32xf32, #tpu.memory_space<vmem>>, vector<1x32x32xf32>
    %239 = vector.shape_cast %238 : vector<1x32x32xf32> to vector<32x32xf32>
    %cst_142 = arith.constant dense<0.000000e+00> : vector<24x32xf32>
    %240 = tpu.matmul %199, %239, %cst_142 {dimension_numbers = #tpu.dot_dimension_numbers<[1], [0], [0], [1], [0, 0, 1, 1], [], []>} : vector<24x32xf32>, vector<32x32xf32>, vector<24x32xf32> -> vector<24x32xf32>
    "tpu.trace_start"() <{level = 10 : i32, message = "qd,kd->qk"}> : () -> ()
    %cst_143 = arith.constant dense<0.000000e+00> : vector<24x24xf32>
    %241 = tpu.matmul %234, %237, %cst_143 {dimension_numbers = #tpu.dot_dimension_numbers<[1], [1], [0], [0], [0, 0, 1, 0], [], []>} : vector<24x32xf32>, vector<24x32xf32>, vector<24x24xf32> -> vector<24x24xf32>
    "tpu.trace_stop"() : () -> ()
    %242 = vector.broadcast %11 : vector<1x24xf32> to vector<24x24xf32>
    %243 = arith.addf %241, %242 : vector<24x24xf32>
    %cst_144 = arith.constant dense<0xFF800000> : vector<24xf32>
    %244 = vector.multi_reduction <maximumf>, %243, %cst_144 [1] : vector<24x24xf32> to vector<24xf32>
    %245 = vector.shape_cast %244 : vector<24xf32> to vector<24x1xf32>
    %246 = vector.broadcast %245 : vector<24x1xf32> to vector<24x24xf32>
    %247 = arith.subf %243, %246 : vector<24x24xf32>
    %248 = math.exp %247 : vector<24x24xf32>
    %cst_145 = arith.constant dense<0.000000e+00> : vector<24xf32>
    %249 = vector.multi_reduction <add>, %248, %cst_145 [1] : vector<24x24xf32> to vector<24xf32>
    %250 = vector.shape_cast %249 : vector<24xf32> to vector<24x1xf32>
    %251 = tpu.reciprocal %250 : vector<24x1xf32> -> vector<24x1xf32>
    %252 = vector.broadcast %251 : vector<24x1xf32> to vector<24x24xf32>
    %253 = arith.mulf %248, %252 : vector<24x24xf32>
    %cst_146 = arith.constant dense<0.000000e+00> : vector<24x32xf32>
    %254 = tpu.matmul %253, %240, %cst_146 {dimension_numbers = #tpu.dot_dimension_numbers<[1], [0], [0], [1], [0, 0, 1, 1], [], []>} : vector<24x24xf32>, vector<24x32xf32>, vector<24x32xf32> -> vector<24x32xf32>
    %c29 = arith.constant 29 : index
    %c0_147 = arith.constant 0 : index
    %c0_148 = arith.constant 0 : index
    %255 = vector.load %arg3[%c29, %c0_147, %c0_148] : memref<32x32x32xf32, #tpu.memory_space<vmem>>, vector<1x32x32xf32>
    %256 = vector.shape_cast %255 : vector<1x32x32xf32> to vector<32x32xf32>
    %cst_149 = arith.constant dense<0.000000e+00> : vector<24x32xf32>
    %257 = tpu.matmul %254, %256, %cst_149 {dimension_numbers = #tpu.dot_dimension_numbers<[1], [0], [0], [1], [0, 0, 1, 1], [], []>} : vector<24x32xf32>, vector<32x32xf32>, vector<24x32xf32> -> vector<24x32xf32>
    %258 = arith.addf %228, %257 : vector<24x32xf32>
    %c18 = arith.constant 18 : index
    %c0_150 = arith.constant 0 : index
    %c0_151 = arith.constant 0 : index
    %259 = vector.load %arg3[%c18, %c0_150, %c0_151] : memref<32x32x32xf32, #tpu.memory_space<vmem>>, vector<1x32x32xf32>
    %260 = vector.shape_cast %259 : vector<1x32x32xf32> to vector<32x32xf32>
    %cst_152 = arith.constant dense<0.000000e+00> : vector<24x32xf32>
    %261 = tpu.matmul %199, %260, %cst_152 {dimension_numbers = #tpu.dot_dimension_numbers<[1], [0], [0], [1], [0, 0, 1, 1], [], []>} : vector<24x32xf32>, vector<32x32xf32>, vector<24x32xf32> -> vector<24x32xf32>
    %c6_153 = arith.constant 6 : index
    %c0_154 = arith.constant 0 : index
    %262 = vector.load %arg4[%c6_153, %c0_154] : memref<8x32xf32, #tpu.memory_space<vmem>>, vector<1x32xf32>
    %263 = vector.broadcast %262 : vector<1x32xf32> to vector<24x32xf32>
    %264 = arith.addf %261, %263 : vector<24x32xf32>
    %c22 = arith.constant 22 : index
    %c0_155 = arith.constant 0 : index
    %c0_156 = arith.constant 0 : index
    %265 = vector.load %arg3[%c22, %c0_155, %c0_156] : memref<32x32x32xf32, #tpu.memory_space<vmem>>, vector<1x32x32xf32>
    %266 = vector.shape_cast %265 : vector<1x32x32xf32> to vector<32x32xf32>
    %cst_157 = arith.constant dense<0.000000e+00> : vector<24x32xf32>
    %267 = tpu.matmul %199, %266, %cst_157 {dimension_numbers = #tpu.dot_dimension_numbers<[1], [0], [0], [1], [0, 0, 1, 1], [], []>} : vector<24x32xf32>, vector<32x32xf32>, vector<24x32xf32> -> vector<24x32xf32>
    %c26 = arith.constant 26 : index
    %c0_158 = arith.constant 0 : index
    %c0_159 = arith.constant 0 : index
    %268 = vector.load %arg3[%c26, %c0_158, %c0_159] : memref<32x32x32xf32, #tpu.memory_space<vmem>>, vector<1x32x32xf32>
    %269 = vector.shape_cast %268 : vector<1x32x32xf32> to vector<32x32xf32>
    %cst_160 = arith.constant dense<0.000000e+00> : vector<24x32xf32>
    %270 = tpu.matmul %199, %269, %cst_160 {dimension_numbers = #tpu.dot_dimension_numbers<[1], [0], [0], [1], [0, 0, 1, 1], [], []>} : vector<24x32xf32>, vector<32x32xf32>, vector<24x32xf32> -> vector<24x32xf32>
    "tpu.trace_start"() <{level = 10 : i32, message = "qd,kd->qk"}> : () -> ()
    %cst_161 = arith.constant dense<0.000000e+00> : vector<24x24xf32>
    %271 = tpu.matmul %264, %267, %cst_161 {dimension_numbers = #tpu.dot_dimension_numbers<[1], [1], [0], [0], [0, 0, 1, 0], [], []>} : vector<24x32xf32>, vector<24x32xf32>, vector<24x24xf32> -> vector<24x24xf32>
    "tpu.trace_stop"() : () -> ()
    %272 = vector.broadcast %11 : vector<1x24xf32> to vector<24x24xf32>
    %273 = arith.addf %271, %272 : vector<24x24xf32>
    %cst_162 = arith.constant dense<0xFF800000> : vector<24xf32>
    %274 = vector.multi_reduction <maximumf>, %273, %cst_162 [1] : vector<24x24xf32> to vector<24xf32>
    %275 = vector.shape_cast %274 : vector<24xf32> to vector<24x1xf32>
    %276 = vector.broadcast %275 : vector<24x1xf32> to vector<24x24xf32>
    %277 = arith.subf %273, %276 : vector<24x24xf32>
    %278 = math.exp %277 : vector<24x24xf32>
    %cst_163 = arith.constant dense<0.000000e+00> : vector<24xf32>
    %279 = vector.multi_reduction <add>, %278, %cst_163 [1] : vector<24x24xf32> to vector<24xf32>
    %280 = vector.shape_cast %279 : vector<24xf32> to vector<24x1xf32>
    %281 = tpu.reciprocal %280 : vector<24x1xf32> -> vector<24x1xf32>
    %282 = vector.broadcast %281 : vector<24x1xf32> to vector<24x24xf32>
    %283 = arith.mulf %278, %282 : vector<24x24xf32>
    %cst_164 = arith.constant dense<0.000000e+00> : vector<24x32xf32>
    %284 = tpu.matmul %283, %270, %cst_164 {dimension_numbers = #tpu.dot_dimension_numbers<[1], [0], [0], [1], [0, 0, 1, 1], [], []>} : vector<24x24xf32>, vector<24x32xf32>, vector<24x32xf32> -> vector<24x32xf32>
    %c30 = arith.constant 30 : index
    %c0_165 = arith.constant 0 : index
    %c0_166 = arith.constant 0 : index
    %285 = vector.load %arg3[%c30, %c0_165, %c0_166] : memref<32x32x32xf32, #tpu.memory_space<vmem>>, vector<1x32x32xf32>
    %286 = vector.shape_cast %285 : vector<1x32x32xf32> to vector<32x32xf32>
    %cst_167 = arith.constant dense<0.000000e+00> : vector<24x32xf32>
    %287 = tpu.matmul %284, %286, %cst_167 {dimension_numbers = #tpu.dot_dimension_numbers<[1], [0], [0], [1], [0, 0, 1, 1], [], []>} : vector<24x32xf32>, vector<32x32xf32>, vector<24x32xf32> -> vector<24x32xf32>
    %288 = arith.addf %258, %287 : vector<24x32xf32>
    %c19 = arith.constant 19 : index
    %c0_168 = arith.constant 0 : index
    %c0_169 = arith.constant 0 : index
    %289 = vector.load %arg3[%c19, %c0_168, %c0_169] : memref<32x32x32xf32, #tpu.memory_space<vmem>>, vector<1x32x32xf32>
    %290 = vector.shape_cast %289 : vector<1x32x32xf32> to vector<32x32xf32>
    %cst_170 = arith.constant dense<0.000000e+00> : vector<24x32xf32>
    %291 = tpu.matmul %199, %290, %cst_170 {dimension_numbers = #tpu.dot_dimension_numbers<[1], [0], [0], [1], [0, 0, 1, 1], [], []>} : vector<24x32xf32>, vector<32x32xf32>, vector<24x32xf32> -> vector<24x32xf32>
    %c7_171 = arith.constant 7 : index
    %c0_172 = arith.constant 0 : index
    %292 = vector.load %arg4[%c7_171, %c0_172] : memref<8x32xf32, #tpu.memory_space<vmem>>, vector<1x32xf32>
    %293 = vector.broadcast %292 : vector<1x32xf32> to vector<24x32xf32>
    %294 = arith.addf %291, %293 : vector<24x32xf32>
    %c23 = arith.constant 23 : index
    %c0_173 = arith.constant 0 : index
    %c0_174 = arith.constant 0 : index
    %295 = vector.load %arg3[%c23, %c0_173, %c0_174] : memref<32x32x32xf32, #tpu.memory_space<vmem>>, vector<1x32x32xf32>
    %296 = vector.shape_cast %295 : vector<1x32x32xf32> to vector<32x32xf32>
    %cst_175 = arith.constant dense<0.000000e+00> : vector<24x32xf32>
    %297 = tpu.matmul %199, %296, %cst_175 {dimension_numbers = #tpu.dot_dimension_numbers<[1], [0], [0], [1], [0, 0, 1, 1], [], []>} : vector<24x32xf32>, vector<32x32xf32>, vector<24x32xf32> -> vector<24x32xf32>
    %c27 = arith.constant 27 : index
    %c0_176 = arith.constant 0 : index
    %c0_177 = arith.constant 0 : index
    %298 = vector.load %arg3[%c27, %c0_176, %c0_177] : memref<32x32x32xf32, #tpu.memory_space<vmem>>, vector<1x32x32xf32>
    %299 = vector.shape_cast %298 : vector<1x32x32xf32> to vector<32x32xf32>
    %cst_178 = arith.constant dense<0.000000e+00> : vector<24x32xf32>
    %300 = tpu.matmul %199, %299, %cst_178 {dimension_numbers = #tpu.dot_dimension_numbers<[1], [0], [0], [1], [0, 0, 1, 1], [], []>} : vector<24x32xf32>, vector<32x32xf32>, vector<24x32xf32> -> vector<24x32xf32>
    "tpu.trace_start"() <{level = 10 : i32, message = "qd,kd->qk"}> : () -> ()
    %cst_179 = arith.constant dense<0.000000e+00> : vector<24x24xf32>
    %301 = tpu.matmul %294, %297, %cst_179 {dimension_numbers = #tpu.dot_dimension_numbers<[1], [1], [0], [0], [0, 0, 1, 0], [], []>} : vector<24x32xf32>, vector<24x32xf32>, vector<24x24xf32> -> vector<24x24xf32>
    "tpu.trace_stop"() : () -> ()
    %302 = vector.broadcast %11 : vector<1x24xf32> to vector<24x24xf32>
    %303 = arith.addf %301, %302 : vector<24x24xf32>
    %cst_180 = arith.constant dense<0xFF800000> : vector<24xf32>
    %304 = vector.multi_reduction <maximumf>, %303, %cst_180 [1] : vector<24x24xf32> to vector<24xf32>
    %305 = vector.shape_cast %304 : vector<24xf32> to vector<24x1xf32>
    %306 = vector.broadcast %305 : vector<24x1xf32> to vector<24x24xf32>
    %307 = arith.subf %303, %306 : vector<24x24xf32>
    %308 = math.exp %307 : vector<24x24xf32>
    %cst_181 = arith.constant dense<0.000000e+00> : vector<24xf32>
    %309 = vector.multi_reduction <add>, %308, %cst_181 [1] : vector<24x24xf32> to vector<24xf32>
    %310 = vector.shape_cast %309 : vector<24xf32> to vector<24x1xf32>
    %311 = tpu.reciprocal %310 : vector<24x1xf32> -> vector<24x1xf32>
    %312 = vector.broadcast %311 : vector<24x1xf32> to vector<24x24xf32>
    %313 = arith.mulf %308, %312 : vector<24x24xf32>
    %cst_182 = arith.constant dense<0.000000e+00> : vector<24x32xf32>
    %314 = tpu.matmul %313, %300, %cst_182 {dimension_numbers = #tpu.dot_dimension_numbers<[1], [0], [0], [1], [0, 0, 1, 1], [], []>} : vector<24x24xf32>, vector<24x32xf32>, vector<24x32xf32> -> vector<24x32xf32>
    %c31 = arith.constant 31 : index
    %c0_183 = arith.constant 0 : index
    %c0_184 = arith.constant 0 : index
    %315 = vector.load %arg3[%c31, %c0_183, %c0_184] : memref<32x32x32xf32, #tpu.memory_space<vmem>>, vector<1x32x32xf32>
    %316 = vector.shape_cast %315 : vector<1x32x32xf32> to vector<32x32xf32>
    %cst_185 = arith.constant dense<0.000000e+00> : vector<24x32xf32>
    %317 = tpu.matmul %314, %316, %cst_185 {dimension_numbers = #tpu.dot_dimension_numbers<[1], [0], [0], [1], [0, 0, 1, 1], [], []>} : vector<24x32xf32>, vector<32x32xf32>, vector<24x32xf32> -> vector<24x32xf32>
    %318 = arith.addf %288, %317 : vector<24x32xf32>
    %319 = arith.addf %199, %318 : vector<24x32xf32>
    %c8_186 = arith.constant 8 : index
    %c0_187 = arith.constant 0 : index
    %320 = vector.load %arg5[%c8_186, %c0_187] : memref<16x32xf32, #tpu.memory_space<vmem>>, vector<1x32xf32>
    %321 = vector.broadcast %320 : vector<1x32xf32> to vector<24x32xf32>
    %322 = arith.addf %319, %321 : vector<24x32xf32>
    %c9_188 = arith.constant 9 : index
    %c0_189 = arith.constant 0 : index
    %323 = vector.load %arg5[%c9_188, %c0_189] : memref<16x32xf32, #tpu.memory_space<vmem>>, vector<1x32xf32>
    %c10_190 = arith.constant 10 : index
    %c0_191 = arith.constant 0 : index
    %324 = vector.load %arg5[%c10_190, %c0_191] : memref<16x32xf32, #tpu.memory_space<vmem>>, vector<1x32xf32>
    %cst_192 = arith.constant dense<0.000000e+00> : vector<24xf32>
    %325 = vector.multi_reduction <add>, %322, %cst_192 [1] : vector<24x32xf32> to vector<24xf32>
    %326 = vector.shape_cast %325 : vector<24xf32> to vector<24x1xf32>
    %cst_193 = arith.constant 3.200000e+01 : f32
    %327 = vector.broadcast %cst_193 : f32 to vector<24x1xf32>
    %328 = arith.divf %326, %327 : vector<24x1xf32>
    %329 = vector.broadcast %328 : vector<24x1xf32> to vector<24x32xf32>
    %330 = arith.subf %322, %329 : vector<24x32xf32>
    %331 = arith.mulf %330, %330 : vector<24x32xf32>
    %cst_194 = arith.constant dense<0.000000e+00> : vector<24xf32>
    %332 = vector.multi_reduction <add>, %331, %cst_194 [1] : vector<24x32xf32> to vector<24xf32>
    %333 = vector.shape_cast %332 : vector<24xf32> to vector<24x1xf32>
    %cst_195 = arith.constant 3.200000e+01 : f32
    %334 = vector.broadcast %cst_195 : f32 to vector<24x1xf32>
    %335 = arith.divf %333, %334 : vector<24x1xf32>
    %336 = vector.broadcast %328 : vector<24x1xf32> to vector<24x32xf32>
    %337 = arith.subf %322, %336 : vector<24x32xf32>
    %cst_196 = arith.constant 9.99999974E-6 : f32
    %338 = vector.broadcast %cst_196 : f32 to vector<24x1xf32>
    %339 = arith.addf %335, %338 : vector<24x1xf32>
    %340 = math.rsqrt %339 : vector<24x1xf32>
    %341 = vector.broadcast %340 : vector<24x1xf32> to vector<24x32xf32>
    %342 = arith.mulf %337, %341 : vector<24x32xf32>
    %343 = vector.broadcast %323 : vector<1x32xf32> to vector<24x32xf32>
    %344 = arith.mulf %342, %343 : vector<24x32xf32>
    %345 = vector.broadcast %324 : vector<1x32xf32> to vector<24x32xf32>
    %346 = arith.addf %344, %345 : vector<24x32xf32>
    %c1_197 = arith.constant 1 : index
    %c0_198 = arith.constant 0 : index
    %c0_199 = arith.constant 0 : index
    %347 = vector.load %arg6[%c1_197, %c0_198, %c0_199] : memref<2x40x64xf32, #tpu.memory_space<vmem>>, vector<1x32x64xf32>
    %348 = vector.shape_cast %347 : vector<1x32x64xf32> to vector<32x64xf32>
    %cst_200 = arith.constant dense<0.000000e+00> : vector<24x64xf32>
    %349 = tpu.matmul %346, %348, %cst_200 {dimension_numbers = #tpu.dot_dimension_numbers<[1], [0], [0], [1], [0, 0, 1, 1], [], []>} : vector<24x32xf32>, vector<32x64xf32>, vector<24x64xf32> -> vector<24x64xf32>
    %c1_201 = arith.constant 1 : index
    %c32_202 = arith.constant 32 : index
    %c0_203 = arith.constant 0 : index
    %350 = vector.load %arg6[%c1_201, %c32_202, %c0_203] : memref<2x40x64xf32, #tpu.memory_space<vmem>>, vector<1x1x64xf32>
    %351 = vector.shape_cast %350 : vector<1x1x64xf32> to vector<1x64xf32>
    %352 = vector.broadcast %351 : vector<1x64xf32> to vector<24x64xf32>
    %353 = arith.addf %349, %352 : vector<24x64xf32>
    %cst_204 = arith.constant 0.000000e+00 : f32
    %354 = vector.broadcast %cst_204 : f32 to vector<24x64xf32>
    %355 = arith.maximumf %353, %354 : vector<24x64xf32>
    %c1_205 = arith.constant 1 : index
    %c0_206 = arith.constant 0 : index
    %c0_207 = arith.constant 0 : index
    %356 = vector.load %arg7[%c1_205, %c0_206, %c0_207] : memref<2x72x32xf32, #tpu.memory_space<vmem>>, vector<1x64x32xf32>
    %357 = vector.shape_cast %356 : vector<1x64x32xf32> to vector<64x32xf32>
    %cst_208 = arith.constant dense<0.000000e+00> : vector<24x32xf32>
    %358 = tpu.matmul %355, %357, %cst_208 {dimension_numbers = #tpu.dot_dimension_numbers<[1], [0], [0], [1], [0, 0, 1, 1], [], []>} : vector<24x64xf32>, vector<64x32xf32>, vector<24x32xf32> -> vector<24x32xf32>
    %c1_209 = arith.constant 1 : index
    %c64_210 = arith.constant 64 : index
    %c0_211 = arith.constant 0 : index
    %359 = vector.load %arg7[%c1_209, %c64_210, %c0_211] : memref<2x72x32xf32, #tpu.memory_space<vmem>>, vector<1x1x32xf32>
    %360 = vector.shape_cast %359 : vector<1x1x32xf32> to vector<1x32xf32>
    %361 = vector.broadcast %360 : vector<1x32xf32> to vector<24x32xf32>
    %362 = arith.addf %358, %361 : vector<24x32xf32>
    %363 = arith.addf %346, %362 : vector<24x32xf32>
    %c11_212 = arith.constant 11 : index
    %c0_213 = arith.constant 0 : index
    %364 = vector.load %arg5[%c11_212, %c0_213] : memref<16x32xf32, #tpu.memory_space<vmem>>, vector<1x32xf32>
    %c12_214 = arith.constant 12 : index
    %c0_215 = arith.constant 0 : index
    %365 = vector.load %arg5[%c12_214, %c0_215] : memref<16x32xf32, #tpu.memory_space<vmem>>, vector<1x32xf32>
    %cst_216 = arith.constant dense<0.000000e+00> : vector<24xf32>
    %366 = vector.multi_reduction <add>, %363, %cst_216 [1] : vector<24x32xf32> to vector<24xf32>
    %367 = vector.shape_cast %366 : vector<24xf32> to vector<24x1xf32>
    %cst_217 = arith.constant 3.200000e+01 : f32
    %368 = vector.broadcast %cst_217 : f32 to vector<24x1xf32>
    %369 = arith.divf %367, %368 : vector<24x1xf32>
    %370 = vector.broadcast %369 : vector<24x1xf32> to vector<24x32xf32>
    %371 = arith.subf %363, %370 : vector<24x32xf32>
    %372 = arith.mulf %371, %371 : vector<24x32xf32>
    %cst_218 = arith.constant dense<0.000000e+00> : vector<24xf32>
    %373 = vector.multi_reduction <add>, %372, %cst_218 [1] : vector<24x32xf32> to vector<24xf32>
    %374 = vector.shape_cast %373 : vector<24xf32> to vector<24x1xf32>
    %cst_219 = arith.constant 3.200000e+01 : f32
    %375 = vector.broadcast %cst_219 : f32 to vector<24x1xf32>
    %376 = arith.divf %374, %375 : vector<24x1xf32>
    %377 = vector.broadcast %369 : vector<24x1xf32> to vector<24x32xf32>
    %378 = arith.subf %363, %377 : vector<24x32xf32>
    %cst_220 = arith.constant 9.99999974E-6 : f32
    %379 = vector.broadcast %cst_220 : f32 to vector<24x1xf32>
    %380 = arith.addf %376, %379 : vector<24x1xf32>
    %381 = math.rsqrt %380 : vector<24x1xf32>
    %382 = vector.broadcast %381 : vector<24x1xf32> to vector<24x32xf32>
    %383 = arith.mulf %378, %382 : vector<24x32xf32>
    %384 = vector.broadcast %364 : vector<1x32xf32> to vector<24x32xf32>
    %385 = arith.mulf %383, %384 : vector<24x32xf32>
    %386 = vector.broadcast %365 : vector<1x32xf32> to vector<24x32xf32>
    %387 = arith.addf %385, %386 : vector<24x32xf32>
    %388 = vector.extract_strided_slice %387 {offsets = [0, 0], sizes = [1, 32], strides = [1, 1]} : vector<24x32xf32> to vector<1x32xf32>
    %c5_221 = arith.constant 5 : index
    %c0_222 = arith.constant 0 : index
    %389 = vector.load %arg5[%c5_221, %c0_222] : memref<16x32xf32, #tpu.memory_space<vmem>>, vector<1x32xf32>
    %c6_223 = arith.constant 6 : index
    %c0_224 = arith.constant 0 : index
    %390 = vector.load %arg5[%c6_223, %c0_224] : memref<16x32xf32, #tpu.memory_space<vmem>>, vector<1x32xf32>
    %cst_225 = arith.constant dense<0.000000e+00> : vector<1xf32>
    %391 = vector.multi_reduction <add>, %388, %cst_225 [1] : vector<1x32xf32> to vector<1xf32>
    %392 = vector.shape_cast %391 : vector<1xf32> to vector<1x1xf32>
    %cst_226 = arith.constant 3.200000e+01 : f32
    %393 = vector.broadcast %cst_226 : f32 to vector<1x1xf32>
    %394 = arith.divf %392, %393 : vector<1x1xf32>
    %395 = vector.broadcast %394 : vector<1x1xf32> to vector<1x32xf32>
    %396 = arith.subf %388, %395 : vector<1x32xf32>
    %397 = arith.mulf %396, %396 : vector<1x32xf32>
    %cst_227 = arith.constant dense<0.000000e+00> : vector<1xf32>
    %398 = vector.multi_reduction <add>, %397, %cst_227 [1] : vector<1x32xf32> to vector<1xf32>
    %399 = vector.shape_cast %398 : vector<1xf32> to vector<1x1xf32>
    %cst_228 = arith.constant 3.200000e+01 : f32
    %400 = vector.broadcast %cst_228 : f32 to vector<1x1xf32>
    %401 = arith.divf %399, %400 : vector<1x1xf32>
    %402 = vector.broadcast %394 : vector<1x1xf32> to vector<1x32xf32>
    %403 = arith.subf %388, %402 : vector<1x32xf32>
    %cst_229 = arith.constant 9.99999974E-6 : f32
    %404 = vector.broadcast %cst_229 : f32 to vector<1x1xf32>
    %405 = arith.addf %401, %404 : vector<1x1xf32>
    %406 = math.rsqrt %405 : vector<1x1xf32>
    %407 = vector.broadcast %406 : vector<1x1xf32> to vector<1x32xf32>
    %408 = arith.mulf %403, %407 : vector<1x32xf32>
    %409 = arith.mulf %408, %389 : vector<1x32xf32>
    %410 = arith.addf %409, %390 : vector<1x32xf32>
    %c0_230 = arith.constant 0 : index
    %c0_231 = arith.constant 0 : index
    %411 = vector.load %arg8[%c0_230, %c0_231] : memref<40x128xf32, #tpu.memory_space<vmem>>, vector<32x128xf32>
    %cst_232 = arith.constant dense<0.000000e+00> : vector<1x128xf32>
    %412 = tpu.matmul %410, %411, %cst_232 {dimension_numbers = #tpu.dot_dimension_numbers<[1], [0], [0], [1], [0, 0, 1, 1], [], []>} : vector<1x32xf32>, vector<32x128xf32>, vector<1x128xf32> -> vector<1x128xf32>
    %c32_233 = arith.constant 32 : index
    %c0_234 = arith.constant 0 : index
    %413 = vector.load %arg8[%c32_233, %c0_234] : memref<40x128xf32, #tpu.memory_space<vmem>>, vector<1x128xf32>
    %414 = arith.addf %412, %413 : vector<1x128xf32>
    %c0_235 = arith.constant 0 : index
    %c0_236 = arith.constant 0 : index
    %c0_237 = arith.constant 0 : index
    %415 = vector.load %arg9[%c0_235, %c0_236, %c0_237] : memref<1x1x128xf32, #tpu.memory_space<vmem>>, vector<1x1x128xf32>
    %416 = vector.shape_cast %415 : vector<1x1x128xf32> to vector<1x128xf32>
    %417 = vector.shape_cast %414 : vector<1x128xf32> to vector<1x1x128xf32>
    tpu.vector_store %arg9[%c0_235, %c0_236, %c0_237], %417 {strides = array<i32>} : memref<1x1x128xf32, #tpu.memory_space<vmem>>, vector<1x1x128xf32>,
    return
  }
  func.func @transform_0(%arg0: i32) -> (i32, i32, i32) {
    %c0_i32 = arith.constant 0 : i32
    %c0_i32_0 = arith.constant 0 : i32
    %c0_i32_1 = arith.constant 0 : i32
    return %arg0, %c0_i32, %c0_i32_0 : i32, i32, i32
  }
  func.func @transform_1(%arg0: i32) -> (i32, i32) {
    %c0_i32 = arith.constant 0 : i32
    %c0_i32_0 = arith.constant 0 : i32
    %c0_i32_1 = arith.constant 0 : i32
    return %c0_i32, %c0_i32_0 : i32, i32
  }
  func.func @transform_2(%arg0: i32) -> (i32, i32, i32) {
    %c0_i32 = arith.constant 0 : i32
    %c0_i32_0 = arith.constant 0 : i32
    %c0_i32_1 = arith.constant 0 : i32
    %c0_i32_2 = arith.constant 0 : i32
    return %c0_i32, %c0_i32_0, %c0_i32_1 : i32, i32, i32
  }
  func.func @transform_3(%arg0: i32) -> (i32, i32) {
    %c0_i32 = arith.constant 0 : i32
    %c0_i32_0 = arith.constant 0 : i32
    %c0_i32_1 = arith.constant 0 : i32
    return %c0_i32, %c0_i32_0 : i32, i32
  }
  func.func @transform_4(%arg0: i32) -> (i32, i32) {
    %c0_i32 = arith.constant 0 : i32
    %c0_i32_0 = arith.constant 0 : i32
    %c0_i32_1 = arith.constant 0 : i32
    return %c0_i32, %c0_i32_0 : i32, i32
  }
  func.func @transform_5(%arg0: i32) -> (i32, i32, i32) {
    %c0_i32 = arith.constant 0 : i32
    %c0_i32_0 = arith.constant 0 : i32
    %c0_i32_1 = arith.constant 0 : i32
    %c0_i32_2 = arith.constant 0 : i32
    return %c0_i32, %c0_i32_0, %c0_i32_1 : i32, i32, i32
  }
  func.func @transform_6(%arg0: i32) -> (i32, i32, i32) {
    %c0_i32 = arith.constant 0 : i32
    %c0_i32_0 = arith.constant 0 : i32
    %c0_i32_1 = arith.constant 0 : i32
    %c0_i32_2 = arith.constant 0 : i32
    return %c0_i32, %c0_i32_0, %c0_i32_1 : i32, i32, i32
  }
  func.func @transform_7(%arg0: i32) -> (i32, i32) {
    %c0_i32 = arith.constant 0 : i32
    %c0_i32_0 = arith.constant 0 : i32
    %c0_i32_1 = arith.constant 0 : i32
    return %c0_i32, %c0_i32_0 : i32, i32
  }
  func.func @transform_8(%arg0: i32) -> (i32, i32, i32) {
    %c0_i32 = arith.constant 0 : i32
    %c0_i32_0 = arith.constant 0 : i32
    %c0_i32_1 = arith.constant 0 : i32
    return %arg0, %c0_i32, %c0_i32_0 : i32, i32, i32
  }
}

</mosaic_0001>

<llo_original>
// kernel: vit_forward.1
$region0: #{vit_forward.1}
  #allocation0 [shape = 'u32[]', space=smem, size = 0x4, offset = 0x4, fixed_abs, tag = 'smem constant byte address 0x4 - core index']
  #allocation1 [shape = 'u32[144,128]{1,0:T(1,128)}', space=vmem, size = 0x12000, scoped, tag = 'internal scratch']
  %s0 = inlined_call_operand.vmem [shape: f32[2,24,64], index: 0, kind: input, shape index: {}]
  %s1 = inlined_call_operand.vmem [shape: f32[88,32], index: 1, kind: input, shape index: {}]
  %s2 = inlined_call_operand.vmem [shape: f32[32,32,32], index: 2, kind: input, shape index: {}]
  %s3 = inlined_call_operand.vmem [shape: f32[8,32], index: 3, kind: input, shape index: {}]
  %s4 = inlined_call_operand.vmem [shape: f32[16,32], index: 4, kind: input, shape index: {}]
  %s5 = inlined_call_operand.vmem [shape: f32[2,40,64], index: 5, kind: input, shape index: {}]
  %s6 = inlined_call_operand.vmem [shape: f32[2,72,32], index: 6, kind: input, shape index: {}]
  %s7 = inlined_call_operand.vmem [shape: f32[40,128], index: 7, kind: input, shape index: {}]
  %s8 = inlined_call_operand.hbm [shape: f32[2,1,128], index: 8, kind: output, shape index: {}]
  %s9 = sld [smem:[#allocation0]]
  $region65: #{vit_forward.1} parent=0
    _
  %s11 = ssub.s32 1, %s9
  %s12 = scalar_select 0, %s11, %s9
  $region1: #{vit_forward.1} parent=0
    #allocation2 [shape = 'u8[1024]{0}', space=vmem, size = 0x400, scoped, tag = 'output window, operand 0']
    #allocation3 [shape = 's32[2]{0}', space=sflag, size = 0x8, scoped, tag = 'scoped memory for vit_forward.1']
    %13 = vsyncpa [#allocation3], 0
    %s14 = scalar_lea.sflag [#allocation3], 1
    %15 = vsyncpa %s14, 0
    loop: start=0, step=1, limit=4
    $region2: #{vit_forward.1} parent=1 // loop_pre_header
      _
    $region3: #{vit_forward.1} parent=1 // loop_header
      %s17 = sphi 0, %s21
      %p18 = scmp.ge.s32.totalorder %s17, 4
      %s27 = sphi 0, %s29
      %s30 = sphi 0, %s27
      %s31 = sphi 0, %s30
      %s47 = sphi 0, %s31
      %s51 = sphi 0, %s51
      %s53 = sphi 0, %s51
      %s54 = sphi 0, %s53
      %s68 = sphi 0, %s54
      %s72 = sphi 0, %s72
      %s74 = sphi 0, %s72
      %s75 = sphi 0, %s74
      %s89 = sphi 0, %s75
      %s93 = sphi 0, %s93
      %s95 = sphi 0, %s93
      %s96 = sphi 0, %s95
      %s110 = sphi 0, %s96
      %s114 = sphi 0, %s114
      %s116 = sphi 0, %s114
      %s117 = sphi 0, %s116
      %s131 = sphi 0, %s117
      %s135 = sphi 0, %s135
      %s137 = sphi 0, %s135
      %s138 = sphi 0, %s137
      %s152 = sphi 0, %s138
      %s156 = sphi 0, %s156
      %s158 = sphi 0, %s156
      %s159 = sphi 0, %s158
      %s173 = sphi 0, %s159
      %s177 = sphi 0, %s177
      %s179 = sphi 0, %s177
      %s180 = sphi 0, %s179
      %s194 = sphi 0, %s180
      %s200 = sphi 0, %s202
      %s203 = sphi 0, %s200
      %s204 = sphi 0, %s203
      %s220 = sphi 0, %s204
    $region4: #{vit_forward.1} parent=1 // loop_header_branch
      %20 = sbr.rel (%p18) target = $region8
    $region5: #{vit_forward.1} parent=1 // loop_body
      %s22 = ssub.s32 %s17, 1
      %s23 = ssub.s32 %s17, 2
      %s24 = sadd.s32 %s17, 1
      %s25 = ssub.s32 %s17, %s24
      %p26 = scmp.eq.s32.totalorder %s25, 0
      %s28 = sadd.s32 %s27, 1
      %s29 = scalar_select %p26, %s27, %s28
      %p32 = pneg %p26
      %p33 = scmp.eq.s32.totalorder %s17, 1
      %p34 = por %p32, %p33
      %p35 = scmp.ne.s32.totalorder %s27, %s30
      %p36 = scmp.eq.s32.totalorder %s17, 0
      %p37 = por %p35, %p36
      %p38 = scmp.ne.s32.totalorder %s27, %s30
      %p39 = scmp.eq.s32.totalorder %s22, 1
      %p40 = por %p38, %p39
      %p41 = scmp.ne.s32.totalorder %s30, %s31
      %p42 = scmp.eq.s32.totalorder %s22, 0
      %p43 = por %p41, %p42
      %p44 = scmp.ne.s32.totalorder %s30, %s31
      %p45 = scmp.eq.s32.totalorder %s23, 1
      %p46 = por %p44, %p45
      %p48 = scmp.ne.s32.totalorder %s31, %s47
      %p49 = scmp.eq.s32.totalorder %s23, 0
      %p50 = por %p48, %p49
      %s52 = sadd.s32 %s51, 1
      %p55 = scmp.eq.s32.totalorder %s17, 1
      %p56 = scmp.ne.s32.totalorder %s51, %s53
      %p57 = scmp.eq.s32.totalorder %s17, 0
      %p58 = por %p56, %p57
      %p59 = scmp.ne.s32.totalorder %s51, %s53
      %p60 = scmp.eq.s32.totalorder %s22, 1
      %p61 = por %p59, %p60
      %p62 = scmp.ne.s32.totalorder %s53, %s54
      %p63 = scmp.eq.s32.totalorder %s22, 0
      %p64 = por %p62, %p63
      %p65 = scmp.ne.s32.totalorder %s53, %s54
      %p66 = scmp.eq.s32.totalorder %s23, 1
      %p67 = por %p65, %p66
      %p69 = scmp.ne.s32.totalorder %s54, %s68
      %p70 = scmp.eq.s32.totalorder %s23, 0
      %p71 = por %p69, %p70
      %s73 = sadd.s32 %s72, 1
      %p76 = scmp.eq.s32.totalorder %s17, 1
      %p77 = scmp.ne.s32.totalorder %s72, %s74
      %p78 = scmp.eq.s32.totalorder %s17, 0
      %p79 = por %p77, %p78
      %p80 = scmp.ne.s32.totalorder %s72, %s74
      %p81 = scmp.eq.s32.totalorder %s22, 1
      %p82 = por %p80, %p81
      %p83 = scmp.ne.s32.totalorder %s74, %s75
      %p84 = scmp.eq.s32.totalorder %s22, 0
      %p85 = por %p83, %p84
      %p86 = scmp.ne.s32.totalorder %s74, %s75
      %p87 = scmp.eq.s32.totalorder %s23, 1
      %p88 = por %p86, %p87
      %p90 = scmp.ne.s32.totalorder %s75, %s89
      %p91 = scmp.eq.s32.totalorder %s23, 0
      %p92 = por %p90, %p91
      %s94 = sadd.s32 %s93, 1
      %p97 = scmp.eq.s32.totalorder %s17, 1
      %p98 = scmp.ne.s32.totalorder %s93, %s95
      %p99 = scmp.eq.s32.totalorder %s17, 0
      %p100 = por %p98, %p99
      %p101 = scmp.ne.s32.totalorder %s93, %s95
      %p102 = scmp.eq.s32.totalorder %s22, 1
      %p103 = por %p101, %p102
      %p104 = scmp.ne.s32.totalorder %s95, %s96
      %p105 = scmp.eq.s32.totalorder %s22, 0
      %p106 = por %p104, %p105
      %p107 = scmp.ne.s32.totalorder %s95, %s96
      %p108 = scmp.eq.s32.totalorder %s23, 1
      %p109 = por %p107, %p108
      %p111 = scmp.ne.s32.totalorder %s96, %s110
      %p112 = scmp.eq.s32.totalorder %s23, 0
      %p113 = por %p111, %p112
      %s115 = sadd.s32 %s114, 1
      %p118 = scmp.eq.s32.totalorder %s17, 1
      %p119 = scmp.ne.s32.totalorder %s114, %s116
      %p120 = scmp.eq.s32.totalorder %s17, 0
      %p121 = por %p119, %p120
      %p122 = scmp.ne.s32.totalorder %s114, %s116
      %p123 = scmp.eq.s32.totalorder %s22, 1
      %p124 = por %p122, %p123
      %p125 = scmp.ne.s32.totalorder %s116, %s117
      %p126 = scmp.eq.s32.totalorder %s22, 0
      %p127 = por %p125, %p126
      %p128 = scmp.ne.s32.totalorder %s116, %s117
      %p129 = scmp.eq.s32.totalorder %s23, 1
      %p130 = por %p128, %p129
      %p132 = scmp.ne.s32.totalorder %s117, %s131
      %p133 = scmp.eq.s32.totalorder %s23, 0
      %p134 = por %p132, %p133
      %s136 = sadd.s32 %s135, 1
      %p139 = scmp.eq.s32.totalorder %s17, 1
      %p140 = scmp.ne.s32.totalorder %s135, %s137
      %p141 = scmp.eq.s32.totalorder %s17, 0
      %p142 = por %p140, %p141
      %p143 = scmp.ne.s32.totalorder %s135, %s137
      %p144 = scmp.eq.s32.totalorder %s22, 1
      %p145 = por %p143, %p144
      %p146 = scmp.ne.s32.totalorder %s137, %s138
      %p147 = scmp.eq.s32.totalorder %s22, 0
      %p148 = por %p146, %p147
      %p149 = scmp.ne.s32.totalorder %s137, %s138
      %p150 = scmp.eq.s32.totalorder %s23, 1
      %p151 = por %p149, %p150
      %p153 = scmp.ne.s32.totalorder %s138, %s152
      %p154 = scmp.eq.s32.totalorder %s23, 0
      %p155 = por %p153, %p154
      %s157 = sadd.s32 %s156, 1
      %p160 = scmp.eq.s32.totalorder %s17, 1
      %p161 = scmp.ne.s32.totalorder %s156, %s158
      %p162 = scmp.eq.s32.totalorder %s17, 0
      %p163 = por %p161, %p162
      %p164 = scmp.ne.s32.totalorder %s156, %s158
      %p165 = scmp.eq.s32.totalorder %s22, 1
      %p166 = por %p164, %p165
      %p167 = scmp.ne.s32.totalorder %s158, %s159
      %p168 = scmp.eq.s32.totalorder %s22, 0
      %p169 = por %p167, %p168
      %p170 = scmp.ne.s32.totalorder %s158, %s159
      %p171 = scmp.eq.s32.totalorder %s23, 1
      %p172 = por %p170, %p171
      %p174 = scmp.ne.s32.totalorder %s159, %s173
      %p175 = scmp.eq.s32.totalorder %s23, 0
      %p176 = por %p174, %p175
      %s178 = sadd.s32 %s177, 1
      %p181 = scmp.eq.s32.totalorder %s17, 1
      %p182 = scmp.ne.s32.totalorder %s177, %s179
      %p183 = scmp.eq.s32.totalorder %s17, 0
      %p184 = por %p182, %p183
      %p185 = scmp.ne.s32.totalorder %s177, %s179
      %p186 = scmp.eq.s32.totalorder %s22, 1
      %p187 = por %p185, %p186
      %p188 = scmp.ne.s32.totalorder %s179, %s180
      %p189 = scmp.eq.s32.totalorder %s22, 0
      %p190 = por %p188, %p189
      %p191 = scmp.ne.s32.totalorder %s179, %s180
      %p192 = scmp.eq.s32.totalorder %s23, 1
      %p193 = por %p191, %p192
      %p195 = scmp.ne.s32.totalorder %s180, %s194
      %p196 = scmp.eq.s32.totalorder %s23, 0
      %p197 = por %p195, %p196
      %s198 = ssub.s32 %s17, %s24
      %p199 = scmp.eq.s32.totalorder %s198, 0
      %s201 = sadd.s32 %s200, 1
      %s202 = scalar_select %p199, %s200, %s201
      %p205 = pneg %p199
      %p206 = scmp.eq.s32.totalorder %s17, 1
      %p207 = por %p205, %p206
      %p208 = scmp.ne.s32.totalorder %s200, %s203
      %p209 = scmp.eq.s32.totalorder %s17, 0
      %p210 = por %p208, %p209
      %p211 = scmp.ne.s32.totalorder %s200, %s203
      %p212 = scmp.eq.s32.totalorder %s22, 1
      %p213 = por %p211, %p212
      %p214 = scmp.ne.s32.totalorder %s203, %s204
      %p215 = scmp.eq.s32.totalorder %s22, 0
      %p216 = por %p214, %p215
      %p217 = scmp.ne.s32.totalorder %s203, %s204
      %p218 = scmp.eq.s32.totalorder %s23, 1
      %p219 = por %p217, %p218
      %p221 = scmp.ne.s32.totalorder %s204, %s220
      %p222 = scmp.eq.s32.totalorder %s23, 0
      %p223 = por %p221, %p222
      %p224 = scmp.le.s32.totalorder 1, %s17
      %p225 = scmp.lt.s32.totalorder %s17, 3
      %p226 = pnand %p224, %p225
      %p227 = pneg %p226
      // Predicated region
      $region9: #{vit_forward.1} parent=5 // pred_check
        _
      $region10: #{vit_forward.1} parent=5 // pred_check_branch
        %229 = sbr.rel (%p226) target = $region12
      $region11: #{vit_forward.1} parent=5 // pred_region
        %s230 = ssub.s32 %s17, 1
        // Predicated region
        $region13: #{vit_forward.1} parent=11 // pred_check
          %p231 = pneg %p64
        $region14: #{vit_forward.1} parent=11 // pred_check_branch
          %233 = sbr.rel (%p231) target = $region16
        $region15: #{vit_forward.1} parent=11 // pred_region
          _
        $region16: #{vit_forward.1} parent=11 // pred_fallthru
          _
        // Predicated region
        $region17: #{vit_forward.1} parent=11 // pred_check
          %p234 = pneg %p85
        $region18: #{vit_forward.1} parent=11 // pred_check_branch
          %236 = sbr.rel (%p234) target = $region20
        $region19: #{vit_forward.1} parent=11 // pred_region
          _
        $region20: #{vit_forward.1} parent=11 // pred_fallthru
          _
        // Predicated region
        $region21: #{vit_forward.1} parent=11 // pred_check
          %p237 = pneg %p106
        $region22: #{vit_forward.1} parent=11 // pred_check_branch
          %239 = sbr.rel (%p237) target = $region24
        $region23: #{vit_forward.1} parent=11 // pred_region
          _
        $region24: #{vit_forward.1} parent=11 // pred_fallthru
          _
        // Predicated region
        $region25: #{vit_forward.1} parent=11 // pred_check
          %p240 = pneg %p127
        $region26: #{vit_forward.1} parent=11 // pred_check_branch
          %242 = sbr.rel (%p240) target = $region28
        $region27: #{vit_forward.1} parent=11 // pred_region
          _
        $region28: #{vit_forward.1} parent=11 // pred_fallthru
          _
        // Predicated region
        $region29: #{vit_forward.1} parent=11 // pred_check
          %p243 = pneg %p148
        $region30: #{vit_forward.1} parent=11 // pred_check_branch
          %245 = sbr.rel (%p243) target = $region32
        $region31: #{vit_forward.1} parent=11 // pred_region
          _
        $region32: #{vit_forward.1} parent=11 // pred_fallthru
          _
        // Predicated region
        $region33: #{vit_forward.1} parent=11 // pred_check
          %p246 = pneg %p169
        $region34: #{vit_forward.1} parent=11 // pred_check_branch
          %248 = sbr.rel (%p246) target = $region36
        $region35: #{vit_forward.1} parent=11 // pred_region
          _
        $region36: #{vit_forward.1} parent=11 // pred_fallthru
          _
        // Predicated region
        $region37: #{vit_forward.1} parent=11 // pred_check
          %p249 = pneg %p190
        $region38: #{vit_forward.1} parent=11 // pred_check_branch
          %251 = sbr.rel (%p249) target = $region40
        $region39: #{vit_forward.1} parent=11 // pred_region
          _
        $region40: #{vit_forward.1} parent=11 // pred_fallthru
          _
      $region12: #{vit_forward.1} parent=5 // pred_fallthru
        _
      %p252 = scmp.lt.s32.totalorder %s17, 2
      // Predicated region
      $region41: #{vit_forward.1} parent=5 // pred_check
        %p253 = pneg %p252
      $region42: #{vit_forward.1} parent=5 // pred_check_branch
        %255 = sbr.rel (%p253) target = $region44
      $region43: #{vit_forward.1} parent=5 // pred_region
        // Predicated region
        $region45: #{vit_forward.1} parent=43 // pred_check
          %p256 = pneg %p37
        $region46: #{vit_forward.1} parent=43 // pred_check_branch
          %258 = sbr.rel (%p256) target = $region48
        $region47: #{vit_forward.1} parent=43 // pred_region
          %p259 = scmp.lt.s32.totalorder %s17, 1
          %s260 = scalar_select %p259, %s17, 1
          %s261 = smul.addr %s260, 3
          %s262 = smul.addr %s261, 8
          %s263 = scalar_lea.vmem %s0, %s262
        $region48: #{vit_forward.1} parent=43 // pred_fallthru
          _
      $region44: #{vit_forward.1} parent=5 // pred_fallthru
        _
      %p264 = scmp.le.s32.totalorder 1, %s17
      %p265 = scmp.lt.s32.totalorder %s17, 3
      %p266 = pnand %p264, %p265
      %p267 = pneg %p266
      // Predicated region
      $region49: #{vit_forward.1} parent=5 // pred_check
        _
      $region50: #{vit_forward.1} parent=5 // pred_check_branch
        %269 = sbr.rel (%p266) target = $region52
      $region51: #{vit_forward.1} parent=5 // pred_region
        %s270 = ssub.s32 %s17, 1
        %p271 = scmp.lt.s32.totalorder %s22, 1
        %s272 = scalar_select %p271, %s22, 1
        %s273 = smul.addr %s272, 3
        %s274 = smul.addr %s273, 8
        %s275 = scalar_lea.vmem %s0, %s274
        %p276 = pneg %p43
        %p277 = pneg %p40
        %p278 = pneg %p64
        %p279 = pneg %p61
        %p280 = pneg %p85
        %p281 = pneg %p82
        %p282 = pneg %p106
        %p283 = pneg %p103
        %p284 = pneg %p127
        %p285 = pneg %p124
        %p286 = pneg %p148
        %p287 = pneg %p145
        %p288 = pneg %p169
        %p289 = pneg %p166
        %p290 = pneg %p190
        %p291 = pneg %p187
        %p292 = pneg %p216
        %p293 = pneg %p213
        %s294 = sand.u32 %s203, 1
        %s295 = scalar_lea.sflag [#allocation3], %s294
        %s296 = sand.u32 %s203, 1
        %s297 = scalar_lea.vmem [#allocation2], %s296
        %p298 = scmp.lt.s32.totalorder %s22, 1
        %s299 = scalar_select %p298, %s22, 1
        %s300 = smul.addr %s299, 3
        %s301 = smul.addr %s300, 8
        %s302 = scalar_lea.vmem %s0, %s301
        %v303 = vld [vmem:[%s302] sm:$0xff]
        %v304 = vld [vmem:[%s302 + $0x8] sm:$0xff]
        %v305 = vld [vmem:[%s302 + $0x10] sm:$0xff]
        %v306 = vld [vmem:[%s1] sm:$0xff]
        %v307 = vld [vmem:[%s1 + $0x8] sm:$0xff]
        %v308 = vld [vmem:[%s1 + $0x10] sm:$0xff]
        %v309 = vld [vmem:[%s1 + $0x18] sm:$0xff]
        %v310 = vld [vmem:[%s1 + $0x20] sm:$0xff]
        %v311 = vld [vmem:[%s1 + $0x28] sm:$0xff]
        %v312 = vld [vmem:[%s1 + $0x30] sm:$0xff]
        %v313 = vld [vmem:[%s1 + $0x38] sm:$0xff]
        %v314 = vld [vmem:[%s1 + $0x40] sm:$0xff]
        %v315 = vld [vmem:[%s1 + $0x48] sm:$0xff]
        %v316 = vld [vmem:[%s1 + $0x50] sm:$0xff]
        %vm317 = vcmask 523264
        %v319 = vsel %vm317, %v303, 0
        %v322 = vsel %vm317, %v304, 0
        %v325 = vsel %vm317, %v305, 0
        %327 = vmatprep.subr.mxu0 0.0
        %328 = vmatpush1.msra.mxu0 %v306
        %329 = vmatprep.subr.mxu0 0.0
        %330 = vmatpush1.msra.mxu0 %v307
        %331 = vmatprep.subr.mxu0 0.0
        %332 = vmatpush1.msra.mxu0 %v308
        %333 = vmatprep.subr.mxu0 0.0
        %334 = vmatpush1.msra.mxu0 %v309
        %335 = vmatprep.subr.mxu0 0.0
        %336 = vmatpush1.msra.mxu0 %v310
        %337 = vmatprep.subr.mxu0 0.0
        %338 = vmatpush1.msra.mxu0 %v311
        %339 = vmatprep.subr.mxu0 0.0
        %340 = vmatpush1.msra.mxu0 %v312
        %341 = vmatprep.subr.mxu0 0.0
        %342 = vmatpush1.msra.mxu0 %v313
        %343 = vmatprep.subr.mxu0 0.0
        %344 = vmatpush1.msra.mxu0 0.0
        %345 = vmatprep.subr.mxu0 0.0
        %346 = vmatpush1.msra.mxu0 0.0
        %347 = vmatprep.subr.mxu0 0.0
        %348 = vmatpush1.msra.mxu0 0.0
        %349 = vmatprep.subr.mxu0 0.0
        %350 = vmatpush1.msra.mxu0 0.0
        %351 = vmatprep.subr.mxu0 0.0
        %352 = vmatpush1.msra.mxu0 0.0
        %353 = vmatprep.subr.mxu0 0.0
        %354 = vmatpush1.msra.mxu0 0.0
        %355 = vmatprep.subr.mxu0 0.0
        %356 = vmatpush1.msra.mxu0 0.0
        %357 = vmatprep.subr.mxu0 0.0
        %358 = vmatpush1.msra.mxu0 0.0
        %359 = vmatprep.subr.mxu0 0.0
        %360 = vmatpush1.msra.mxu0 0.0
        %361 = vmatprep.subr.mxu0 0.0
        %362 = vmatpush1.msra.mxu0 0.0
        %363 = vmatprep.subr.mxu0 0.0
        %364 = vmatpush1.msra.mxu0 0.0
        %365 = vmatprep.subr.mxu0 0.0
        %366 = vmatpush1.msra.mxu0 0.0
        %367 = vmatprep.subr.mxu0 0.0
        %368 = vmatpush1.msra.mxu0 0.0
        %369 = vmatprep.subr.mxu0 0.0
        %370 = vmatpush1.msra.mxu0 0.0
        %371 = vmatprep.subr.mxu0 0.0
        %372 = vmatpush1.msra.mxu0 0.0
        %373 = vmatprep.subr.mxu0 0.0
        %374 = vmatpush1.msra.mxu0 0.0
        %375 = vmatprep.subr.mxu0 0.0
        %376 = vmatpush1.msra.mxu0 0.0
        %377 = vmatprep.subr.mxu0 0.0
        %378 = vmatpush1.msra.mxu0 0.0
        %379 = vmatprep.subr.mxu0 0.0
        %380 = vmatpush1.msra.mxu0 0.0
        %381 = vmatprep.subr.mxu0 0.0
        %382 = vmatpush1.msra.mxu0 0.0
        %383 = vmatprep.subr.mxu0 0.0
        %384 = vmatpush1.msra.mxu0 0.0
        %385 = vmatprep.subr.mxu0 0.0
        %386 = vmatpush1.msra.mxu0 0.0
        %387 = vmatprep.subr.mxu0 0.0
        %388 = vmatpush1.msra.mxu0 0.0
        %389 = vmatprep.subr.mxu0 0.0
        %390 = vmatpush1.msra.mxu0 0.0
        %391 = vmatprep.mubr.f32.mxu0 0.0
        %392 = vmatmul.mubr.f32.gmra.mrb[0].mxu0 %v319
        %v393 = vpop.f32.mrb[0].mxu0
        %v394 = vadd.f32 %v314, %v393
        %v395 = vpop.f32.mrb[0].mxu0
        %396 = vmatprep.mubr.f32.mxu0 0.0
        %397 = vmatmul.mubr.f32.gmra.mrb[0].mxu0 %v322
        %v398 = vpop.f32.mrb[0].mxu0
        %v399 = vadd.f32 %v315, %v398
        %v400 = vpop.f32.mrb[0].mxu0
        %401 = vmatprep.mubr.f32.mxu0 0.0
        %402 = vmatmul.mubr.f32.gmra.mrb[0].mxu0 %v325
        %v403 = vpop.f32.mrb[0].mxu0
        %v404 = vadd.f32 %v316, %v403
        %v405 = vpop.f32.mrb[0].mxu0
        %406 = vdwg.mxu0
        %v407 = vlaneseq
        %v408 = vand.u32 %v407, 127
        %vm409 = vcmp.lt.s32.totalorder %v408, 17
        %v410 = vsel %vm409, 0.0, -1e+30
        %v411 = vld [vmem:[%s2] sm:$0xff]
        %v412 = vld [vmem:[%s2 + $0x8] sm:$0xff]
        %v413 = vld [vmem:[%s2 + $0x10] sm:$0xff]
        %v414 = vld [vmem:[%s2 + $0x18] sm:$0xff]
        %v415 = vld [vmem:[%s3] sm:$0x1]
        %v416 = vlaneseq
        %v417 = vshrl.u32 %v416, 7
        %v418 = vsub.s32 0, %v417
        %v419 = vrot.slane %v415, %v418
        %vm420 = vcmask 261120
        %v422 = vsel %vm420, %v394, 0
        %v425 = vsel %vm420, %v399, 0
        %v428 = vsel %vm420, %v404, 0
        %430 = vmatprep.subr.mxu0 0.0
        %431 = vmatpush1.msra.mxu0 %v411
        %432 = vmatprep.subr.mxu0 0.0
        %433 = vmatpush1.msra.mxu0 %v412
        %434 = vmatprep.subr.mxu0 0.0
        %435 = vmatpush1.msra.mxu0 %v413
        %436 = vmatprep.subr.mxu0 0.0
        %437 = vmatpush1.msra.mxu0 %v414
        %438 = vmatprep.subr.mxu0 0.0
        %439 = vmatpush1.msra.mxu0 0.0
        %440 = vmatprep.subr.mxu0 0.0
        %441 = vmatpush1.msra.mxu0 0.0
        %442 = vmatprep.subr.mxu0 0.0
        %443 = vmatpush1.msra.mxu0 0.0
        %444 = vmatprep.subr.mxu0 0.0
        %445 = vmatpush1.msra.mxu0 0.0
        %446 = vmatprep.subr.mxu0 0.0
        %447 = vmatpush1.msra.mxu0 0.0
        %448 = vmatprep.subr.mxu0 0.0
        %449 = vmatpush1.msra.mxu0 0.0
        %450 = vmatprep.subr.mxu0 0.0
        %451 = vmatpush1.msra.mxu0 0.0
        %452 = vmatprep.subr.mxu0 0.0
        %453 = vmatpush1.msra.mxu0 0.0
        %454 = vmatprep.subr.mxu0 0.0
        %455 = vmatpush1.msra.mxu0 0.0
        %456 = vmatprep.subr.mxu0 0.0
        %457 = vmatpush1.msra.mxu0 0.0
        %458 = vmatprep.subr.mxu0 0.0
        %459 = vmatpush1.msra.mxu0 0.0
        %460 = vmatprep.subr.mxu0 0.0
        %461 = vmatpush1.msra.mxu0 0.0
        %462 = vmatprep.subr.mxu0 0.0
        %463 = vmatpush1.msra.mxu0 0.0
        %464 = vmatprep.subr.mxu0 0.0
        %465 = vmatpush1.msra.mxu0 0.0
        %466 = vmatprep.subr.mxu0 0.0
        %467 = vmatpush1.msra.mxu0 0.0
        %468 = vmatprep.subr.mxu0 0.0
        %469 = vmatpush1.msra.mxu0 0.0
        %470 = vmatprep.subr.mxu0 0.0
        %471 = vmatpush1.msra.mxu0 0.0
        %472 = vmatprep.subr.mxu0 0.0
        %473 = vmatpush1.msra.mxu0 0.0
        %474 = vmatprep.subr.mxu0 0.0
        %475 = vmatpush1.msra.mxu0 0.0
        %476 = vmatprep.subr.mxu0 0.0
        %477 = vmatpush1.msra.mxu0 0.0
        %478 = vmatprep.subr.mxu0 0.0
        %479 = vmatpush1.msra.mxu0 0.0
        %480 = vmatprep.subr.mxu0 0.0
        %481 = vmatpush1.msra.mxu0 0.0
        %482 = vmatprep.subr.mxu0 0.0
        %483 = vmatpush1.msra.mxu0 0.0
        %484 = vmatprep.subr.mxu0 0.0
        %485 = vmatpush1.msra.mxu0 0.0
        %486 = vmatprep.subr.mxu0 0.0
        %487 = vmatpush1.msra.mxu0 0.0
        %488 = vmatprep.subr.mxu0 0.0
        %489 = vmatpush1.msra.mxu0 0.0
        %490 = vmatprep.subr.mxu0 0.0
        %491 = vmatpush1.msra.mxu0 0.0
        %492 = vmatprep.subr.mxu0 0.0
        %493 = vmatpush1.msra.mxu0 0.0
        %494 = vmatprep.mubr.f32.mxu0 0.0
        %495 = vmatmul.mubr.f32.gmra.mrb[0].mxu0 %v422
        %v496 = vpop.f32.mrb[0].mxu0
        %v497 = vadd.f32 %v419, %v496
        %v498 = vpop.f32.mrb[0].mxu0
        %499 = vmatprep.mubr.f32.mxu0 0.0
        %500 = vmatmul.mubr.f32.gmra.mrb[0].mxu0 %v425
        %v501 = vpop.f32.mrb[0].mxu0
        %v502 = vadd.f32 %v419, %v501
        %v503 = vpop.f32.mrb[0].mxu0
        %504 = vmatprep.mubr.f32.mxu0 0.0
        %505 = vmatmul.mubr.f32.gmra.mrb[0].mxu0 %v428
        %v506 = vpop.f32.mrb[0].mxu0
        %v507 = vadd.f32 %v419, %v506
        %v508 = vpop.f32.mrb[0].mxu0
        %509 = vdwg.mxu0
        %s510 = scalar_lea.vmem %s2, 128
        %v511 = vld [vmem:[%s510] sm:$0xff]
        %v512 = vld [vmem:[%s510 + $0x8] sm:$0xff]
        %v513 = vld [vmem:[%s510 + $0x10] sm:$0xff]
        %v514 = vld [vmem:[%s510 + $0x18] sm:$0xff]
        %515 = vmatprep.subr.mxu0 0.0
        %516 = vmatpush1.msra.mxu0 %v511
        %517 = vmatprep.subr.mxu0 0.0
        %518 = vmatpush1.msra.mxu0 %v512
        %519 = vmatprep.subr.mxu0 0.0
        %520 = vmatpush1.msra.mxu0 %v513
        %521 = vmatprep.subr.mxu0 0.0
        %522 = vmatpush1.msra.mxu0 %v514
        %523 = vmatprep.subr.mxu0 0.0
        %524 = vmatpush1.msra.mxu0 0.0
        %525 = vmatprep.subr.mxu0 0.0
        %526 = vmatpush1.msra.mxu0 0.0
        %527 = vmatprep.subr.mxu0 0.0
        %528 = vmatpush1.msra.mxu0 0.0
        %529 = vmatprep.subr.mxu0 0.0
        %530 = vmatpush1.msra.mxu0 0.0
        %531 = vmatprep.subr.mxu0 0.0
        %532 = vmatpush1.msra.mxu0 0.0
        %533 = vmatprep.subr.mxu0 0.0
        %534 = vmatpush1.msra.mxu0 0.0
        %535 = vmatprep.subr.mxu0 0.0
        %536 = vmatpush1.msra.mxu0 0.0
        %537 = vmatprep.subr.mxu0 0.0
        %538 = vmatpush1.msra.mxu0 0.0
        %539 = vmatprep.subr.mxu0 0.0
        %540 = vmatpush1.msra.mxu0 0.0
        %541 = vmatprep.subr.mxu0 0.0
        %542 = vmatpush1.msra.mxu0 0.0
        %543 = vmatprep.subr.mxu0 0.0
        %544 = vmatpush1.msra.mxu0 0.0
        %545 = vmatprep.subr.mxu0 0.0
        %546 = vmatpush1.msra.mxu0 0.0
        %547 = vmatprep.subr.mxu0 0.0
        %548 = vmatpush1.msra.mxu0 0.0
        %549 = vmatprep.subr.mxu0 0.0
        %550 = vmatpush1.msra.mxu0 0.0
        %551 = vmatprep.subr.mxu0 0.0
        %552 = vmatpush1.msra.mxu0 0.0
        %553 = vmatprep.subr.mxu0 0.0
        %554 = vmatpush1.msra.mxu0 0.0
        %555 = vmatprep.subr.mxu0 0.0
        %556 = vmatpush1.msra.mxu0 0.0
        %557 = vmatprep.subr.mxu0 0.0
        %558 = vmatpush1.msra.mxu0 0.0
        %559 = vmatprep.subr.mxu0 0.0
        %560 = vmatpush1.msra.mxu0 0.0
        %561 = vmatprep.subr.mxu0 0.0
        %562 = vmatpush1.msra.mxu0 0.0
        %563 = vmatprep.subr.mxu0 0.0
        %564 = vmatpush1.msra.mxu0 0.0
        %565 = vmatprep.subr.mxu0 0.0
        %566 = vmatpush1.msra.mxu0 0.0
        %567 = vmatprep.subr.mxu0 0.0
        %568 = vmatpush1.msra.mxu0 0.0
        %569 = vmatprep.subr.mxu0 0.0
        %570 = vmatpush1.msra.mxu0 0.0
        %571 = vmatprep.subr.mxu0 0.0
        %572 = vmatpush1.msra.mxu0 0.0
        %573 = vmatprep.subr.mxu0 0.0
        %574 = vmatpush1.msra.mxu0 0.0
        %575 = vmatprep.subr.mxu0 0.0
        %576 = vmatpush1.msra.mxu0 0.0
        %577 = vmatprep.subr.mxu0 0.0
        %578 = vmatpush1.msra.mxu0 0.0
        %579 = vmatprep.mubr.f32.mxu0 0.0
        %580 = vmatmul.mubr.f32.gmra.mrb[0].mxu0 %v422
        %v581 = vpop.f32.mrb[0].mxu0
        %v582 = vadd.f32 0.0, %v581
        %v583 = vpop.f32.mrb[0].mxu0
        %584 = vmatprep.mubr.f32.mxu0 0.0
        %585 = vmatmul.mubr.f32.gmra.mrb[0].mxu0 %v425
        %v586 = vpop.f32.mrb[0].mxu0
        %v587 = vadd.f32 0.0, %v586
        %v588 = vpop.f32.mrb[0].mxu0
        %589 = vmatprep.mubr.f32.mxu0 0.0
        %590 = vmatmul.mubr.f32.gmra.mrb[0].mxu0 %v428
        %v591 = vpop.f32.mrb[0].mxu0
        %v592 = vadd.f32 0.0, %v591
        %v593 = vpop.f32.mrb[0].mxu0
        %594 = vdwg.mxu0
        %s595 = scalar_lea.vmem %s2, 256
        %v596 = vld [vmem:[%s595] sm:$0xff]
        %v597 = vld [vmem:[%s595 + $0x8] sm:$0xff]
        %v598 = vld [vmem:[%s595 + $0x10] sm:$0xff]
        %v599 = vld [vmem:[%s595 + $0x18] sm:$0xff]
        %600 = vmatprep.subr.mxu0 0.0
        %601 = vmatpush1.msra.mxu0 %v596
        %602 = vmatprep.subr.mxu0 0.0
        %603 = vmatpush1.msra.mxu0 %v597
        %604 = vmatprep.subr.mxu0 0.0
        %605 = vmatpush1.msra.mxu0 %v598
        %606 = vmatprep.subr.mxu0 0.0
        %607 = vmatpush1.msra.mxu0 %v599
        %608 = vmatprep.subr.mxu0 0.0
        %609 = vmatpush1.msra.mxu0 0.0
        %610 = vmatprep.subr.mxu0 0.0
        %611 = vmatpush1.msra.mxu0 0.0
        %612 = vmatprep.subr.mxu0 0.0
        %613 = vmatpush1.msra.mxu0 0.0
        %614 = vmatprep.subr.mxu0 0.0
        %615 = vmatpush1.msra.mxu0 0.0
        %616 = vmatprep.subr.mxu0 0.0
        %617 = vmatpush1.msra.mxu0 0.0
        %618 = vmatprep.subr.mxu0 0.0
        %619 = vmatpush1.msra.mxu0 0.0
        %620 = vmatprep.subr.mxu0 0.0
        %621 = vmatpush1.msra.mxu0 0.0
        %622 = vmatprep.subr.mxu0 0.0
        %623 = vmatpush1.msra.mxu0 0.0
        %624 = vmatprep.subr.mxu0 0.0
        %625 = vmatpush1.msra.mxu0 0.0
        %626 = vmatprep.subr.mxu0 0.0
        %627 = vmatpush1.msra.mxu0 0.0
        %628 = vmatprep.subr.mxu0 0.0
        %629 = vmatpush1.msra.mxu0 0.0
        %630 = vmatprep.subr.mxu0 0.0
        %631 = vmatpush1.msra.mxu0 0.0
        %632 = vmatprep.subr.mxu0 0.0
        %633 = vmatpush1.msra.mxu0 0.0
        %634 = vmatprep.subr.mxu0 0.0
        %635 = vmatpush1.msra.mxu0 0.0
        %636 = vmatprep.subr.mxu0 0.0
        %637 = vmatpush1.msra.mxu0 0.0
        %638 = vmatprep.subr.mxu0 0.0
        %639 = vmatpush1.msra.mxu0 0.0
        %640 = vmatprep.subr.mxu0 0.0
        %641 = vmatpush1.msra.mxu0 0.0
        %642 = vmatprep.subr.mxu0 0.0
        %643 = vmatpush1.msra.mxu0 0.0
        %644 = vmatprep.subr.mxu0 0.0
        %645 = vmatpush1.msra.mxu0 0.0
        %646 = vmatprep.subr.mxu0 0.0
        %647 = vmatpush1.msra.mxu0 0.0
        %648 = vmatprep.subr.mxu0 0.0
        %649 = vmatpush1.msra.mxu0 0.0
        %650 = vmatprep.subr.mxu0 0.0
        %651 = vmatpush1.msra.mxu0 0.0
        %652 = vmatprep.subr.mxu0 0.0
        %653 = vmatpush1.msra.mxu0 0.0
        %654 = vmatprep.subr.mxu0 0.0
        %655 = vmatpush1.msra.mxu0 0.0
        %656 = vmatprep.subr.mxu0 0.0
        %657 = vmatpush1.msra.mxu0 0.0
        %658 = vmatprep.subr.mxu0 0.0
        %659 = vmatpush1.msra.mxu0 0.0
        %660 = vmatprep.subr.mxu0 0.0
        %661 = vmatpush1.msra.mxu0 0.0
        %662 = vmatprep.subr.mxu0 0.0
        %663 = vmatpush1.msra.mxu0 0.0
        %664 = vmatprep.mubr.f32.mxu0 0.0
        %665 = vmatmul.mubr.f32.gmra.mrb[0].mxu0 %v422
        %v666 = vpop.f32.mrb[0].mxu0
        %v667 = vadd.f32 0.0, %v666
        %v668 = vpop.f32.mrb[0].mxu0
        %669 = vmatprep.mubr.f32.mxu0 0.0
        %670 = vmatmul.mubr.f32.gmra.mrb[0].mxu0 %v425
        %v671 = vpop.f32.mrb[0].mxu0
        %v672 = vadd.f32 0.0, %v671
        %v673 = vpop.f32.mrb[0].mxu0
        %674 = vmatprep.mubr.f32.mxu0 0.0
        %675 = vmatmul.mubr.f32.gmra.mrb[0].mxu0 %v428
        %v676 = vpop.f32.mrb[0].mxu0
        %v677 = vadd.f32 0.0, %v676
        %v678 = vpop.f32.mrb[0].mxu0
        %679 = vdwg.mxu0
        %v681 = vsel %vm420, %v497, 0
        %v684 = vsel %vm420, %v502, 0
        %v687 = vsel %vm420, %v507, 0
        %v690 = vsel %vm420, %v582, 0
        %v693 = vsel %vm420, %v587, 0
        %v696 = vsel %vm420, %v592, 0
        %698 = vmatprep.subr.mxu0 0.0
        %699 = vmatpush1.xpose.msra.mxu0 %v690
        %700 = vmatprep.subr.mxu0 0.0
        %701 = vmatpush1.xpose.msra.mxu0 %v693
        %702 = vmatprep.subr.mxu0 0.0
        %703 = vmatpush1.xpose.msra.mxu0 %v696
        %704 = vmatprep.subr.mxu0 0.0
        %705 = vmatpush1.xpose.msra.mxu0 0.0
        %706 = vmatprep.subr.mxu0 0.0
        %707 = vmatpush1.xpose.msra.mxu0 0.0
        %708 = vmatprep.subr.mxu0 0.0
        %709 = vmatpush1.xpose.msra.mxu0 0.0
        %710 = vmatprep.subr.mxu0 0.0
        %711 = vmatpush1.xpose.msra.mxu0 0.0
        %712 = vmatprep.subr.mxu0 0.0
        %713 = vmatpush1.xpose.msra.mxu0 0.0
        %714 = vmatprep.subr.mxu0 0.0
        %715 = vmatpush1.xpose.msra.mxu0 0.0
        %716 = vmatprep.subr.mxu0 0.0
        %717 = vmatpush1.xpose.msra.mxu0 0.0
        %718 = vmatprep.subr.mxu0 0.0
        %719 = vmatpush1.xpose.msra.mxu0 0.0
        %720 = vmatprep.subr.mxu0 0.0
        %721 = vmatpush1.xpose.msra.mxu0 0.0
        %722 = vmatprep.subr.mxu0 0.0
        %723 = vmatpush1.xpose.msra.mxu0 0.0
        %724 = vmatprep.subr.mxu0 0.0
        %725 = vmatpush1.xpose.msra.mxu0 0.0
        %726 = vmatprep.subr.mxu0 0.0
        %727 = vmatpush1.xpose.msra.mxu0 0.0
        %728 = vmatprep.subr.mxu0 0.0
        %729 = vmatpush1.xpose.msra.mxu0 0.0
        %730 = vmatprep.subr.mxu0 0.0
        %731 = vmatpush1.xpose.msra.mxu0 0.0
        %732 = vmatprep.subr.mxu0 0.0
        %733 = vmatpush1.xpose.msra.mxu0 0.0
        %734 = vmatprep.subr.mxu0 0.0
        %735 = vmatpush1.xpose.msra.mxu0 0.0
        %736 = vmatprep.subr.mxu0 0.0
        %737 = vmatpush1.xpose.msra.mxu0 0.0
        %738 = vmatprep.subr.mxu0 0.0
        %739 = vmatpush1.xpose.msra.mxu0 0.0
        %740 = vmatprep.subr.mxu0 0.0
        %741 = vmatpush1.xpose.msra.mxu0 0.0
        %742 = vmatprep.subr.mxu0 0.0
        %743 = vmatpush1.xpose.msra.mxu0 0.0
        %744 = vmatprep.subr.mxu0 0.0
        %745 = vmatpush1.xpose.msra.mxu0 0.0
        %746 = vmatprep.subr.mxu0 0.0
        %747 = vmatpush1.xpose.msra.mxu0 0.0
        %748 = vmatprep.subr.mxu0 0.0
        %749 = vmatpush1.xpose.msra.mxu0 0.0
        %750 = vmatprep.subr.mxu0 0.0
        %751 = vmatpush1.xpose.msra.mxu0 0.0
        %752 = vmatprep.subr.mxu0 0.0
        %753 = vmatpush1.xpose.msra.mxu0 0.0
        %754 = vmatprep.subr.mxu0 0.0
        %755 = vmatpush1.xpose.msra.mxu0 0.0
        %756 = vmatprep.subr.mxu0 0.0
        %757 = vmatpush1.xpose.msra.mxu0 0.0
        %758 = vmatprep.subr.mxu0 0.0
        %759 = vmatpush1.xpose.msra.mxu0 0.0
        %760 = vmatprep.subr.mxu0 0.0
        %761 = vmatpush1.xpose.msra.mxu0 0.0
        %762 = vmatprep.mubr.f32.mxu0 0.0
        %763 = vmatmul.mubr.f32.gmra.mrb[0].mxu0 %v681
        %v764 = vpop.f32.mrb[0].mxu0
        %v765 = vadd.f32 %v410, %v764
        %v766 = vpop.f32.mrb[0].mxu0
        %767 = vmatprep.mubr.f32.mxu0 0.0
        %768 = vmatmul.mubr.f32.gmra.mrb[0].mxu0 %v684
        %v769 = vpop.f32.mrb[0].mxu0
        %v770 = vadd.f32 %v410, %v769
        %v771 = vpop.f32.mrb[0].mxu0
        %772 = vmatprep.mubr.f32.mxu0 0.0
        %773 = vmatmul.mubr.f32.gmra.mrb[0].mxu0 %v687
        %v774 = vpop.f32.mrb[0].mxu0
        %v775 = vadd.f32 %v410, %v774
        %v776 = vpop.f32.mrb[0].mxu0
        %777 = vdwg.mxu0
        %vm778 = vcmask 195584
        %v779 = vsel %vm778, %v765, -inf
        %780 = vmax.xlane.f32.xlu0 %v779
        %v781 = vpop.xlane.xlu0 %780
        %v782 = vsel %vm778, %v770, -inf
        %783 = vmax.xlane.f32.xlu0 %v782
        %v784 = vpop.xlane.xlu0 %783
        %v785 = vsel %vm778, %v775, -inf
        %786 = vmax.xlane.f32.xlu0 %v785
        %v787 = vpop.xlane.xlu0 %786
        %v788 = vsub.f32 %v765, %v781
        %v789 = vsub.f32 %v770, %v784
        %v790 = vsub.f32 %v775, %v787
        %v791 = vmul.f32 %v788, 1.442695
        %v792 = vpow.pop %v791
        %v793 = vmul.f32 %v789, 1.442695
        %v794 = vpow.pop %v793
        %v795 = vmul.f32 %v790, 1.442695
        %v796 = vpow.pop %v795
        %v797 = vsel %vm778, %v792, 0.0
        %798 = vadd.xlane.f32.xlu0 %v797
        %v799 = vpop.xlane.xlu0 %798
        %v800 = vsel %vm778, %v794, 0.0
        %801 = vadd.xlane.f32.xlu0 %v800
        %v802 = vpop.xlane.xlu0 %801
        %v803 = vsel %vm778, %v796, 0.0
        %804 = vadd.xlane.f32.xlu0 %v803
        %v805 = vpop.xlane.xlu0 %804
        %v806 = vrcp.pop %v799
        %v807 = vrcp.pop %v802
        %v808 = vrcp.pop %v805
        %v809 = vmul.f32 %v792, %v806
        %v810 = vmul.f32 %v794, %v807
        %v811 = vmul.f32 %v796, %v808
        %v813 = vsel %vm778, %v809, 0
        %v816 = vsel %vm778, %v810, 0
        %v819 = vsel %vm778, %v811, 0
        %821 = vmatprep.subr.mxu0 0.0
        %822 = vmatpush1.msra.mxu0 %v667
        %823 = vmatprep.subr.mxu0 0.0
        %824 = vmatpush1.msra.mxu0 %v672
        %825 = vmatprep.subr.mxu0 0.0
        %826 = vmatpush1.msra.mxu0 %v677
        %827 = vmatprep.subr.mxu0 0.0
        %828 = vmatpush1.msra.mxu0 0.0
        %829 = vmatprep.subr.mxu0 0.0
        %830 = vmatpush1.msra.mxu0 0.0
        %831 = vmatprep.subr.mxu0 0.0
        %832 = vmatpush1.msra.mxu0 0.0
        %833 = vmatprep.subr.mxu0 0.0
        %834 = vmatpush1.msra.mxu0 0.0
        %835 = vmatprep.subr.mxu0 0.0
        %836 = vmatpush1.msra.mxu0 0.0
        %837 = vmatprep.subr.mxu0 0.0
        %838 = vmatpush1.msra.mxu0 0.0
        %839 = vmatprep.subr.mxu0 0.0
        %840 = vmatpush1.msra.mxu0 0.0
        %841 = vmatprep.subr.mxu0 0.0
        %842 = vmatpush1.msra.mxu0 0.0
        %843 = vmatprep.subr.mxu0 0.0
        %844 = vmatpush1.msra.mxu0 0.0
        %845 = vmatprep.subr.mxu0 0.0
        %846 = vmatpush1.msra.mxu0 0.0
        %847 = vmatprep.subr.mxu0 0.0
        %848 = vmatpush1.msra.mxu0 0.0
        %849 = vmatprep.subr.mxu0 0.0
        %850 = vmatpush1.msra.mxu0 0.0
        %851 = vmatprep.subr.mxu0 0.0
        %852 = vmatpush1.msra.mxu0 0.0
        %853 = vmatprep.subr.mxu0 0.0
        %854 = vmatpush1.msra.mxu0 0.0
        %855 = vmatprep.subr.mxu0 0.0
        %856 = vmatpush1.msra.mxu0 0.0
        %857 = vmatprep.subr.mxu0 0.0
        %858 = vmatpush1.msra.mxu0 0.0
        %859 = vmatprep.subr.mxu0 0.0
        %860 = vmatpush1.msra.mxu0 0.0
        %861 = vmatprep.subr.mxu0 0.0
        %862 = vmatpush1.msra.mxu0 0.0
        %863 = vmatprep.subr.mxu0 0.0
        %864 = vmatpush1.msra.mxu0 0.0
        %865 = vmatprep.subr.mxu0 0.0
        %866 = vmatpush1.msra.mxu0 0.0
        %867 = vmatprep.subr.mxu0 0.0
        %868 = vmatpush1.msra.mxu0 0.0
        %869 = vmatprep.subr.mxu0 0.0
        %870 = vmatpush1.msra.mxu0 0.0
        %871 = vmatprep.subr.mxu0 0.0
        %872 = vmatpush1.msra.mxu0 0.0
        %873 = vmatprep.subr.mxu0 0.0
        %874 = vmatpush1.msra.mxu0 0.0
        %875 = vmatprep.subr.mxu0 0.0
        %876 = vmatpush1.msra.mxu0 0.0
        %877 = vmatprep.subr.mxu0 0.0
        %878 = vmatpush1.msra.mxu0 0.0
        %879 = vmatprep.subr.mxu0 0.0
        %880 = vmatpush1.msra.mxu0 0.0
        %881 = vmatprep.subr.mxu0 0.0
        %882 = vmatpush1.msra.mxu0 0.0
        %883 = vmatprep.subr.mxu0 0.0
        %884 = vmatpush1.msra.mxu0 0.0
        %885 = vmatprep.mubr.f32.mxu0 0.0
        %886 = vmatmul.mubr.f32.gmra.mrb[0].mxu0 %v813
        %v887 = vpop.f32.mrb[0].mxu0
        %v888 = vadd.f32 0.0, %v887
        %v889 = vpop.f32.mrb[0].mxu0
        %890 = vmatprep.mubr.f32.mxu0 0.0
        %891 = vmatmul.mubr.f32.gmra.mrb[0].mxu0 %v816
        %v892 = vpop.f32.mrb[0].mxu0
        %v893 = vadd.f32 0.0, %v892
        %v894 = vpop.f32.mrb[0].mxu0
        %895 = vmatprep.mubr.f32.mxu0 0.0
        %896 = vmatmul.mubr.f32.gmra.mrb[0].mxu0 %v819
        %v897 = vpop.f32.mrb[0].mxu0
        %v898 = vadd.f32 0.0, %v897
        %v899 = vpop.f32.mrb[0].mxu0
        %900 = vdwg.mxu0
        %s901 = scalar_lea.vmem %s2, 384
        %v902 = vld [vmem:[%s901] sm:$0xff]
        %v903 = vld [vmem:[%s901 + $0x8] sm:$0xff]
        %v904 = vld [vmem:[%s901 + $0x10] sm:$0xff]
        %v905 = vld [vmem:[%s901 + $0x18] sm:$0xff]
        %s906 = scalar_lea.vmem %s2, 32
        %v907 = vld [vmem:[%s906] sm:$0xff]
        %v908 = vld [vmem:[%s906 + $0x8] sm:$0xff]
        %v909 = vld [vmem:[%s906 + $0x10] sm:$0xff]
        %v910 = vld [vmem:[%s906 + $0x18] sm:$0xff]
        %v911 = vld [vmem:[%s3 + $0x1] sm:$0x1]
        %v912 = vlaneseq
        %v913 = vshrl.u32 %v912, 7
        %v914 = vsub.s32 0, %v913
        %v915 = vrot.slane %v911, %v914
        %916 = vmatprep.subr.mxu0 0.0
        %917 = vmatpush1.msra.mxu0 %v907
        %918 = vmatprep.subr.mxu0 0.0
        %919 = vmatpush1.msra.mxu0 %v908
        %920 = vmatprep.subr.mxu0 0.0
        %921 = vmatpush1.msra.mxu0 %v909
        %922 = vmatprep.subr.mxu0 0.0
        %923 = vmatpush1.msra.mxu0 %v910
        %924 = vmatprep.subr.mxu0 0.0
        %925 = vmatpush1.msra.mxu0 0.0
        %926 = vmatprep.subr.mxu0 0.0
        %927 = vmatpush1.msra.mxu0 0.0
        %928 = vmatprep.subr.mxu0 0.0
        %929 = vmatpush1.msra.mxu0 0.0
        %930 = vmatprep.subr.mxu0 0.0
        %931 = vmatpush1.msra.mxu0 0.0
        %932 = vmatprep.subr.mxu0 0.0
        %933 = vmatpush1.msra.mxu0 0.0
        %934 = vmatprep.subr.mxu0 0.0
        %935 = vmatpush1.msra.mxu0 0.0
        %936 = vmatprep.subr.mxu0 0.0
        %937 = vmatpush1.msra.mxu0 0.0
        %938 = vmatprep.subr.mxu0 0.0
        %939 = vmatpush1.msra.mxu0 0.0
        %940 = vmatprep.subr.mxu0 0.0
        %941 = vmatpush1.msra.mxu0 0.0
        %942 = vmatprep.subr.mxu0 0.0
        %943 = vmatpush1.msra.mxu0 0.0
        %944 = vmatprep.subr.mxu0 0.0
        %945 = vmatpush1.msra.mxu0 0.0
        %946 = vmatprep.subr.mxu0 0.0
        %947 = vmatpush1.msra.mxu0 0.0
        %948 = vmatprep.subr.mxu0 0.0
        %949 = vmatpush1.msra.mxu0 0.0
        %950 = vmatprep.subr.mxu0 0.0
        %951 = vmatpush1.msra.mxu0 0.0
        %952 = vmatprep.subr.mxu0 0.0
        %953 = vmatpush1.msra.mxu0 0.0
        %954 = vmatprep.subr.mxu0 0.0
        %955 = vmatpush1.msra.mxu0 0.0
        %956 = vmatprep.subr.mxu0 0.0
        %957 = vmatpush1.msra.mxu0 0.0
        %958 = vmatprep.subr.mxu0 0.0
        %959 = vmatpush1.msra.mxu0 0.0
        %960 = vmatprep.subr.mxu0 0.0
        %961 = vmatpush1.msra.mxu0 0.0
        %962 = vmatprep.subr.mxu0 0.0
        %963 = vmatpush1.msra.mxu0 0.0
        %964 = vmatprep.subr.mxu0 0.0
        %965 = vmatpush1.msra.mxu0 0.0
        %966 = vmatprep.subr.mxu0 0.0
        %967 = vmatpush1.msra.mxu0 0.0
        %968 = vmatprep.subr.mxu0 0.0
        %969 = vmatpush1.msra.mxu0 0.0
        %970 = vmatprep.subr.mxu0 0.0
        %971 = vmatpush1.msra.mxu0 0.0
        %972 = vmatprep.subr.mxu0 0.0
        %973 = vmatpush1.msra.mxu0 0.0
        %974 = vmatprep.subr.mxu0 0.0
        %975 = vmatpush1.msra.mxu0 0.0
        %976 = vmatprep.subr.mxu0 0.0
        %977 = vmatpush1.msra.mxu0 0.0
        %978 = vmatprep.subr.mxu0 0.0
        %979 = vmatpush1.msra.mxu0 0.0
        %980 = vmatprep.mubr.f32.mxu0 0.0
        %981 = vmatmul.mubr.f32.gmra.mrb[0].mxu0 %v422
        %v982 = vpop.f32.mrb[0].mxu0
        %v983 = vadd.f32 %v915, %v982
        %v984 = vpop.f32.mrb[0].mxu0
        %985 = vmatprep.mubr.f32.mxu0 0.0
        %986 = vmatmul.mubr.f32.gmra.mrb[0].mxu0 %v425
        %v987 = vpop.f32.mrb[0].mxu0
        %v988 = vadd.f32 %v915, %v987
        %v989 = vpop.f32.mrb[0].mxu0
        %990 = vmatprep.mubr.f32.mxu0 0.0
        %991 = vmatmul.mubr.f32.gmra.mrb[0].mxu0 %v428
        %v992 = vpop.f32.mrb[0].mxu0
        %v993 = vadd.f32 %v915, %v992
        %v994 = vpop.f32.mrb[0].mxu0
        %995 = vdwg.mxu0
        %s996 = scalar_lea.vmem %s2, 160
        %v997 = vld [vmem:[%s996] sm:$0xff]
        %v998 = vld [vmem:[%s996 + $0x8] sm:$0xff]
        %v999 = vld [vmem:[%s996 + $0x10] sm:$0xff]
        %v1000 = vld [vmem:[%s996 + $0x18] sm:$0xff]
        %1001 = vmatprep.subr.mxu0 0.0
        %1002 = vmatpush1.msra.mxu0 %v997
        %1003 = vmatprep.subr.mxu0 0.0
        %1004 = vmatpush1.msra.mxu0 %v998
        %1005 = vmatprep.subr.mxu0 0.0
        %1006 = vmatpush1.msra.mxu0 %v999
        %1007 = vmatprep.subr.mxu0 0.0
        %1008 = vmatpush1.msra.mxu0 %v1000
        %1009 = vmatprep.subr.mxu0 0.0
        %1010 = vmatpush1.msra.mxu0 0.0
        %1011 = vmatprep.subr.mxu0 0.0
        %1012 = vmatpush1.msra.mxu0 0.0
        %1013 = vmatprep.subr.mxu0 0.0
        %1014 = vmatpush1.msra.mxu0 0.0
        %1015 = vmatprep.subr.mxu0 0.0
        %1016 = vmatpush1.msra.mxu0 0.0
        %1017 = vmatprep.subr.mxu0 0.0
        %1018 = vmatpush1.msra.mxu0 0.0
        %1019 = vmatprep.subr.mxu0 0.0
        %1020 = vmatpush1.msra.mxu0 0.0
        %1021 = vmatprep.subr.mxu0 0.0
        %1022 = vmatpush1.msra.mxu0 0.0
        %1023 = vmatprep.subr.mxu0 0.0
        %1024 = vmatpush1.msra.mxu0 0.0
        %1025 = vmatprep.subr.mxu0 0.0
        %1026 = vmatpush1.msra.mxu0 0.0
        %1027 = vmatprep.subr.mxu0 0.0
        %1028 = vmatpush1.msra.mxu0 0.0
        %1029 = vmatprep.subr.mxu0 0.0
        %1030 = vmatpush1.msra.mxu0 0.0
        %1031 = vmatprep.subr.mxu0 0.0
        %1032 = vmatpush1.msra.mxu0 0.0
        %1033 = vmatprep.subr.mxu0 0.0
        %1034 = vmatpush1.msra.mxu0 0.0
        %1035 = vmatprep.subr.mxu0 0.0
        %1036 = vmatpush1.msra.mxu0 0.0
        %1037 = vmatprep.subr.mxu0 0.0
        %1038 = vmatpush1.msra.mxu0 0.0
        %1039 = vmatprep.subr.mxu0 0.0
        %1040 = vmatpush1.msra.mxu0 0.0
        %1041 = vmatprep.subr.mxu0 0.0
        %1042 = vmatpush1.msra.mxu0 0.0
        %1043 = vmatprep.subr.mxu0 0.0
        %1044 = vmatpush1.msra.mxu0 0.0
        %1045 = vmatprep.subr.mxu0 0.0
        %1046 = vmatpush1.msra.mxu0 0.0
        %1047 = vmatprep.subr.mxu0 0.0
        %1048 = vmatpush1.msra.mxu0 0.0
        %1049 = vmatprep.subr.mxu0 0.0
        %1050 = vmatpush1.msra.mxu0 0.0
        %1051 = vmatprep.subr.mxu0 0.0
        %1052 = vmatpush1.msra.mxu0 0.0
        %1053 = vmatprep.subr.mxu0 0.0
        %1054 = vmatpush1.msra.mxu0 0.0
        %1055 = vmatprep.subr.mxu0 0.0
        %1056 = vmatpush1.msra.mxu0 0.0
        %1057 = vmatprep.subr.mxu0 0.0
        %1058 = vmatpush1.msra.mxu0 0.0
        %1059 = vmatprep.subr.mxu0 0.0
        %1060 = vmatpush1.msra.mxu0 0.0
        %1061 = vmatprep.subr.mxu0 0.0
        %1062 = vmatpush1.msra.mxu0 0.0
        %1063 = vmatprep.subr.mxu0 0.0
        %1064 = vmatpush1.msra.mxu0 0.0
        %1065 = vmatprep.mubr.f32.mxu0 0.0
        %1066 = vmatmul.mubr.f32.gmra.mrb[0].mxu0 %v422
        %v1067 = vpop.f32.mrb[0].mxu0
        %v1068 = vadd.f32 0.0, %v1067
        %v1069 = vpop.f32.mrb[0].mxu0
        %1070 = vmatprep.mubr.f32.mxu0 0.0
        %1071 = vmatmul.mubr.f32.gmra.mrb[0].mxu0 %v425
        %v1072 = vpop.f32.mrb[0].mxu0
        %v1073 = vadd.f32 0.0, %v1072
        %v1074 = vpop.f32.mrb[0].mxu0
        %1075 = vmatprep.mubr.f32.mxu0 0.0
        %1076 = vmatmul.mubr.f32.gmra.mrb[0].mxu0 %v428
        %v1077 = vpop.f32.mrb[0].mxu0
        %v1078 = vadd.f32 0.0, %v1077
        %v1079 = vpop.f32.mrb[0].mxu0
        %1080 = vdwg.mxu0
        %s1081 = scalar_lea.vmem %s2, 288
        %v1082 = vld [vmem:[%s1081] sm:$0xff]
        %v1083 = vld [vmem:[%s1081 + $0x8] sm:$0xff]
        %v1084 = vld [vmem:[%s1081 + $0x10] sm:$0xff]
        %v1085 = vld [vmem:[%s1081 + $0x18] sm:$0xff]
        %1086 = vmatprep.subr.mxu0 0.0
        %1087 = vmatpush1.msra.mxu0 %v1082
        %1088 = vmatprep.subr.mxu0 0.0
        %1089 = vmatpush1.msra.mxu0 %v1083
        %1090 = vmatprep.subr.mxu0 0.0
        %1091 = vmatpush1.msra.mxu0 %v1084
        %1092 = vmatprep.subr.mxu0 0.0
        %1093 = vmatpush1.msra.mxu0 %v1085
        %1094 = vmatprep.subr.mxu0 0.0
        %1095 = vmatpush1.msra.mxu0 0.0
        %1096 = vmatprep.subr.mxu0 0.0
        %1097 = vmatpush1.msra.mxu0 0.0
        %1098 = vmatprep.subr.mxu0 0.0
        %1099 = vmatpush1.msra.mxu0 0.0
        %1100 = vmatprep.subr.mxu0 0.0
        %1101 = vmatpush1.msra.mxu0 0.0
        %1102 = vmatprep.subr.mxu0 0.0
        %1103 = vmatpush1.msra.mxu0 0.0
        %1104 = vmatprep.subr.mxu0 0.0
        %1105 = vmatpush1.msra.mxu0 0.0
        %1106 = vmatprep.subr.mxu0 0.0
        %1107 = vmatpush1.msra.mxu0 0.0
        %1108 = vmatprep.subr.mxu0 0.0
        %1109 = vmatpush1.msra.mxu0 0.0
        %1110 = vmatprep.subr.mxu0 0.0
        %1111 = vmatpush1.msra.mxu0 0.0
        %1112 = vmatprep.subr.mxu0 0.0
        %1113 = vmatpush1.msra.mxu0 0.0
        %1114 = vmatprep.subr.mxu0 0.0
        %1115 = vmatpush1.msra.mxu0 0.0
        %1116 = vmatprep.subr.mxu0 0.0
        %1117 = vmatpush1.msra.mxu0 0.0
        %1118 = vmatprep.subr.mxu0 0.0
        %1119 = vmatpush1.msra.mxu0 0.0
        %1120 = vmatprep.subr.mxu0 0.0
        %1121 = vmatpush1.msra.mxu0 0.0
        %1122 = vmatprep.subr.mxu0 0.0
        %1123 = vmatpush1.msra.mxu0 0.0
        %1124 = vmatprep.subr.mxu0 0.0
        %1125 = vmatpush1.msra.mxu0 0.0
        %1126 = vmatprep.subr.mxu0 0.0
        %1127 = vmatpush1.msra.mxu0 0.0
        %1128 = vmatprep.subr.mxu0 0.0
        %1129 = vmatpush1.msra.mxu0 0.0
        %1130 = vmatprep.subr.mxu0 0.0
        %1131 = vmatpush1.msra.mxu0 0.0
        %1132 = vmatprep.subr.mxu0 0.0
        %1133 = vmatpush1.msra.mxu0 0.0
        %1134 = vmatprep.subr.mxu0 0.0
        %1135 = vmatpush1.msra.mxu0 0.0
        %1136 = vmatprep.subr.mxu0 0.0
        %1137 = vmatpush1.msra.mxu0 0.0
        %1138 = vmatprep.subr.mxu0 0.0
        %1139 = vmatpush1.msra.mxu0 0.0
        %1140 = vmatprep.subr.mxu0 0.0
        %1141 = vmatpush1.msra.mxu0 0.0
        %1142 = vmatprep.subr.mxu0 0.0
        %1143 = vmatpush1.msra.mxu0 0.0
        %1144 = vmatprep.subr.mxu0 0.0
        %1145 = vmatpush1.msra.mxu0 0.0
        %1146 = vmatprep.subr.mxu0 0.0
        %1147 = vmatpush1.msra.mxu0 0.0
        %1148 = vmatprep.subr.mxu0 0.0
        %1149 = vmatpush1.msra.mxu0 0.0
        %1150 = vmatprep.mubr.f32.mxu0 0.0
        %1151 = vmatmul.mubr.f32.gmra.mrb[0].mxu0 %v422
        %v1152 = vpop.f32.mrb[0].mxu0
        %v1153 = vadd.f32 0.0, %v1152
        %v1154 = vpop.f32.mrb[0].mxu0
        %1155 = vmatprep.mubr.f32.mxu0 0.0
        %1156 = vmatmul.mubr.f32.gmra.mrb[0].mxu0 %v425
        %v1157 = vpop.f32.mrb[0].mxu0
        %v1158 = vadd.f32 0.0, %v1157
        %v1159 = vpop.f32.mrb[0].mxu0
        %1160 = vmatprep.mubr.f32.mxu0 0.0
        %1161 = vmatmul.mubr.f32.gmra.mrb[0].mxu0 %v428
        %v1162 = vpop.f32.mrb[0].mxu0
        %v1163 = vadd.f32 0.0, %v1162
        %v1164 = vpop.f32.mrb[0].mxu0
        %1165 = vdwg.mxu0
        %v1167 = vsel %vm420, %v983, 0
        %v1170 = vsel %vm420, %v988, 0
        %v1173 = vsel %vm420, %v993, 0
        %v1176 = vsel %vm420, %v1068, 0
        %v1179 = vsel %vm420, %v1073, 0
        %v1182 = vsel %vm420, %v1078, 0
        %1184 = vmatprep.subr.mxu0 0.0
        %1185 = vmatpush1.xpose.msra.mxu0 %v1176
        %1186 = vmatprep.subr.mxu0 0.0
        %1187 = vmatpush1.xpose.msra.mxu0 %v1179
        %1188 = vmatprep.subr.mxu0 0.0
        %1189 = vmatpush1.xpose.msra.mxu0 %v1182
        %1190 = vmatprep.subr.mxu0 0.0
        %1191 = vmatpush1.xpose.msra.mxu0 0.0
        %1192 = vmatprep.subr.mxu0 0.0
        %1193 = vmatpush1.xpose.msra.mxu0 0.0
        %1194 = vmatprep.subr.mxu0 0.0
        %1195 = vmatpush1.xpose.msra.mxu0 0.0
        %1196 = vmatprep.subr.mxu0 0.0
        %1197 = vmatpush1.xpose.msra.mxu0 0.0
        %1198 = vmatprep.subr.mxu0 0.0
        %1199 = vmatpush1.xpose.msra.mxu0 0.0
        %1200 = vmatprep.subr.mxu0 0.0
        %1201 = vmatpush1.xpose.msra.mxu0 0.0
        %1202 = vmatprep.subr.mxu0 0.0
        %1203 = vmatpush1.xpose.msra.mxu0 0.0
        %1204 = vmatprep.subr.mxu0 0.0
        %1205 = vmatpush1.xpose.msra.mxu0 0.0
        %1206 = vmatprep.subr.mxu0 0.0
        %1207 = vmatpush1.xpose.msra.mxu0 0.0
        %1208 = vmatprep.subr.mxu0 0.0
        %1209 = vmatpush1.xpose.msra.mxu0 0.0
        %1210 = vmatprep.subr.mxu0 0.0
        %1211 = vmatpush1.xpose.msra.mxu0 0.0
        %1212 = vmatprep.subr.mxu0 0.0
        %1213 = vmatpush1.xpose.msra.mxu0 0.0
        %1214 = vmatprep.subr.mxu0 0.0
        %1215 = vmatpush1.xpose.msra.mxu0 0.0
        %1216 = vmatprep.subr.mxu0 0.0
        %1217 = vmatpush1.xpose.msra.mxu0 0.0
        %1218 = vmatprep.subr.mxu0 0.0
        %1219 = vmatpush1.xpose.msra.mxu0 0.0
        %1220 = vmatprep.subr.mxu0 0.0
        %1221 = vmatpush1.xpose.msra.mxu0 0.0
        %1222 = vmatprep.subr.mxu0 0.0
        %1223 = vmatpush1.xpose.msra.mxu0 0.0
        %1224 = vmatprep.subr.mxu0 0.0
        %1225 = vmatpush1.xpose.msra.mxu0 0.0
        %1226 = vmatprep.subr.mxu0 0.0
        %1227 = vmatpush1.xpose.msra.mxu0 0.0
        %1228 = vmatprep.subr.mxu0 0.0
        %1229 = vmatpush1.xpose.msra.mxu0 0.0
        %1230 = vmatprep.subr.mxu0 0.0
        %1231 = vmatpush1.xpose.msra.mxu0 0.0
        %1232 = vmatprep.subr.mxu0 0.0
        %1233 = vmatpush1.xpose.msra.mxu0 0.0
        %1234 = vmatprep.subr.mxu0 0.0
        %1235 = vmatpush1.xpose.msra.mxu0 0.0
        %1236 = vmatprep.subr.mxu0 0.0
        %1237 = vmatpush1.xpose.msra.mxu0 0.0
        %1238 = vmatprep.subr.mxu0 0.0
        %1239 = vmatpush1.xpose.msra.mxu0 0.0
        %1240 = vmatprep.subr.mxu0 0.0
        %1241 = vmatpush1.xpose.msra.mxu0 0.0
        %1242 = vmatprep.subr.mxu0 0.0
        %1243 = vmatpush1.xpose.msra.mxu0 0.0
        %1244 = vmatprep.subr.mxu0 0.0
        %1245 = vmatpush1.xpose.msra.mxu0 0.0
        %1246 = vmatprep.subr.mxu0 0.0
        %1247 = vmatpush1.xpose.msra.mxu0 0.0
        %1248 = vmatprep.mubr.f32.mxu0 0.0
        %1249 = vmatmul.mubr.f32.gmra.mrb[0].mxu0 %v1167
        %v1250 = vpop.f32.mrb[0].mxu0
        %v1251 = vadd.f32 %v410, %v1250
        %v1252 = vpop.f32.mrb[0].mxu0
        %1253 = vmatprep.mubr.f32.mxu0 0.0
        %1254 = vmatmul.mubr.f32.gmra.mrb[0].mxu0 %v1170
        %v1255 = vpop.f32.mrb[0].mxu0
        %v1256 = vadd.f32 %v410, %v1255
        %v1257 = vpop.f32.mrb[0].mxu0
        %1258 = vmatprep.mubr.f32.mxu0 0.0
        %1259 = vmatmul.mubr.f32.gmra.mrb[0].mxu0 %v1173
        %v1260 = vpop.f32.mrb[0].mxu0
        %v1261 = vadd.f32 %v410, %v1260
        %v1262 = vpop.f32.mrb[0].mxu0
        %1263 = vdwg.mxu0
        %v1264 = vsel %vm778, %v1251, -inf
        %1265 = vmax.xlane.f32.xlu0 %v1264
        %v1266 = vpop.xlane.xlu0 %1265
        %v1267 = vsel %vm778, %v1256, -inf
        %1268 = vmax.xlane.f32.xlu0 %v1267
        %v1269 = vpop.xlane.xlu0 %1268
        %v1270 = vsel %vm778, %v1261, -inf
        %1271 = vmax.xlane.f32.xlu0 %v1270
        %v1272 = vpop.xlane.xlu0 %1271
        %v1273 = vsub.f32 %v1251, %v1266
        %v1274 = vsub.f32 %v1256, %v1269
        %v1275 = vsub.f32 %v1261, %v1272
        %v1276 = vmul.f32 %v1273, 1.442695
        %v1277 = vpow.pop %v1276
        %v1278 = vmul.f32 %v1274, 1.442695
        %v1279 = vpow.pop %v1278
        %v1280 = vmul.f32 %v1275, 1.442695
        %v1281 = vpow.pop %v1280
        %v1282 = vsel %vm778, %v1277, 0.0
        %1283 = vadd.xlane.f32.xlu0 %v1282
        %v1284 = vpop.xlane.xlu0 %1283
        %v1285 = vsel %vm778, %v1279, 0.0
        %1286 = vadd.xlane.f32.xlu0 %v1285
        %v1287 = vpop.xlane.xlu0 %1286
        %v1288 = vsel %vm778, %v1281, 0.0
        %1289 = vadd.xlane.f32.xlu0 %v1288
        %v1290 = vpop.xlane.xlu0 %1289
        %v1291 = vrcp.pop %v1284
        %v1292 = vrcp.pop %v1287
        %v1293 = vrcp.pop %v1290
        %v1294 = vmul.f32 %v1277, %v1291
        %v1295 = vmul.f32 %v1279, %v1292
        %v1296 = vmul.f32 %v1281, %v1293
        %v1298 = vsel %vm778, %v1294, 0
        %v1301 = vsel %vm778, %v1295, 0
        %v1304 = vsel %vm778, %v1296, 0
        %1306 = vmatprep.subr.mxu0 0.0
        %1307 = vmatpush1.msra.mxu0 %v1153
        %1308 = vmatprep.subr.mxu0 0.0
        %1309 = vmatpush1.msra.mxu0 %v1158
        %1310 = vmatprep.subr.mxu0 0.0
        %1311 = vmatpush1.msra.mxu0 %v1163
        %1312 = vmatprep.subr.mxu0 0.0
        %1313 = vmatpush1.msra.mxu0 0.0
        %1314 = vmatprep.subr.mxu0 0.0
        %1315 = vmatpush1.msra.mxu0 0.0
        %1316 = vmatprep.subr.mxu0 0.0
        %1317 = vmatpush1.msra.mxu0 0.0
        %1318 = vmatprep.subr.mxu0 0.0
        %1319 = vmatpush1.msra.mxu0 0.0
        %1320 = vmatprep.subr.mxu0 0.0
        %1321 = vmatpush1.msra.mxu0 0.0
        %1322 = vmatprep.subr.mxu0 0.0
        %1323 = vmatpush1.msra.mxu0 0.0
        %1324 = vmatprep.subr.mxu0 0.0
        %1325 = vmatpush1.msra.mxu0 0.0
        %1326 = vmatprep.subr.mxu0 0.0
        %1327 = vmatpush1.msra.mxu0 0.0
        %1328 = vmatprep.subr.mxu0 0.0
        %1329 = vmatpush1.msra.mxu0 0.0
        %1330 = vmatprep.subr.mxu0 0.0
        %1331 = vmatpush1.msra.mxu0 0.0
        %1332 = vmatprep.subr.mxu0 0.0
        %1333 = vmatpush1.msra.mxu0 0.0
        %1334 = vmatprep.subr.mxu0 0.0
        %1335 = vmatpush1.msra.mxu0 0.0
        %1336 = vmatprep.subr.mxu0 0.0
        %1337 = vmatpush1.msra.mxu0 0.0
        %1338 = vmatprep.subr.mxu0 0.0
        %1339 = vmatpush1.msra.mxu0 0.0
        %1340 = vmatprep.subr.mxu0 0.0
        %1341 = vmatpush1.msra.mxu0 0.0
        %1342 = vmatprep.subr.mxu0 0.0
        %1343 = vmatpush1.msra.mxu0 0.0
        %1344 = vmatprep.subr.mxu0 0.0
        %1345 = vmatpush1.msra.mxu0 0.0
        %1346 = vmatprep.subr.mxu0 0.0
        %1347 = vmatpush1.msra.mxu0 0.0
        %1348 = vmatprep.subr.mxu0 0.0
        %1349 = vmatpush1.msra.mxu0 0.0
        %1350 = vmatprep.subr.mxu0 0.0
        %1351 = vmatpush1.msra.mxu0 0.0
        %1352 = vmatprep.subr.mxu0 0.0
        %1353 = vmatpush1.msra.mxu0 0.0
        %1354 = vmatprep.subr.mxu0 0.0
        %1355 = vmatpush1.msra.mxu0 0.0
        %1356 = vmatprep.subr.mxu0 0.0
        %1357 = vmatpush1.msra.mxu0 0.0
        %1358 = vmatprep.subr.mxu0 0.0
        %1359 = vmatpush1.msra.mxu0 0.0
        %1360 = vmatprep.subr.mxu0 0.0
        %1361 = vmatpush1.msra.mxu0 0.0
        %1362 = vmatprep.subr.mxu0 0.0
        %1363 = vmatpush1.msra.mxu0 0.0
        %1364 = vmatprep.subr.mxu0 0.0
        %1365 = vmatpush1.msra.mxu0 0.0
        %1366 = vmatprep.subr.mxu0 0.0
        %1367 = vmatpush1.msra.mxu0 0.0
        %1368 = vmatprep.subr.mxu0 0.0
        %1369 = vmatpush1.msra.mxu0 0.0
        %1370 = vmatprep.mubr.f32.mxu0 0.0
        %1371 = vmatmul.mubr.f32.gmra.mrb[0].mxu0 %v1298
        %v1372 = vpop.f32.mrb[0].mxu0
        %v1373 = vadd.f32 0.0, %v1372
        %v1374 = vpop.f32.mrb[0].mxu0
        %1375 = vmatprep.mubr.f32.mxu0 0.0
        %1376 = vmatmul.mubr.f32.gmra.mrb[0].mxu0 %v1301
        %v1377 = vpop.f32.mrb[0].mxu0
        %v1378 = vadd.f32 0.0, %v1377
        %v1379 = vpop.f32.mrb[0].mxu0
        %1380 = vmatprep.mubr.f32.mxu0 0.0
        %1381 = vmatmul.mubr.f32.gmra.mrb[0].mxu0 %v1304
        %v1382 = vpop.f32.mrb[0].mxu0
        %v1383 = vadd.f32 0.0, %v1382
        %v1384 = vpop.f32.mrb[0].mxu0
        %1385 = vdwg.mxu0
        %s1386 = scalar_lea.vmem %s2, 416
        %v1387 = vld [vmem:[%s1386] sm:$0xff]
        %v1388 = vld [vmem:[%s1386 + $0x8] sm:$0xff]
        %v1389 = vld [vmem:[%s1386 + $0x10] sm:$0xff]
        %v1390 = vld [vmem:[%s1386 + $0x18] sm:$0xff]
        %v1392 = vsel %vm420, %v1373, 0
        %v1395 = vsel %vm420, %v1378, 0
        %v1398 = vsel %vm420, %v1383, 0
        %1400 = vmatprep.subr.mxu0 0.0
        %1401 = vmatpush1.msra.mxu0 %v1387
        %1402 = vmatprep.subr.mxu0 0.0
        %1403 = vmatpush1.msra.mxu0 %v1388
        %1404 = vmatprep.subr.mxu0 0.0
        %1405 = vmatpush1.msra.mxu0 %v1389
        %1406 = vmatprep.subr.mxu0 0.0
        %1407 = vmatpush1.msra.mxu0 %v1390
        %1408 = vmatprep.subr.mxu0 0.0
        %1409 = vmatpush1.msra.mxu0 0.0
        %1410 = vmatprep.subr.mxu0 0.0
        %1411 = vmatpush1.msra.mxu0 0.0
        %1412 = vmatprep.subr.mxu0 0.0
        %1413 = vmatpush1.msra.mxu0 0.0
        %1414 = vmatprep.subr.mxu0 0.0
        %1415 = vmatpush1.msra.mxu0 0.0
        %1416 = vmatprep.subr.mxu0 0.0
        %1417 = vmatpush1.msra.mxu0 0.0
        %1418 = vmatprep.subr.mxu0 0.0
        %1419 = vmatpush1.msra.mxu0 0.0
        %1420 = vmatprep.subr.mxu0 0.0
        %1421 = vmatpush1.msra.mxu0 0.0
        %1422 = vmatprep.subr.mxu0 0.0
        %1423 = vmatpush1.msra.mxu0 0.0
        %1424 = vmatprep.subr.mxu0 0.0
        %1425 = vmatpush1.msra.mxu0 0.0
        %1426 = vmatprep.subr.mxu0 0.0
        %1427 = vmatpush1.msra.mxu0 0.0
        %1428 = vmatprep.subr.mxu0 0.0
        %1429 = vmatpush1.msra.mxu0 0.0
        %1430 = vmatprep.subr.mxu0 0.0
        %1431 = vmatpush1.msra.mxu0 0.0
        %1432 = vmatprep.subr.mxu0 0.0
        %1433 = vmatpush1.msra.mxu0 0.0
        %1434 = vmatprep.subr.mxu0 0.0
        %1435 = vmatpush1.msra.mxu0 0.0
        %1436 = vmatprep.subr.mxu0 0.0
        %1437 = vmatpush1.msra.mxu0 0.0
        %1438 = vmatprep.subr.mxu0 0.0
        %1439 = vmatpush1.msra.mxu0 0.0
        %1440 = vmatprep.subr.mxu0 0.0
        %1441 = vmatpush1.msra.mxu0 0.0
        %1442 = vmatprep.subr.mxu0 0.0
        %1443 = vmatpush1.msra.mxu0 0.0
        %1444 = vmatprep.subr.mxu0 0.0
        %1445 = vmatpush1.msra.mxu0 0.0
        %1446 = vmatprep.subr.mxu0 0.0
        %1447 = vmatpush1.msra.mxu0 0.0
        %1448 = vmatprep.subr.mxu0 0.0
        %1449 = vmatpush1.msra.mxu0 0.0
        %1450 = vmatprep.subr.mxu0 0.0
        %1451 = vmatpush1.msra.mxu0 0.0
        %1452 = vmatprep.subr.mxu0 0.0
        %1453 = vmatpush1.msra.mxu0 0.0
        %1454 = vmatprep.subr.mxu0 0.0
        %1455 = vmatpush1.msra.mxu0 0.0
        %1456 = vmatprep.subr.mxu0 0.0
        %1457 = vmatpush1.msra.mxu0 0.0
        %1458 = vmatprep.subr.mxu0 0.0
        %1459 = vmatpush1.msra.mxu0 0.0
        %1460 = vmatprep.subr.mxu0 0.0
        %1461 = vmatpush1.msra.mxu0 0.0
        %1462 = vmatprep.subr.mxu0 0.0
        %1463 = vmatpush1.msra.mxu0 0.0
        %1464 = vmatprep.mubr.f32.mxu0 0.0
        %1465 = vmatmul.mubr.f32.gmra.mrb[0].mxu0 %v1392
        %v1466 = vpop.f32.mrb[0].mxu0
        %v1467 = vadd.f32 0.0, %v1466
        %v1468 = vpop.f32.mrb[0].mxu0
        %1469 = vmatprep.mubr.f32.mxu0 0.0
        %1470 = vmatmul.mubr.f32.gmra.mrb[0].mxu0 %v1395
        %v1471 = vpop.f32.mrb[0].mxu0
        %v1472 = vadd.f32 0.0, %v1471
        %v1473 = vpop.f32.mrb[0].mxu0
        %1474 = vmatprep.mubr.f32.mxu0 0.0
        %1475 = vmatmul.mubr.f32.gmra.mrb[0].mxu0 %v1398
        %v1476 = vpop.f32.mrb[0].mxu0
        %v1477 = vadd.f32 0.0, %v1476
        %v1478 = vpop.f32.mrb[0].mxu0
        %1479 = vdwg.mxu0
        %v1481 = vsel %vm420, %v888, 0
        %v1484 = vsel %vm420, %v893, 0
        %v1487 = vsel %vm420, %v898, 0
        %1489 = vmatprep.subr.mxu0 0.0
        %1490 = vmatpush1.msra.mxu0 %v902
        %1491 = vmatprep.subr.mxu0 0.0
        %1492 = vmatpush1.msra.mxu0 %v903
        %1493 = vmatprep.subr.mxu0 0.0
        %1494 = vmatpush1.msra.mxu0 %v904
        %1495 = vmatprep.subr.mxu0 0.0
        %1496 = vmatpush1.msra.mxu0 %v905
        %1497 = vmatprep.subr.mxu0 0.0
        %1498 = vmatpush1.msra.mxu0 0.0
        %1499 = vmatprep.subr.mxu0 0.0
        %1500 = vmatpush1.msra.mxu0 0.0
        %1501 = vmatprep.subr.mxu0 0.0
        %1502 = vmatpush1.msra.mxu0 0.0
        %1503 = vmatprep.subr.mxu0 0.0
        %1504 = vmatpush1.msra.mxu0 0.0
        %1505 = vmatprep.subr.mxu0 0.0
        %1506 = vmatpush1.msra.mxu0 0.0
        %1507 = vmatprep.subr.mxu0 0.0
        %1508 = vmatpush1.msra.mxu0 0.0
        %1509 = vmatprep.subr.mxu0 0.0
        %1510 = vmatpush1.msra.mxu0 0.0
        %1511 = vmatprep.subr.mxu0 0.0
        %1512 = vmatpush1.msra.mxu0 0.0
        %1513 = vmatprep.subr.mxu0 0.0
        %1514 = vmatpush1.msra.mxu0 0.0
        %1515 = vmatprep.subr.mxu0 0.0
        %1516 = vmatpush1.msra.mxu0 0.0
        %1517 = vmatprep.subr.mxu0 0.0
        %1518 = vmatpush1.msra.mxu0 0.0
        %1519 = vmatprep.subr.mxu0 0.0
        %1520 = vmatpush1.msra.mxu0 0.0
        %1521 = vmatprep.subr.mxu0 0.0
        %1522 = vmatpush1.msra.mxu0 0.0
        %1523 = vmatprep.subr.mxu0 0.0
        %1524 = vmatpush1.msra.mxu0 0.0
        %1525 = vmatprep.subr.mxu0 0.0
        %1526 = vmatpush1.msra.mxu0 0.0
        %1527 = vmatprep.subr.mxu0 0.0
        %1528 = vmatpush1.msra.mxu0 0.0
        %1529 = vmatprep.subr.mxu0 0.0
        %1530 = vmatpush1.msra.mxu0 0.0
        %1531 = vmatprep.subr.mxu0 0.0
        %1532 = vmatpush1.msra.mxu0 0.0
        %1533 = vmatprep.subr.mxu0 0.0
        %1534 = vmatpush1.msra.mxu0 0.0
        %1535 = vmatprep.subr.mxu0 0.0
        %1536 = vmatpush1.msra.mxu0 0.0
        %1537 = vmatprep.subr.mxu0 0.0
        %1538 = vmatpush1.msra.mxu0 0.0
        %1539 = vmatprep.subr.mxu0 0.0
        %1540 = vmatpush1.msra.mxu0 0.0
        %1541 = vmatprep.subr.mxu0 0.0
        %1542 = vmatpush1.msra.mxu0 0.0
        %1543 = vmatprep.subr.mxu0 0.0
        %1544 = vmatpush1.msra.mxu0 0.0
        %1545 = vmatprep.subr.mxu0 0.0
        %1546 = vmatpush1.msra.mxu0 0.0
        %1547 = vmatprep.subr.mxu0 0.0
        %1548 = vmatpush1.msra.mxu0 0.0
        %1549 = vmatprep.subr.mxu0 0.0
        %1550 = vmatpush1.msra.mxu0 0.0
        %1551 = vmatprep.subr.mxu0 0.0
        %1552 = vmatpush1.msra.mxu0 0.0
        %1553 = vmatprep.mubr.f32.mxu0 0.0
        %1554 = vmatmul.mubr.f32.gmra.mrb[0].mxu0 %v1481
        %v1555 = vpop.f32.mrb[0].mxu0
        %v1556 = vadd.f32 %v1467, %v1555
        %v1557 = vpop.f32.mrb[0].mxu0
        %1558 = vmatprep.mubr.f32.mxu0 0.0
        %1559 = vmatmul.mubr.f32.gmra.mrb[0].mxu0 %v1484
        %v1560 = vpop.f32.mrb[0].mxu0
        %v1561 = vadd.f32 %v1472, %v1560
        %v1562 = vpop.f32.mrb[0].mxu0
        %1563 = vmatprep.mubr.f32.mxu0 0.0
        %1564 = vmatmul.mubr.f32.gmra.mrb[0].mxu0 %v1487
        %v1565 = vpop.f32.mrb[0].mxu0
        %v1566 = vadd.f32 %v1477, %v1565
        %v1567 = vpop.f32.mrb[0].mxu0
        %1568 = vdwg.mxu0
        %s1569 = scalar_lea.vmem %s2, 64
        %v1570 = vld [vmem:[%s1569] sm:$0xff]
        %v1571 = vld [vmem:[%s1569 + $0x8] sm:$0xff]
        %v1572 = vld [vmem:[%s1569 + $0x10] sm:$0xff]
        %v1573 = vld [vmem:[%s1569 + $0x18] sm:$0xff]
        %v1574 = vld [vmem:[%s3 + $0x2] sm:$0x1]
        %v1575 = vlaneseq
        %v1576 = vshrl.u32 %v1575, 7
        %v1577 = vsub.s32 0, %v1576
        %v1578 = vrot.slane %v1574, %v1577
        %1579 = vmatprep.subr.mxu0 0.0
        %1580 = vmatpush1.msra.mxu0 %v1570
        %1581 = vmatprep.subr.mxu0 0.0
        %1582 = vmatpush1.msra.mxu0 %v1571
        %1583 = vmatprep.subr.mxu0 0.0
        %1584 = vmatpush1.msra.mxu0 %v1572
        %1585 = vmatprep.subr.mxu0 0.0
        %1586 = vmatpush1.msra.mxu0 %v1573
        %1587 = vmatprep.subr.mxu0 0.0
        %1588 = vmatpush1.msra.mxu0 0.0
        %1589 = vmatprep.subr.mxu0 0.0
        %1590 = vmatpush1.msra.mxu0 0.0
        %1591 = vmatprep.subr.mxu0 0.0
        %1592 = vmatpush1.msra.mxu0 0.0
        %1593 = vmatprep.subr.mxu0 0.0
        %1594 = vmatpush1.msra.mxu0 0.0
        %1595 = vmatprep.subr.mxu0 0.0
        %1596 = vmatpush1.msra.mxu0 0.0
        %1597 = vmatprep.subr.mxu0 0.0
        %1598 = vmatpush1.msra.mxu0 0.0
        %1599 = vmatprep.subr.mxu0 0.0
        %1600 = vmatpush1.msra.mxu0 0.0
        %1601 = vmatprep.subr.mxu0 0.0
        %1602 = vmatpush1.msra.mxu0 0.0
        %1603 = vmatprep.subr.mxu0 0.0
        %1604 = vmatpush1.msra.mxu0 0.0
        %1605 = vmatprep.subr.mxu0 0.0
        %1606 = vmatpush1.msra.mxu0 0.0
        %1607 = vmatprep.subr.mxu0 0.0
        %1608 = vmatpush1.msra.mxu0 0.0
        %1609 = vmatprep.subr.mxu0 0.0
        %1610 = vmatpush1.msra.mxu0 0.0
        %1611 = vmatprep.subr.mxu0 0.0
        %1612 = vmatpush1.msra.mxu0 0.0
        %1613 = vmatprep.subr.mxu0 0.0
        %1614 = vmatpush1.msra.mxu0 0.0
        %1615 = vmatprep.subr.mxu0 0.0
        %1616 = vmatpush1.msra.mxu0 0.0
        %1617 = vmatprep.subr.mxu0 0.0
        %1618 = vmatpush1.msra.mxu0 0.0
        %1619 = vmatprep.subr.mxu0 0.0
        %1620 = vmatpush1.msra.mxu0 0.0
        %1621 = vmatprep.subr.mxu0 0.0
        %1622 = vmatpush1.msra.mxu0 0.0
        %1623 = vmatprep.subr.mxu0 0.0
        %1624 = vmatpush1.msra.mxu0 0.0
        %1625 = vmatprep.subr.mxu0 0.0
        %1626 = vmatpush1.msra.mxu0 0.0
        %1627 = vmatprep.subr.mxu0 0.0
        %1628 = vmatpush1.msra.mxu0 0.0
        %1629 = vmatprep.subr.mxu0 0.0
        %1630 = vmatpush1.msra.mxu0 0.0
        %1631 = vmatprep.subr.mxu0 0.0
        %1632 = vmatpush1.msra.mxu0 0.0
        %1633 = vmatprep.subr.mxu0 0.0
        %1634 = vmatpush1.msra.mxu0 0.0
        %1635 = vmatprep.subr.mxu0 0.0
        %1636 = vmatpush1.msra.mxu0 0.0
        %1637 = vmatprep.subr.mxu0 0.0
        %1638 = vmatpush1.msra.mxu0 0.0
        %1639 = vmatprep.subr.mxu0 0.0
        %1640 = vmatpush1.msra.mxu0 0.0
        %1641 = vmatprep.subr.mxu0 0.0
        %1642 = vmatpush1.msra.mxu0 0.0
        %1643 = vmatprep.mubr.f32.mxu0 0.0
        %1644 = vmatmul.mubr.f32.gmra.mrb[0].mxu0 %v422
        %v1645 = vpop.f32.mrb[0].mxu0
        %v1646 = vadd.f32 %v1578, %v1645
        %v1647 = vpop.f32.mrb[0].mxu0
        %1648 = vmatprep.mubr.f32.mxu0 0.0
        %1649 = vmatmul.mubr.f32.gmra.mrb[0].mxu0 %v425
        %v1650 = vpop.f32.mrb[0].mxu0
        %v1651 = vadd.f32 %v1578, %v1650
        %v1652 = vpop.f32.mrb[0].mxu0
        %1653 = vmatprep.mubr.f32.mxu0 0.0
        %1654 = vmatmul.mubr.f32.gmra.mrb[0].mxu0 %v428
        %v1655 = vpop.f32.mrb[0].mxu0
        %v1656 = vadd.f32 %v1578, %v1655
        %v1657 = vpop.f32.mrb[0].mxu0
        %1658 = vdwg.mxu0
        %s1659 = scalar_lea.vmem %s2, 192
        %v1660 = vld [vmem:[%s1659] sm:$0xff]
        %v1661 = vld [vmem:[%s1659 + $0x8] sm:$0xff]
        %v1662 = vld [vmem:[%s1659 + $0x10] sm:$0xff]
        %v1663 = vld [vmem:[%s1659 + $0x18] sm:$0xff]
        %1664 = vmatprep.subr.mxu0 0.0
        %1665 = vmatpush1.msra.mxu0 %v1660
        %1666 = vmatprep.subr.mxu0 0.0
        %1667 = vmatpush1.msra.mxu0 %v1661
        %1668 = vmatprep.subr.mxu0 0.0
        %1669 = vmatpush1.msra.mxu0 %v1662
        %1670 = vmatprep.subr.mxu0 0.0
        %1671 = vmatpush1.msra.mxu0 %v1663
        %1672 = vmatprep.subr.mxu0 0.0
        %1673 = vmatpush1.msra.mxu0 0.0
        %1674 = vmatprep.subr.mxu0 0.0
        %1675 = vmatpush1.msra.mxu0 0.0
        %1676 = vmatprep.subr.mxu0 0.0
        %1677 = vmatpush1.msra.mxu0 0.0
        %1678 = vmatprep.subr.mxu0 0.0
        %1679 = vmatpush1.msra.mxu0 0.0
        %1680 = vmatprep.subr.mxu0 0.0
        %1681 = vmatpush1.msra.mxu0 0.0
        %1682 = vmatprep.subr.mxu0 0.0
        %1683 = vmatpush1.msra.mxu0 0.0
        %1684 = vmatprep.subr.mxu0 0.0
        %1685 = vmatpush1.msra.mxu0 0.0
        %1686 = vmatprep.subr.mxu0 0.0
        %1687 = vmatpush1.msra.mxu0 0.0
        %1688 = vmatprep.subr.mxu0 0.0
        %1689 = vmatpush1.msra.mxu0 0.0
        %1690 = vmatprep.subr.mxu0 0.0
        %1691 = vmatpush1.msra.mxu0 0.0
        %1692 = vmatprep.subr.mxu0 0.0
        %1693 = vmatpush1.msra.mxu0 0.0
        %1694 = vmatprep.subr.mxu0 0.0
        %1695 = vmatpush1.msra.mxu0 0.0
        %1696 = vmatprep.subr.mxu0 0.0
        %1697 = vmatpush1.msra.mxu0 0.0
        %1698 = vmatprep.subr.mxu0 0.0
        %1699 = vmatpush1.msra.mxu0 0.0
        %1700 = vmatprep.subr.mxu0 0.0
        %1701 = vmatpush1.msra.mxu0 0.0
        %1702 = vmatprep.subr.mxu0 0.0
        %1703 = vmatpush1.msra.mxu0 0.0
        %1704 = vmatprep.subr.mxu0 0.0
        %1705 = vmatpush1.msra.mxu0 0.0
        %1706 = vmatprep.subr.mxu0 0.0
        %1707 = vmatpush1.msra.mxu0 0.0
        %1708 = vmatprep.subr.mxu0 0.0
        %1709 = vmatpush1.msra.mxu0 0.0
        %1710 = vmatprep.subr.mxu0 0.0
        %1711 = vmatpush1.msra.mxu0 0.0
        %1712 = vmatprep.subr.mxu0 0.0
        %1713 = vmatpush1.msra.mxu0 0.0
        %1714 = vmatprep.subr.mxu0 0.0
        %1715 = vmatpush1.msra.mxu0 0.0
        %1716 = vmatprep.subr.mxu0 0.0
        %1717 = vmatpush1.msra.mxu0 0.0
        %1718 = vmatprep.subr.mxu0 0.0
        %1719 = vmatpush1.msra.mxu0 0.0
        %1720 = vmatprep.subr.mxu0 0.0
        %1721 = vmatpush1.msra.mxu0 0.0
        %1722 = vmatprep.subr.mxu0 0.0
        %1723 = vmatpush1.msra.mxu0 0.0
        %1724 = vmatprep.subr.mxu0 0.0
        %1725 = vmatpush1.msra.mxu0 0.0
        %1726 = vmatprep.subr.mxu0 0.0
        %1727 = vmatpush1.msra.mxu0 0.0
        %1728 = vmatprep.mubr.f32.mxu0 0.0
        %1729 = vmatmul.mubr.f32.gmra.mrb[0].mxu0 %v422
        %v1730 = vpop.f32.mrb[0].mxu0
        %v1731 = vadd.f32 0.0, %v1730
        %v1732 = vpop.f32.mrb[0].mxu0
        %1733 = vmatprep.mubr.f32.mxu0 0.0
        %1734 = vmatmul.mubr.f32.gmra.mrb[0].mxu0 %v425
        %v1735 = vpop.f32.mrb[0].mxu0
        %v1736 = vadd.f32 0.0, %v1735
        %v1737 = vpop.f32.mrb[0].mxu0
        %1738 = vmatprep.mubr.f32.mxu0 0.0
        %1739 = vmatmul.mubr.f32.gmra.mrb[0].mxu0 %v428
        %v1740 = vpop.f32.mrb[0].mxu0
        %v1741 = vadd.f32 0.0, %v1740
        %v1742 = vpop.f32.mrb[0].mxu0
        %1743 = vdwg.mxu0
        %s1744 = scalar_lea.vmem %s2, 320
        %v1745 = vld [vmem:[%s1744] sm:$0xff]
        %v1746 = vld [vmem:[%s1744 + $0x8] sm:$0xff]
        %v1747 = vld [vmem:[%s1744 + $0x10] sm:$0xff]
        %v1748 = vld [vmem:[%s1744 + $0x18] sm:$0xff]
        %1749 = vmatprep.subr.mxu0 0.0
        %1750 = vmatpush1.msra.mxu0 %v1745
        %1751 = vmatprep.subr.mxu0 0.0
        %1752 = vmatpush1.msra.mxu0 %v1746
        %1753 = vmatprep.subr.mxu0 0.0
        %1754 = vmatpush1.msra.mxu0 %v1747
        %1755 = vmatprep.subr.mxu0 0.0
        %1756 = vmatpush1.msra.mxu0 %v1748
        %1757 = vmatprep.subr.mxu0 0.0
        %1758 = vmatpush1.msra.mxu0 0.0
        %1759 = vmatprep.subr.mxu0 0.0
        %1760 = vmatpush1.msra.mxu0 0.0
        %1761 = vmatprep.subr.mxu0 0.0
        %1762 = vmatpush1.msra.mxu0 0.0
        %1763 = vmatprep.subr.mxu0 0.0
        %1764 = vmatpush1.msra.mxu0 0.0
        %1765 = vmatprep.subr.mxu0 0.0
        %1766 = vmatpush1.msra.mxu0 0.0
        %1767 = vmatprep.subr.mxu0 0.0
        %1768 = vmatpush1.msra.mxu0 0.0
        %1769 = vmatprep.subr.mxu0 0.0
        %1770 = vmatpush1.msra.mxu0 0.0
        %1771 = vmatprep.subr.mxu0 0.0
        %1772 = vmatpush1.msra.mxu0 0.0
        %1773 = vmatprep.subr.mxu0 0.0
        %1774 = vmatpush1.msra.mxu0 0.0
        %1775 = vmatprep.subr.mxu0 0.0
        %1776 = vmatpush1.msra.mxu0 0.0
        %1777 = vmatprep.subr.mxu0 0.0
        %1778 = vmatpush1.msra.mxu0 0.0
        %1779 = vmatprep.subr.mxu0 0.0
        %1780 = vmatpush1.msra.mxu0 0.0
        %1781 = vmatprep.subr.mxu0 0.0
        %1782 = vmatpush1.msra.mxu0 0.0
        %1783 = vmatprep.subr.mxu0 0.0
        %1784 = vmatpush1.msra.mxu0 0.0
        %1785 = vmatprep.subr.mxu0 0.0
        %1786 = vmatpush1.msra.mxu0 0.0
        %1787 = vmatprep.subr.mxu0 0.0
        %1788 = vmatpush1.msra.mxu0 0.0
        %1789 = vmatprep.subr.mxu0 0.0
        %1790 = vmatpush1.msra.mxu0 0.0
        %1791 = vmatprep.subr.mxu0 0.0
        %1792 = vmatpush1.msra.mxu0 0.0
        %1793 = vmatprep.subr.mxu0 0.0
        %1794 = vmatpush1.msra.mxu0 0.0
        %1795 = vmatprep.subr.mxu0 0.0
        %1796 = vmatpush1.msra.mxu0 0.0
        %1797 = vmatprep.subr.mxu0 0.0
        %1798 = vmatpush1.msra.mxu0 0.0
        %1799 = vmatprep.subr.mxu0 0.0
        %1800 = vmatpush1.msra.mxu0 0.0
        %1801 = vmatprep.subr.mxu0 0.0
        %1802 = vmatpush1.msra.mxu0 0.0
        %1803 = vmatprep.subr.mxu0 0.0
        %1804 = vmatpush1.msra.mxu0 0.0
        %1805 = vmatprep.subr.mxu0 0.0
        %1806 = vmatpush1.msra.mxu0 0.0
        %1807 = vmatprep.subr.mxu0 0.0
        %1808 = vmatpush1.msra.mxu0 0.0
        %1809 = vmatprep.subr.mxu0 0.0
        %1810 = vmatpush1.msra.mxu0 0.0
        %1811 = vmatprep.subr.mxu0 0.0
        %1812 = vmatpush1.msra.mxu0 0.0
        %1813 = vmatprep.mubr.f32.mxu0 0.0
        %1814 = vmatmul.mubr.f32.gmra.mrb[0].mxu0 %v422
        %v1815 = vpop.f32.mrb[0].mxu0
        %v1816 = vadd.f32 0.0, %v1815
        %v1817 = vpop.f32.mrb[0].mxu0
        %1818 = vmatprep.mubr.f32.mxu0 0.0
        %1819 = vmatmul.mubr.f32.gmra.mrb[0].mxu0 %v425
        %v1820 = vpop.f32.mrb[0].mxu0
        %v1821 = vadd.f32 0.0, %v1820
        %v1822 = vpop.f32.mrb[0].mxu0
        %1823 = vmatprep.mubr.f32.mxu0 0.0
        %1824 = vmatmul.mubr.f32.gmra.mrb[0].mxu0 %v428
        %v1825 = vpop.f32.mrb[0].mxu0
        %v1826 = vadd.f32 0.0, %v1825
        %v1827 = vpop.f32.mrb[0].mxu0
        %1828 = vdwg.mxu0
        %v1830 = vsel %vm420, %v1646, 0
        %v1833 = vsel %vm420, %v1651, 0
        %v1836 = vsel %vm420, %v1656, 0
        %v1839 = vsel %vm420, %v1731, 0
        %v1842 = vsel %vm420, %v1736, 0
        %v1845 = vsel %vm420, %v1741, 0
        %1847 = vmatprep.subr.mxu0 0.0
        %1848 = vmatpush1.xpose.msra.mxu0 %v1839
        %1849 = vmatprep.subr.mxu0 0.0
        %1850 = vmatpush1.xpose.msra.mxu0 %v1842
        %1851 = vmatprep.subr.mxu0 0.0
        %1852 = vmatpush1.xpose.msra.mxu0 %v1845
        %1853 = vmatprep.subr.mxu0 0.0
        %1854 = vmatpush1.xpose.msra.mxu0 0.0
        %1855 = vmatprep.subr.mxu0 0.0
        %1856 = vmatpush1.xpose.msra.mxu0 0.0
        %1857 = vmatprep.subr.mxu0 0.0
        %1858 = vmatpush1.xpose.msra.mxu0 0.0
        %1859 = vmatprep.subr.mxu0 0.0
        %1860 = vmatpush1.xpose.msra.mxu0 0.0
        %1861 = vmatprep.subr.mxu0 0.0
        %1862 = vmatpush1.xpose.msra.mxu0 0.0
        %1863 = vmatprep.subr.mxu0 0.0
        %1864 = vmatpush1.xpose.msra.mxu0 0.0
        %1865 = vmatprep.subr.mxu0 0.0
        %1866 = vmatpush1.xpose.msra.mxu0 0.0
        %1867 = vmatprep.subr.mxu0 0.0
        %1868 = vmatpush1.xpose.msra.mxu0 0.0
        %1869 = vmatprep.subr.mxu0 0.0
        %1870 = vmatpush1.xpose.msra.mxu0 0.0
        %1871 = vmatprep.subr.mxu0 0.0
        %1872 = vmatpush1.xpose.msra.mxu0 0.0
        %1873 = vmatprep.subr.mxu0 0.0
        %1874 = vmatpush1.xpose.msra.mxu0 0.0
        %1875 = vmatprep.subr.mxu0 0.0
        %1876 = vmatpush1.xpose.msra.mxu0 0.0
        %1877 = vmatprep.subr.mxu0 0.0
        %1878 = vmatpush1.xpose.msra.mxu0 0.0
        %1879 = vmatprep.subr.mxu0 0.0
        %1880 = vmatpush1.xpose.msra.mxu0 0.0
        %1881 = vmatprep.subr.mxu0 0.0
        %1882 = vmatpush1.xpose.msra.mxu0 0.0
        %1883 = vmatprep.subr.mxu0 0.0
        %1884 = vmatpush1.xpose.msra.mxu0 0.0
        %1885 = vmatprep.subr.mxu0 0.0
        %1886 = vmatpush1.xpose.msra.mxu0 0.0
        %1887 = vmatprep.subr.mxu0 0.0
        %1888 = vmatpush1.xpose.msra.mxu0 0.0
        %1889 = vmatprep.subr.mxu0 0.0
        %1890 = vmatpush1.xpose.msra.mxu0 0.0
        %1891 = vmatprep.subr.mxu0 0.0
        %1892 = vmatpush1.xpose.msra.mxu0 0.0
        %1893 = vmatprep.subr.mxu0 0.0
        %1894 = vmatpush1.xpose.msra.mxu0 0.0
        %1895 = vmatprep.subr.mxu0 0.0
        %1896 = vmatpush1.xpose.msra.mxu0 0.0
        %1897 = vmatprep.subr.mxu0 0.0
        %1898 = vmatpush1.xpose.msra.mxu0 0.0
        %1899 = vmatprep.subr.mxu0 0.0
        %1900 = vmatpush1.xpose.msra.mxu0 0.0
        %1901 = vmatprep.subr.mxu0 0.0
        %1902 = vmatpush1.xpose.msra.mxu0 0.0
        %1903 = vmatprep.subr.mxu0 0.0
        %1904 = vmatpush1.xpose.msra.mxu0 0.0
        %1905 = vmatprep.subr.mxu0 0.0
        %1906 = vmatpush1.xpose.msra.mxu0 0.0
        %1907 = vmatprep.subr.mxu0 0.0
        %1908 = vmatpush1.xpose.msra.mxu0 0.0
        %1909 = vmatprep.subr.mxu0 0.0
        %1910 = vmatpush1.xpose.msra.mxu0 0.0
        %1911 = vmatprep.mubr.f32.mxu0 0.0
        %1912 = vmatmul.mubr.f32.gmra.mrb[0].mxu0 %v1830
        %v1913 = vpop.f32.mrb[0].mxu0
        %v1914 = vadd.f32 %v410, %v1913
        %v1915 = vpop.f32.mrb[0].mxu0
        %1916 = vmatprep.mubr.f32.mxu0 0.0
        %1917 = vmatmul.mubr.f32.gmra.mrb[0].mxu0 %v1833
        %v1918 = vpop.f32.mrb[0].mxu0
        %v1919 = vadd.f32 %v410, %v1918
        %v1920 = vpop.f32.mrb[0].mxu0
        %1921 = vmatprep.mubr.f32.mxu0 0.0
        %1922 = vmatmul.mubr.f32.gmra.mrb[0].mxu0 %v1836
        %v1923 = vpop.f32.mrb[0].mxu0
        %v1924 = vadd.f32 %v410, %v1923
        %v1925 = vpop.f32.mrb[0].mxu0
        %1926 = vdwg.mxu0
        %v1927 = vsel %vm778, %v1914, -inf
        %1928 = vmax.xlane.f32.xlu0 %v1927
        %v1929 = vpop.xlane.xlu0 %1928
        %v1930 = vsel %vm778, %v1919, -inf
        %1931 = vmax.xlane.f32.xlu0 %v1930
        %v1932 = vpop.xlane.xlu0 %1931
        %v1933 = vsel %vm778, %v1924, -inf
        %1934 = vmax.xlane.f32.xlu0 %v1933
        %v1935 = vpop.xlane.xlu0 %1934
        %v1936 = vsub.f32 %v1914, %v1929
        %v1937 = vsub.f32 %v1919, %v1932
        %v1938 = vsub.f32 %v1924, %v1935
        %v1939 = vmul.f32 %v1936, 1.442695
        %v1940 = vpow.pop %v1939
        %v1941 = vmul.f32 %v1937, 1.442695
        %v1942 = vpow.pop %v1941
        %v1943 = vmul.f32 %v1938, 1.442695
        %v1944 = vpow.pop %v1943
        %v1945 = vsel %vm778, %v1940, 0.0
        %1946 = vadd.xlane.f32.xlu0 %v1945
        %v1947 = vpop.xlane.xlu0 %1946
        %v1948 = vsel %vm778, %v1942, 0.0
        %1949 = vadd.xlane.f32.xlu0 %v1948
        %v1950 = vpop.xlane.xlu0 %1949
        %v1951 = vsel %vm778, %v1944, 0.0
        %1952 = vadd.xlane.f32.xlu0 %v1951
        %v1953 = vpop.xlane.xlu0 %1952
        %v1954 = vrcp.pop %v1947
        %v1955 = vrcp.pop %v1950
        %v1956 = vrcp.pop %v1953
        %v1957 = vmul.f32 %v1940, %v1954
        %v1958 = vmul.f32 %v1942, %v1955
        %v1959 = vmul.f32 %v1944, %v1956
        %v1961 = vsel %vm778, %v1957, 0
        %v1964 = vsel %vm778, %v1958, 0
        %v1967 = vsel %vm778, %v1959, 0
        %1969 = vmatprep.subr.mxu0 0.0
        %1970 = vmatpush1.msra.mxu0 %v1816
        %1971 = vmatprep.subr.mxu0 0.0
        %1972 = vmatpush1.msra.mxu0 %v1821
        %1973 = vmatprep.subr.mxu0 0.0
        %1974 = vmatpush1.msra.mxu0 %v1826
        %1975 = vmatprep.subr.mxu0 0.0
        %1976 = vmatpush1.msra.mxu0 0.0
        %1977 = vmatprep.subr.mxu0 0.0
        %1978 = vmatpush1.msra.mxu0 0.0
        %1979 = vmatprep.subr.mxu0 0.0
        %1980 = vmatpush1.msra.mxu0 0.0
        %1981 = vmatprep.subr.mxu0 0.0
        %1982 = vmatpush1.msra.mxu0 0.0
        %1983 = vmatprep.subr.mxu0 0.0
        %1984 = vmatpush1.msra.mxu0 0.0
        %1985 = vmatprep.subr.mxu0 0.0
        %1986 = vmatpush1.msra.mxu0 0.0
        %1987 = vmatprep.subr.mxu0 0.0
        %1988 = vmatpush1.msra.mxu0 0.0
        %1989 = vmatprep.subr.mxu0 0.0
        %1990 = vmatpush1.msra.mxu0 0.0
        %1991 = vmatprep.subr.mxu0 0.0
        %1992 = vmatpush1.msra.mxu0 0.0
        %1993 = vmatprep.subr.mxu0 0.0
        %1994 = vmatpush1.msra.mxu0 0.0
        %1995 = vmatprep.subr.mxu0 0.0
        %1996 = vmatpush1.msra.mxu0 0.0
        %1997 = vmatprep.subr.mxu0 0.0
        %1998 = vmatpush1.msra.mxu0 0.0
        %1999 = vmatprep.subr.mxu0 0.0
        %2000 = vmatpush1.msra.mxu0 0.0
        %2001 = vmatprep.subr.mxu0 0.0
        %2002 = vmatpush1.msra.mxu0 0.0
        %2003 = vmatprep.subr.mxu0 0.0
        %2004 = vmatpush1.msra.mxu0 0.0
        %2005 = vmatprep.subr.mxu0 0.0
        %2006 = vmatpush1.msra.mxu0 0.0
        %2007 = vmatprep.subr.mxu0 0.0
        %2008 = vmatpush1.msra.mxu0 0.0
        %2009 = vmatprep.subr.mxu0 0.0
        %2010 = vmatpush1.msra.mxu0 0.0
        %2011 = vmatprep.subr.mxu0 0.0
        %2012 = vmatpush1.msra.mxu0 0.0
        %2013 = vmatprep.subr.mxu0 0.0
        %2014 = vmatpush1.msra.mxu0 0.0
        %2015 = vmatprep.subr.mxu0 0.0
        %2016 = vmatpush1.msra.mxu0 0.0
        %2017 = vmatprep.subr.mxu0 0.0
        %2018 = vmatpush1.msra.mxu0 0.0
        %2019 = vmatprep.subr.mxu0 0.0
        %2020 = vmatpush1.msra.mxu0 0.0
        %2021 = vmatprep.subr.mxu0 0.0
        %2022 = vmatpush1.msra.mxu0 0.0
        %2023 = vmatprep.subr.mxu0 0.0
        %2024 = vmatpush1.msra.mxu0 0.0
        %2025 = vmatprep.subr.mxu0 0.0
        %2026 = vmatpush1.msra.mxu0 0.0
        %2027 = vmatprep.subr.mxu0 0.0
        %2028 = vmatpush1.msra.mxu0 0.0
        %2029 = vmatprep.subr.mxu0 0.0
        %2030 = vmatpush1.msra.mxu0 0.0
        %2031 = vmatprep.subr.mxu0 0.0
        %2032 = vmatpush1.msra.mxu0 0.0
        %2033 = vmatprep.mubr.f32.mxu0 0.0
        %2034 = vmatmul.mubr.f32.gmra.mrb[0].mxu0 %v1961
        %v2035 = vpop.f32.mrb[0].mxu0
        %v2036 = vadd.f32 0.0, %v2035
        %v2037 = vpop.f32.mrb[0].mxu0
        %2038 = vmatprep.mubr.f32.mxu0 0.0
        %2039 = vmatmul.mubr.f32.gmra.mrb[0].mxu0 %v1964
        %v2040 = vpop.f32.mrb[0].mxu0
        %v2041 = vadd.f32 0.0, %v2040
        %v2042 = vpop.f32.mrb[0].mxu0
        %2043 = vmatprep.mubr.f32.mxu0 0.0
        %2044 = vmatmul.mubr.f32.gmra.mrb[0].mxu0 %v1967
        %v2045 = vpop.f32.mrb[0].mxu0
        %v2046 = vadd.f32 0.0, %v2045
        %v2047 = vpop.f32.mrb[0].mxu0
        %2048 = vdwg.mxu0
        %s2049 = scalar_lea.vmem %s2, 448
        %v2050 = vld [vmem:[%s2049] sm:$0xff]
        %v2051 = vld [vmem:[%s2049 + $0x8] sm:$0xff]
        %v2052 = vld [vmem:[%s2049 + $0x10] sm:$0xff]
        %v2053 = vld [vmem:[%s2049 + $0x18] sm:$0xff]
        %v2055 = vsel %vm420, %v2036, 0
        %v2058 = vsel %vm420, %v2041, 0
        %v2061 = vsel %vm420, %v2046, 0
        %2063 = vmatprep.subr.mxu0 0.0
        %2064 = vmatpush1.msra.mxu0 %v2050
        %2065 = vmatprep.subr.mxu0 0.0
        %2066 = vmatpush1.msra.mxu0 %v2051
        %2067 = vmatprep.subr.mxu0 0.0
        %2068 = vmatpush1.msra.mxu0 %v2052
        %2069 = vmatprep.subr.mxu0 0.0
        %2070 = vmatpush1.msra.mxu0 %v2053
        %2071 = vmatprep.subr.mxu0 0.0
        %2072 = vmatpush1.msra.mxu0 0.0
        %2073 = vmatprep.subr.mxu0 0.0
        %2074 = vmatpush1.msra.mxu0 0.0
        %2075 = vmatprep.subr.mxu0 0.0
        %2076 = vmatpush1.msra.mxu0 0.0
        %2077 = vmatprep.subr.mxu0 0.0
        %2078 = vmatpush1.msra.mxu0 0.0
        %2079 = vmatprep.subr.mxu0 0.0
        %2080 = vmatpush1.msra.mxu0 0.0
        %2081 = vmatprep.subr.mxu0 0.0
        %2082 = vmatpush1.msra.mxu0 0.0
        %2083 = vmatprep.subr.mxu0 0.0
        %2084 = vmatpush1.msra.mxu0 0.0
        %2085 = vmatprep.subr.mxu0 0.0
        %2086 = vmatpush1.msra.mxu0 0.0
        %2087 = vmatprep.subr.mxu0 0.0
        %2088 = vmatpush1.msra.mxu0 0.0
        %2089 = vmatprep.subr.mxu0 0.0
        %2090 = vmatpush1.msra.mxu0 0.0
        %2091 = vmatprep.subr.mxu0 0.0
        %2092 = vmatpush1.msra.mxu0 0.0
        %2093 = vmatprep.subr.mxu0 0.0
        %2094 = vmatpush1.msra.mxu0 0.0
        %2095 = vmatprep.subr.mxu0 0.0
        %2096 = vmatpush1.msra.mxu0 0.0
        %2097 = vmatprep.subr.mxu0 0.0
        %2098 = vmatpush1.msra.mxu0 0.0
        %2099 = vmatprep.subr.mxu0 0.0
        %2100 = vmatpush1.msra.mxu0 0.0
        %2101 = vmatprep.subr.mxu0 0.0
        %2102 = vmatpush1.msra.mxu0 0.0
        %2103 = vmatprep.subr.mxu0 0.0
        %2104 = vmatpush1.msra.mxu0 0.0
        %2105 = vmatprep.subr.mxu0 0.0
        %2106 = vmatpush1.msra.mxu0 0.0
        %2107 = vmatprep.subr.mxu0 0.0
        %2108 = vmatpush1.msra.mxu0 0.0
        %2109 = vmatprep.subr.mxu0 0.0
        %2110 = vmatpush1.msra.mxu0 0.0
        %2111 = vmatprep.subr.mxu0 0.0
        %2112 = vmatpush1.msra.mxu0 0.0
        %2113 = vmatprep.subr.mxu0 0.0
        %2114 = vmatpush1.msra.mxu0 0.0
        %2115 = vmatprep.subr.mxu0 0.0
        %2116 = vmatpush1.msra.mxu0 0.0
        %2117 = vmatprep.subr.mxu0 0.0
        %2118 = vmatpush1.msra.mxu0 0.0
        %2119 = vmatprep.subr.mxu0 0.0
        %2120 = vmatpush1.msra.mxu0 0.0
        %2121 = vmatprep.subr.mxu0 0.0
        %2122 = vmatpush1.msra.mxu0 0.0
        %2123 = vmatprep.subr.mxu0 0.0
        %2124 = vmatpush1.msra.mxu0 0.0
        %2125 = vmatprep.subr.mxu0 0.0
        %2126 = vmatpush1.msra.mxu0 0.0
        %2127 = vmatprep.mubr.f32.mxu0 0.0
        %2128 = vmatmul.mubr.f32.gmra.mrb[0].mxu0 %v2055
        %v2129 = vpop.f32.mrb[0].mxu0
        %v2130 = vadd.f32 0.0, %v2129
        %v2131 = vpop.f32.mrb[0].mxu0
        %2132 = vmatprep.mubr.f32.mxu0 0.0
        %2133 = vmatmul.mubr.f32.gmra.mrb[0].mxu0 %v2058
        %v2134 = vpop.f32.mrb[0].mxu0
        %v2135 = vadd.f32 0.0, %v2134
        %v2136 = vpop.f32.mrb[0].mxu0
        %2137 = vmatprep.mubr.f32.mxu0 0.0
        %2138 = vmatmul.mubr.f32.gmra.mrb[0].mxu0 %v2061
        %v2139 = vpop.f32.mrb[0].mxu0
        %v2140 = vadd.f32 0.0, %v2139
        %v2141 = vpop.f32.mrb[0].mxu0
        %2142 = vdwg.mxu0
        %v2143 = vadd.f32 %v1556, %v2130
        %v2144 = vadd.f32 %v1561, %v2135
        %v2145 = vadd.f32 %v1566, %v2140
        %s2146 = scalar_lea.vmem %s2, 96
        %v2147 = vld [vmem:[%s2146] sm:$0xff]
        %v2148 = vld [vmem:[%s2146 + $0x8] sm:$0xff]
        %v2149 = vld [vmem:[%s2146 + $0x10] sm:$0xff]
        %v2150 = vld [vmem:[%s2146 + $0x18] sm:$0xff]
        %v2151 = vld [vmem:[%s3 + $0x3] sm:$0x1]
        %v2152 = vlaneseq
        %v2153 = vshrl.u32 %v2152, 7
        %v2154 = vsub.s32 0, %v2153
        %v2155 = vrot.slane %v2151, %v2154
        %2156 = vmatprep.subr.mxu0 0.0
        %2157 = vmatpush1.msra.mxu0 %v2147
        %2158 = vmatprep.subr.mxu0 0.0
        %2159 = vmatpush1.msra.mxu0 %v2148
        %2160 = vmatprep.subr.mxu0 0.0
        %2161 = vmatpush1.msra.mxu0 %v2149
        %2162 = vmatprep.subr.mxu0 0.0
        %2163 = vmatpush1.msra.mxu0 %v2150
        %2164 = vmatprep.subr.mxu0 0.0
        %2165 = vmatpush1.msra.mxu0 0.0
        %2166 = vmatprep.subr.mxu0 0.0
        %2167 = vmatpush1.msra.mxu0 0.0
        %2168 = vmatprep.subr.mxu0 0.0
        %2169 = vmatpush1.msra.mxu0 0.0
        %2170 = vmatprep.subr.mxu0 0.0
        %2171 = vmatpush1.msra.mxu0 0.0
        %2172 = vmatprep.subr.mxu0 0.0
        %2173 = vmatpush1.msra.mxu0 0.0
        %2174 = vmatprep.subr.mxu0 0.0
        %2175 = vmatpush1.msra.mxu0 0.0
        %2176 = vmatprep.subr.mxu0 0.0
        %2177 = vmatpush1.msra.mxu0 0.0
        %2178 = vmatprep.subr.mxu0 0.0
        %2179 = vmatpush1.msra.mxu0 0.0
        %2180 = vmatprep.subr.mxu0 0.0
        %2181 = vmatpush1.msra.mxu0 0.0
        %2182 = vmatprep.subr.mxu0 0.0
        %2183 = vmatpush1.msra.mxu0 0.0
        %2184 = vmatprep.subr.mxu0 0.0
        %2185 = vmatpush1.msra.mxu0 0.0
        %2186 = vmatprep.subr.mxu0 0.0
        %2187 = vmatpush1.msra.mxu0 0.0
        %2188 = vmatprep.subr.mxu0 0.0
        %2189 = vmatpush1.msra.mxu0 0.0
        %2190 = vmatprep.subr.mxu0 0.0
        %2191 = vmatpush1.msra.mxu0 0.0
        %2192 = vmatprep.subr.mxu0 0.0
        %2193 = vmatpush1.msra.mxu0 0.0
        %2194 = vmatprep.subr.mxu0 0.0
        %2195 = vmatpush1.msra.mxu0 0.0
        %2196 = vmatprep.subr.mxu0 0.0
        %2197 = vmatpush1.msra.mxu0 0.0
        %2198 = vmatprep.subr.mxu0 0.0
        %2199 = vmatpush1.msra.mxu0 0.0
        %2200 = vmatprep.subr.mxu0 0.0
        %2201 = vmatpush1.msra.mxu0 0.0
        %2202 = vmatprep.subr.mxu0 0.0
        %2203 = vmatpush1.msra.mxu0 0.0
        %2204 = vmatprep.subr.mxu0 0.0
        %2205 = vmatpush1.msra.mxu0 0.0
        %2206 = vmatprep.subr.mxu0 0.0
        %2207 = vmatpush1.msra.mxu0 0.0
        %2208 = vmatprep.subr.mxu0 0.0
        %2209 = vmatpush1.msra.mxu0 0.0
        %2210 = vmatprep.subr.mxu0 0.0
        %2211 = vmatpush1.msra.mxu0 0.0
        %2212 = vmatprep.subr.mxu0 0.0
        %2213 = vmatpush1.msra.mxu0 0.0
        %2214 = vmatprep.subr.mxu0 0.0
        %2215 = vmatpush1.msra.mxu0 0.0
        %2216 = vmatprep.subr.mxu0 0.0
        %2217 = vmatpush1.msra.mxu0 0.0
        %2218 = vmatprep.subr.mxu0 0.0
        %2219 = vmatpush1.msra.mxu0 0.0
        %2220 = vmatprep.mubr.f32.mxu0 0.0
        %2221 = vmatmul.mubr.f32.gmra.mrb[0].mxu0 %v422
        %v2222 = vpop.f32.mrb[0].mxu0
        %v2223 = vadd.f32 %v2155, %v2222
        %v2224 = vpop.f32.mrb[0].mxu0
        %2225 = vmatprep.mubr.f32.mxu0 0.0
        %2226 = vmatmul.mubr.f32.gmra.mrb[0].mxu0 %v425
        %v2227 = vpop.f32.mrb[0].mxu0
        %v2228 = vadd.f32 %v2155, %v2227
        %v2229 = vpop.f32.mrb[0].mxu0
        %2230 = vmatprep.mubr.f32.mxu0 0.0
        %2231 = vmatmul.mubr.f32.gmra.mrb[0].mxu0 %v428
        %v2232 = vpop.f32.mrb[0].mxu0
        %v2233 = vadd.f32 %v2155, %v2232
        %v2234 = vpop.f32.mrb[0].mxu0
        %2235 = vdwg.mxu0
        %s2236 = scalar_lea.vmem %s2, 224
        %v2237 = vld [vmem:[%s2236] sm:$0xff]
        %v2238 = vld [vmem:[%s2236 + $0x8] sm:$0xff]
        %v2239 = vld [vmem:[%s2236 + $0x10] sm:$0xff]
        %v2240 = vld [vmem:[%s2236 + $0x18] sm:$0xff]
        %2241 = vmatprep.subr.mxu0 0.0
        %2242 = vmatpush1.msra.mxu0 %v2237
        %2243 = vmatprep.subr.mxu0 0.0
        %2244 = vmatpush1.msra.mxu0 %v2238
        %2245 = vmatprep.subr.mxu0 0.0
        %2246 = vmatpush1.msra.mxu0 %v2239
        %2247 = vmatprep.subr.mxu0 0.0
        %2248 = vmatpush1.msra.mxu0 %v2240
        %2249 = vmatprep.subr.mxu0 0.0
        %2250 = vmatpush1.msra.mxu0 0.0
        %2251 = vmatprep.subr.mxu0 0.0
        %2252 = vmatpush1.msra.mxu0 0.0
        %2253 = vmatprep.subr.mxu0 0.0
        %2254 = vmatpush1.msra.mxu0 0.0
        %2255 = vmatprep.subr.mxu0 0.0
        %2256 = vmatpush1.msra.mxu0 0.0
        %2257 = vmatprep.subr.mxu0 0.0
        %2258 = vmatpush1.msra.mxu0 0.0
        %2259 = vmatprep.subr.mxu0 0.0
        %2260 = vmatpush1.msra.mxu0 0.0
        %2261 = vmatprep.subr.mxu0 0.0
        %2262 = vmatpush1.msra.mxu0 0.0
        %2263 = vmatprep.subr.mxu0 0.0
        %2264 = vmatpush1.msra.mxu0 0.0
        %2265 = vmatprep.subr.mxu0 0.0
        %2266 = vmatpush1.msra.mxu0 0.0
        %2267 = vmatprep.subr.mxu0 0.0
        %2268 = vmatpush1.msra.mxu0 0.0
        %2269 = vmatprep.subr.mxu0 0.0
        %2270 = vmatpush1.msra.mxu0 0.0
        %2271 = vmatprep.subr.mxu0 0.0
        %2272 = vmatpush1.msra.mxu0 0.0
        %2273 = vmatprep.subr.mxu0 0.0
        %2274 = vmatpush1.msra.mxu0 0.0
        %2275 = vmatprep.subr.mxu0 0.0
        %2276 = vmatpush1.msra.mxu0 0.0
        %2277 = vmatprep.subr.mxu0 0.0
        %2278 = vmatpush1.msra.mxu0 0.0
        %2279 = vmatprep.subr.mxu0 0.0
        %2280 = vmatpush1.msra.mxu0 0.0
        %2281 = vmatprep.subr.mxu0 0.0
        %2282 = vmatpush1.msra.mxu0 0.0
        %2283 = vmatprep.subr.mxu0 0.0
        %2284 = vmatpush1.msra.mxu0 0.0
        %2285 = vmatprep.subr.mxu0 0.0
        %2286 = vmatpush1.msra.mxu0 0.0
        %2287 = vmatprep.subr.mxu0 0.0
        %2288 = vmatpush1.msra.mxu0 0.0
        %2289 = vmatprep.subr.mxu0 0.0
        %2290 = vmatpush1.msra.mxu0 0.0
        %2291 = vmatprep.subr.mxu0 0.0
        %2292 = vmatpush1.msra.mxu0 0.0
        %2293 = vmatprep.subr.mxu0 0.0
        %2294 = vmatpush1.msra.mxu0 0.0
        %2295 = vmatprep.subr.mxu0 0.0
        %2296 = vmatpush1.msra.mxu0 0.0
        %2297 = vmatprep.subr.mxu0 0.0
        %2298 = vmatpush1.msra.mxu0 0.0
        %2299 = vmatprep.subr.mxu0 0.0
        %2300 = vmatpush1.msra.mxu0 0.0
        %2301 = vmatprep.subr.mxu0 0.0
        %2302 = vmatpush1.msra.mxu0 0.0
        %2303 = vmatprep.subr.mxu0 0.0
        %2304 = vmatpush1.msra.mxu0 0.0
        %2305 = vmatprep.mubr.f32.mxu0 0.0
        %2306 = vmatmul.mubr.f32.gmra.mrb[0].mxu0 %v422
        %v2307 = vpop.f32.mrb[0].mxu0
        %v2308 = vadd.f32 0.0, %v2307
        %v2309 = vpop.f32.mrb[0].mxu0
        %2310 = vmatprep.mubr.f32.mxu0 0.0
        %2311 = vmatmul.mubr.f32.gmra.mrb[0].mxu0 %v425
        %v2312 = vpop.f32.mrb[0].mxu0
        %v2313 = vadd.f32 0.0, %v2312
        %v2314 = vpop.f32.mrb[0].mxu0
        %2315 = vmatprep.mubr.f32.mxu0 0.0
        %2316 = vmatmul.mubr.f32.gmra.mrb[0].mxu0 %v428
        %v2317 = vpop.f32.mrb[0].mxu0
        %v2318 = vadd.f32 0.0, %v2317
        %v2319 = vpop.f32.mrb[0].mxu0
        %2320 = vdwg.mxu0
        %s2321 = scalar_lea.vmem %s2, 352
        %v2322 = vld [vmem:[%s2321] sm:$0xff]
        %v2323 = vld [vmem:[%s2321 + $0x8] sm:$0xff]
        %v2324 = vld [vmem:[%s2321 + $0x10] sm:$0xff]
        %v2325 = vld [vmem:[%s2321 + $0x18] sm:$0xff]
        %2326 = vmatprep.subr.mxu0 0.0
        %2327 = vmatpush1.msra.mxu0 %v2322
        %2328 = vmatprep.subr.mxu0 0.0
        %2329 = vmatpush1.msra.mxu0 %v2323
        %2330 = vmatprep.subr.mxu0 0.0
        %2331 = vmatpush1.msra.mxu0 %v2324
        %2332 = vmatprep.subr.mxu0 0.0
        %2333 = vmatpush1.msra.mxu0 %v2325
        %2334 = vmatprep.subr.mxu0 0.0
        %2335 = vmatpush1.msra.mxu0 0.0
        %2336 = vmatprep.subr.mxu0 0.0
        %2337 = vmatpush1.msra.mxu0 0.0
        %2338 = vmatprep.subr.mxu0 0.0
        %2339 = vmatpush1.msra.mxu0 0.0
        %2340 = vmatprep.subr.mxu0 0.0
        %2341 = vmatpush1.msra.mxu0 0.0
        %2342 = vmatprep.subr.mxu0 0.0
        %2343 = vmatpush1.msra.mxu0 0.0
        %2344 = vmatprep.subr.mxu0 0.0
        %2345 = vmatpush1.msra.mxu0 0.0
        %2346 = vmatprep.subr.mxu0 0.0
        %2347 = vmatpush1.msra.mxu0 0.0
        %2348 = vmatprep.subr.mxu0 0.0
        %2349 = vmatpush1.msra.mxu0 0.0
        %2350 = vmatprep.subr.mxu0 0.0
        %2351 = vmatpush1.msra.mxu0 0.0
        %2352 = vmatprep.subr.mxu0 0.0
        %2353 = vmatpush1.msra.mxu0 0.0
        %2354 = vmatprep.subr.mxu0 0.0
        %2355 = vmatpush1.msra.mxu0 0.0
        %2356 = vmatprep.subr.mxu0 0.0
        %2357 = vmatpush1.msra.mxu0 0.0
        %2358 = vmatprep.subr.mxu0 0.0
        %2359 = vmatpush1.msra.mxu0 0.0
        %2360 = vmatprep.subr.mxu0 0.0
        %2361 = vmatpush1.msra.mxu0 0.0
        %2362 = vmatprep.subr.mxu0 0.0
        %2363 = vmatpush1.msra.mxu0 0.0
        %2364 = vmatprep.subr.mxu0 0.0
        %2365 = vmatpush1.msra.mxu0 0.0
        %2366 = vmatprep.subr.mxu0 0.0
        %2367 = vmatpush1.msra.mxu0 0.0
        %2368 = vmatprep.subr.mxu0 0.0
        %2369 = vmatpush1.msra.mxu0 0.0
        %2370 = vmatprep.subr.mxu0 0.0
        %2371 = vmatpush1.msra.mxu0 0.0
        %2372 = vmatprep.subr.mxu0 0.0
        %2373 = vmatpush1.msra.mxu0 0.0
        %2374 = vmatprep.subr.mxu0 0.0
        %2375 = vmatpush1.msra.mxu0 0.0
        %2376 = vmatprep.subr.mxu0 0.0
        %2377 = vmatpush1.msra.mxu0 0.0
        %2378 = vmatprep.subr.mxu0 0.0
        %2379 = vmatpush1.msra.mxu0 0.0
        %2380 = vmatprep.subr.mxu0 0.0
        %2381 = vmatpush1.msra.mxu0 0.0
        %2382 = vmatprep.subr.mxu0 0.0
        %2383 = vmatpush1.msra.mxu0 0.0
        %2384 = vmatprep.subr.mxu0 0.0
        %2385 = vmatpush1.msra.mxu0 0.0
        %2386 = vmatprep.subr.mxu0 0.0
        %2387 = vmatpush1.msra.mxu0 0.0
        %2388 = vmatprep.subr.mxu0 0.0
        %2389 = vmatpush1.msra.mxu0 0.0
        %2390 = vmatprep.mubr.f32.mxu0 0.0
        %2391 = vmatmul.mubr.f32.gmra.mrb[0].mxu0 %v422
        %v2392 = vpop.f32.mrb[0].mxu0
        %v2393 = vadd.f32 0.0, %v2392
        %v2394 = vpop.f32.mrb[0].mxu0
        %2395 = vmatprep.mubr.f32.mxu0 0.0
        %2396 = vmatmul.mubr.f32.gmra.mrb[0].mxu0 %v425
        %v2397 = vpop.f32.mrb[0].mxu0
        %v2398 = vadd.f32 0.0, %v2397
        %v2399 = vpop.f32.mrb[0].mxu0
        %2400 = vmatprep.mubr.f32.mxu0 0.0
        %2401 = vmatmul.mubr.f32.gmra.mrb[0].mxu0 %v428
        %v2402 = vpop.f32.mrb[0].mxu0
        %v2403 = vadd.f32 0.0, %v2402
        %v2404 = vpop.f32.mrb[0].mxu0
        %2405 = vdwg.mxu0
        %v2407 = vsel %vm420, %v2223, 0
        %v2410 = vsel %vm420, %v2228, 0
        %v2413 = vsel %vm420, %v2233, 0
        %v2416 = vsel %vm420, %v2308, 0
        %v2419 = vsel %vm420, %v2313, 0
        %v2422 = vsel %vm420, %v2318, 0
        %2424 = vmatprep.subr.mxu0 0.0
        %2425 = vmatpush1.xpose.msra.mxu0 %v2416
        %2426 = vmatprep.subr.mxu0 0.0
        %2427 = vmatpush1.xpose.msra.mxu0 %v2419
        %2428 = vmatprep.subr.mxu0 0.0
        %2429 = vmatpush1.xpose.msra.mxu0 %v2422
        %2430 = vmatprep.subr.mxu0 0.0
        %2431 = vmatpush1.xpose.msra.mxu0 0.0
        %2432 = vmatprep.subr.mxu0 0.0
        %2433 = vmatpush1.xpose.msra.mxu0 0.0
        %2434 = vmatprep.subr.mxu0 0.0
        %2435 = vmatpush1.xpose.msra.mxu0 0.0
        %2436 = vmatprep.subr.mxu0 0.0
        %2437 = vmatpush1.xpose.msra.mxu0 0.0
        %2438 = vmatprep.subr.mxu0 0.0
        %2439 = vmatpush1.xpose.msra.mxu0 0.0
        %2440 = vmatprep.subr.mxu0 0.0
        %2441 = vmatpush1.xpose.msra.mxu0 0.0
        %2442 = vmatprep.subr.mxu0 0.0
        %2443 = vmatpush1.xpose.msra.mxu0 0.0
        %2444 = vmatprep.subr.mxu0 0.0
        %2445 = vmatpush1.xpose.msra.mxu0 0.0
        %2446 = vmatprep.subr.mxu0 0.0
        %2447 = vmatpush1.xpose.msra.mxu0 0.0
        %2448 = vmatprep.subr.mxu0 0.0
        %2449 = vmatpush1.xpose.msra.mxu0 0.0
        %2450 = vmatprep.subr.mxu0 0.0
        %2451 = vmatpush1.xpose.msra.mxu0 0.0
        %2452 = vmatprep.subr.mxu0 0.0
        %2453 = vmatpush1.xpose.msra.mxu0 0.0
        %2454 = vmatprep.subr.mxu0 0.0
        %2455 = vmatpush1.xpose.msra.mxu0 0.0
        %2456 = vmatprep.subr.mxu0 0.0
        %2457 = vmatpush1.xpose.msra.mxu0 0.0
        %2458 = vmatprep.subr.mxu0 0.0
        %2459 = vmatpush1.xpose.msra.mxu0 0.0
        %2460 = vmatprep.subr.mxu0 0.0
        %2461 = vmatpush1.xpose.msra.mxu0 0.0
        %2462 = vmatprep.subr.mxu0 0.0
        %2463 = vmatpush1.xpose.msra.mxu0 0.0
        %2464 = vmatprep.subr.mxu0 0.0
        %2465 = vmatpush1.xpose.msra.mxu0 0.0
        %2466 = vmatprep.subr.mxu0 0.0
        %2467 = vmatpush1.xpose.msra.mxu0 0.0
        %2468 = vmatprep.subr.mxu0 0.0
        %2469 = vmatpush1.xpose.msra.mxu0 0.0
        %2470 = vmatprep.subr.mxu0 0.0
        %2471 = vmatpush1.xpose.msra.mxu0 0.0
        %2472 = vmatprep.subr.mxu0 0.0
        %2473 = vmatpush1.xpose.msra.mxu0 0.0
        %2474 = vmatprep.subr.mxu0 0.0
        %2475 = vmatpush1.xpose.msra.mxu0 0.0
        %2476 = vmatprep.subr.mxu0 0.0
        %2477 = vmatpush1.xpose.msra.mxu0 0.0
        %2478 = vmatprep.subr.mxu0 0.0
        %2479 = vmatpush1.xpose.msra.mxu0 0.0
        %2480 = vmatprep.subr.mxu0 0.0
        %2481 = vmatpush1.xpose.msra.mxu0 0.0
        %2482 = vmatprep.subr.mxu0 0.0
        %2483 = vmatpush1.xpose.msra.mxu0 0.0
        %2484 = vmatprep.subr.mxu0 0.0
        %2485 = vmatpush1.xpose.msra.mxu0 0.0
        %2486 = vmatprep.subr.mxu0 0.0
        %2487 = vmatpush1.xpose.msra.mxu0 0.0
        %2488 = vmatprep.mubr.f32.mxu0 0.0
        %2489 = vmatmul.mubr.f32.gmra.mrb[0].mxu0 %v2407
        %v2490 = vpop.f32.mrb[0].mxu0
        %v2491 = vadd.f32 %v410, %v2490
        %v2492 = vpop.f32.mrb[0].mxu0
        %2493 = vmatprep.mubr.f32.mxu0 0.0
        %2494 = vmatmul.mubr.f32.gmra.mrb[0].mxu0 %v2410
        %v2495 = vpop.f32.mrb[0].mxu0
        %v2496 = vadd.f32 %v410, %v2495
        %v2497 = vpop.f32.mrb[0].mxu0
        %2498 = vmatprep.mubr.f32.mxu0 0.0
        %2499 = vmatmul.mubr.f32.gmra.mrb[0].mxu0 %v2413
        %v2500 = vpop.f32.mrb[0].mxu0
        %v2501 = vadd.f32 %v410, %v2500
        %v2502 = vpop.f32.mrb[0].mxu0
        %2503 = vdwg.mxu0
        %v2504 = vsel %vm778, %v2491, -inf
        %2505 = vmax.xlane.f32.xlu0 %v2504
        %v2506 = vpop.xlane.xlu0 %2505
        %v2507 = vsel %vm778, %v2496, -inf
        %2508 = vmax.xlane.f32.xlu0 %v2507
        %v2509 = vpop.xlane.xlu0 %2508
        %v2510 = vsel %vm778, %v2501, -inf
        %2511 = vmax.xlane.f32.xlu0 %v2510
        %v2512 = vpop.xlane.xlu0 %2511
        %v2513 = vsub.f32 %v2491, %v2506
        %v2514 = vsub.f32 %v2496, %v2509
        %v2515 = vsub.f32 %v2501, %v2512
        %v2516 = vmul.f32 %v2513, 1.442695
        %v2517 = vpow.pop %v2516
        %v2518 = vmul.f32 %v2514, 1.442695
        %v2519 = vpow.pop %v2518
        %v2520 = vmul.f32 %v2515, 1.442695
        %v2521 = vpow.pop %v2520
        %v2522 = vsel %vm778, %v2517, 0.0
        %2523 = vadd.xlane.f32.xlu0 %v2522
        %v2524 = vpop.xlane.xlu0 %2523
        %v2525 = vsel %vm778, %v2519, 0.0
        %2526 = vadd.xlane.f32.xlu0 %v2525
        %v2527 = vpop.xlane.xlu0 %2526
        %v2528 = vsel %vm778, %v2521, 0.0
        %2529 = vadd.xlane.f32.xlu0 %v2528
        %v2530 = vpop.xlane.xlu0 %2529
        %v2531 = vrcp.pop %v2524
        %v2532 = vrcp.pop %v2527
        %v2533 = vrcp.pop %v2530
        %v2534 = vmul.f32 %v2517, %v2531
        %v2535 = vmul.f32 %v2519, %v2532
        %v2536 = vmul.f32 %v2521, %v2533
        %v2538 = vsel %vm778, %v2534, 0
        %v2541 = vsel %vm778, %v2535, 0
        %v2544 = vsel %vm778, %v2536, 0
        %2546 = vmatprep.subr.mxu0 0.0
        %2547 = vmatpush1.msra.mxu0 %v2393
        %2548 = vmatprep.subr.mxu0 0.0
        %2549 = vmatpush1.msra.mxu0 %v2398
        %2550 = vmatprep.subr.mxu0 0.0
        %2551 = vmatpush1.msra.mxu0 %v2403
        %2552 = vmatprep.subr.mxu0 0.0
        %2553 = vmatpush1.msra.mxu0 0.0
        %2554 = vmatprep.subr.mxu0 0.0
        %2555 = vmatpush1.msra.mxu0 0.0
        %2556 = vmatprep.subr.mxu0 0.0
        %2557 = vmatpush1.msra.mxu0 0.0
        %2558 = vmatprep.subr.mxu0 0.0
        %2559 = vmatpush1.msra.mxu0 0.0
        %2560 = vmatprep.subr.mxu0 0.0
        %2561 = vmatpush1.msra.mxu0 0.0
        %2562 = vmatprep.subr.mxu0 0.0
        %2563 = vmatpush1.msra.mxu0 0.0
        %2564 = vmatprep.subr.mxu0 0.0
        %2565 = vmatpush1.msra.mxu0 0.0
        %2566 = vmatprep.subr.mxu0 0.0
        %2567 = vmatpush1.msra.mxu0 0.0
        %2568 = vmatprep.subr.mxu0 0.0
        %2569 = vmatpush1.msra.mxu0 0.0
        %2570 = vmatprep.subr.mxu0 0.0
        %2571 = vmatpush1.msra.mxu0 0.0
        %2572 = vmatprep.subr.mxu0 0.0
        %2573 = vmatpush1.msra.mxu0 0.0
        %2574 = vmatprep.subr.mxu0 0.0
        %2575 = vmatpush1.msra.mxu0 0.0
        %2576 = vmatprep.subr.mxu0 0.0
        %2577 = vmatpush1.msra.mxu0 0.0
        %2578 = vmatprep.subr.mxu0 0.0
        %2579 = vmatpush1.msra.mxu0 0.0
        %2580 = vmatprep.subr.mxu0 0.0
        %2581 = vmatpush1.msra.mxu0 0.0
        %2582 = vmatprep.subr.mxu0 0.0
        %2583 = vmatpush1.msra.mxu0 0.0
        %2584 = vmatprep.subr.mxu0 0.0
        %2585 = vmatpush1.msra.mxu0 0.0
        %2586 = vmatprep.subr.mxu0 0.0
        %2587 = vmatpush1.msra.mxu0 0.0
        %2588 = vmatprep.subr.mxu0 0.0
        %2589 = vmatpush1.msra.mxu0 0.0
        %2590 = vmatprep.subr.mxu0 0.0
        %2591 = vmatpush1.msra.mxu0 0.0
        %2592 = vmatprep.subr.mxu0 0.0
        %2593 = vmatpush1.msra.mxu0 0.0
        %2594 = vmatprep.subr.mxu0 0.0
        %2595 = vmatpush1.msra.mxu0 0.0
        %2596 = vmatprep.subr.mxu0 0.0
        %2597 = vmatpush1.msra.mxu0 0.0
        %2598 = vmatprep.subr.mxu0 0.0
        %2599 = vmatpush1.msra.mxu0 0.0
        %2600 = vmatprep.subr.mxu0 0.0
        %2601 = vmatpush1.msra.mxu0 0.0
        %2602 = vmatprep.subr.mxu0 0.0
        %2603 = vmatpush1.msra.mxu0 0.0
        %2604 = vmatprep.subr.mxu0 0.0
        %2605 = vmatpush1.msra.mxu0 0.0
        %2606 = vmatprep.subr.mxu0 0.0
        %2607 = vmatpush1.msra.mxu0 0.0
        %2608 = vmatprep.subr.mxu0 0.0
        %2609 = vmatpush1.msra.mxu0 0.0
        %2610 = vmatprep.mubr.f32.mxu0 0.0
        %2611 = vmatmul.mubr.f32.gmra.mrb[0].mxu0 %v2538
        %v2612 = vpop.f32.mrb[0].mxu0
        %v2613 = vadd.f32 0.0, %v2612
        %v2614 = vpop.f32.mrb[0].mxu0
        %2615 = vmatprep.mubr.f32.mxu0 0.0
        %2616 = vmatmul.mubr.f32.gmra.mrb[0].mxu0 %v2541
        %v2617 = vpop.f32.mrb[0].mxu0
        %v2618 = vadd.f32 0.0, %v2617
        %v2619 = vpop.f32.mrb[0].mxu0
        %2620 = vmatprep.mubr.f32.mxu0 0.0
        %2621 = vmatmul.mubr.f32.gmra.mrb[0].mxu0 %v2544
        %v2622 = vpop.f32.mrb[0].mxu0
        %v2623 = vadd.f32 0.0, %v2622
        %v2624 = vpop.f32.mrb[0].mxu0
        %2625 = vdwg.mxu0
        %s2626 = scalar_lea.vmem %s2, 480
        %v2627 = vld [vmem:[%s2626] sm:$0xff]
        %v2628 = vld [vmem:[%s2626 + $0x8] sm:$0xff]
        %v2629 = vld [vmem:[%s2626 + $0x10] sm:$0xff]
        %v2630 = vld [vmem:[%s2626 + $0x18] sm:$0xff]
        %v2632 = vsel %vm420, %v2613, 0
        %v2635 = vsel %vm420, %v2618, 0
        %v2638 = vsel %vm420, %v2623, 0
        %2640 = vmatprep.subr.mxu0 0.0
        %2641 = vmatpush1.msra.mxu0 %v2627
        %2642 = vmatprep.subr.mxu0 0.0
        %2643 = vmatpush1.msra.mxu0 %v2628
        %2644 = vmatprep.subr.mxu0 0.0
        %2645 = vmatpush1.msra.mxu0 %v2629
        %2646 = vmatprep.subr.mxu0 0.0
        %2647 = vmatpush1.msra.mxu0 %v2630
        %2648 = vmatprep.subr.mxu0 0.0
        %2649 = vmatpush1.msra.mxu0 0.0
        %2650 = vmatprep.subr.mxu0 0.0
        %2651 = vmatpush1.msra.mxu0 0.0
        %2652 = vmatprep.subr.mxu0 0.0
        %2653 = vmatpush1.msra.mxu0 0.0
        %2654 = vmatprep.subr.mxu0 0.0
        %2655 = vmatpush1.msra.mxu0 0.0
        %2656 = vmatprep.subr.mxu0 0.0
        %2657 = vmatpush1.msra.mxu0 0.0
        %2658 = vmatprep.subr.mxu0 0.0
        %2659 = vmatpush1.msra.mxu0 0.0
        %2660 = vmatprep.subr.mxu0 0.0
        %2661 = vmatpush1.msra.mxu0 0.0
        %2662 = vmatprep.subr.mxu0 0.0
        %2663 = vmatpush1.msra.mxu0 0.0
        %2664 = vmatprep.subr.mxu0 0.0
        %2665 = vmatpush1.msra.mxu0 0.0
        %2666 = vmatprep.subr.mxu0 0.0
        %2667 = vmatpush1.msra.mxu0 0.0
        %2668 = vmatprep.subr.mxu0 0.0
        %2669 = vmatpush1.msra.mxu0 0.0
        %2670 = vmatprep.subr.mxu0 0.0
        %2671 = vmatpush1.msra.mxu0 0.0
        %2672 = vmatprep.subr.mxu0 0.0
        %2673 = vmatpush1.msra.mxu0 0.0
        %2674 = vmatprep.subr.mxu0 0.0
        %2675 = vmatpush1.msra.mxu0 0.0
        %2676 = vmatprep.subr.mxu0 0.0
        %2677 = vmatpush1.msra.mxu0 0.0
        %2678 = vmatprep.subr.mxu0 0.0
        %2679 = vmatpush1.msra.mxu0 0.0
        %2680 = vmatprep.subr.mxu0 0.0
        %2681 = vmatpush1.msra.mxu0 0.0
        %2682 = vmatprep.subr.mxu0 0.0
        %2683 = vmatpush1.msra.mxu0 0.0
        %2684 = vmatprep.subr.mxu0 0.0
        %2685 = vmatpush1.msra.mxu0 0.0
        %2686 = vmatprep.subr.mxu0 0.0
        %2687 = vmatpush1.msra.mxu0 0.0
        %2688 = vmatprep.subr.mxu0 0.0
        %2689 = vmatpush1.msra.mxu0 0.0
        %2690 = vmatprep.subr.mxu0 0.0
        %2691 = vmatpush1.msra.mxu0 0.0
        %2692 = vmatprep.subr.mxu0 0.0
        %2693 = vmatpush1.msra.mxu0 0.0
        %2694 = vmatprep.subr.mxu0 0.0
        %2695 = vmatpush1.msra.mxu0 0.0
        %2696 = vmatprep.subr.mxu0 0.0
        %2697 = vmatpush1.msra.mxu0 0.0
        %2698 = vmatprep.subr.mxu0 0.0
        %2699 = vmatpush1.msra.mxu0 0.0
        %2700 = vmatprep.subr.mxu0 0.0
        %2701 = vmatpush1.msra.mxu0 0.0
        %2702 = vmatprep.subr.mxu0 0.0
        %2703 = vmatpush1.msra.mxu0 0.0
        %2704 = vmatprep.mubr.f32.mxu0 0.0
        %2705 = vmatmul.mubr.f32.gmra.mrb[0].mxu0 %v2632
        %v2706 = vpop.f32.mrb[0].mxu0
        %v2707 = vadd.f32 0.0, %v2706
        %v2708 = vpop.f32.mrb[0].mxu0
        %2709 = vmatprep.mubr.f32.mxu0 0.0
        %2710 = vmatmul.mubr.f32.gmra.mrb[0].mxu0 %v2635
        %v2711 = vpop.f32.mrb[0].mxu0
        %v2712 = vadd.f32 0.0, %v2711
        %v2713 = vpop.f32.mrb[0].mxu0
        %2714 = vmatprep.mubr.f32.mxu0 0.0
        %2715 = vmatmul.mubr.f32.gmra.mrb[0].mxu0 %v2638
        %v2716 = vpop.f32.mrb[0].mxu0
        %v2717 = vadd.f32 0.0, %v2716
        %v2718 = vpop.f32.mrb[0].mxu0
        %2719 = vdwg.mxu0
        %v2720 = vadd.f32 %v2143, %v2707
        %v2721 = vadd.f32 %v2144, %v2712
        %v2722 = vadd.f32 %v2145, %v2717
        %v2723 = vadd.f32 %v394, %v2720
        %v2724 = vadd.f32 %v399, %v2721
        %v2725 = vadd.f32 %v404, %v2722
        %v2726 = vld [vmem:[%s4] sm:$0x1]
        %v2727 = vlaneseq
        %v2728 = vshrl.u32 %v2727, 7
        %v2729 = vsub.s32 0, %v2728
        %v2730 = vrot.slane %v2726, %v2729
        %v2731 = vadd.f32 %v2723, %v2730
        %v2732 = vadd.f32 %v2724, %v2730
        %v2733 = vadd.f32 %v2725, %v2730
        %v2734 = vld [vmem:[%s4 + $0x1] sm:$0x1]
        %v2735 = vld [vmem:[%s4 + $0x2] sm:$0x1]
        %v2736 = vsel %vm420, %v2731, 0.0
        %2737 = vadd.xlane.f32.xlu0 %v2736
        %v2738 = vpop.xlane.xlu0 %2737
        %v2739 = vsel %vm420, %v2732, 0.0
        %2740 = vadd.xlane.f32.xlu0 %v2739
        %v2741 = vpop.xlane.xlu0 %2740
        %v2742 = vsel %vm420, %v2733, 0.0
        %2743 = vadd.xlane.f32.xlu0 %v2742
        %v2744 = vpop.xlane.xlu0 %2743
        %v2745 = vrcp.pop 32.0
        %v2746 = vmul.f32 %v2738, %v2745
        %v2747 = vmul.f32 %v2741, %v2745
        %v2748 = vmul.f32 %v2744, %v2745
        %v2749 = vsub.f32 %v2731, %v2746
        %v2750 = vsub.f32 %v2732, %v2747
        %v2751 = vsub.f32 %v2733, %v2748
        %v2752 = vmul.f32 %v2749, %v2749
        %v2753 = vmul.f32 %v2750, %v2750
        %v2754 = vmul.f32 %v2751, %v2751
        %v2755 = vsel %vm420, %v2752, 0.0
        %2756 = vadd.xlane.f32.xlu0 %v2755
        %v2757 = vpop.xlane.xlu0 %2756
        %v2758 = vsel %vm420, %v2753, 0.0
        %2759 = vadd.xlane.f32.xlu0 %v2758
        %v2760 = vpop.xlane.xlu0 %2759
        %v2761 = vsel %vm420, %v2754, 0.0
        %2762 = vadd.xlane.f32.xlu0 %v2761
        %v2763 = vpop.xlane.xlu0 %2762
        %v2764 = vmul.f32 %v2757, %v2745
        %v2765 = vmul.f32 %v2760, %v2745
        %v2766 = vmul.f32 %v2763, %v2745
        %v2767 = vadd.f32 %v2764, 1e-05
        %v2768 = vadd.f32 %v2765, 1e-05
        %v2769 = vadd.f32 %v2766, 1e-05
        %v2770 = vrsqrt.pop %v2767
        %v2771 = vrsqrt.pop %v2768
        %v2772 = vrsqrt.pop %v2769
        %v2773 = vmul.f32 %v2749, %v2770
        %v2774 = vmul.f32 %v2750, %v2771
        %v2775 = vmul.f32 %v2751, %v2772
        %v2776 = vlaneseq
        %v2777 = vshrl.u32 %v2776, 7
        %v2778 = vsub.s32 0, %v2777
        %v2779 = vrot.slane %v2734, %v2778
        %v2780 = vmul.f32 %v2773, %v2779
        %v2781 = vmul.f32 %v2774, %v2779
        %v2782 = vmul.f32 %v2775, %v2779
        %v2783 = vlaneseq
        %v2784 = vshrl.u32 %v2783, 7
        %v2785 = vsub.s32 0, %v2784
        %v2786 = vrot.slane %v2735, %v2785
        %v2787 = vadd.f32 %v2780, %v2786
        %v2788 = vadd.f32 %v2781, %v2786
        %v2789 = vadd.f32 %v2782, %v2786
        %v2790 = vld [vmem:[%s5] sm:$0xff]
        %v2791 = vld [vmem:[%s5 + $0x8] sm:$0xff]
        %v2792 = vld [vmem:[%s5 + $0x10] sm:$0xff]
        %v2793 = vld [vmem:[%s5 + $0x18] sm:$0xff]
        %v2794 = vld [vmem:[%s5 + $0x20] sm:$0x1]
        %v2795 = vlaneseq
        %v2796 = vshrl.u32 %v2795, 7
        %v2797 = vsub.s32 0, %v2796
        %v2798 = vrot.slane %v2794, %v2797
        %v2800 = vsel %vm420, %v2787, 0
        %v2803 = vsel %vm420, %v2788, 0
        %v2806 = vsel %vm420, %v2789, 0
        %2808 = vmatprep.subr.mxu0 0.0
        %2809 = vmatpush1.msra.mxu0 %v2790
        %2810 = vmatprep.subr.mxu0 0.0
        %2811 = vmatpush1.msra.mxu0 %v2791
        %2812 = vmatprep.subr.mxu0 0.0
        %2813 = vmatpush1.msra.mxu0 %v2792
        %2814 = vmatprep.subr.mxu0 0.0
        %2815 = vmatpush1.msra.mxu0 %v2793
        %2816 = vmatprep.subr.mxu0 0.0
        %2817 = vmatpush1.msra.mxu0 0.0
        %2818 = vmatprep.subr.mxu0 0.0
        %2819 = vmatpush1.msra.mxu0 0.0
        %2820 = vmatprep.subr.mxu0 0.0
        %2821 = vmatpush1.msra.mxu0 0.0
        %2822 = vmatprep.subr.mxu0 0.0
        %2823 = vmatpush1.msra.mxu0 0.0
        %2824 = vmatprep.subr.mxu0 0.0
        %2825 = vmatpush1.msra.mxu0 0.0
        %2826 = vmatprep.subr.mxu0 0.0
        %2827 = vmatpush1.msra.mxu0 0.0
        %2828 = vmatprep.subr.mxu0 0.0
        %2829 = vmatpush1.msra.mxu0 0.0
        %2830 = vmatprep.subr.mxu0 0.0
        %2831 = vmatpush1.msra.mxu0 0.0
        %2832 = vmatprep.subr.mxu0 0.0
        %2833 = vmatpush1.msra.mxu0 0.0
        %2834 = vmatprep.subr.mxu0 0.0
        %2835 = vmatpush1.msra.mxu0 0.0
        %2836 = vmatprep.subr.mxu0 0.0
        %2837 = vmatpush1.msra.mxu0 0.0
        %2838 = vmatprep.subr.mxu0 0.0
        %2839 = vmatpush1.msra.mxu0 0.0
        %2840 = vmatprep.subr.mxu0 0.0
        %2841 = vmatpush1.msra.mxu0 0.0
        %2842 = vmatprep.subr.mxu0 0.0
        %2843 = vmatpush1.msra.mxu0 0.0
        %2844 = vmatprep.subr.mxu0 0.0
        %2845 = vmatpush1.msra.mxu0 0.0
        %2846 = vmatprep.subr.mxu0 0.0
        %2847 = vmatpush1.msra.mxu0 0.0
        %2848 = vmatprep.subr.mxu0 0.0
        %2849 = vmatpush1.msra.mxu0 0.0
        %2850 = vmatprep.subr.mxu0 0.0
        %2851 = vmatpush1.msra.mxu0 0.0
        %2852 = vmatprep.subr.mxu0 0.0
        %2853 = vmatpush1.msra.mxu0 0.0
        %2854 = vmatprep.subr.mxu0 0.0
        %2855 = vmatpush1.msra.mxu0 0.0
        %2856 = vmatprep.subr.mxu0 0.0
        %2857 = vmatpush1.msra.mxu0 0.0
        %2858 = vmatprep.subr.mxu0 0.0
        %2859 = vmatpush1.msra.mxu0 0.0
        %2860 = vmatprep.subr.mxu0 0.0
        %2861 = vmatpush1.msra.mxu0 0.0
        %2862 = vmatprep.subr.mxu0 0.0
        %2863 = vmatpush1.msra.mxu0 0.0
        %2864 = vmatprep.subr.mxu0 0.0
        %2865 = vmatpush1.msra.mxu0 0.0
        %2866 = vmatprep.subr.mxu0 0.0
        %2867 = vmatpush1.msra.mxu0 0.0
        %2868 = vmatprep.subr.mxu0 0.0
        %2869 = vmatpush1.msra.mxu0 0.0
        %2870 = vmatprep.subr.mxu0 0.0
        %2871 = vmatpush1.msra.mxu0 0.0
        %2872 = vmatprep.mubr.f32.mxu0 0.0
        %2873 = vmatmul.mubr.f32.gmra.mrb[0].mxu0 %v2800
        %v2874 = vpop.f32.mrb[0].mxu0
        %v2875 = vadd.f32 %v2798, %v2874
        %v2876 = vpop.f32.mrb[0].mxu0
        %2877 = vmatprep.mubr.f32.mxu0 0.0
        %2878 = vmatmul.mubr.f32.gmra.mrb[0].mxu0 %v2803
        %v2879 = vpop.f32.mrb[0].mxu0
        %v2880 = vadd.f32 %v2798, %v2879
        %v2881 = vpop.f32.mrb[0].mxu0
        %2882 = vmatprep.mubr.f32.mxu0 0.0
        %2883 = vmatmul.mubr.f32.gmra.mrb[0].mxu0 %v2806
        %v2884 = vpop.f32.mrb[0].mxu0
        %v2885 = vadd.f32 %v2798, %v2884
        %v2886 = vpop.f32.mrb[0].mxu0
        %2887 = vdwg.mxu0
        %v2888 = vmax.f32 %v2875, 0.0
        %v2889 = vmax.f32 %v2880, 0.0
        %v2890 = vmax.f32 %v2885, 0.0
        %v2891 = vld [vmem:[%s6] sm:$0xff]
        %v2892 = vld [vmem:[%s6 + $0x8] sm:$0xff]
        %v2893 = vld [vmem:[%s6 + $0x10] sm:$0xff]
        %v2894 = vld [vmem:[%s6 + $0x18] sm:$0xff]
        %v2895 = vld [vmem:[%s6 + $0x20] sm:$0xff]
        %v2896 = vld [vmem:[%s6 + $0x28] sm:$0xff]
        %v2897 = vld [vmem:[%s6 + $0x30] sm:$0xff]
        %v2898 = vld [vmem:[%s6 + $0x38] sm:$0xff]
        %v2899 = vld [vmem:[%s6 + $0x40] sm:$0x1]
        %v2900 = vlaneseq
        %v2901 = vshrl.u32 %v2900, 7
        %v2902 = vsub.s32 0, %v2901
        %v2903 = vrot.slane %v2899, %v2902
        %v2905 = vsel %vm317, %v2888, 0
        %v2908 = vsel %vm317, %v2889, 0
        %v2911 = vsel %vm317, %v2890, 0
        %2913 = vmatprep.subr.mxu0 0.0
        %2914 = vmatpush1.msra.mxu0 %v2891
        %2915 = vmatprep.subr.mxu0 0.0
        %2916 = vmatpush1.msra.mxu0 %v2892
        %2917 = vmatprep.subr.mxu0 0.0
        %2918 = vmatpush1.msra.mxu0 %v2893
        %2919 = vmatprep.subr.mxu0 0.0
        %2920 = vmatpush1.msra.mxu0 %v2894
        %2921 = vmatprep.subr.mxu0 0.0
        %2922 = vmatpush1.msra.mxu0 %v2895
        %2923 = vmatprep.subr.mxu0 0.0
        %2924 = vmatpush1.msra.mxu0 %v2896
        %2925 = vmatprep.subr.mxu0 0.0
        %2926 = vmatpush1.msra.mxu0 %v2897
        %2927 = vmatprep.subr.mxu0 0.0
        %2928 = vmatpush1.msra.mxu0 %v2898
        %2929 = vmatprep.subr.mxu0 0.0
        %2930 = vmatpush1.msra.mxu0 0.0
        %2931 = vmatprep.subr.mxu0 0.0
        %2932 = vmatpush1.msra.mxu0 0.0
        %2933 = vmatprep.subr.mxu0 0.0
        %2934 = vmatpush1.msra.mxu0 0.0
        %2935 = vmatprep.subr.mxu0 0.0
        %2936 = vmatpush1.msra.mxu0 0.0
        %2937 = vmatprep.subr.mxu0 0.0
        %2938 = vmatpush1.msra.mxu0 0.0
        %2939 = vmatprep.subr.mxu0 0.0
        %2940 = vmatpush1.msra.mxu0 0.0
        %2941 = vmatprep.subr.mxu0 0.0
        %2942 = vmatpush1.msra.mxu0 0.0
        %2943 = vmatprep.subr.mxu0 0.0
        %2944 = vmatpush1.msra.mxu0 0.0
        %2945 = vmatprep.subr.mxu0 0.0
        %2946 = vmatpush1.msra.mxu0 0.0
        %2947 = vmatprep.subr.mxu0 0.0
        %2948 = vmatpush1.msra.mxu0 0.0
        %2949 = vmatprep.subr.mxu0 0.0
        %2950 = vmatpush1.msra.mxu0 0.0
        %2951 = vmatprep.subr.mxu0 0.0
        %2952 = vmatpush1.msra.mxu0 0.0
        %2953 = vmatprep.subr.mxu0 0.0
        %2954 = vmatpush1.msra.mxu0 0.0
        %2955 = vmatprep.subr.mxu0 0.0
        %2956 = vmatpush1.msra.mxu0 0.0
        %2957 = vmatprep.subr.mxu0 0.0
        %2958 = vmatpush1.msra.mxu0 0.0
        %2959 = vmatprep.subr.mxu0 0.0
        %2960 = vmatpush1.msra.mxu0 0.0
        %2961 = vmatprep.subr.mxu0 0.0
        %2962 = vmatpush1.msra.mxu0 0.0
        %2963 = vmatprep.subr.mxu0 0.0
        %2964 = vmatpush1.msra.mxu0 0.0
        %2965 = vmatprep.subr.mxu0 0.0
        %2966 = vmatpush1.msra.mxu0 0.0
        %2967 = vmatprep.subr.mxu0 0.0
        %2968 = vmatpush1.msra.mxu0 0.0
        %2969 = vmatprep.subr.mxu0 0.0
        %2970 = vmatpush1.msra.mxu0 0.0
        %2971 = vmatprep.subr.mxu0 0.0
        %2972 = vmatpush1.msra.mxu0 0.0
        %2973 = vmatprep.subr.mxu0 0.0
        %2974 = vmatpush1.msra.mxu0 0.0
        %2975 = vmatprep.subr.mxu0 0.0
        %2976 = vmatpush1.msra.mxu0 0.0
        %2977 = vmatprep.mubr.f32.mxu0 0.0
        %2978 = vmatmul.mubr.f32.gmra.mrb[0].mxu0 %v2905
        %v2979 = vpop.f32.mrb[0].mxu0
        %v2980 = vadd.f32 %v2903, %v2979
        %v2981 = vpop.f32.mrb[0].mxu0
        %2982 = vmatprep.mubr.f32.mxu0 0.0
        %2983 = vmatmul.mubr.f32.gmra.mrb[0].mxu0 %v2908
        %v2984 = vpop.f32.mrb[0].mxu0
        %v2985 = vadd.f32 %v2903, %v2984
        %v2986 = vpop.f32.mrb[0].mxu0
        %2987 = vmatprep.mubr.f32.mxu0 0.0
        %2988 = vmatmul.mubr.f32.gmra.mrb[0].mxu0 %v2911
        %v2989 = vpop.f32.mrb[0].mxu0
        %v2990 = vadd.f32 %v2903, %v2989
        %v2991 = vpop.f32.mrb[0].mxu0
        %2992 = vdwg.mxu0
        %v2993 = vadd.f32 %v2787, %v2980
        %v2994 = vadd.f32 %v2788, %v2985
        %v2995 = vadd.f32 %v2789, %v2990
        %v2996 = vld [vmem:[%s4 + $0x3] sm:$0x1]
        %v2997 = vld [vmem:[%s4 + $0x4] sm:$0x1]
        %v2998 = vsel %vm420, %v2993, 0.0
        %2999 = vadd.xlane.f32.xlu0 %v2998
        %v3000 = vpop.xlane.xlu0 %2999
        %v3001 = vsel %vm420, %v2994, 0.0
        %3002 = vadd.xlane.f32.xlu0 %v3001
        %v3003 = vpop.xlane.xlu0 %3002
        %v3004 = vsel %vm420, %v2995, 0.0
        %3005 = vadd.xlane.f32.xlu0 %v3004
        %v3006 = vpop.xlane.xlu0 %3005
        %v3007 = vmul.f32 %v3000, %v2745
        %v3008 = vmul.f32 %v3003, %v2745
        %v3009 = vmul.f32 %v3006, %v2745
        %v3010 = vsub.f32 %v2993, %v3007
        %v3011 = vsub.f32 %v2994, %v3008
        %v3012 = vsub.f32 %v2995, %v3009
        %v3013 = vmul.f32 %v3010, %v3010
        %v3014 = vmul.f32 %v3011, %v3011
        %v3015 = vmul.f32 %v3012, %v3012
        %v3016 = vsel %vm420, %v3013, 0.0
        %3017 = vadd.xlane.f32.xlu0 %v3016
        %v3018 = vpop.xlane.xlu0 %3017
        %v3019 = vsel %vm420, %v3014, 0.0
        %3020 = vadd.xlane.f32.xlu0 %v3019
        %v3021 = vpop.xlane.xlu0 %3020
        %v3022 = vsel %vm420, %v3015, 0.0
        %3023 = vadd.xlane.f32.xlu0 %v3022
        %v3024 = vpop.xlane.xlu0 %3023
        %v3025 = vmul.f32 %v3018, %v2745
        %v3026 = vmul.f32 %v3021, %v2745
        %v3027 = vmul.f32 %v3024, %v2745
        %v3028 = vadd.f32 %v3025, 1e-05
        %v3029 = vadd.f32 %v3026, 1e-05
        %v3030 = vadd.f32 %v3027, 1e-05
        %v3031 = vrsqrt.pop %v3028
        %v3032 = vrsqrt.pop %v3029
        %v3033 = vrsqrt.pop %v3030
        %v3034 = vmul.f32 %v3010, %v3031
        %v3035 = vmul.f32 %v3011, %v3032
        %v3036 = vmul.f32 %v3012, %v3033
        %v3037 = vlaneseq
        %v3038 = vshrl.u32 %v3037, 7
        %v3039 = vsub.s32 0, %v3038
        %v3040 = vrot.slane %v2996, %v3039
        %v3041 = vmul.f32 %v3034, %v3040
        %v3042 = vmul.f32 %v3035, %v3040
        %v3043 = vmul.f32 %v3036, %v3040
        %v3044 = vlaneseq
        %v3045 = vshrl.u32 %v3044, 7
        %v3046 = vsub.s32 0, %v3045
        %v3047 = vrot.slane %v2997, %v3046
        %v3048 = vadd.f32 %v3041, %v3047
        %v3049 = vadd.f32 %v3042, %v3047
        %v3050 = vadd.f32 %v3043, %v3047
        %s3051 = scalar_lea.vmem %s2, 512
        %v3052 = vld [vmem:[%s3051] sm:$0xff]
        %v3053 = vld [vmem:[%s3051 + $0x8] sm:$0xff]
        %v3054 = vld [vmem:[%s3051 + $0x10] sm:$0xff]
        %v3055 = vld [vmem:[%s3051 + $0x18] sm:$0xff]
        %v3056 = vld [vmem:[%s3 + $0x4] sm:$0x1]
        %v3057 = vlaneseq
        %v3058 = vshrl.u32 %v3057, 7
        %v3059 = vsub.s32 0, %v3058
        %v3060 = vrot.slane %v3056, %v3059
        %v3062 = vsel %vm420, %v3048, 0
        %v3065 = vsel %vm420, %v3049, 0
        %v3068 = vsel %vm420, %v3050, 0
        %3070 = vmatprep.subr.mxu0 0.0
        %3071 = vmatpush1.msra.mxu0 %v3052
        %3072 = vmatprep.subr.mxu0 0.0
        %3073 = vmatpush1.msra.mxu0 %v3053
        %3074 = vmatprep.subr.mxu0 0.0
        %3075 = vmatpush1.msra.mxu0 %v3054
        %3076 = vmatprep.subr.mxu0 0.0
        %3077 = vmatpush1.msra.mxu0 %v3055
        %3078 = vmatprep.subr.mxu0 0.0
        %3079 = vmatpush1.msra.mxu0 0.0
        %3080 = vmatprep.subr.mxu0 0.0
        %3081 = vmatpush1.msra.mxu0 0.0
        %3082 = vmatprep.subr.mxu0 0.0
        %3083 = vmatpush1.msra.mxu0 0.0
        %3084 = vmatprep.subr.mxu0 0.0
        %3085 = vmatpush1.msra.mxu0 0.0
        %3086 = vmatprep.subr.mxu0 0.0
        %3087 = vmatpush1.msra.mxu0 0.0
        %3088 = vmatprep.subr.mxu0 0.0
        %3089 = vmatpush1.msra.mxu0 0.0
        %3090 = vmatprep.subr.mxu0 0.0
        %3091 = vmatpush1.msra.mxu0 0.0
        %3092 = vmatprep.subr.mxu0 0.0
        %3093 = vmatpush1.msra.mxu0 0.0
        %3094 = vmatprep.subr.mxu0 0.0
        %3095 = vmatpush1.msra.mxu0 0.0
        %3096 = vmatprep.subr.mxu0 0.0
        %3097 = vmatpush1.msra.mxu0 0.0
        %3098 = vmatprep.subr.mxu0 0.0
        %3099 = vmatpush1.msra.mxu0 0.0
        %3100 = vmatprep.subr.mxu0 0.0
        %3101 = vmatpush1.msra.mxu0 0.0
        %3102 = vmatprep.subr.mxu0 0.0
        %3103 = vmatpush1.msra.mxu0 0.0
        %3104 = vmatprep.subr.mxu0 0.0
        %3105 = vmatpush1.msra.mxu0 0.0
        %3106 = vmatprep.subr.mxu0 0.0
        %3107 = vmatpush1.msra.mxu0 0.0
        %3108 = vmatprep.subr.mxu0 0.0
        %3109 = vmatpush1.msra.mxu0 0.0
        %3110 = vmatprep.subr.mxu0 0.0
        %3111 = vmatpush1.msra.mxu0 0.0
        %3112 = vmatprep.subr.mxu0 0.0
        %3113 = vmatpush1.msra.mxu0 0.0
        %3114 = vmatprep.subr.mxu0 0.0
        %3115 = vmatpush1.msra.mxu0 0.0
        %3116 = vmatprep.subr.mxu0 0.0
        %3117 = vmatpush1.msra.mxu0 0.0
        %3118 = vmatprep.subr.mxu0 0.0
        %3119 = vmatpush1.msra.mxu0 0.0
        %3120 = vmatprep.subr.mxu0 0.0
        %3121 = vmatpush1.msra.mxu0 0.0
        %3122 = vmatprep.subr.mxu0 0.0
        %3123 = vmatpush1.msra.mxu0 0.0
        %3124 = vmatprep.subr.mxu0 0.0
        %3125 = vmatpush1.msra.mxu0 0.0
        %3126 = vmatprep.subr.mxu0 0.0
        %3127 = vmatpush1.msra.mxu0 0.0
        %3128 = vmatprep.subr.mxu0 0.0
        %3129 = vmatpush1.msra.mxu0 0.0
        %3130 = vmatprep.subr.mxu0 0.0
        %3131 = vmatpush1.msra.mxu0 0.0
        %3132 = vmatprep.subr.mxu0 0.0
        %3133 = vmatpush1.msra.mxu0 0.0
        %3134 = vmatprep.mubr.f32.mxu0 0.0
        %3135 = vmatmul.mubr.f32.gmra.mrb[0].mxu0 %v3062
        %v3136 = vpop.f32.mrb[0].mxu0
        %v3137 = vadd.f32 %v3060, %v3136
        %v3138 = vpop.f32.mrb[0].mxu0
        %3139 = vmatprep.mubr.f32.mxu0 0.0
        %3140 = vmatmul.mubr.f32.gmra.mrb[0].mxu0 %v3065
        %v3141 = vpop.f32.mrb[0].mxu0
        %v3142 = vadd.f32 %v3060, %v3141
        %v3143 = vpop.f32.mrb[0].mxu0
        %3144 = vmatprep.mubr.f32.mxu0 0.0
        %3145 = vmatmul.mubr.f32.gmra.mrb[0].mxu0 %v3068
        %v3146 = vpop.f32.mrb[0].mxu0
        %v3147 = vadd.f32 %v3060, %v3146
        %v3148 = vpop.f32.mrb[0].mxu0
        %3149 = vdwg.mxu0
        %s3150 = scalar_lea.vmem %s2, 640
        %v3151 = vld [vmem:[%s3150] sm:$0xff]
        %v3152 = vld [vmem:[%s3150 + $0x8] sm:$0xff]
        %v3153 = vld [vmem:[%s3150 + $0x10] sm:$0xff]
        %v3154 = vld [vmem:[%s3150 + $0x18] sm:$0xff]
        %3155 = vmatprep.subr.mxu0 0.0
        %3156 = vmatpush1.msra.mxu0 %v3151
        %3157 = vmatprep.subr.mxu0 0.0
        %3158 = vmatpush1.msra.mxu0 %v3152
        %3159 = vmatprep.subr.mxu0 0.0
        %3160 = vmatpush1.msra.mxu0 %v3153
        %3161 = vmatprep.subr.mxu0 0.0
        %3162 = vmatpush1.msra.mxu0 %v3154
        %3163 = vmatprep.subr.mxu0 0.0
        %3164 = vmatpush1.msra.mxu0 0.0
        %3165 = vmatprep.subr.mxu0 0.0
        %3166 = vmatpush1.msra.mxu0 0.0
        %3167 = vmatprep.subr.mxu0 0.0
        %3168 = vmatpush1.msra.mxu0 0.0
        %3169 = vmatprep.subr.mxu0 0.0
        %3170 = vmatpush1.msra.mxu0 0.0
        %3171 = vmatprep.subr.mxu0 0.0
        %3172 = vmatpush1.msra.mxu0 0.0
        %3173 = vmatprep.subr.mxu0 0.0
        %3174 = vmatpush1.msra.mxu0 0.0
        %3175 = vmatprep.subr.mxu0 0.0
        %3176 = vmatpush1.msra.mxu0 0.0
        %3177 = vmatprep.subr.mxu0 0.0
        %3178 = vmatpush1.msra.mxu0 0.0
        %3179 = vmatprep.subr.mxu0 0.0
        %3180 = vmatpush1.msra.mxu0 0.0
        %3181 = vmatprep.subr.mxu0 0.0
        %3182 = vmatpush1.msra.mxu0 0.0
        %3183 = vmatprep.subr.mxu0 0.0
        %3184 = vmatpush1.msra.mxu0 0.0
        %3185 = vmatprep.subr.mxu0 0.0
        %3186 = vmatpush1.msra.mxu0 0.0
        %3187 = vmatprep.subr.mxu0 0.0
        %3188 = vmatpush1.msra.mxu0 0.0
        %3189 = vmatprep.subr.mxu0 0.0
        %3190 = vmatpush1.msra.mxu0 0.0
        %3191 = vmatprep.subr.mxu0 0.0
        %3192 = vmatpush1.msra.mxu0 0.0
        %3193 = vmatprep.subr.mxu0 0.0
        %3194 = vmatpush1.msra.mxu0 0.0
        %3195 = vmatprep.subr.mxu0 0.0
        %3196 = vmatpush1.msra.mxu0 0.0
        %3197 = vmatprep.subr.mxu0 0.0
        %3198 = vmatpush1.msra.mxu0 0.0
        %3199 = vmatprep.subr.mxu0 0.0
        %3200 = vmatpush1.msra.mxu0 0.0
        %3201 = vmatprep.subr.mxu0 0.0
        %3202 = vmatpush1.msra.mxu0 0.0
        %3203 = vmatprep.subr.mxu0 0.0
        %3204 = vmatpush1.msra.mxu0 0.0
        %3205 = vmatprep.subr.mxu0 0.0
        %3206 = vmatpush1.msra.mxu0 0.0
        %3207 = vmatprep.subr.mxu0 0.0
        %3208 = vmatpush1.msra.mxu0 0.0
        %3209 = vmatprep.subr.mxu0 0.0
        %3210 = vmatpush1.msra.mxu0 0.0
        %3211 = vmatprep.subr.mxu0 0.0
        %3212 = vmatpush1.msra.mxu0 0.0
        %3213 = vmatprep.subr.mxu0 0.0
        %3214 = vmatpush1.msra.mxu0 0.0
        %3215 = vmatprep.subr.mxu0 0.0
        %3216 = vmatpush1.msra.mxu0 0.0
        %3217 = vmatprep.subr.mxu0 0.0
        %3218 = vmatpush1.msra.mxu0 0.0
        %3219 = vmatprep.mubr.f32.mxu0 0.0
        %3220 = vmatmul.mubr.f32.gmra.mrb[0].mxu0 %v3062
        %v3221 = vpop.f32.mrb[0].mxu0
        %v3222 = vadd.f32 0.0, %v3221
        %v3223 = vpop.f32.mrb[0].mxu0
        %3224 = vmatprep.mubr.f32.mxu0 0.0
        %3225 = vmatmul.mubr.f32.gmra.mrb[0].mxu0 %v3065
        %v3226 = vpop.f32.mrb[0].mxu0
        %v3227 = vadd.f32 0.0, %v3226
        %v3228 = vpop.f32.mrb[0].mxu0
        %3229 = vmatprep.mubr.f32.mxu0 0.0
        %3230 = vmatmul.mubr.f32.gmra.mrb[0].mxu0 %v3068
        %v3231 = vpop.f32.mrb[0].mxu0
        %v3232 = vadd.f32 0.0, %v3231
        %v3233 = vpop.f32.mrb[0].mxu0
        %3234 = vdwg.mxu0
        %s3235 = scalar_lea.vmem %s2, 768
        %v3236 = vld [vmem:[%s3235] sm:$0xff]
        %v3237 = vld [vmem:[%s3235 + $0x8] sm:$0xff]
        %v3238 = vld [vmem:[%s3235 + $0x10] sm:$0xff]
        %v3239 = vld [vmem:[%s3235 + $0x18] sm:$0xff]
        %3240 = vmatprep.subr.mxu0 0.0
        %3241 = vmatpush1.msra.mxu0 %v3236
        %3242 = vmatprep.subr.mxu0 0.0
        %3243 = vmatpush1.msra.mxu0 %v3237
        %3244 = vmatprep.subr.mxu0 0.0
        %3245 = vmatpush1.msra.mxu0 %v3238
        %3246 = vmatprep.subr.mxu0 0.0
        %3247 = vmatpush1.msra.mxu0 %v3239
        %3248 = vmatprep.subr.mxu0 0.0
        %3249 = vmatpush1.msra.mxu0 0.0
        %3250 = vmatprep.subr.mxu0 0.0
        %3251 = vmatpush1.msra.mxu0 0.0
        %3252 = vmatprep.subr.mxu0 0.0
        %3253 = vmatpush1.msra.mxu0 0.0
        %3254 = vmatprep.subr.mxu0 0.0
        %3255 = vmatpush1.msra.mxu0 0.0
        %3256 = vmatprep.subr.mxu0 0.0
        %3257 = vmatpush1.msra.mxu0 0.0
        %3258 = vmatprep.subr.mxu0 0.0
        %3259 = vmatpush1.msra.mxu0 0.0
        %3260 = vmatprep.subr.mxu0 0.0
        %3261 = vmatpush1.msra.mxu0 0.0
        %3262 = vmatprep.subr.mxu0 0.0
        %3263 = vmatpush1.msra.mxu0 0.0
        %3264 = vmatprep.subr.mxu0 0.0
        %3265 = vmatpush1.msra.mxu0 0.0
        %3266 = vmatprep.subr.mxu0 0.0
        %3267 = vmatpush1.msra.mxu0 0.0
        %3268 = vmatprep.subr.mxu0 0.0
        %3269 = vmatpush1.msra.mxu0 0.0
        %3270 = vmatprep.subr.mxu0 0.0
        %3271 = vmatpush1.msra.mxu0 0.0
        %3272 = vmatprep.subr.mxu0 0.0
        %3273 = vmatpush1.msra.mxu0 0.0
        %3274 = vmatprep.subr.mxu0 0.0
        %3275 = vmatpush1.msra.mxu0 0.0
        %3276 = vmatprep.subr.mxu0 0.0
        %3277 = vmatpush1.msra.mxu0 0.0
        %3278 = vmatprep.subr.mxu0 0.0
        %3279 = vmatpush1.msra.mxu0 0.0
        %3280 = vmatprep.subr.mxu0 0.0
        %3281 = vmatpush1.msra.mxu0 0.0
        %3282 = vmatprep.subr.mxu0 0.0
        %3283 = vmatpush1.msra.mxu0 0.0
        %3284 = vmatprep.subr.mxu0 0.0
        %3285 = vmatpush1.msra.mxu0 0.0
        %3286 = vmatprep.subr.mxu0 0.0
        %3287 = vmatpush1.msra.mxu0 0.0
        %3288 = vmatprep.subr.mxu0 0.0
        %3289 = vmatpush1.msra.mxu0 0.0
        %3290 = vmatprep.subr.mxu0 0.0
        %3291 = vmatpush1.msra.mxu0 0.0
        %3292 = vmatprep.subr.mxu0 0.0
        %3293 = vmatpush1.msra.mxu0 0.0
        %3294 = vmatprep.subr.mxu0 0.0
        %3295 = vmatpush1.msra.mxu0 0.0
        %3296 = vmatprep.subr.mxu0 0.0
        %3297 = vmatpush1.msra.mxu0 0.0
        %3298 = vmatprep.subr.mxu0 0.0
        %3299 = vmatpush1.msra.mxu0 0.0
        %3300 = vmatprep.subr.mxu0 0.0
        %3301 = vmatpush1.msra.mxu0 0.0
        %3302 = vmatprep.subr.mxu0 0.0
        %3303 = vmatpush1.msra.mxu0 0.0
        %3304 = vmatprep.mubr.f32.mxu0 0.0
        %3305 = vmatmul.mubr.f32.gmra.mrb[0].mxu0 %v3062
        %v3306 = vpop.f32.mrb[0].mxu0
        %v3307 = vadd.f32 0.0, %v3306
        %v3308 = vpop.f32.mrb[0].mxu0
        %3309 = vmatprep.mubr.f32.mxu0 0.0
        %3310 = vmatmul.mubr.f32.gmra.mrb[0].mxu0 %v3065
        %v3311 = vpop.f32.mrb[0].mxu0
        %v3312 = vadd.f32 0.0, %v3311
        %v3313 = vpop.f32.mrb[0].mxu0
        %3314 = vmatprep.mubr.f32.mxu0 0.0
        %3315 = vmatmul.mubr.f32.gmra.mrb[0].mxu0 %v3068
        %v3316 = vpop.f32.mrb[0].mxu0
        %v3317 = vadd.f32 0.0, %v3316
        %v3318 = vpop.f32.mrb[0].mxu0
        %3319 = vdwg.mxu0
        %v3321 = vsel %vm420, %v3137, 0
        %v3324 = vsel %vm420, %v3142, 0
        %v3327 = vsel %vm420, %v3147, 0
        %v3330 = vsel %vm420, %v3222, 0
        %v3333 = vsel %vm420, %v3227, 0
        %v3336 = vsel %vm420, %v3232, 0
        %3338 = vmatprep.subr.mxu0 0.0
        %3339 = vmatpush1.xpose.msra.mxu0 %v3330
        %3340 = vmatprep.subr.mxu0 0.0
        %3341 = vmatpush1.xpose.msra.mxu0 %v3333
        %3342 = vmatprep.subr.mxu0 0.0
        %3343 = vmatpush1.xpose.msra.mxu0 %v3336
        %3344 = vmatprep.subr.mxu0 0.0
        %3345 = vmatpush1.xpose.msra.mxu0 0.0
        %3346 = vmatprep.subr.mxu0 0.0
        %3347 = vmatpush1.xpose.msra.mxu0 0.0
        %3348 = vmatprep.subr.mxu0 0.0
        %3349 = vmatpush1.xpose.msra.mxu0 0.0
        %3350 = vmatprep.subr.mxu0 0.0
        %3351 = vmatpush1.xpose.msra.mxu0 0.0
        %3352 = vmatprep.subr.mxu0 0.0
        %3353 = vmatpush1.xpose.msra.mxu0 0.0
        %3354 = vmatprep.subr.mxu0 0.0
        %3355 = vmatpush1.xpose.msra.mxu0 0.0
        %3356 = vmatprep.subr.mxu0 0.0
        %3357 = vmatpush1.xpose.msra.mxu0 0.0
        %3358 = vmatprep.subr.mxu0 0.0
        %3359 = vmatpush1.xpose.msra.mxu0 0.0
        %3360 = vmatprep.subr.mxu0 0.0
        %3361 = vmatpush1.xpose.msra.mxu0 0.0
        %3362 = vmatprep.subr.mxu0 0.0
        %3363 = vmatpush1.xpose.msra.mxu0 0.0
        %3364 = vmatprep.subr.mxu0 0.0
        %3365 = vmatpush1.xpose.msra.mxu0 0.0
        %3366 = vmatprep.subr.mxu0 0.0
        %3367 = vmatpush1.xpose.msra.mxu0 0.0
        %3368 = vmatprep.subr.mxu0 0.0
        %3369 = vmatpush1.xpose.msra.mxu0 0.0
        %3370 = vmatprep.subr.mxu0 0.0
        %3371 = vmatpush1.xpose.msra.mxu0 0.0
        %3372 = vmatprep.subr.mxu0 0.0
        %3373 = vmatpush1.xpose.msra.mxu0 0.0
        %3374 = vmatprep.subr.mxu0 0.0
        %3375 = vmatpush1.xpose.msra.mxu0 0.0
        %3376 = vmatprep.subr.mxu0 0.0
        %3377 = vmatpush1.xpose.msra.mxu0 0.0
        %3378 = vmatprep.subr.mxu0 0.0
        %3379 = vmatpush1.xpose.msra.mxu0 0.0
        %3380 = vmatprep.subr.mxu0 0.0
        %3381 = vmatpush1.xpose.msra.mxu0 0.0
        %3382 = vmatprep.subr.mxu0 0.0
        %3383 = vmatpush1.xpose.msra.mxu0 0.0
        %3384 = vmatprep.subr.mxu0 0.0
        %3385 = vmatpush1.xpose.msra.mxu0 0.0
        %3386 = vmatprep.subr.mxu0 0.0
        %3387 = vmatpush1.xpose.msra.mxu0 0.0
        %3388 = vmatprep.subr.mxu0 0.0
        %3389 = vmatpush1.xpose.msra.mxu0 0.0
        %3390 = vmatprep.subr.mxu0 0.0
        %3391 = vmatpush1.xpose.msra.mxu0 0.0
        %3392 = vmatprep.subr.mxu0 0.0
        %3393 = vmatpush1.xpose.msra.mxu0 0.0
        %3394 = vmatprep.subr.mxu0 0.0
        %3395 = vmatpush1.xpose.msra.mxu0 0.0
        %3396 = vmatprep.subr.mxu0 0.0
        %3397 = vmatpush1.xpose.msra.mxu0 0.0
        %3398 = vmatprep.subr.mxu0 0.0
        %3399 = vmatpush1.xpose.msra.mxu0 0.0
        %3400 = vmatprep.subr.mxu0 0.0
        %3401 = vmatpush1.xpose.msra.mxu0 0.0
        %3402 = vmatprep.mubr.f32.mxu0 0.0
        %3403 = vmatmul.mubr.f32.gmra.mrb[0].mxu0 %v3321
        %v3404 = vpop.f32.mrb[0].mxu0
        %v3405 = vadd.f32 %v410, %v3404
        %v3406 = vpop.f32.mrb[0].mxu0
        %3407 = vmatprep.mubr.f32.mxu0 0.0
        %3408 = vmatmul.mubr.f32.gmra.mrb[0].mxu0 %v3324
        %v3409 = vpop.f32.mrb[0].mxu0
        %v3410 = vadd.f32 %v410, %v3409
        %v3411 = vpop.f32.mrb[0].mxu0
        %3412 = vmatprep.mubr.f32.mxu0 0.0
        %3413 = vmatmul.mubr.f32.gmra.mrb[0].mxu0 %v3327
        %v3414 = vpop.f32.mrb[0].mxu0
        %v3415 = vadd.f32 %v410, %v3414
        %v3416 = vpop.f32.mrb[0].mxu0
        %3417 = vdwg.mxu0
        %v3418 = vsel %vm778, %v3405, -inf
        %3419 = vmax.xlane.f32.xlu0 %v3418
        %v3420 = vpop.xlane.xlu0 %3419
        %v3421 = vsel %vm778, %v3410, -inf
        %3422 = vmax.xlane.f32.xlu0 %v3421
        %v3423 = vpop.xlane.xlu0 %3422
        %v3424 = vsel %vm778, %v3415, -inf
        %3425 = vmax.xlane.f32.xlu0 %v3424
        %v3426 = vpop.xlane.xlu0 %3425
        %v3427 = vsub.f32 %v3405, %v3420
        %v3428 = vsub.f32 %v3410, %v3423
        %v3429 = vsub.f32 %v3415, %v3426
        %v3430 = vmul.f32 %v3427, 1.442695
        %v3431 = vpow.pop %v3430
        %v3432 = vmul.f32 %v3428, 1.442695
        %v3433 = vpow.pop %v3432
        %v3434 = vmul.f32 %v3429, 1.442695
        %v3435 = vpow.pop %v3434
        %v3436 = vsel %vm778, %v3431, 0.0
        %3437 = vadd.xlane.f32.xlu0 %v3436
        %v3438 = vpop.xlane.xlu0 %3437
        %v3439 = vsel %vm778, %v3433, 0.0
        %3440 = vadd.xlane.f32.xlu0 %v3439
        %v3441 = vpop.xlane.xlu0 %3440
        %v3442 = vsel %vm778, %v3435, 0.0
        %3443 = vadd.xlane.f32.xlu0 %v3442
        %v3444 = vpop.xlane.xlu0 %3443
        %v3445 = vrcp.pop %v3438
        %v3446 = vrcp.pop %v3441
        %v3447 = vrcp.pop %v3444
        %v3448 = vmul.f32 %v3431, %v3445
        %v3449 = vmul.f32 %v3433, %v3446
        %v3450 = vmul.f32 %v3435, %v3447
        %v3452 = vsel %vm778, %v3448, 0
        %v3455 = vsel %vm778, %v3449, 0
        %v3458 = vsel %vm778, %v3450, 0
        %3460 = vmatprep.subr.mxu0 0.0
        %3461 = vmatpush1.msra.mxu0 %v3307
        %3462 = vmatprep.subr.mxu0 0.0
        %3463 = vmatpush1.msra.mxu0 %v3312
        %3464 = vmatprep.subr.mxu0 0.0
        %3465 = vmatpush1.msra.mxu0 %v3317
        %3466 = vmatprep.subr.mxu0 0.0
        %3467 = vmatpush1.msra.mxu0 0.0
        %3468 = vmatprep.subr.mxu0 0.0
        %3469 = vmatpush1.msra.mxu0 0.0
        %3470 = vmatprep.subr.mxu0 0.0
        %3471 = vmatpush1.msra.mxu0 0.0
        %3472 = vmatprep.subr.mxu0 0.0
        %3473 = vmatpush1.msra.mxu0 0.0
        %3474 = vmatprep.subr.mxu0 0.0
        %3475 = vmatpush1.msra.mxu0 0.0
        %3476 = vmatprep.subr.mxu0 0.0
        %3477 = vmatpush1.msra.mxu0 0.0
        %3478 = vmatprep.subr.mxu0 0.0
        %3479 = vmatpush1.msra.mxu0 0.0
        %3480 = vmatprep.subr.mxu0 0.0
        %3481 = vmatpush1.msra.mxu0 0.0
        %3482 = vmatprep.subr.mxu0 0.0
        %3483 = vmatpush1.msra.mxu0 0.0
        %3484 = vmatprep.subr.mxu0 0.0
        %3485 = vmatpush1.msra.mxu0 0.0
        %3486 = vmatprep.subr.mxu0 0.0
        %3487 = vmatpush1.msra.mxu0 0.0
        %3488 = vmatprep.subr.mxu0 0.0
        %3489 = vmatpush1.msra.mxu0 0.0
        %3490 = vmatprep.subr.mxu0 0.0
        %3491 = vmatpush1.msra.mxu0 0.0
        %3492 = vmatprep.subr.mxu0 0.0
        %3493 = vmatpush1.msra.mxu0 0.0
        %3494 = vmatprep.subr.mxu0 0.0
        %3495 = vmatpush1.msra.mxu0 0.0
        %3496 = vmatprep.subr.mxu0 0.0
        %3497 = vmatpush1.msra.mxu0 0.0
        %3498 = vmatprep.subr.mxu0 0.0
        %3499 = vmatpush1.msra.mxu0 0.0
        %3500 = vmatprep.subr.mxu0 0.0
        %3501 = vmatpush1.msra.mxu0 0.0
        %3502 = vmatprep.subr.mxu0 0.0
        %3503 = vmatpush1.msra.mxu0 0.0
        %3504 = vmatprep.subr.mxu0 0.0
        %3505 = vmatpush1.msra.mxu0 0.0
        %3506 = vmatprep.subr.mxu0 0.0
        %3507 = vmatpush1.msra.mxu0 0.0
        %3508 = vmatprep.subr.mxu0 0.0
        %3509 = vmatpush1.msra.mxu0 0.0
        %3510 = vmatprep.subr.mxu0 0.0
        %3511 = vmatpush1.msra.mxu0 0.0
        %3512 = vmatprep.subr.mxu0 0.0
        %3513 = vmatpush1.msra.mxu0 0.0
        %3514 = vmatprep.subr.mxu0 0.0
        %3515 = vmatpush1.msra.mxu0 0.0
        %3516 = vmatprep.subr.mxu0 0.0
        %3517 = vmatpush1.msra.mxu0 0.0
        %3518 = vmatprep.subr.mxu0 0.0
        %3519 = vmatpush1.msra.mxu0 0.0
        %3520 = vmatprep.subr.mxu0 0.0
        %3521 = vmatpush1.msra.mxu0 0.0
        %3522 = vmatprep.subr.mxu0 0.0
        %3523 = vmatpush1.msra.mxu0 0.0
        %3524 = vmatprep.mubr.f32.mxu0 0.0
        %3525 = vmatmul.mubr.f32.gmra.mrb[0].mxu0 %v3452
        %v3526 = vpop.f32.mrb[0].mxu0
        %v3527 = vadd.f32 0.0, %v3526
        %v3528 = vpop.f32.mrb[0].mxu0
        %3529 = vmatprep.mubr.f32.mxu0 0.0
        %3530 = vmatmul.mubr.f32.gmra.mrb[0].mxu0 %v3455
        %v3531 = vpop.f32.mrb[0].mxu0
        %v3532 = vadd.f32 0.0, %v3531
        %v3533 = vpop.f32.mrb[0].mxu0
        %3534 = vmatprep.mubr.f32.mxu0 0.0
        %3535 = vmatmul.mubr.f32.gmra.mrb[0].mxu0 %v3458
        %v3536 = vpop.f32.mrb[0].mxu0
        %v3537 = vadd.f32 0.0, %v3536
        %v3538 = vpop.f32.mrb[0].mxu0
        %3539 = vdwg.mxu0
        %s3540 = scalar_lea.vmem %s2, 896
        %v3541 = vld [vmem:[%s3540] sm:$0xff]
        %v3542 = vld [vmem:[%s3540 + $0x8] sm:$0xff]
        %v3543 = vld [vmem:[%s3540 + $0x10] sm:$0xff]
        %v3544 = vld [vmem:[%s3540 + $0x18] sm:$0xff]
        %s3545 = scalar_lea.vmem %s2, 544
        %v3546 = vld [vmem:[%s3545] sm:$0xff]
        %v3547 = vld [vmem:[%s3545 + $0x8] sm:$0xff]
        %v3548 = vld [vmem:[%s3545 + $0x10] sm:$0xff]
        %v3549 = vld [vmem:[%s3545 + $0x18] sm:$0xff]
        %v3550 = vld [vmem:[%s3 + $0x5] sm:$0x1]
        %v3551 = vlaneseq
        %v3552 = vshrl.u32 %v3551, 7
        %v3553 = vsub.s32 0, %v3552
        %v3554 = vrot.slane %v3550, %v3553
        %3555 = vmatprep.subr.mxu0 0.0
        %3556 = vmatpush1.msra.mxu0 %v3546
        %3557 = vmatprep.subr.mxu0 0.0
        %3558 = vmatpush1.msra.mxu0 %v3547
        %3559 = vmatprep.subr.mxu0 0.0
        %3560 = vmatpush1.msra.mxu0 %v3548
        %3561 = vmatprep.subr.mxu0 0.0
        %3562 = vmatpush1.msra.mxu0 %v3549
        %3563 = vmatprep.subr.mxu0 0.0
        %3564 = vmatpush1.msra.mxu0 0.0
        %3565 = vmatprep.subr.mxu0 0.0
        %3566 = vmatpush1.msra.mxu0 0.0
        %3567 = vmatprep.subr.mxu0 0.0
        %3568 = vmatpush1.msra.mxu0 0.0
        %3569 = vmatprep.subr.mxu0 0.0
        %3570 = vmatpush1.msra.mxu0 0.0
        %3571 = vmatprep.subr.mxu0 0.0
        %3572 = vmatpush1.msra.mxu0 0.0
        %3573 = vmatprep.subr.mxu0 0.0
        %3574 = vmatpush1.msra.mxu0 0.0
        %3575 = vmatprep.subr.mxu0 0.0
        %3576 = vmatpush1.msra.mxu0 0.0
        %3577 = vmatprep.subr.mxu0 0.0
        %3578 = vmatpush1.msra.mxu0 0.0
        %3579 = vmatprep.subr.mxu0 0.0
        %3580 = vmatpush1.msra.mxu0 0.0
        %3581 = vmatprep.subr.mxu0 0.0
        %3582 = vmatpush1.msra.mxu0 0.0
        %3583 = vmatprep.subr.mxu0 0.0
        %3584 = vmatpush1.msra.mxu0 0.0
        %3585 = vmatprep.subr.mxu0 0.0
        %3586 = vmatpush1.msra.mxu0 0.0
        %3587 = vmatprep.subr.mxu0 0.0
        %3588 = vmatpush1.msra.mxu0 0.0
        %3589 = vmatprep.subr.mxu0 0.0
        %3590 = vmatpush1.msra.mxu0 0.0
        %3591 = vmatprep.subr.mxu0 0.0
        %3592 = vmatpush1.msra.mxu0 0.0
        %3593 = vmatprep.subr.mxu0 0.0
        %3594 = vmatpush1.msra.mxu0 0.0
        %3595 = vmatprep.subr.mxu0 0.0
        %3596 = vmatpush1.msra.mxu0 0.0
        %3597 = vmatprep.subr.mxu0 0.0
        %3598 = vmatpush1.msra.mxu0 0.0
        %3599 = vmatprep.subr.mxu0 0.0
        %3600 = vmatpush1.msra.mxu0 0.0
        %3601 = vmatprep.subr.mxu0 0.0
        %3602 = vmatpush1.msra.mxu0 0.0
        %3603 = vmatprep.subr.mxu0 0.0
        %3604 = vmatpush1.msra.mxu0 0.0
        %3605 = vmatprep.subr.mxu0 0.0
        %3606 = vmatpush1.msra.mxu0 0.0
        %3607 = vmatprep.subr.mxu0 0.0
        %3608 = vmatpush1.msra.mxu0 0.0
        %3609 = vmatprep.subr.mxu0 0.0
        %3610 = vmatpush1.msra.mxu0 0.0
        %3611 = vmatprep.subr.mxu0 0.0
        %3612 = vmatpush1.msra.mxu0 0.0
        %3613 = vmatprep.subr.mxu0 0.0
        %3614 = vmatpush1.msra.mxu0 0.0
        %3615 = vmatprep.subr.mxu0 0.0
        %3616 = vmatpush1.msra.mxu0 0.0
        %3617 = vmatprep.subr.mxu0 0.0
        %3618 = vmatpush1.msra.mxu0 0.0
        %3619 = vmatprep.mubr.f32.mxu0 0.0
        %3620 = vmatmul.mubr.f32.gmra.mrb[0].mxu0 %v3062
        %v3621 = vpop.f32.mrb[0].mxu0
        %v3622 = vadd.f32 %v3554, %v3621
        %v3623 = vpop.f32.mrb[0].mxu0
        %3624 = vmatprep.mubr.f32.mxu0 0.0
        %3625 = vmatmul.mubr.f32.gmra.mrb[0].mxu0 %v3065
        %v3626 = vpop.f32.mrb[0].mxu0
        %v3627 = vadd.f32 %v3554, %v3626
        %v3628 = vpop.f32.mrb[0].mxu0
        %3629 = vmatprep.mubr.f32.mxu0 0.0
        %3630 = vmatmul.mubr.f32.gmra.mrb[0].mxu0 %v3068
        %v3631 = vpop.f32.mrb[0].mxu0
        %v3632 = vadd.f32 %v3554, %v3631
        %v3633 = vpop.f32.mrb[0].mxu0
        %3634 = vdwg.mxu0
        %s3635 = scalar_lea.vmem %s2, 672
        %v3636 = vld [vmem:[%s3635] sm:$0xff]
        %v3637 = vld [vmem:[%s3635 + $0x8] sm:$0xff]
        %v3638 = vld [vmem:[%s3635 + $0x10] sm:$0xff]
        %v3639 = vld [vmem:[%s3635 + $0x18] sm:$0xff]
        %3640 = vmatprep.subr.mxu0 0.0
        %3641 = vmatpush1.msra.mxu0 %v3636
        %3642 = vmatprep.subr.mxu0 0.0
        %3643 = vmatpush1.msra.mxu0 %v3637
        %3644 = vmatprep.subr.mxu0 0.0
        %3645 = vmatpush1.msra.mxu0 %v3638
        %3646 = vmatprep.subr.mxu0 0.0
        %3647 = vmatpush1.msra.mxu0 %v3639
        %3648 = vmatprep.subr.mxu0 0.0
        %3649 = vmatpush1.msra.mxu0 0.0
        %3650 = vmatprep.subr.mxu0 0.0
        %3651 = vmatpush1.msra.mxu0 0.0
        %3652 = vmatprep.subr.mxu0 0.0
        %3653 = vmatpush1.msra.mxu0 0.0
        %3654 = vmatprep.subr.mxu0 0.0
        %3655 = vmatpush1.msra.mxu0 0.0
        %3656 = vmatprep.subr.mxu0 0.0
        %3657 = vmatpush1.msra.mxu0 0.0
        %3658 = vmatprep.subr.mxu0 0.0
        %3659 = vmatpush1.msra.mxu0 0.0
        %3660 = vmatprep.subr.mxu0 0.0
        %3661 = vmatpush1.msra.mxu0 0.0
        %3662 = vmatprep.subr.mxu0 0.0
        %3663 = vmatpush1.msra.mxu0 0.0
        %3664 = vmatprep.subr.mxu0 0.0
        %3665 = vmatpush1.msra.mxu0 0.0
        %3666 = vmatprep.subr.mxu0 0.0
        %3667 = vmatpush1.msra.mxu0 0.0
        %3668 = vmatprep.subr.mxu0 0.0
        %3669 = vmatpush1.msra.mxu0 0.0
        %3670 = vmatprep.subr.mxu0 0.0
        %3671 = vmatpush1.msra.mxu0 0.0
        %3672 = vmatprep.subr.mxu0 0.0
        %3673 = vmatpush1.msra.mxu0 0.0
        %3674 = vmatprep.subr.mxu0 0.0
        %3675 = vmatpush1.msra.mxu0 0.0
        %3676 = vmatprep.subr.mxu0 0.0
        %3677 = vmatpush1.msra.mxu0 0.0
        %3678 = vmatprep.subr.mxu0 0.0
        %3679 = vmatpush1.msra.mxu0 0.0
        %3680 = vmatprep.subr.mxu0 0.0
        %3681 = vmatpush1.msra.mxu0 0.0
        %3682 = vmatprep.subr.mxu0 0.0
        %3683 = vmatpush1.msra.mxu0 0.0
        %3684 = vmatprep.subr.mxu0 0.0
        %3685 = vmatpush1.msra.mxu0 0.0
        %3686 = vmatprep.subr.mxu0 0.0
        %3687 = vmatpush1.msra.mxu0 0.0
        %3688 = vmatprep.subr.mxu0 0.0
        %3689 = vmatpush1.msra.mxu0 0.0
        %3690 = vmatprep.subr.mxu0 0.0
        %3691 = vmatpush1.msra.mxu0 0.0
        %3692 = vmatprep.subr.mxu0 0.0
        %3693 = vmatpush1.msra.mxu0 0.0
        %3694 = vmatprep.subr.mxu0 0.0
        %3695 = vmatpush1.msra.mxu0 0.0
        %3696 = vmatprep.subr.mxu0 0.0
        %3697 = vmatpush1.msra.mxu0 0.0
        %3698 = vmatprep.subr.mxu0 0.0
        %3699 = vmatpush1.msra.mxu0 0.0
        %3700 = vmatprep.subr.mxu0 0.0
        %3701 = vmatpush1.msra.mxu0 0.0
        %3702 = vmatprep.subr.mxu0 0.0
        %3703 = vmatpush1.msra.mxu0 0.0
        %3704 = vmatprep.mubr.f32.mxu0 0.0
        %3705 = vmatmul.mubr.f32.gmra.mrb[0].mxu0 %v3062
        %v3706 = vpop.f32.mrb[0].mxu0
        %v3707 = vadd.f32 0.0, %v3706
        %v3708 = vpop.f32.mrb[0].mxu0
        %3709 = vmatprep.mubr.f32.mxu0 0.0
        %3710 = vmatmul.mubr.f32.gmra.mrb[0].mxu0 %v3065
        %v3711 = vpop.f32.mrb[0].mxu0
        %v3712 = vadd.f32 0.0, %v3711
        %v3713 = vpop.f32.mrb[0].mxu0
        %3714 = vmatprep.mubr.f32.mxu0 0.0
        %3715 = vmatmul.mubr.f32.gmra.mrb[0].mxu0 %v3068
        %v3716 = vpop.f32.mrb[0].mxu0
        %v3717 = vadd.f32 0.0, %v3716
        %v3718 = vpop.f32.mrb[0].mxu0
        %3719 = vdwg.mxu0
        %s3720 = scalar_lea.vmem %s2, 800
        %v3721 = vld [vmem:[%s3720] sm:$0xff]
        %v3722 = vld [vmem:[%s3720 + $0x8] sm:$0xff]
        %v3723 = vld [vmem:[%s3720 + $0x10] sm:$0xff]
        %v3724 = vld [vmem:[%s3720 + $0x18] sm:$0xff]
        %3725 = vmatprep.subr.mxu0 0.0
        %3726 = vmatpush1.msra.mxu0 %v3721
        %3727 = vmatprep.subr.mxu0 0.0
        %3728 = vmatpush1.msra.mxu0 %v3722
        %3729 = vmatprep.subr.mxu0 0.0
        %3730 = vmatpush1.msra.mxu0 %v3723
        %3731 = vmatprep.subr.mxu0 0.0
        %3732 = vmatpush1.msra.mxu0 %v3724
        %3733 = vmatprep.subr.mxu0 0.0
        %3734 = vmatpush1.msra.mxu0 0.0
        %3735 = vmatprep.subr.mxu0 0.0
        %3736 = vmatpush1.msra.mxu0 0.0
        %3737 = vmatprep.subr.mxu0 0.0
        %3738 = vmatpush1.msra.mxu0 0.0
        %3739 = vmatprep.subr.mxu0 0.0
        %3740 = vmatpush1.msra.mxu0 0.0
        %3741 = vmatprep.subr.mxu0 0.0
        %3742 = vmatpush1.msra.mxu0 0.0
        %3743 = vmatprep.subr.mxu0 0.0
        %3744 = vmatpush1.msra.mxu0 0.0
        %3745 = vmatprep.subr.mxu0 0.0
        %3746 = vmatpush1.msra.mxu0 0.0
        %3747 = vmatprep.subr.mxu0 0.0
        %3748 = vmatpush1.msra.mxu0 0.0
        %3749 = vmatprep.subr.mxu0 0.0
        %3750 = vmatpush1.msra.mxu0 0.0
        %3751 = vmatprep.subr.mxu0 0.0
        %3752 = vmatpush1.msra.mxu0 0.0
        %3753 = vmatprep.subr.mxu0 0.0
        %3754 = vmatpush1.msra.mxu0 0.0
        %3755 = vmatprep.subr.mxu0 0.0
        %3756 = vmatpush1.msra.mxu0 0.0
        %3757 = vmatprep.subr.mxu0 0.0
        %3758 = vmatpush1.msra.mxu0 0.0
        %3759 = vmatprep.subr.mxu0 0.0
        %3760 = vmatpush1.msra.mxu0 0.0
        %3761 = vmatprep.subr.mxu0 0.0
        %3762 = vmatpush1.msra.mxu0 0.0
        %3763 = vmatprep.subr.mxu0 0.0
        %3764 = vmatpush1.msra.mxu0 0.0
        %3765 = vmatprep.subr.mxu0 0.0
        %3766 = vmatpush1.msra.mxu0 0.0
        %3767 = vmatprep.subr.mxu0 0.0
        %3768 = vmatpush1.msra.mxu0 0.0
        %3769 = vmatprep.subr.mxu0 0.0
        %3770 = vmatpush1.msra.mxu0 0.0
        %3771 = vmatprep.subr.mxu0 0.0
        %3772 = vmatpush1.msra.mxu0 0.0
        %3773 = vmatprep.subr.mxu0 0.0
        %3774 = vmatpush1.msra.mxu0 0.0
        %3775 = vmatprep.subr.mxu0 0.0
        %3776 = vmatpush1.msra.mxu0 0.0
        %3777 = vmatprep.subr.mxu0 0.0
        %3778 = vmatpush1.msra.mxu0 0.0
        %3779 = vmatprep.subr.mxu0 0.0
        %3780 = vmatpush1.msra.mxu0 0.0
        %3781 = vmatprep.subr.mxu0 0.0
        %3782 = vmatpush1.msra.mxu0 0.0
        %3783 = vmatprep.subr.mxu0 0.0
        %3784 = vmatpush1.msra.mxu0 0.0
        %3785 = vmatprep.subr.mxu0 0.0
        %3786 = vmatpush1.msra.mxu0 0.0
        %3787 = vmatprep.subr.mxu0 0.0
        %3788 = vmatpush1.msra.mxu0 0.0
        %3789 = vmatprep.mubr.f32.mxu0 0.0
        %3790 = vmatmul.mubr.f32.gmra.mrb[0].mxu0 %v3062
        %v3791 = vpop.f32.mrb[0].mxu0
        %v3792 = vadd.f32 0.0, %v3791
        %v3793 = vpop.f32.mrb[0].mxu0
        %3794 = vmatprep.mubr.f32.mxu0 0.0
        %3795 = vmatmul.mubr.f32.gmra.mrb[0].mxu0 %v3065
        %v3796 = vpop.f32.mrb[0].mxu0
        %v3797 = vadd.f32 0.0, %v3796
        %v3798 = vpop.f32.mrb[0].mxu0
        %3799 = vmatprep.mubr.f32.mxu0 0.0
        %3800 = vmatmul.mubr.f32.gmra.mrb[0].mxu0 %v3068
        %v3801 = vpop.f32.mrb[0].mxu0
        %v3802 = vadd.f32 0.0, %v3801
        %v3803 = vpop.f32.mrb[0].mxu0
        %3804 = vdwg.mxu0
        %v3806 = vsel %vm420, %v3622, 0
        %v3809 = vsel %vm420, %v3627, 0
        %v3812 = vsel %vm420, %v3632, 0
        %v3815 = vsel %vm420, %v3707, 0
        %v3818 = vsel %vm420, %v3712, 0
        %v3821 = vsel %vm420, %v3717, 0
        %3823 = vmatprep.subr.mxu0 0.0
        %3824 = vmatpush1.xpose.msra.mxu0 %v3815
        %3825 = vmatprep.subr.mxu0 0.0
        %3826 = vmatpush1.xpose.msra.mxu0 %v3818
        %3827 = vmatprep.subr.mxu0 0.0
        %3828 = vmatpush1.xpose.msra.mxu0 %v3821
        %3829 = vmatprep.subr.mxu0 0.0
        %3830 = vmatpush1.xpose.msra.mxu0 0.0
        %3831 = vmatprep.subr.mxu0 0.0
        %3832 = vmatpush1.xpose.msra.mxu0 0.0
        %3833 = vmatprep.subr.mxu0 0.0
        %3834 = vmatpush1.xpose.msra.mxu0 0.0
        %3835 = vmatprep.subr.mxu0 0.0
        %3836 = vmatpush1.xpose.msra.mxu0 0.0
        %3837 = vmatprep.subr.mxu0 0.0
        %3838 = vmatpush1.xpose.msra.mxu0 0.0
        %3839 = vmatprep.subr.mxu0 0.0
        %3840 = vmatpush1.xpose.msra.mxu0 0.0
        %3841 = vmatprep.subr.mxu0 0.0
        %3842 = vmatpush1.xpose.msra.mxu0 0.0
        %3843 = vmatprep.subr.mxu0 0.0
        %3844 = vmatpush1.xpose.msra.mxu0 0.0
        %3845 = vmatprep.subr.mxu0 0.0
        %3846 = vmatpush1.xpose.msra.mxu0 0.0
        %3847 = vmatprep.subr.mxu0 0.0
        %3848 = vmatpush1.xpose.msra.mxu0 0.0
        %3849 = vmatprep.subr.mxu0 0.0
        %3850 = vmatpush1.xpose.msra.mxu0 0.0
        %3851 = vmatprep.subr.mxu0 0.0
        %3852 = vmatpush1.xpose.msra.mxu0 0.0
        %3853 = vmatprep.subr.mxu0 0.0
        %3854 = vmatpush1.xpose.msra.mxu0 0.0
        %3855 = vmatprep.subr.mxu0 0.0
        %3856 = vmatpush1.xpose.msra.mxu0 0.0
        %3857 = vmatprep.subr.mxu0 0.0
        %3858 = vmatpush1.xpose.msra.mxu0 0.0
        %3859 = vmatprep.subr.mxu0 0.0
        %3860 = vmatpush1.xpose.msra.mxu0 0.0
        %3861 = vmatprep.subr.mxu0 0.0
        %3862 = vmatpush1.xpose.msra.mxu0 0.0
        %3863 = vmatprep.subr.mxu0 0.0
        %3864 = vmatpush1.xpose.msra.mxu0 0.0
        %3865 = vmatprep.subr.mxu0 0.0
        %3866 = vmatpush1.xpose.msra.mxu0 0.0
        %3867 = vmatprep.subr.mxu0 0.0
        %3868 = vmatpush1.xpose.msra.mxu0 0.0
        %3869 = vmatprep.subr.mxu0 0.0
        %3870 = vmatpush1.xpose.msra.mxu0 0.0
        %3871 = vmatprep.subr.mxu0 0.0
        %3872 = vmatpush1.xpose.msra.mxu0 0.0
        %3873 = vmatprep.subr.mxu0 0.0
        %3874 = vmatpush1.xpose.msra.mxu0 0.0
        %3875 = vmatprep.subr.mxu0 0.0
        %3876 = vmatpush1.xpose.msra.mxu0 0.0
        %3877 = vmatprep.subr.mxu0 0.0
        %3878 = vmatpush1.xpose.msra.mxu0 0.0
        %3879 = vmatprep.subr.mxu0 0.0
        %3880 = vmatpush1.xpose.msra.mxu0 0.0
        %3881 = vmatprep.subr.mxu0 0.0
        %3882 = vmatpush1.xpose.msra.mxu0 0.0
        %3883 = vmatprep.subr.mxu0 0.0
        %3884 = vmatpush1.xpose.msra.mxu0 0.0
        %3885 = vmatprep.subr.mxu0 0.0
        %3886 = vmatpush1.xpose.msra.mxu0 0.0
        %3887 = vmatprep.mubr.f32.mxu0 0.0
        %3888 = vmatmul.mubr.f32.gmra.mrb[0].mxu0 %v3806
        %v3889 = vpop.f32.mrb[0].mxu0
        %v3890 = vadd.f32 %v410, %v3889
        %v3891 = vpop.f32.mrb[0].mxu0
        %3892 = vmatprep.mubr.f32.mxu0 0.0
        %3893 = vmatmul.mubr.f32.gmra.mrb[0].mxu0 %v3809
        %v3894 = vpop.f32.mrb[0].mxu0
        %v3895 = vadd.f32 %v410, %v3894
        %v3896 = vpop.f32.mrb[0].mxu0
        %3897 = vmatprep.mubr.f32.mxu0 0.0
        %3898 = vmatmul.mubr.f32.gmra.mrb[0].mxu0 %v3812
        %v3899 = vpop.f32.mrb[0].mxu0
        %v3900 = vadd.f32 %v410, %v3899
        %v3901 = vpop.f32.mrb[0].mxu0
        %3902 = vdwg.mxu0
        %v3903 = vsel %vm778, %v3890, -inf
        %3904 = vmax.xlane.f32.xlu0 %v3903
        %v3905 = vpop.xlane.xlu0 %3904
        %v3906 = vsel %vm778, %v3895, -inf
        %3907 = vmax.xlane.f32.xlu0 %v3906
        %v3908 = vpop.xlane.xlu0 %3907
        %v3909 = vsel %vm778, %v3900, -inf
        %3910 = vmax.xlane.f32.xlu0 %v3909
        %v3911 = vpop.xlane.xlu0 %3910
        %v3912 = vsub.f32 %v3890, %v3905
        %v3913 = vsub.f32 %v3895, %v3908
        %v3914 = vsub.f32 %v3900, %v3911
        %v3915 = vmul.f32 %v3912, 1.442695
        %v3916 = vpow.pop %v3915
        %v3917 = vmul.f32 %v3913, 1.442695
        %v3918 = vpow.pop %v3917
        %v3919 = vmul.f32 %v3914, 1.442695
        %v3920 = vpow.pop %v3919
        %v3921 = vsel %vm778, %v3916, 0.0
        %3922 = vadd.xlane.f32.xlu0 %v3921
        %v3923 = vpop.xlane.xlu0 %3922
        %v3924 = vsel %vm778, %v3918, 0.0
        %3925 = vadd.xlane.f32.xlu0 %v3924
        %v3926 = vpop.xlane.xlu0 %3925
        %v3927 = vsel %vm778, %v3920, 0.0
        %3928 = vadd.xlane.f32.xlu0 %v3927
        %v3929 = vpop.xlane.xlu0 %3928
        %v3930 = vrcp.pop %v3923
        %v3931 = vrcp.pop %v3926
        %v3932 = vrcp.pop %v3929
        %v3933 = vmul.f32 %v3916, %v3930
        %v3934 = vmul.f32 %v3918, %v3931
        %v3935 = vmul.f32 %v3920, %v3932
        %v3937 = vsel %vm778, %v3933, 0
        %v3940 = vsel %vm778, %v3934, 0
        %v3943 = vsel %vm778, %v3935, 0
        %3945 = vmatprep.subr.mxu0 0.0
        %3946 = vmatpush1.msra.mxu0 %v3792
        %3947 = vmatprep.subr.mxu0 0.0
        %3948 = vmatpush1.msra.mxu0 %v3797
        %3949 = vmatprep.subr.mxu0 0.0
        %3950 = vmatpush1.msra.mxu0 %v3802
        %3951 = vmatprep.subr.mxu0 0.0
        %3952 = vmatpush1.msra.mxu0 0.0
        %3953 = vmatprep.subr.mxu0 0.0
        %3954 = vmatpush1.msra.mxu0 0.0
        %3955 = vmatprep.subr.mxu0 0.0
        %3956 = vmatpush1.msra.mxu0 0.0
        %3957 = vmatprep.subr.mxu0 0.0
        %3958 = vmatpush1.msra.mxu0 0.0
        %3959 = vmatprep.subr.mxu0 0.0
        %3960 = vmatpush1.msra.mxu0 0.0
        %3961 = vmatprep.subr.mxu0 0.0
        %3962 = vmatpush1.msra.mxu0 0.0
        %3963 = vmatprep.subr.mxu0 0.0
        %3964 = vmatpush1.msra.mxu0 0.0
        %3965 = vmatprep.subr.mxu0 0.0
        %3966 = vmatpush1.msra.mxu0 0.0
        %3967 = vmatprep.subr.mxu0 0.0
        %3968 = vmatpush1.msra.mxu0 0.0
        %3969 = vmatprep.subr.mxu0 0.0
        %3970 = vmatpush1.msra.mxu0 0.0
        %3971 = vmatprep.subr.mxu0 0.0
        %3972 = vmatpush1.msra.mxu0 0.0
        %3973 = vmatprep.subr.mxu0 0.0
        %3974 = vmatpush1.msra.mxu0 0.0
        %3975 = vmatprep.subr.mxu0 0.0
        %3976 = vmatpush1.msra.mxu0 0.0
        %3977 = vmatprep.subr.mxu0 0.0
        %3978 = vmatpush1.msra.mxu0 0.0
        %3979 = vmatprep.subr.mxu0 0.0
        %3980 = vmatpush1.msra.mxu0 0.0
        %3981 = vmatprep.subr.mxu0 0.0
        %3982 = vmatpush1.msra.mxu0 0.0
        %3983 = vmatprep.subr.mxu0 0.0
        %3984 = vmatpush1.msra.mxu0 0.0
        %3985 = vmatprep.subr.mxu0 0.0
        %3986 = vmatpush1.msra.mxu0 0.0
        %3987 = vmatprep.subr.mxu0 0.0
        %3988 = vmatpush1.msra.mxu0 0.0
        %3989 = vmatprep.subr.mxu0 0.0
        %3990 = vmatpush1.msra.mxu0 0.0
        %3991 = vmatprep.subr.mxu0 0.0
        %3992 = vmatpush1.msra.mxu0 0.0
        %3993 = vmatprep.subr.mxu0 0.0
        %3994 = vmatpush1.msra.mxu0 0.0
        %3995 = vmatprep.subr.mxu0 0.0
        %3996 = vmatpush1.msra.mxu0 0.0
        %3997 = vmatprep.subr.mxu0 0.0
        %3998 = vmatpush1.msra.mxu0 0.0
        %3999 = vmatprep.subr.mxu0 0.0
        %4000 = vmatpush1.msra.mxu0 0.0
        %4001 = vmatprep.subr.mxu0 0.0
        %4002 = vmatpush1.msra.mxu0 0.0
        %4003 = vmatprep.subr.mxu0 0.0
        %4004 = vmatpush1.msra.mxu0 0.0
        %4005 = vmatprep.subr.mxu0 0.0
        %4006 = vmatpush1.msra.mxu0 0.0
        %4007 = vmatprep.subr.mxu0 0.0
        %4008 = vmatpush1.msra.mxu0 0.0
        %4009 = vmatprep.mubr.f32.mxu0 0.0
        %4010 = vmatmul.mubr.f32.gmra.mrb[0].mxu0 %v3937
        %v4011 = vpop.f32.mrb[0].mxu0
        %v4012 = vadd.f32 0.0, %v4011
        %v4013 = vpop.f32.mrb[0].mxu0
        %4014 = vmatprep.mubr.f32.mxu0 0.0
        %4015 = vmatmul.mubr.f32.gmra.mrb[0].mxu0 %v3940
        %v4016 = vpop.f32.mrb[0].mxu0
        %v4017 = vadd.f32 0.0, %v4016
        %v4018 = vpop.f32.mrb[0].mxu0
        %4019 = vmatprep.mubr.f32.mxu0 0.0
        %4020 = vmatmul.mubr.f32.gmra.mrb[0].mxu0 %v3943
        %v4021 = vpop.f32.mrb[0].mxu0
        %v4022 = vadd.f32 0.0, %v4021
        %v4023 = vpop.f32.mrb[0].mxu0
        %4024 = vdwg.mxu0
        %s4025 = scalar_lea.vmem %s2, 928
        %v4026 = vld [vmem:[%s4025] sm:$0xff]
        %v4027 = vld [vmem:[%s4025 + $0x8] sm:$0xff]
        %v4028 = vld [vmem:[%s4025 + $0x10] sm:$0xff]
        %v4029 = vld [vmem:[%s4025 + $0x18] sm:$0xff]
        %v4031 = vsel %vm420, %v4012, 0
        %v4034 = vsel %vm420, %v4017, 0
        %v4037 = vsel %vm420, %v4022, 0
        %4039 = vmatprep.subr.mxu0 0.0
        %4040 = vmatpush1.msra.mxu0 %v4026
        %4041 = vmatprep.subr.mxu0 0.0
        %4042 = vmatpush1.msra.mxu0 %v4027
        %4043 = vmatprep.subr.mxu0 0.0
        %4044 = vmatpush1.msra.mxu0 %v4028
        %4045 = vmatprep.subr.mxu0 0.0
        %4046 = vmatpush1.msra.mxu0 %v4029
        %4047 = vmatprep.subr.mxu0 0.0
        %4048 = vmatpush1.msra.mxu0 0.0
        %4049 = vmatprep.subr.mxu0 0.0
        %4050 = vmatpush1.msra.mxu0 0.0
        %4051 = vmatprep.subr.mxu0 0.0
        %4052 = vmatpush1.msra.mxu0 0.0
        %4053 = vmatprep.subr.mxu0 0.0
        %4054 = vmatpush1.msra.mxu0 0.0
        %4055 = vmatprep.subr.mxu0 0.0
        %4056 = vmatpush1.msra.mxu0 0.0
        %4057 = vmatprep.subr.mxu0 0.0
        %4058 = vmatpush1.msra.mxu0 0.0
        %4059 = vmatprep.subr.mxu0 0.0
        %4060 = vmatpush1.msra.mxu0 0.0
        %4061 = vmatprep.subr.mxu0 0.0
        %4062 = vmatpush1.msra.mxu0 0.0
        %4063 = vmatprep.subr.mxu0 0.0
        %4064 = vmatpush1.msra.mxu0 0.0
        %4065 = vmatprep.subr.mxu0 0.0
        %4066 = vmatpush1.msra.mxu0 0.0
        %4067 = vmatprep.subr.mxu0 0.0
        %4068 = vmatpush1.msra.mxu0 0.0
        %4069 = vmatprep.subr.mxu0 0.0
        %4070 = vmatpush1.msra.mxu0 0.0
        %4071 = vmatprep.subr.mxu0 0.0
        %4072 = vmatpush1.msra.mxu0 0.0
        %4073 = vmatprep.subr.mxu0 0.0
        %4074 = vmatpush1.msra.mxu0 0.0
        %4075 = vmatprep.subr.mxu0 0.0
        %4076 = vmatpush1.msra.mxu0 0.0
        %4077 = vmatprep.subr.mxu0 0.0
        %4078 = vmatpush1.msra.mxu0 0.0
        %4079 = vmatprep.subr.mxu0 0.0
        %4080 = vmatpush1.msra.mxu0 0.0
        %4081 = vmatprep.subr.mxu0 0.0
        %4082 = vmatpush1.msra.mxu0 0.0
        %4083 = vmatprep.subr.mxu0 0.0
        %4084 = vmatpush1.msra.mxu0 0.0
        %4085 = vmatprep.subr.mxu0 0.0
        %4086 = vmatpush1.msra.mxu0 0.0
        %4087 = vmatprep.subr.mxu0 0.0
        %4088 = vmatpush1.msra.mxu0 0.0
        %4089 = vmatprep.subr.mxu0 0.0
        %4090 = vmatpush1.msra.mxu0 0.0
        %4091 = vmatprep.subr.mxu0 0.0
        %4092 = vmatpush1.msra.mxu0 0.0
        %4093 = vmatprep.subr.mxu0 0.0
        %4094 = vmatpush1.msra.mxu0 0.0
        %4095 = vmatprep.subr.mxu0 0.0
        %4096 = vmatpush1.msra.mxu0 0.0
        %4097 = vmatprep.subr.mxu0 0.0
        %4098 = vmatpush1.msra.mxu0 0.0
        %4099 = vmatprep.subr.mxu0 0.0
        %4100 = vmatpush1.msra.mxu0 0.0
        %4101 = vmatprep.subr.mxu0 0.0
        %4102 = vmatpush1.msra.mxu0 0.0
        %4103 = vmatprep.mubr.f32.mxu0 0.0
        %4104 = vmatmul.mubr.f32.gmra.mrb[0].mxu0 %v4031
        %v4105 = vpop.f32.mrb[0].mxu0
        %v4106 = vadd.f32 0.0, %v4105
        %v4107 = vpop.f32.mrb[0].mxu0
        %4108 = vmatprep.mubr.f32.mxu0 0.0
        %4109 = vmatmul.mubr.f32.gmra.mrb[0].mxu0 %v4034
        %v4110 = vpop.f32.mrb[0].mxu0
        %v4111 = vadd.f32 0.0, %v4110
        %v4112 = vpop.f32.mrb[0].mxu0
        %4113 = vmatprep.mubr.f32.mxu0 0.0
        %4114 = vmatmul.mubr.f32.gmra.mrb[0].mxu0 %v4037
        %v4115 = vpop.f32.mrb[0].mxu0
        %v4116 = vadd.f32 0.0, %v4115
        %v4117 = vpop.f32.mrb[0].mxu0
        %4118 = vdwg.mxu0
        %v4120 = vsel %vm420, %v3527, 0
        %v4123 = vsel %vm420, %v3532, 0
        %v4126 = vsel %vm420, %v3537, 0
        %4128 = vmatprep.subr.mxu0 0.0
        %4129 = vmatpush1.msra.mxu0 %v3541
        %4130 = vmatprep.subr.mxu0 0.0
        %4131 = vmatpush1.msra.mxu0 %v3542
        %4132 = vmatprep.subr.mxu0 0.0
        %4133 = vmatpush1.msra.mxu0 %v3543
        %4134 = vmatprep.subr.mxu0 0.0
        %4135 = vmatpush1.msra.mxu0 %v3544
        %4136 = vmatprep.subr.mxu0 0.0
        %4137 = vmatpush1.msra.mxu0 0.0
        %4138 = vmatprep.subr.mxu0 0.0
        %4139 = vmatpush1.msra.mxu0 0.0
        %4140 = vmatprep.subr.mxu0 0.0
        %4141 = vmatpush1.msra.mxu0 0.0
        %4142 = vmatprep.subr.mxu0 0.0
        %4143 = vmatpush1.msra.mxu0 0.0
        %4144 = vmatprep.subr.mxu0 0.0
        %4145 = vmatpush1.msra.mxu0 0.0
        %4146 = vmatprep.subr.mxu0 0.0
        %4147 = vmatpush1.msra.mxu0 0.0
        %4148 = vmatprep.subr.mxu0 0.0
        %4149 = vmatpush1.msra.mxu0 0.0
        %4150 = vmatprep.subr.mxu0 0.0
        %4151 = vmatpush1.msra.mxu0 0.0
        %4152 = vmatprep.subr.mxu0 0.0
        %4153 = vmatpush1.msra.mxu0 0.0
        %4154 = vmatprep.subr.mxu0 0.0
        %4155 = vmatpush1.msra.mxu0 0.0
        %4156 = vmatprep.subr.mxu0 0.0
        %4157 = vmatpush1.msra.mxu0 0.0
        %4158 = vmatprep.subr.mxu0 0.0
        %4159 = vmatpush1.msra.mxu0 0.0
        %4160 = vmatprep.subr.mxu0 0.0
        %4161 = vmatpush1.msra.mxu0 0.0
        %4162 = vmatprep.subr.mxu0 0.0
        %4163 = vmatpush1.msra.mxu0 0.0
        %4164 = vmatprep.subr.mxu0 0.0
        %4165 = vmatpush1.msra.mxu0 0.0
        %4166 = vmatprep.subr.mxu0 0.0
        %4167 = vmatpush1.msra.mxu0 0.0
        %4168 = vmatprep.subr.mxu0 0.0
        %4169 = vmatpush1.msra.mxu0 0.0
        %4170 = vmatprep.subr.mxu0 0.0
        %4171 = vmatpush1.msra.mxu0 0.0
        %4172 = vmatprep.subr.mxu0 0.0
        %4173 = vmatpush1.msra.mxu0 0.0
        %4174 = vmatprep.subr.mxu0 0.0
        %4175 = vmatpush1.msra.mxu0 0.0
        %4176 = vmatprep.subr.mxu0 0.0
        %4177 = vmatpush1.msra.mxu0 0.0
        %4178 = vmatprep.subr.mxu0 0.0
        %4179 = vmatpush1.msra.mxu0 0.0
        %4180 = vmatprep.subr.mxu0 0.0
        %4181 = vmatpush1.msra.mxu0 0.0
        %4182 = vmatprep.subr.mxu0 0.0
        %4183 = vmatpush1.msra.mxu0 0.0
        %4184 = vmatprep.subr.mxu0 0.0
        %4185 = vmatpush1.msra.mxu0 0.0
        %4186 = vmatprep.subr.mxu0 0.0
        %4187 = vmatpush1.msra.mxu0 0.0
        %4188 = vmatprep.subr.mxu0 0.0
        %4189 = vmatpush1.msra.mxu0 0.0
        %4190 = vmatprep.subr.mxu0 0.0
        %4191 = vmatpush1.msra.mxu0 0.0
        %4192 = vmatprep.mubr.f32.mxu0 0.0
        %4193 = vmatmul.mubr.f32.gmra.mrb[0].mxu0 %v4120
        %v4194 = vpop.f32.mrb[0].mxu0
        %v4195 = vadd.f32 %v4106, %v4194
        %v4196 = vpop.f32.mrb[0].mxu0
        %4197 = vmatprep.mubr.f32.mxu0 0.0
        %4198 = vmatmul.mubr.f32.gmra.mrb[0].mxu0 %v4123
        %v4199 = vpop.f32.mrb[0].mxu0
        %v4200 = vadd.f32 %v4111, %v4199
        %v4201 = vpop.f32.mrb[0].mxu0
        %4202 = vmatprep.mubr.f32.mxu0 0.0
        %4203 = vmatmul.mubr.f32.gmra.mrb[0].mxu0 %v4126
        %v4204 = vpop.f32.mrb[0].mxu0
        %v4205 = vadd.f32 %v4116, %v4204
        %v4206 = vpop.f32.mrb[0].mxu0
        %4207 = vdwg.mxu0
        %s4208 = scalar_lea.vmem %s2, 576
        %v4209 = vld [vmem:[%s4208] sm:$0xff]
        %v4210 = vld [vmem:[%s4208 + $0x8] sm:$0xff]
        %v4211 = vld [vmem:[%s4208 + $0x10] sm:$0xff]
        %v4212 = vld [vmem:[%s4208 + $0x18] sm:$0xff]
        %v4213 = vld [vmem:[%s3 + $0x6] sm:$0x1]
        %v4214 = vlaneseq
        %v4215 = vshrl.u32 %v4214, 7
        %v4216 = vsub.s32 0, %v4215
        %v4217 = vrot.slane %v4213, %v4216
        %4218 = vmatprep.subr.mxu0 0.0
        %4219 = vmatpush1.msra.mxu0 %v4209
        %4220 = vmatprep.subr.mxu0 0.0
        %4221 = vmatpush1.msra.mxu0 %v4210
        %4222 = vmatprep.subr.mxu0 0.0
        %4223 = vmatpush1.msra.mxu0 %v4211
        %4224 = vmatprep.subr.mxu0 0.0
        %4225 = vmatpush1.msra.mxu0 %v4212
        %4226 = vmatprep.subr.mxu0 0.0
        %4227 = vmatpush1.msra.mxu0 0.0
        %4228 = vmatprep.subr.mxu0 0.0
        %4229 = vmatpush1.msra.mxu0 0.0
        %4230 = vmatprep.subr.mxu0 0.0
        %4231 = vmatpush1.msra.mxu0 0.0
        %4232 = vmatprep.subr.mxu0 0.0
        %4233 = vmatpush1.msra.mxu0 0.0
        %4234 = vmatprep.subr.mxu0 0.0
        %4235 = vmatpush1.msra.mxu0 0.0
        %4236 = vmatprep.subr.mxu0 0.0
        %4237 = vmatpush1.msra.mxu0 0.0
        %4238 = vmatprep.subr.mxu0 0.0
        %4239 = vmatpush1.msra.mxu0 0.0
        %4240 = vmatprep.subr.mxu0 0.0
        %4241 = vmatpush1.msra.mxu0 0.0
        %4242 = vmatprep.subr.mxu0 0.0
        %4243 = vmatpush1.msra.mxu0 0.0
        %4244 = vmatprep.subr.mxu0 0.0
        %4245 = vmatpush1.msra.mxu0 0.0
        %4246 = vmatprep.subr.mxu0 0.0
        %4247 = vmatpush1.msra.mxu0 0.0
        %4248 = vmatprep.subr.mxu0 0.0
        %4249 = vmatpush1.msra.mxu0 0.0
        %4250 = vmatprep.subr.mxu0 0.0
        %4251 = vmatpush1.msra.mxu0 0.0
        %4252 = vmatprep.subr.mxu0 0.0
        %4253 = vmatpush1.msra.mxu0 0.0
        %4254 = vmatprep.subr.mxu0 0.0
        %4255 = vmatpush1.msra.mxu0 0.0
        %4256 = vmatprep.subr.mxu0 0.0
        %4257 = vmatpush1.msra.mxu0 0.0
        %4258 = vmatprep.subr.mxu0 0.0
        %4259 = vmatpush1.msra.mxu0 0.0
        %4260 = vmatprep.subr.mxu0 0.0
        %4261 = vmatpush1.msra.mxu0 0.0
        %4262 = vmatprep.subr.mxu0 0.0
        %4263 = vmatpush1.msra.mxu0 0.0
        %4264 = vmatprep.subr.mxu0 0.0
        %4265 = vmatpush1.msra.mxu0 0.0
        %4266 = vmatprep.subr.mxu0 0.0
        %4267 = vmatpush1.msra.mxu0 0.0
        %4268 = vmatprep.subr.mxu0 0.0
        %4269 = vmatpush1.msra.mxu0 0.0
        %4270 = vmatprep.subr.mxu0 0.0
        %4271 = vmatpush1.msra.mxu0 0.0
        %4272 = vmatprep.subr.mxu0 0.0
        %4273 = vmatpush1.msra.mxu0 0.0
        %4274 = vmatprep.subr.mxu0 0.0
        %4275 = vmatpush1.msra.mxu0 0.0
        %4276 = vmatprep.subr.mxu0 0.0
        %4277 = vmatpush1.msra.mxu0 0.0
        %4278 = vmatprep.subr.mxu0 0.0
        %4279 = vmatpush1.msra.mxu0 0.0
        %4280 = vmatprep.subr.mxu0 0.0
        %4281 = vmatpush1.msra.mxu0 0.0
        %4282 = vmatprep.mubr.f32.mxu0 0.0
        %4283 = vmatmul.mubr.f32.gmra.mrb[0].mxu0 %v3062
        %v4284 = vpop.f32.mrb[0].mxu0
        %v4285 = vadd.f32 %v4217, %v4284
        %v4286 = vpop.f32.mrb[0].mxu0
        %4287 = vmatprep.mubr.f32.mxu0 0.0
        %4288 = vmatmul.mubr.f32.gmra.mrb[0].mxu0 %v3065
        %v4289 = vpop.f32.mrb[0].mxu0
        %v4290 = vadd.f32 %v4217, %v4289
        %v4291 = vpop.f32.mrb[0].mxu0
        %4292 = vmatprep.mubr.f32.mxu0 0.0
        %4293 = vmatmul.mubr.f32.gmra.mrb[0].mxu0 %v3068
        %v4294 = vpop.f32.mrb[0].mxu0
        %v4295 = vadd.f32 %v4217, %v4294
        %v4296 = vpop.f32.mrb[0].mxu0
        %4297 = vdwg.mxu0
        %s4298 = scalar_lea.vmem %s2, 704
        %v4299 = vld [vmem:[%s4298] sm:$0xff]
        %v4300 = vld [vmem:[%s4298 + $0x8] sm:$0xff]
        %v4301 = vld [vmem:[%s4298 + $0x10] sm:$0xff]
        %v4302 = vld [vmem:[%s4298 + $0x18] sm:$0xff]
        %4303 = vmatprep.subr.mxu0 0.0
        %4304 = vmatpush1.msra.mxu0 %v4299
        %4305 = vmatprep.subr.mxu0 0.0
        %4306 = vmatpush1.msra.mxu0 %v4300
        %4307 = vmatprep.subr.mxu0 0.0
        %4308 = vmatpush1.msra.mxu0 %v4301
        %4309 = vmatprep.subr.mxu0 0.0
        %4310 = vmatpush1.msra.mxu0 %v4302
        %4311 = vmatprep.subr.mxu0 0.0
        %4312 = vmatpush1.msra.mxu0 0.0
        %4313 = vmatprep.subr.mxu0 0.0
        %4314 = vmatpush1.msra.mxu0 0.0
        %4315 = vmatprep.subr.mxu0 0.0
        %4316 = vmatpush1.msra.mxu0 0.0
        %4317 = vmatprep.subr.mxu0 0.0
        %4318 = vmatpush1.msra.mxu0 0.0
        %4319 = vmatprep.subr.mxu0 0.0
        %4320 = vmatpush1.msra.mxu0 0.0
        %4321 = vmatprep.subr.mxu0 0.0
        %4322 = vmatpush1.msra.mxu0 0.0
        %4323 = vmatprep.subr.mxu0 0.0
        %4324 = vmatpush1.msra.mxu0 0.0
        %4325 = vmatprep.subr.mxu0 0.0
        %4326 = vmatpush1.msra.mxu0 0.0
        %4327 = vmatprep.subr.mxu0 0.0
        %4328 = vmatpush1.msra.mxu0 0.0
        %4329 = vmatprep.subr.mxu0 0.0
        %4330 = vmatpush1.msra.mxu0 0.0
        %4331 = vmatprep.subr.mxu0 0.0
        %4332 = vmatpush1.msra.mxu0 0.0
        %4333 = vmatprep.subr.mxu0 0.0
        %4334 = vmatpush1.msra.mxu0 0.0
        %4335 = vmatprep.subr.mxu0 0.0
        %4336 = vmatpush1.msra.mxu0 0.0
        %4337 = vmatprep.subr.mxu0 0.0
        %4338 = vmatpush1.msra.mxu0 0.0
        %4339 = vmatprep.subr.mxu0 0.0
        %4340 = vmatpush1.msra.mxu0 0.0
        %4341 = vmatprep.subr.mxu0 0.0
        %4342 = vmatpush1.msra.mxu0 0.0
        %4343 = vmatprep.subr.mxu0 0.0
        %4344 = vmatpush1.msra.mxu0 0.0
        %4345 = vmatprep.subr.mxu0 0.0
        %4346 = vmatpush1.msra.mxu0 0.0
        %4347 = vmatprep.subr.mxu0 0.0
        %4348 = vmatpush1.msra.mxu0 0.0
        %4349 = vmatprep.subr.mxu0 0.0
        %4350 = vmatpush1.msra.mxu0 0.0
        %4351 = vmatprep.subr.mxu0 0.0
        %4352 = vmatpush1.msra.mxu0 0.0
        %4353 = vmatprep.subr.mxu0 0.0
        %4354 = vmatpush1.msra.mxu0 0.0
        %4355 = vmatprep.subr.mxu0 0.0
        %4356 = vmatpush1.msra.mxu0 0.0
        %4357 = vmatprep.subr.mxu0 0.0
        %4358 = vmatpush1.msra.mxu0 0.0
        %4359 = vmatprep.subr.mxu0 0.0
        %4360 = vmatpush1.msra.mxu0 0.0
        %4361 = vmatprep.subr.mxu0 0.0
        %4362 = vmatpush1.msra.mxu0 0.0
        %4363 = vmatprep.subr.mxu0 0.0
        %4364 = vmatpush1.msra.mxu0 0.0
        %4365 = vmatprep.subr.mxu0 0.0
        %4366 = vmatpush1.msra.mxu0 0.0
        %4367 = vmatprep.mubr.f32.mxu0 0.0
        %4368 = vmatmul.mubr.f32.gmra.mrb[0].mxu0 %v3062
        %v4369 = vpop.f32.mrb[0].mxu0
        %v4370 = vadd.f32 0.0, %v4369
        %v4371 = vpop.f32.mrb[0].mxu0
        %4372 = vmatprep.mubr.f32.mxu0 0.0
        %4373 = vmatmul.mubr.f32.gmra.mrb[0].mxu0 %v3065
        %v4374 = vpop.f32.mrb[0].mxu0
        %v4375 = vadd.f32 0.0, %v4374
        %v4376 = vpop.f32.mrb[0].mxu0
        %4377 = vmatprep.mubr.f32.mxu0 0.0
        %4378 = vmatmul.mubr.f32.gmra.mrb[0].mxu0 %v3068
        %v4379 = vpop.f32.mrb[0].mxu0
        %v4380 = vadd.f32 0.0, %v4379
        %v4381 = vpop.f32.mrb[0].mxu0
        %4382 = vdwg.mxu0
        %s4383 = scalar_lea.vmem %s2, 832
        %v4384 = vld [vmem:[%s4383] sm:$0xff]
        %v4385 = vld [vmem:[%s4383 + $0x8] sm:$0xff]
        %v4386 = vld [vmem:[%s4383 + $0x10] sm:$0xff]
        %v4387 = vld [vmem:[%s4383 + $0x18] sm:$0xff]
        %4388 = vmatprep.subr.mxu0 0.0
        %4389 = vmatpush1.msra.mxu0 %v4384
        %4390 = vmatprep.subr.mxu0 0.0
        %4391 = vmatpush1.msra.mxu0 %v4385
        %4392 = vmatprep.subr.mxu0 0.0
        %4393 = vmatpush1.msra.mxu0 %v4386
        %4394 = vmatprep.subr.mxu0 0.0
        %4395 = vmatpush1.msra.mxu0 %v4387
        %4396 = vmatprep.subr.mxu0 0.0
        %4397 = vmatpush1.msra.mxu0 0.0
        %4398 = vmatprep.subr.mxu0 0.0
        %4399 = vmatpush1.msra.mxu0 0.0
        %4400 = vmatprep.subr.mxu0 0.0
        %4401 = vmatpush1.msra.mxu0 0.0
        %4402 = vmatprep.subr.mxu0 0.0
        %4403 = vmatpush1.msra.mxu0 0.0
        %4404 = vmatprep.subr.mxu0 0.0
        %4405 = vmatpush1.msra.mxu0 0.0
        %4406 = vmatprep.subr.mxu0 0.0
        %4407 = vmatpush1.msra.mxu0 0.0
        %4408 = vmatprep.subr.mxu0 0.0
        %4409 = vmatpush1.msra.mxu0 0.0
        %4410 = vmatprep.subr.mxu0 0.0
        %4411 = vmatpush1.msra.mxu0 0.0
        %4412 = vmatprep.subr.mxu0 0.0
        %4413 = vmatpush1.msra.mxu0 0.0
        %4414 = vmatprep.subr.mxu0 0.0
        %4415 = vmatpush1.msra.mxu0 0.0
        %4416 = vmatprep.subr.mxu0 0.0
        %4417 = vmatpush1.msra.mxu0 0.0
        %4418 = vmatprep.subr.mxu0 0.0
        %4419 = vmatpush1.msra.mxu0 0.0
        %4420 = vmatprep.subr.mxu0 0.0
        %4421 = vmatpush1.msra.mxu0 0.0
        %4422 = vmatprep.subr.mxu0 0.0
        %4423 = vmatpush1.msra.mxu0 0.0
        %4424 = vmatprep.subr.mxu0 0.0
        %4425 = vmatpush1.msra.mxu0 0.0
        %4426 = vmatprep.subr.mxu0 0.0
        %4427 = vmatpush1.msra.mxu0 0.0
        %4428 = vmatprep.subr.mxu0 0.0
        %4429 = vmatpush1.msra.mxu0 0.0
        %4430 = vmatprep.subr.mxu0 0.0
        %4431 = vmatpush1.msra.mxu0 0.0
        %4432 = vmatprep.subr.mxu0 0.0
        %4433 = vmatpush1.msra.mxu0 0.0
        %4434 = vmatprep.subr.mxu0 0.0
        %4435 = vmatpush1.msra.mxu0 0.0
        %4436 = vmatprep.subr.mxu0 0.0
        %4437 = vmatpush1.msra.mxu0 0.0
        %4438 = vmatprep.subr.mxu0 0.0
        %4439 = vmatpush1.msra.mxu0 0.0
        %4440 = vmatprep.subr.mxu0 0.0
        %4441 = vmatpush1.msra.mxu0 0.0
        %4442 = vmatprep.subr.mxu0 0.0
        %4443 = vmatpush1.msra.mxu0 0.0
        %4444 = vmatprep.subr.mxu0 0.0
        %4445 = vmatpush1.msra.mxu0 0.0
        %4446 = vmatprep.subr.mxu0 0.0
        %4447 = vmatpush1.msra.mxu0 0.0
        %4448 = vmatprep.subr.mxu0 0.0
        %4449 = vmatpush1.msra.mxu0 0.0
        %4450 = vmatprep.subr.mxu0 0.0
        %4451 = vmatpush1.msra.mxu0 0.0
        %4452 = vmatprep.mubr.f32.mxu0 0.0
        %4453 = vmatmul.mubr.f32.gmra.mrb[0].mxu0 %v3062
        %v4454 = vpop.f32.mrb[0].mxu0
        %v4455 = vadd.f32 0.0, %v4454
        %v4456 = vpop.f32.mrb[0].mxu0
        %4457 = vmatprep.mubr.f32.mxu0 0.0
        %4458 = vmatmul.mubr.f32.gmra.mrb[0].mxu0 %v3065
        %v4459 = vpop.f32.mrb[0].mxu0
        %v4460 = vadd.f32 0.0, %v4459
        %v4461 = vpop.f32.mrb[0].mxu0
        %4462 = vmatprep.mubr.f32.mxu0 0.0
        %4463 = vmatmul.mubr.f32.gmra.mrb[0].mxu0 %v3068
        %v4464 = vpop.f32.mrb[0].mxu0
        %v4465 = vadd.f32 0.0, %v4464
        %v4466 = vpop.f32.mrb[0].mxu0
        %4467 = vdwg.mxu0
        %v4469 = vsel %vm420, %v4285, 0
        %v4472 = vsel %vm420, %v4290, 0
        %v4475 = vsel %vm420, %v4295, 0
        %v4478 = vsel %vm420, %v4370, 0
        %v4481 = vsel %vm420, %v4375, 0
        %v4484 = vsel %vm420, %v4380, 0
        %4486 = vmatprep.subr.mxu0 0.0
        %4487 = vmatpush1.xpose.msra.mxu0 %v4478
        %4488 = vmatprep.subr.mxu0 0.0
        %4489 = vmatpush1.xpose.msra.mxu0 %v4481
        %4490 = vmatprep.subr.mxu0 0.0
        %4491 = vmatpush1.xpose.msra.mxu0 %v4484
        %4492 = vmatprep.subr.mxu0 0.0
        %4493 = vmatpush1.xpose.msra.mxu0 0.0
        %4494 = vmatprep.subr.mxu0 0.0
        %4495 = vmatpush1.xpose.msra.mxu0 0.0
        %4496 = vmatprep.subr.mxu0 0.0
        %4497 = vmatpush1.xpose.msra.mxu0 0.0
        %4498 = vmatprep.subr.mxu0 0.0
        %4499 = vmatpush1.xpose.msra.mxu0 0.0
        %4500 = vmatprep.subr.mxu0 0.0
        %4501 = vmatpush1.xpose.msra.mxu0 0.0
        %4502 = vmatprep.subr.mxu0 0.0
        %4503 = vmatpush1.xpose.msra.mxu0 0.0
        %4504 = vmatprep.subr.mxu0 0.0
        %4505 = vmatpush1.xpose.msra.mxu0 0.0
        %4506 = vmatprep.subr.mxu0 0.0
        %4507 = vmatpush1.xpose.msra.mxu0 0.0
        %4508 = vmatprep.subr.mxu0 0.0
        %4509 = vmatpush1.xpose.msra.mxu0 0.0
        %4510 = vmatprep.subr.mxu0 0.0
        %4511 = vmatpush1.xpose.msra.mxu0 0.0
        %4512 = vmatprep.subr.mxu0 0.0
        %4513 = vmatpush1.xpose.msra.mxu0 0.0
        %4514 = vmatprep.subr.mxu0 0.0
        %4515 = vmatpush1.xpose.msra.mxu0 0.0
        %4516 = vmatprep.subr.mxu0 0.0
        %4517 = vmatpush1.xpose.msra.mxu0 0.0
        %4518 = vmatprep.subr.mxu0 0.0
        %4519 = vmatpush1.xpose.msra.mxu0 0.0
        %4520 = vmatprep.subr.mxu0 0.0
        %4521 = vmatpush1.xpose.msra.mxu0 0.0
        %4522 = vmatprep.subr.mxu0 0.0
        %4523 = vmatpush1.xpose.msra.mxu0 0.0
        %4524 = vmatprep.subr.mxu0 0.0
        %4525 = vmatpush1.xpose.msra.mxu0 0.0
        %4526 = vmatprep.subr.mxu0 0.0
        %4527 = vmatpush1.xpose.msra.mxu0 0.0
        %4528 = vmatprep.subr.mxu0 0.0
        %4529 = vmatpush1.xpose.msra.mxu0 0.0
        %4530 = vmatprep.subr.mxu0 0.0
        %4531 = vmatpush1.xpose.msra.mxu0 0.0
        %4532 = vmatprep.subr.mxu0 0.0
        %4533 = vmatpush1.xpose.msra.mxu0 0.0
        %4534 = vmatprep.subr.mxu0 0.0
        %4535 = vmatpush1.xpose.msra.mxu0 0.0
        %4536 = vmatprep.subr.mxu0 0.0
        %4537 = vmatpush1.xpose.msra.mxu0 0.0
        %4538 = vmatprep.subr.mxu0 0.0
        %4539 = vmatpush1.xpose.msra.mxu0 0.0
        %4540 = vmatprep.subr.mxu0 0.0
        %4541 = vmatpush1.xpose.msra.mxu0 0.0
        %4542 = vmatprep.subr.mxu0 0.0
        %4543 = vmatpush1.xpose.msra.mxu0 0.0
        %4544 = vmatprep.subr.mxu0 0.0
        %4545 = vmatpush1.xpose.msra.mxu0 0.0
        %4546 = vmatprep.subr.mxu0 0.0
        %4547 = vmatpush1.xpose.msra.mxu0 0.0
        %4548 = vmatprep.subr.mxu0 0.0
        %4549 = vmatpush1.xpose.msra.mxu0 0.0
        %4550 = vmatprep.mubr.f32.mxu0 0.0
        %4551 = vmatmul.mubr.f32.gmra.mrb[0].mxu0 %v4469
        %v4552 = vpop.f32.mrb[0].mxu0
        %v4553 = vadd.f32 %v410, %v4552
        %v4554 = vpop.f32.mrb[0].mxu0
        %4555 = vmatprep.mubr.f32.mxu0 0.0
        %4556 = vmatmul.mubr.f32.gmra.mrb[0].mxu0 %v4472
        %v4557 = vpop.f32.mrb[0].mxu0
        %v4558 = vadd.f32 %v410, %v4557
        %v4559 = vpop.f32.mrb[0].mxu0
        %4560 = vmatprep.mubr.f32.mxu0 0.0
        %4561 = vmatmul.mubr.f32.gmra.mrb[0].mxu0 %v4475
        %v4562 = vpop.f32.mrb[0].mxu0
        %v4563 = vadd.f32 %v410, %v4562
        %v4564 = vpop.f32.mrb[0].mxu0
        %4565 = vdwg.mxu0
        %v4566 = vsel %vm778, %v4553, -inf
        %4567 = vmax.xlane.f32.xlu0 %v4566
        %v4568 = vpop.xlane.xlu0 %4567
        %v4569 = vsel %vm778, %v4558, -inf
        %4570 = vmax.xlane.f32.xlu0 %v4569
        %v4571 = vpop.xlane.xlu0 %4570
        %v4572 = vsel %vm778, %v4563, -inf
        %4573 = vmax.xlane.f32.xlu0 %v4572
        %v4574 = vpop.xlane.xlu0 %4573
        %v4575 = vsub.f32 %v4553, %v4568
        %v4576 = vsub.f32 %v4558, %v4571
        %v4577 = vsub.f32 %v4563, %v4574
        %v4578 = vmul.f32 %v4575, 1.442695
        %v4579 = vpow.pop %v4578
        %v4580 = vmul.f32 %v4576, 1.442695
        %v4581 = vpow.pop %v4580
        %v4582 = vmul.f32 %v4577, 1.442695
        %v4583 = vpow.pop %v4582
        %v4584 = vsel %vm778, %v4579, 0.0
        %4585 = vadd.xlane.f32.xlu0 %v4584
        %v4586 = vpop.xlane.xlu0 %4585
        %v4587 = vsel %vm778, %v4581, 0.0
        %4588 = vadd.xlane.f32.xlu0 %v4587
        %v4589 = vpop.xlane.xlu0 %4588
        %v4590 = vsel %vm778, %v4583, 0.0
        %4591 = vadd.xlane.f32.xlu0 %v4590
        %v4592 = vpop.xlane.xlu0 %4591
        %v4593 = vrcp.pop %v4586
        %v4594 = vrcp.pop %v4589
        %v4595 = vrcp.pop %v4592
        %v4596 = vmul.f32 %v4579, %v4593
        %v4597 = vmul.f32 %v4581, %v4594
        %v4598 = vmul.f32 %v4583, %v4595
        %v4600 = vsel %vm778, %v4596, 0
        %v4603 = vsel %vm778, %v4597, 0
        %v4606 = vsel %vm778, %v4598, 0
        %4608 = vmatprep.subr.mxu0 0.0
        %4609 = vmatpush1.msra.mxu0 %v4455
        %4610 = vmatprep.subr.mxu0 0.0
        %4611 = vmatpush1.msra.mxu0 %v4460
        %4612 = vmatprep.subr.mxu0 0.0
        %4613 = vmatpush1.msra.mxu0 %v4465
        %4614 = vmatprep.subr.mxu0 0.0
        %4615 = vmatpush1.msra.mxu0 0.0
        %4616 = vmatprep.subr.mxu0 0.0
        %4617 = vmatpush1.msra.mxu0 0.0
        %4618 = vmatprep.subr.mxu0 0.0
        %4619 = vmatpush1.msra.mxu0 0.0
        %4620 = vmatprep.subr.mxu0 0.0
        %4621 = vmatpush1.msra.mxu0 0.0
        %4622 = vmatprep.subr.mxu0 0.0
        %4623 = vmatpush1.msra.mxu0 0.0
        %4624 = vmatprep.subr.mxu0 0.0
        %4625 = vmatpush1.msra.mxu0 0.0
        %4626 = vmatprep.subr.mxu0 0.0
        %4627 = vmatpush1.msra.mxu0 0.0
        %4628 = vmatprep.subr.mxu0 0.0
        %4629 = vmatpush1.msra.mxu0 0.0
        %4630 = vmatprep.subr.mxu0 0.0
        %4631 = vmatpush1.msra.mxu0 0.0
        %4632 = vmatprep.subr.mxu0 0.0
        %4633 = vmatpush1.msra.mxu0 0.0
        %4634 = vmatprep.subr.mxu0 0.0
        %4635 = vmatpush1.msra.mxu0 0.0
        %4636 = vmatprep.subr.mxu0 0.0
        %4637 = vmatpush1.msra.mxu0 0.0
        %4638 = vmatprep.subr.mxu0 0.0
        %4639 = vmatpush1.msra.mxu0 0.0
        %4640 = vmatprep.subr.mxu0 0.0
        %4641 = vmatpush1.msra.mxu0 0.0
        %4642 = vmatprep.subr.mxu0 0.0
        %4643 = vmatpush1.msra.mxu0 0.0
        %4644 = vmatprep.subr.mxu0 0.0
        %4645 = vmatpush1.msra.mxu0 0.0
        %4646 = vmatprep.subr.mxu0 0.0
        %4647 = vmatpush1.msra.mxu0 0.0
        %4648 = vmatprep.subr.mxu0 0.0
        %4649 = vmatpush1.msra.mxu0 0.0
        %4650 = vmatprep.subr.mxu0 0.0
        %4651 = vmatpush1.msra.mxu0 0.0
        %4652 = vmatprep.subr.mxu0 0.0
        %4653 = vmatpush1.msra.mxu0 0.0
        %4654 = vmatprep.subr.mxu0 0.0
        %4655 = vmatpush1.msra.mxu0 0.0
        %4656 = vmatprep.subr.mxu0 0.0
        %4657 = vmatpush1.msra.mxu0 0.0
        %4658 = vmatprep.subr.mxu0 0.0
        %4659 = vmatpush1.msra.mxu0 0.0
        %4660 = vmatprep.subr.mxu0 0.0
        %4661 = vmatpush1.msra.mxu0 0.0
        %4662 = vmatprep.subr.mxu0 0.0
        %4663 = vmatpush1.msra.mxu0 0.0
        %4664 = vmatprep.subr.mxu0 0.0
        %4665 = vmatpush1.msra.mxu0 0.0
        %4666 = vmatprep.subr.mxu0 0.0
        %4667 = vmatpush1.msra.mxu0 0.0
        %4668 = vmatprep.subr.mxu0 0.0
        %4669 = vmatpush1.msra.mxu0 0.0
        %4670 = vmatprep.subr.mxu0 0.0
        %4671 = vmatpush1.msra.mxu0 0.0
        %4672 = vmatprep.mubr.f32.mxu0 0.0
        %4673 = vmatmul.mubr.f32.gmra.mrb[0].mxu0 %v4600
        %v4674 = vpop.f32.mrb[0].mxu0
        %v4675 = vadd.f32 0.0, %v4674
        %v4676 = vpop.f32.mrb[0].mxu0
        %4677 = vmatprep.mubr.f32.mxu0 0.0
        %4678 = vmatmul.mubr.f32.gmra.mrb[0].mxu0 %v4603
        %v4679 = vpop.f32.mrb[0].mxu0
        %v4680 = vadd.f32 0.0, %v4679
        %v4681 = vpop.f32.mrb[0].mxu0
        %4682 = vmatprep.mubr.f32.mxu0 0.0
        %4683 = vmatmul.mubr.f32.gmra.mrb[0].mxu0 %v4606
        %v4684 = vpop.f32.mrb[0].mxu0
        %v4685 = vadd.f32 0.0, %v4684
        %v4686 = vpop.f32.mrb[0].mxu0
        %4687 = vdwg.mxu0
        %s4688 = scalar_lea.vmem %s2, 960
        %v4689 = vld [vmem:[%s4688] sm:$0xff]
        %v4690 = vld [vmem:[%s4688 + $0x8] sm:$0xff]
        %v4691 = vld [vmem:[%s4688 + $0x10] sm:$0xff]
        %v4692 = vld [vmem:[%s4688 + $0x18] sm:$0xff]
        %v4694 = vsel %vm420, %v4675, 0
        %v4697 = vsel %vm420, %v4680, 0
        %v4700 = vsel %vm420, %v4685, 0
        %4702 = vmatprep.subr.mxu0 0.0
        %4703 = vmatpush1.msra.mxu0 %v4689
        %4704 = vmatprep.subr.mxu0 0.0
        %4705 = vmatpush1.msra.mxu0 %v4690
        %4706 = vmatprep.subr.mxu0 0.0
        %4707 = vmatpush1.msra.mxu0 %v4691
        %4708 = vmatprep.subr.mxu0 0.0
        %4709 = vmatpush1.msra.mxu0 %v4692
        %4710 = vmatprep.subr.mxu0 0.0
        %4711 = vmatpush1.msra.mxu0 0.0
        %4712 = vmatprep.subr.mxu0 0.0
        %4713 = vmatpush1.msra.mxu0 0.0
        %4714 = vmatprep.subr.mxu0 0.0
        %4715 = vmatpush1.msra.mxu0 0.0
        %4716 = vmatprep.subr.mxu0 0.0
        %4717 = vmatpush1.msra.mxu0 0.0
        %4718 = vmatprep.subr.mxu0 0.0
        %4719 = vmatpush1.msra.mxu0 0.0
        %4720 = vmatprep.subr.mxu0 0.0
        %4721 = vmatpush1.msra.mxu0 0.0
        %4722 = vmatprep.subr.mxu0 0.0
        %4723 = vmatpush1.msra.mxu0 0.0
        %4724 = vmatprep.subr.mxu0 0.0
        %4725 = vmatpush1.msra.mxu0 0.0
        %4726 = vmatprep.subr.mxu0 0.0
        %4727 = vmatpush1.msra.mxu0 0.0
        %4728 = vmatprep.subr.mxu0 0.0
        %4729 = vmatpush1.msra.mxu0 0.0
        %4730 = vmatprep.subr.mxu0 0.0
        %4731 = vmatpush1.msra.mxu0 0.0
        %4732 = vmatprep.subr.mxu0 0.0
        %4733 = vmatpush1.msra.mxu0 0.0
        %4734 = vmatprep.subr.mxu0 0.0
        %4735 = vmatpush1.msra.mxu0 0.0
        %4736 = vmatprep.subr.mxu0 0.0
        %4737 = vmatpush1.msra.mxu0 0.0
        %4738 = vmatprep.subr.mxu0 0.0
        %4739 = vmatpush1.msra.mxu0 0.0
        %4740 = vmatprep.subr.mxu0 0.0
        %4741 = vmatpush1.msra.mxu0 0.0
        %4742 = vmatprep.subr.mxu0 0.0
        %4743 = vmatpush1.msra.mxu0 0.0
        %4744 = vmatprep.subr.mxu0 0.0
        %4745 = vmatpush1.msra.mxu0 0.0
        %4746 = vmatprep.subr.mxu0 0.0
        %4747 = vmatpush1.msra.mxu0 0.0
        %4748 = vmatprep.subr.mxu0 0.0
        %4749 = vmatpush1.msra.mxu0 0.0
        %4750 = vmatprep.subr.mxu0 0.0
        %4751 = vmatpush1.msra.mxu0 0.0
        %4752 = vmatprep.subr.mxu0 0.0
        %4753 = vmatpush1.msra.mxu0 0.0
        %4754 = vmatprep.subr.mxu0 0.0
        %4755 = vmatpush1.msra.mxu0 0.0
        %4756 = vmatprep.subr.mxu0 0.0
        %4757 = vmatpush1.msra.mxu0 0.0
        %4758 = vmatprep.subr.mxu0 0.0
        %4759 = vmatpush1.msra.mxu0 0.0
        %4760 = vmatprep.subr.mxu0 0.0
        %4761 = vmatpush1.msra.mxu0 0.0
        %4762 = vmatprep.subr.mxu0 0.0
        %4763 = vmatpush1.msra.mxu0 0.0
        %4764 = vmatprep.subr.mxu0 0.0
        %4765 = vmatpush1.msra.mxu0 0.0
        %4766 = vmatprep.mubr.f32.mxu0 0.0
        %4767 = vmatmul.mubr.f32.gmra.mrb[0].mxu0 %v4694
        %v4768 = vpop.f32.mrb[0].mxu0
        %v4769 = vadd.f32 0.0, %v4768
        %v4770 = vpop.f32.mrb[0].mxu0
        %4771 = vmatprep.mubr.f32.mxu0 0.0
        %4772 = vmatmul.mubr.f32.gmra.mrb[0].mxu0 %v4697
        %v4773 = vpop.f32.mrb[0].mxu0
        %v4774 = vadd.f32 0.0, %v4773
        %v4775 = vpop.f32.mrb[0].mxu0
        %4776 = vmatprep.mubr.f32.mxu0 0.0
        %4777 = vmatmul.mubr.f32.gmra.mrb[0].mxu0 %v4700
        %v4778 = vpop.f32.mrb[0].mxu0
        %v4779 = vadd.f32 0.0, %v4778
        %v4780 = vpop.f32.mrb[0].mxu0
        %4781 = vdwg.mxu0
        %v4782 = vadd.f32 %v4195, %v4769
        %v4783 = vadd.f32 %v4200, %v4774
        %v4784 = vadd.f32 %v4205, %v4779
        %s4785 = scalar_lea.vmem %s2, 608
        %v4786 = vld [vmem:[%s4785] sm:$0xff]
        %v4787 = vld [vmem:[%s4785 + $0x8] sm:$0xff]
        %v4788 = vld [vmem:[%s4785 + $0x10] sm:$0xff]
        %v4789 = vld [vmem:[%s4785 + $0x18] sm:$0xff]
        %v4790 = vld [vmem:[%s3 + $0x7] sm:$0x1]
        %v4791 = vlaneseq
        %v4792 = vshrl.u32 %v4791, 7
        %v4793 = vsub.s32 0, %v4792
        %v4794 = vrot.slane %v4790, %v4793
        %4795 = vmatprep.subr.mxu0 0.0
        %4796 = vmatpush1.msra.mxu0 %v4786
        %4797 = vmatprep.subr.mxu0 0.0
        %4798 = vmatpush1.msra.mxu0 %v4787
        %4799 = vmatprep.subr.mxu0 0.0
        %4800 = vmatpush1.msra.mxu0 %v4788
        %4801 = vmatprep.subr.mxu0 0.0
        %4802 = vmatpush1.msra.mxu0 %v4789
        %4803 = vmatprep.subr.mxu0 0.0
        %4804 = vmatpush1.msra.mxu0 0.0
        %4805 = vmatprep.subr.mxu0 0.0
        %4806 = vmatpush1.msra.mxu0 0.0
        %4807 = vmatprep.subr.mxu0 0.0
        %4808 = vmatpush1.msra.mxu0 0.0
        %4809 = vmatprep.subr.mxu0 0.0
        %4810 = vmatpush1.msra.mxu0 0.0
        %4811 = vmatprep.subr.mxu0 0.0
        %4812 = vmatpush1.msra.mxu0 0.0
        %4813 = vmatprep.subr.mxu0 0.0
        %4814 = vmatpush1.msra.mxu0 0.0
        %4815 = vmatprep.subr.mxu0 0.0
        %4816 = vmatpush1.msra.mxu0 0.0
        %4817 = vmatprep.subr.mxu0 0.0
        %4818 = vmatpush1.msra.mxu0 0.0
        %4819 = vmatprep.subr.mxu0 0.0
        %4820 = vmatpush1.msra.mxu0 0.0
        %4821 = vmatprep.subr.mxu0 0.0
        %4822 = vmatpush1.msra.mxu0 0.0
        %4823 = vmatprep.subr.mxu0 0.0
        %4824 = vmatpush1.msra.mxu0 0.0
        %4825 = vmatprep.subr.mxu0 0.0
        %4826 = vmatpush1.msra.mxu0 0.0
        %4827 = vmatprep.subr.mxu0 0.0
        %4828 = vmatpush1.msra.mxu0 0.0
        %4829 = vmatprep.subr.mxu0 0.0
        %4830 = vmatpush1.msra.mxu0 0.0
        %4831 = vmatprep.subr.mxu0 0.0
        %4832 = vmatpush1.msra.mxu0 0.0
        %4833 = vmatprep.subr.mxu0 0.0
        %4834 = vmatpush1.msra.mxu0 0.0
        %4835 = vmatprep.subr.mxu0 0.0
        %4836 = vmatpush1.msra.mxu0 0.0
        %4837 = vmatprep.subr.mxu0 0.0
        %4838 = vmatpush1.msra.mxu0 0.0
        %4839 = vmatprep.subr.mxu0 0.0
        %4840 = vmatpush1.msra.mxu0 0.0
        %4841 = vmatprep.subr.mxu0 0.0
        %4842 = vmatpush1.msra.mxu0 0.0
        %4843 = vmatprep.subr.mxu0 0.0
        %4844 = vmatpush1.msra.mxu0 0.0
        %4845 = vmatprep.subr.mxu0 0.0
        %4846 = vmatpush1.msra.mxu0 0.0
        %4847 = vmatprep.subr.mxu0 0.0
        %4848 = vmatpush1.msra.mxu0 0.0
        %4849 = vmatprep.subr.mxu0 0.0
        %4850 = vmatpush1.msra.mxu0 0.0
        %4851 = vmatprep.subr.mxu0 0.0
        %4852 = vmatpush1.msra.mxu0 0.0
        %4853 = vmatprep.subr.mxu0 0.0
        %4854 = vmatpush1.msra.mxu0 0.0
        %4855 = vmatprep.subr.mxu0 0.0
        %4856 = vmatpush1.msra.mxu0 0.0
        %4857 = vmatprep.subr.mxu0 0.0
        %4858 = vmatpush1.msra.mxu0 0.0
        %4859 = vmatprep.mubr.f32.mxu0 0.0
        %4860 = vmatmul.mubr.f32.gmra.mrb[0].mxu0 %v3062
        %v4861 = vpop.f32.mrb[0].mxu0
        %v4862 = vadd.f32 %v4794, %v4861
        %v4863 = vpop.f32.mrb[0].mxu0
        %4864 = vmatprep.mubr.f32.mxu0 0.0
        %4865 = vmatmul.mubr.f32.gmra.mrb[0].mxu0 %v3065
        %v4866 = vpop.f32.mrb[0].mxu0
        %v4867 = vadd.f32 %v4794, %v4866
        %v4868 = vpop.f32.mrb[0].mxu0
        %4869 = vmatprep.mubr.f32.mxu0 0.0
        %4870 = vmatmul.mubr.f32.gmra.mrb[0].mxu0 %v3068
        %v4871 = vpop.f32.mrb[0].mxu0
        %v4872 = vadd.f32 %v4794, %v4871
        %v4873 = vpop.f32.mrb[0].mxu0
        %4874 = vdwg.mxu0
        %s4875 = scalar_lea.vmem %s2, 736
        %v4876 = vld [vmem:[%s4875] sm:$0xff]
        %v4877 = vld [vmem:[%s4875 + $0x8] sm:$0xff]
        %v4878 = vld [vmem:[%s4875 + $0x10] sm:$0xff]
        %v4879 = vld [vmem:[%s4875 + $0x18] sm:$0xff]
        %4880 = vmatprep.subr.mxu0 0.0
        %4881 = vmatpush1.msra.mxu0 %v4876
        %4882 = vmatprep.subr.mxu0 0.0
        %4883 = vmatpush1.msra.mxu0 %v4877
        %4884 = vmatprep.subr.mxu0 0.0
        %4885 = vmatpush1.msra.mxu0 %v4878
        %4886 = vmatprep.subr.mxu0 0.0
        %4887 = vmatpush1.msra.mxu0 %v4879
        %4888 = vmatprep.subr.mxu0 0.0
        %4889 = vmatpush1.msra.mxu0 0.0
        %4890 = vmatprep.subr.mxu0 0.0
        %4891 = vmatpush1.msra.mxu0 0.0
        %4892 = vmatprep.subr.mxu0 0.0
        %4893 = vmatpush1.msra.mxu0 0.0
        %4894 = vmatprep.subr.mxu0 0.0
        %4895 = vmatpush1.msra.mxu0 0.0
        %4896 = vmatprep.subr.mxu0 0.0
        %4897 = vmatpush1.msra.mxu0 0.0
        %4898 = vmatprep.subr.mxu0 0.0
        %4899 = vmatpush1.msra.mxu0 0.0
        %4900 = vmatprep.subr.mxu0 0.0
        %4901 = vmatpush1.msra.mxu0 0.0
        %4902 = vmatprep.subr.mxu0 0.0
        %4903 = vmatpush1.msra.mxu0 0.0
        %4904 = vmatprep.subr.mxu0 0.0
        %4905 = vmatpush1.msra.mxu0 0.0
        %4906 = vmatprep.subr.mxu0 0.0
        %4907 = vmatpush1.msra.mxu0 0.0
        %4908 = vmatprep.subr.mxu0 0.0
        %4909 = vmatpush1.msra.mxu0 0.0
        %4910 = vmatprep.subr.mxu0 0.0
        %4911 = vmatpush1.msra.mxu0 0.0
        %4912 = vmatprep.subr.mxu0 0.0
        %4913 = vmatpush1.msra.mxu0 0.0
        %4914 = vmatprep.subr.mxu0 0.0
        %4915 = vmatpush1.msra.mxu0 0.0
        %4916 = vmatprep.subr.mxu0 0.0
        %4917 = vmatpush1.msra.mxu0 0.0
        %4918 = vmatprep.subr.mxu0 0.0
        %4919 = vmatpush1.msra.mxu0 0.0
        %4920 = vmatprep.subr.mxu0 0.0
        %4921 = vmatpush1.msra.mxu0 0.0
        %4922 = vmatprep.subr.mxu0 0.0
        %4923 = vmatpush1.msra.mxu0 0.0
        %4924 = vmatprep.subr.mxu0 0.0
        %4925 = vmatpush1.msra.mxu0 0.0
        %4926 = vmatprep.subr.mxu0 0.0
        %4927 = vmatpush1.msra.mxu0 0.0
        %4928 = vmatprep.subr.mxu0 0.0
        %4929 = vmatpush1.msra.mxu0 0.0
        %4930 = vmatprep.subr.mxu0 0.0
        %4931 = vmatpush1.msra.mxu0 0.0
        %4932 = vmatprep.subr.mxu0 0.0
        %4933 = vmatpush1.msra.mxu0 0.0
        %4934 = vmatprep.subr.mxu0 0.0
        %4935 = vmatpush1.msra.mxu0 0.0
        %4936 = vmatprep.subr.mxu0 0.0
        %4937 = vmatpush1.msra.mxu0 0.0
        %4938 = vmatprep.subr.mxu0 0.0
        %4939 = vmatpush1.msra.mxu0 0.0
        %4940 = vmatprep.subr.mxu0 0.0
        %4941 = vmatpush1.msra.mxu0 0.0
        %4942 = vmatprep.subr.mxu0 0.0
        %4943 = vmatpush1.msra.mxu0 0.0
        %4944 = vmatprep.mubr.f32.mxu0 0.0
        %4945 = vmatmul.mubr.f32.gmra.mrb[0].mxu0 %v3062
        %v4946 = vpop.f32.mrb[0].mxu0
        %v4947 = vadd.f32 0.0, %v4946
        %v4948 = vpop.f32.mrb[0].mxu0
        %4949 = vmatprep.mubr.f32.mxu0 0.0
        %4950 = vmatmul.mubr.f32.gmra.mrb[0].mxu0 %v3065
        %v4951 = vpop.f32.mrb[0].mxu0
        %v4952 = vadd.f32 0.0, %v4951
        %v4953 = vpop.f32.mrb[0].mxu0
        %4954 = vmatprep.mubr.f32.mxu0 0.0
        %4955 = vmatmul.mubr.f32.gmra.mrb[0].mxu0 %v3068
        %v4956 = vpop.f32.mrb[0].mxu0
        %v4957 = vadd.f32 0.0, %v4956
        %v4958 = vpop.f32.mrb[0].mxu0
        %4959 = vdwg.mxu0
        %s4960 = scalar_lea.vmem %s2, 864
        %v4961 = vld [vmem:[%s4960] sm:$0xff]
        %v4962 = vld [vmem:[%s4960 + $0x8] sm:$0xff]
        %v4963 = vld [vmem:[%s4960 + $0x10] sm:$0xff]
        %v4964 = vld [vmem:[%s4960 + $0x18] sm:$0xff]
        %4965 = vmatprep.subr.mxu0 0.0
        %4966 = vmatpush1.msra.mxu0 %v4961
        %4967 = vmatprep.subr.mxu0 0.0
        %4968 = vmatpush1.msra.mxu0 %v4962
        %4969 = vmatprep.subr.mxu0 0.0
        %4970 = vmatpush1.msra.mxu0 %v4963
        %4971 = vmatprep.subr.mxu0 0.0
        %4972 = vmatpush1.msra.mxu0 %v4964
        %4973 = vmatprep.subr.mxu0 0.0
        %4974 = vmatpush1.msra.mxu0 0.0
        %4975 = vmatprep.subr.mxu0 0.0
        %4976 = vmatpush1.msra.mxu0 0.0
        %4977 = vmatprep.subr.mxu0 0.0
        %4978 = vmatpush1.msra.mxu0 0.0
        %4979 = vmatprep.subr.mxu0 0.0
        %4980 = vmatpush1.msra.mxu0 0.0
        %4981 = vmatprep.subr.mxu0 0.0
        %4982 = vmatpush1.msra.mxu0 0.0
        %4983 = vmatprep.subr.mxu0 0.0
        %4984 = vmatpush1.msra.mxu0 0.0
        %4985 = vmatprep.subr.mxu0 0.0
        %4986 = vmatpush1.msra.mxu0 0.0
        %4987 = vmatprep.subr.mxu0 0.0
        %4988 = vmatpush1.msra.mxu0 0.0
        %4989 = vmatprep.subr.mxu0 0.0
        %4990 = vmatpush1.msra.mxu0 0.0
        %4991 = vmatprep.subr.mxu0 0.0
        %4992 = vmatpush1.msra.mxu0 0.0
        %4993 = vmatprep.subr.mxu0 0.0
        %4994 = vmatpush1.msra.mxu0 0.0
        %4995 = vmatprep.subr.mxu0 0.0
        %4996 = vmatpush1.msra.mxu0 0.0
        %4997 = vmatprep.subr.mxu0 0.0
        %4998 = vmatpush1.msra.mxu0 0.0
        %4999 = vmatprep.subr.mxu0 0.0
        %5000 = vmatpush1.msra.mxu0 0.0
        %5001 = vmatprep.subr.mxu0 0.0
        %5002 = vmatpush1.msra.mxu0 0.0
        %5003 = vmatprep.subr.mxu0 0.0
        %5004 = vmatpush1.msra.mxu0 0.0
        %5005 = vmatprep.subr.mxu0 0.0
        %5006 = vmatpush1.msra.mxu0 0.0
        %5007 = vmatprep.subr.mxu0 0.0
        %5008 = vmatpush1.msra.mxu0 0.0
        %5009 = vmatprep.subr.mxu0 0.0
        %5010 = vmatpush1.msra.mxu0 0.0
        %5011 = vmatprep.subr.mxu0 0.0
        %5012 = vmatpush1.msra.mxu0 0.0
        %5013 = vmatprep.subr.mxu0 0.0
        %5014 = vmatpush1.msra.mxu0 0.0
        %5015 = vmatprep.subr.mxu0 0.0
        %5016 = vmatpush1.msra.mxu0 0.0
        %5017 = vmatprep.subr.mxu0 0.0
        %5018 = vmatpush1.msra.mxu0 0.0
        %5019 = vmatprep.subr.mxu0 0.0
        %5020 = vmatpush1.msra.mxu0 0.0
        %5021 = vmatprep.subr.mxu0 0.0
        %5022 = vmatpush1.msra.mxu0 0.0
        %5023 = vmatprep.subr.mxu0 0.0
        %5024 = vmatpush1.msra.mxu0 0.0
        %5025 = vmatprep.subr.mxu0 0.0
        %5026 = vmatpush1.msra.mxu0 0.0
        %5027 = vmatprep.subr.mxu0 0.0
        %5028 = vmatpush1.msra.mxu0 0.0
        %5029 = vmatprep.mubr.f32.mxu0 0.0
        %5030 = vmatmul.mubr.f32.gmra.mrb[0].mxu0 %v3062
        %v5031 = vpop.f32.mrb[0].mxu0
        %v5032 = vadd.f32 0.0, %v5031
        %v5033 = vpop.f32.mrb[0].mxu0
        %5034 = vmatprep.mubr.f32.mxu0 0.0
        %5035 = vmatmul.mubr.f32.gmra.mrb[0].mxu0 %v3065
        %v5036 = vpop.f32.mrb[0].mxu0
        %v5037 = vadd.f32 0.0, %v5036
        %v5038 = vpop.f32.mrb[0].mxu0
        %5039 = vmatprep.mubr.f32.mxu0 0.0
        %5040 = vmatmul.mubr.f32.gmra.mrb[0].mxu0 %v3068
        %v5041 = vpop.f32.mrb[0].mxu0
        %v5042 = vadd.f32 0.0, %v5041
        %v5043 = vpop.f32.mrb[0].mxu0
        %5044 = vdwg.mxu0
        %v5046 = vsel %vm420, %v4862, 0
        %v5049 = vsel %vm420, %v4867, 0
        %v5052 = vsel %vm420, %v4872, 0
        %v5055 = vsel %vm420, %v4947, 0
        %v5058 = vsel %vm420, %v4952, 0
        %v5061 = vsel %vm420, %v4957, 0
        %5063 = vmatprep.subr.mxu0 0.0
        %5064 = vmatpush1.xpose.msra.mxu0 %v5055
        %5065 = vmatprep.subr.mxu0 0.0
        %5066 = vmatpush1.xpose.msra.mxu0 %v5058
        %5067 = vmatprep.subr.mxu0 0.0
        %5068 = vmatpush1.xpose.msra.mxu0 %v5061
        %5069 = vmatprep.subr.mxu0 0.0
        %5070 = vmatpush1.xpose.msra.mxu0 0.0
        %5071 = vmatprep.subr.mxu0 0.0
        %5072 = vmatpush1.xpose.msra.mxu0 0.0
        %5073 = vmatprep.subr.mxu0 0.0
        %5074 = vmatpush1.xpose.msra.mxu0 0.0
        %5075 = vmatprep.subr.mxu0 0.0
        %5076 = vmatpush1.xpose.msra.mxu0 0.0
        %5077 = vmatprep.subr.mxu0 0.0
        %5078 = vmatpush1.xpose.msra.mxu0 0.0
        %5079 = vmatprep.subr.mxu0 0.0
        %5080 = vmatpush1.xpose.msra.mxu0 0.0
        %5081 = vmatprep.subr.mxu0 0.0
        %5082 = vmatpush1.xpose.msra.mxu0 0.0
        %5083 = vmatprep.subr.mxu0 0.0
        %5084 = vmatpush1.xpose.msra.mxu0 0.0
        %5085 = vmatprep.subr.mxu0 0.0
        %5086 = vmatpush1.xpose.msra.mxu0 0.0
        %5087 = vmatprep.subr.mxu0 0.0
        %5088 = vmatpush1.xpose.msra.mxu0 0.0
        %5089 = vmatprep.subr.mxu0 0.0
        %5090 = vmatpush1.xpose.msra.mxu0 0.0
        %5091 = vmatprep.subr.mxu0 0.0
        %5092 = vmatpush1.xpose.msra.mxu0 0.0
        %5093 = vmatprep.subr.mxu0 0.0
        %5094 = vmatpush1.xpose.msra.mxu0 0.0
        %5095 = vmatprep.subr.mxu0 0.0
        %5096 = vmatpush1.xpose.msra.mxu0 0.0
        %5097 = vmatprep.subr.mxu0 0.0
        %5098 = vmatpush1.xpose.msra.mxu0 0.0
        %5099 = vmatprep.subr.mxu0 0.0
        %5100 = vmatpush1.xpose.msra.mxu0 0.0
        %5101 = vmatprep.subr.mxu0 0.0
        %5102 = vmatpush1.xpose.msra.mxu0 0.0
        %5103 = vmatprep.subr.mxu0 0.0
        %5104 = vmatpush1.xpose.msra.mxu0 0.0
        %5105 = vmatprep.subr.mxu0 0.0
        %5106 = vmatpush1.xpose.msra.mxu0 0.0
        %5107 = vmatprep.subr.mxu0 0.0
        %5108 = vmatpush1.xpose.msra.mxu0 0.0
        %5109 = vmatprep.subr.mxu0 0.0
        %5110 = vmatpush1.xpose.msra.mxu0 0.0
        %5111 = vmatprep.subr.mxu0 0.0
        %5112 = vmatpush1.xpose.msra.mxu0 0.0
        %5113 = vmatprep.subr.mxu0 0.0
        %5114 = vmatpush1.xpose.msra.mxu0 0.0
        %5115 = vmatprep.subr.mxu0 0.0
        %5116 = vmatpush1.xpose.msra.mxu0 0.0
        %5117 = vmatprep.subr.mxu0 0.0
        %5118 = vmatpush1.xpose.msra.mxu0 0.0
        %5119 = vmatprep.subr.mxu0 0.0
        %5120 = vmatpush1.xpose.msra.mxu0 0.0
        %5121 = vmatprep.subr.mxu0 0.0
        %5122 = vmatpush1.xpose.msra.mxu0 0.0
        %5123 = vmatprep.subr.mxu0 0.0
        %5124 = vmatpush1.xpose.msra.mxu0 0.0
        %5125 = vmatprep.subr.mxu0 0.0
        %5126 = vmatpush1.xpose.msra.mxu0 0.0
        %5127 = vmatprep.mubr.f32.mxu0 0.0
        %5128 = vmatmul.mubr.f32.gmra.mrb[0].mxu0 %v5046
        %v5129 = vpop.f32.mrb[0].mxu0
        %v5130 = vadd.f32 %v410, %v5129
        %v5131 = vpop.f32.mrb[0].mxu0
        %5132 = vmatprep.mubr.f32.mxu0 0.0
        %5133 = vmatmul.mubr.f32.gmra.mrb[0].mxu0 %v5049
        %v5134 = vpop.f32.mrb[0].mxu0
        %v5135 = vadd.f32 %v410, %v5134
        %v5136 = vpop.f32.mrb[0].mxu0
        %5137 = vmatprep.mubr.f32.mxu0 0.0
        %5138 = vmatmul.mubr.f32.gmra.mrb[0].mxu0 %v5052
        %v5139 = vpop.f32.mrb[0].mxu0
        %v5140 = vadd.f32 %v410, %v5139
        %v5141 = vpop.f32.mrb[0].mxu0
        %5142 = vdwg.mxu0
        %v5143 = vsel %vm778, %v5130, -inf
        %5144 = vmax.xlane.f32.xlu0 %v5143
        %v5145 = vpop.xlane.xlu0 %5144
        %v5146 = vsel %vm778, %v5135, -inf
        %5147 = vmax.xlane.f32.xlu0 %v5146
        %v5148 = vpop.xlane.xlu0 %5147
        %v5149 = vsel %vm778, %v5140, -inf
        %5150 = vmax.xlane.f32.xlu0 %v5149
        %v5151 = vpop.xlane.xlu0 %5150
        %v5152 = vsub.f32 %v5130, %v5145
        %v5153 = vsub.f32 %v5135, %v5148
        %v5154 = vsub.f32 %v5140, %v5151
        %v5155 = vmul.f32 %v5152, 1.442695
        %v5156 = vpow.pop %v5155
        %v5157 = vmul.f32 %v5153, 1.442695
        %v5158 = vpow.pop %v5157
        %v5159 = vmul.f32 %v5154, 1.442695
        %v5160 = vpow.pop %v5159
        %v5161 = vsel %vm778, %v5156, 0.0
        %5162 = vadd.xlane.f32.xlu0 %v5161
        %v5163 = vpop.xlane.xlu0 %5162
        %v5164 = vsel %vm778, %v5158, 0.0
        %5165 = vadd.xlane.f32.xlu0 %v5164
        %v5166 = vpop.xlane.xlu0 %5165
        %v5167 = vsel %vm778, %v5160, 0.0
        %5168 = vadd.xlane.f32.xlu0 %v5167
        %v5169 = vpop.xlane.xlu0 %5168
        %v5170 = vrcp.pop %v5163
        %v5171 = vrcp.pop %v5166
        %v5172 = vrcp.pop %v5169
        %v5173 = vmul.f32 %v5156, %v5170
        %v5174 = vmul.f32 %v5158, %v5171
        %v5175 = vmul.f32 %v5160, %v5172
        %v5177 = vsel %vm778, %v5173, 0
        %v5180 = vsel %vm778, %v5174, 0
        %v5183 = vsel %vm778, %v5175, 0
        %5185 = vmatprep.subr.mxu0 0.0
        %5186 = vmatpush1.msra.mxu0 %v5032
        %5187 = vmatprep.subr.mxu0 0.0
        %5188 = vmatpush1.msra.mxu0 %v5037
        %5189 = vmatprep.subr.mxu0 0.0
        %5190 = vmatpush1.msra.mxu0 %v5042
        %5191 = vmatprep.subr.mxu0 0.0
        %5192 = vmatpush1.msra.mxu0 0.0
        %5193 = vmatprep.subr.mxu0 0.0
        %5194 = vmatpush1.msra.mxu0 0.0
        %5195 = vmatprep.subr.mxu0 0.0
        %5196 = vmatpush1.msra.mxu0 0.0
        %5197 = vmatprep.subr.mxu0 0.0
        %5198 = vmatpush1.msra.mxu0 0.0
        %5199 = vmatprep.subr.mxu0 0.0
        %5200 = vmatpush1.msra.mxu0 0.0
        %5201 = vmatprep.subr.mxu0 0.0
        %5202 = vmatpush1.msra.mxu0 0.0
        %5203 = vmatprep.subr.mxu0 0.0
        %5204 = vmatpush1.msra.mxu0 0.0
        %5205 = vmatprep.subr.mxu0 0.0
        %5206 = vmatpush1.msra.mxu0 0.0
        %5207 = vmatprep.subr.mxu0 0.0
        %5208 = vmatpush1.msra.mxu0 0.0
        %5209 = vmatprep.subr.mxu0 0.0
        %5210 = vmatpush1.msra.mxu0 0.0
        %5211 = vmatprep.subr.mxu0 0.0
        %5212 = vmatpush1.msra.mxu0 0.0
        %5213 = vmatprep.subr.mxu0 0.0
        %5214 = vmatpush1.msra.mxu0 0.0
        %5215 = vmatprep.subr.mxu0 0.0
        %5216 = vmatpush1.msra.mxu0 0.0
        %5217 = vmatprep.subr.mxu0 0.0
        %5218 = vmatpush1.msra.mxu0 0.0
        %5219 = vmatprep.subr.mxu0 0.0
        %5220 = vmatpush1.msra.mxu0 0.0
        %5221 = vmatprep.subr.mxu0 0.0
        %5222 = vmatpush1.msra.mxu0 0.0
        %5223 = vmatprep.subr.mxu0 0.0
        %5224 = vmatpush1.msra.mxu0 0.0
        %5225 = vmatprep.subr.mxu0 0.0
        %5226 = vmatpush1.msra.mxu0 0.0
        %5227 = vmatprep.subr.mxu0 0.0
        %5228 = vmatpush1.msra.mxu0 0.0
        %5229 = vmatprep.subr.mxu0 0.0
        %5230 = vmatpush1.msra.mxu0 0.0
        %5231 = vmatprep.subr.mxu0 0.0
        %5232 = vmatpush1.msra.mxu0 0.0
        %5233 = vmatprep.subr.mxu0 0.0
        %5234 = vmatpush1.msra.mxu0 0.0
        %5235 = vmatprep.subr.mxu0 0.0
        %5236 = vmatpush1.msra.mxu0 0.0
        %5237 = vmatprep.subr.mxu0 0.0
        %5238 = vmatpush1.msra.mxu0 0.0
        %5239 = vmatprep.subr.mxu0 0.0
        %5240 = vmatpush1.msra.mxu0 0.0
        %5241 = vmatprep.subr.mxu0 0.0
        %5242 = vmatpush1.msra.mxu0 0.0
        %5243 = vmatprep.subr.mxu0 0.0
        %5244 = vmatpush1.msra.mxu0 0.0
        %5245 = vmatprep.subr.mxu0 0.0
        %5246 = vmatpush1.msra.mxu0 0.0
        %5247 = vmatprep.subr.mxu0 0.0
        %5248 = vmatpush1.msra.mxu0 0.0
        %5249 = vmatprep.mubr.f32.mxu0 0.0
        %5250 = vmatmul.mubr.f32.gmra.mrb[0].mxu0 %v5177
        %v5251 = vpop.f32.mrb[0].mxu0
        %v5252 = vadd.f32 0.0, %v5251
        %v5253 = vpop.f32.mrb[0].mxu0
        %5254 = vmatprep.mubr.f32.mxu0 0.0
        %5255 = vmatmul.mubr.f32.gmra.mrb[0].mxu0 %v5180
        %v5256 = vpop.f32.mrb[0].mxu0
        %v5257 = vadd.f32 0.0, %v5256
        %v5258 = vpop.f32.mrb[0].mxu0
        %5259 = vmatprep.mubr.f32.mxu0 0.0
        %5260 = vmatmul.mubr.f32.gmra.mrb[0].mxu0 %v5183
        %v5261 = vpop.f32.mrb[0].mxu0
        %v5262 = vadd.f32 0.0, %v5261
        %v5263 = vpop.f32.mrb[0].mxu0
        %5264 = vdwg.mxu0
        %s5265 = scalar_lea.vmem %s2, 992
        %v5266 = vld [vmem:[%s5265] sm:$0xff]
        %v5267 = vld [vmem:[%s5265 + $0x8] sm:$0xff]
        %v5268 = vld [vmem:[%s5265 + $0x10] sm:$0xff]
        %v5269 = vld [vmem:[%s5265 + $0x18] sm:$0xff]
        %v5271 = vsel %vm420, %v5252, 0
        %v5274 = vsel %vm420, %v5257, 0
        %v5277 = vsel %vm420, %v5262, 0
        %5279 = vmatprep.subr.mxu0 0.0
        %5280 = vmatpush1.msra.mxu0 %v5266
        %5281 = vmatprep.subr.mxu0 0.0
        %5282 = vmatpush1.msra.mxu0 %v5267
        %5283 = vmatprep.subr.mxu0 0.0
        %5284 = vmatpush1.msra.mxu0 %v5268
        %5285 = vmatprep.subr.mxu0 0.0
        %5286 = vmatpush1.msra.mxu0 %v5269
        %5287 = vmatprep.subr.mxu0 0.0
        %5288 = vmatpush1.msra.mxu0 0.0
        %5289 = vmatprep.subr.mxu0 0.0
        %5290 = vmatpush1.msra.mxu0 0.0
        %5291 = vmatprep.subr.mxu0 0.0
        %5292 = vmatpush1.msra.mxu0 0.0
        %5293 = vmatprep.subr.mxu0 0.0
        %5294 = vmatpush1.msra.mxu0 0.0
        %5295 = vmatprep.subr.mxu0 0.0
        %5296 = vmatpush1.msra.mxu0 0.0
        %5297 = vmatprep.subr.mxu0 0.0
        %5298 = vmatpush1.msra.mxu0 0.0
        %5299 = vmatprep.subr.mxu0 0.0
        %5300 = vmatpush1.msra.mxu0 0.0
        %5301 = vmatprep.subr.mxu0 0.0
        %5302 = vmatpush1.msra.mxu0 0.0
        %5303 = vmatprep.subr.mxu0 0.0
        %5304 = vmatpush1.msra.mxu0 0.0
        %5305 = vmatprep.subr.mxu0 0.0
        %5306 = vmatpush1.msra.mxu0 0.0
        %5307 = vmatprep.subr.mxu0 0.0
        %5308 = vmatpush1.msra.mxu0 0.0
        %5309 = vmatprep.subr.mxu0 0.0
        %5310 = vmatpush1.msra.mxu0 0.0
        %5311 = vmatprep.subr.mxu0 0.0
        %5312 = vmatpush1.msra.mxu0 0.0
        %5313 = vmatprep.subr.mxu0 0.0
        %5314 = vmatpush1.msra.mxu0 0.0
        %5315 = vmatprep.subr.mxu0 0.0
        %5316 = vmatpush1.msra.mxu0 0.0
        %5317 = vmatprep.subr.mxu0 0.0
        %5318 = vmatpush1.msra.mxu0 0.0
        %5319 = vmatprep.subr.mxu0 0.0
        %5320 = vmatpush1.msra.mxu0 0.0
        %5321 = vmatprep.subr.mxu0 0.0
        %5322 = vmatpush1.msra.mxu0 0.0
        %5323 = vmatprep.subr.mxu0 0.0
        %5324 = vmatpush1.msra.mxu0 0.0
        %5325 = vmatprep.subr.mxu0 0.0
        %5326 = vmatpush1.msra.mxu0 0.0
        %5327 = vmatprep.subr.mxu0 0.0
        %5328 = vmatpush1.msra.mxu0 0.0
        %5329 = vmatprep.subr.mxu0 0.0
        %5330 = vmatpush1.msra.mxu0 0.0
        %5331 = vmatprep.subr.mxu0 0.0
        %5332 = vmatpush1.msra.mxu0 0.0
        %5333 = vmatprep.subr.mxu0 0.0
        %5334 = vmatpush1.msra.mxu0 0.0
        %5335 = vmatprep.subr.mxu0 0.0
        %5336 = vmatpush1.msra.mxu0 0.0
        %5337 = vmatprep.subr.mxu0 0.0
        %5338 = vmatpush1.msra.mxu0 0.0
        %5339 = vmatprep.subr.mxu0 0.0
        %5340 = vmatpush1.msra.mxu0 0.0
        %5341 = vmatprep.subr.mxu0 0.0
        %5342 = vmatpush1.msra.mxu0 0.0
        %5343 = vmatprep.mubr.f32.mxu0 0.0
        %5344 = vmatmul.mubr.f32.gmra.mrb[0].mxu0 %v5271
        %v5345 = vpop.f32.mrb[0].mxu0
        %v5346 = vadd.f32 0.0, %v5345
        %v5347 = vpop.f32.mrb[0].mxu0
        %5348 = vmatprep.mubr.f32.mxu0 0.0
        %5349 = vmatmul.mubr.f32.gmra.mrb[0].mxu0 %v5274
        %v5350 = vpop.f32.mrb[0].mxu0
        %v5351 = vadd.f32 0.0, %v5350
        %v5352 = vpop.f32.mrb[0].mxu0
        %5353 = vmatprep.mubr.f32.mxu0 0.0
        %5354 = vmatmul.mubr.f32.gmra.mrb[0].mxu0 %v5277
        %v5355 = vpop.f32.mrb[0].mxu0
        %v5356 = vadd.f32 0.0, %v5355
        %v5357 = vpop.f32.mrb[0].mxu0
        %5358 = vdwg.mxu0
        %v5359 = vadd.f32 %v4782, %v5346
        %v5360 = vadd.f32 %v4783, %v5351
        %v5361 = vadd.f32 %v4784, %v5356
        %v5362 = vadd.f32 %v3048, %v5359
        %v5363 = vadd.f32 %v3049, %v5360
        %v5364 = vadd.f32 %v3050, %v5361
        %v5365 = vld [vmem:[%s4 + $0x8] sm:$0x1]
        %v5366 = vlaneseq
        %v5367 = vshrl.u32 %v5366, 7
        %v5368 = vsub.s32 0, %v5367
        %v5369 = vrot.slane %v5365, %v5368
        %v5370 = vadd.f32 %v5362, %v5369
        %v5371 = vadd.f32 %v5363, %v5369
        %v5372 = vadd.f32 %v5364, %v5369
        %v5373 = vld [vmem:[%s4 + $0x9] sm:$0x1]
        %v5374 = vld [vmem:[%s4 + $0xa] sm:$0x1]
        %v5375 = vsel %vm420, %v5370, 0.0
        %5376 = vadd.xlane.f32.xlu0 %v5375
        %v5377 = vpop.xlane.xlu0 %5376
        %v5378 = vsel %vm420, %v5371, 0.0
        %5379 = vadd.xlane.f32.xlu0 %v5378
        %v5380 = vpop.xlane.xlu0 %5379
        %v5381 = vsel %vm420, %v5372, 0.0
        %5382 = vadd.xlane.f32.xlu0 %v5381
        %v5383 = vpop.xlane.xlu0 %5382
        %v5384 = vmul.f32 %v5377, %v2745
        %v5385 = vmul.f32 %v5380, %v2745
        %v5386 = vmul.f32 %v5383, %v2745
        %v5387 = vsub.f32 %v5370, %v5384
        %v5388 = vsub.f32 %v5371, %v5385
        %v5389 = vsub.f32 %v5372, %v5386
        %v5390 = vmul.f32 %v5387, %v5387
        %v5391 = vmul.f32 %v5388, %v5388
        %v5392 = vmul.f32 %v5389, %v5389
        %v5393 = vsel %vm420, %v5390, 0.0
        %5394 = vadd.xlane.f32.xlu0 %v5393
        %v5395 = vpop.xlane.xlu0 %5394
        %v5396 = vsel %vm420, %v5391, 0.0
        %5397 = vadd.xlane.f32.xlu0 %v5396
        %v5398 = vpop.xlane.xlu0 %5397
        %v5399 = vsel %vm420, %v5392, 0.0
        %5400 = vadd.xlane.f32.xlu0 %v5399
        %v5401 = vpop.xlane.xlu0 %5400
        %v5402 = vmul.f32 %v5395, %v2745
        %v5403 = vmul.f32 %v5398, %v2745
        %v5404 = vmul.f32 %v5401, %v2745
        %v5405 = vadd.f32 %v5402, 1e-05
        %v5406 = vadd.f32 %v5403, 1e-05
        %v5407 = vadd.f32 %v5404, 1e-05
        %v5408 = vrsqrt.pop %v5405
        %v5409 = vrsqrt.pop %v5406
        %v5410 = vrsqrt.pop %v5407
        %v5411 = vmul.f32 %v5387, %v5408
        %v5412 = vmul.f32 %v5388, %v5409
        %v5413 = vmul.f32 %v5389, %v5410
        %v5414 = vlaneseq
        %v5415 = vshrl.u32 %v5414, 7
        %v5416 = vsub.s32 0, %v5415
        %v5417 = vrot.slane %v5373, %v5416
        %v5418 = vmul.f32 %v5411, %v5417
        %v5419 = vmul.f32 %v5412, %v5417
        %v5420 = vmul.f32 %v5413, %v5417
        %v5421 = vlaneseq
        %v5422 = vshrl.u32 %v5421, 7
        %v5423 = vsub.s32 0, %v5422
        %v5424 = vrot.slane %v5374, %v5423
        %v5425 = vadd.f32 %v5418, %v5424
        %v5426 = vadd.f32 %v5419, %v5424
        %v5427 = vadd.f32 %v5420, %v5424
        %s5428 = scalar_lea.vmem %s5, 40
        %v5429 = vld [vmem:[%s5428] sm:$0xff]
        %v5430 = vld [vmem:[%s5428 + $0x8] sm:$0xff]
        %v5431 = vld [vmem:[%s5428 + $0x10] sm:$0xff]
        %v5432 = vld [vmem:[%s5428 + $0x18] sm:$0xff]
        %v5433 = vld [vmem:[%s5428 + $0x20] sm:$0x1]
        %v5434 = vlaneseq
        %v5435 = vshrl.u32 %v5434, 7
        %v5436 = vsub.s32 0, %v5435
        %v5437 = vrot.slane %v5433, %v5436
        %v5439 = vsel %vm420, %v5425, 0
        %v5442 = vsel %vm420, %v5426, 0
        %v5445 = vsel %vm420, %v5427, 0
        %5447 = vmatprep.subr.mxu0 0.0
        %5448 = vmatpush1.msra.mxu0 %v5429
        %5449 = vmatprep.subr.mxu0 0.0
        %5450 = vmatpush1.msra.mxu0 %v5430
        %5451 = vmatprep.subr.mxu0 0.0
        %5452 = vmatpush1.msra.mxu0 %v5431
        %5453 = vmatprep.subr.mxu0 0.0
        %5454 = vmatpush1.msra.mxu0 %v5432
        %5455 = vmatprep.subr.mxu0 0.0
        %5456 = vmatpush1.msra.mxu0 0.0
        %5457 = vmatprep.subr.mxu0 0.0
        %5458 = vmatpush1.msra.mxu0 0.0
        %5459 = vmatprep.subr.mxu0 0.0
        %5460 = vmatpush1.msra.mxu0 0.0
        %5461 = vmatprep.subr.mxu0 0.0
        %5462 = vmatpush1.msra.mxu0 0.0
        %5463 = vmatprep.subr.mxu0 0.0
        %5464 = vmatpush1.msra.mxu0 0.0
        %5465 = vmatprep.subr.mxu0 0.0
        %5466 = vmatpush1.msra.mxu0 0.0
        %5467 = vmatprep.subr.mxu0 0.0
        %5468 = vmatpush1.msra.mxu0 0.0
        %5469 = vmatprep.subr.mxu0 0.0
        %5470 = vmatpush1.msra.mxu0 0.0
        %5471 = vmatprep.subr.mxu0 0.0
        %5472 = vmatpush1.msra.mxu0 0.0
        %5473 = vmatprep.subr.mxu0 0.0
        %5474 = vmatpush1.msra.mxu0 0.0
        %5475 = vmatprep.subr.mxu0 0.0
        %5476 = vmatpush1.msra.mxu0 0.0
        %5477 = vmatprep.subr.mxu0 0.0
        %5478 = vmatpush1.msra.mxu0 0.0
        %5479 = vmatprep.subr.mxu0 0.0
        %5480 = vmatpush1.msra.mxu0 0.0
        %5481 = vmatprep.subr.mxu0 0.0
        %5482 = vmatpush1.msra.mxu0 0.0
        %5483 = vmatprep.subr.mxu0 0.0
        %5484 = vmatpush1.msra.mxu0 0.0
        %5485 = vmatprep.subr.mxu0 0.0
        %5486 = vmatpush1.msra.mxu0 0.0
        %5487 = vmatprep.subr.mxu0 0.0
        %5488 = vmatpush1.msra.mxu0 0.0
        %5489 = vmatprep.subr.mxu0 0.0
        %5490 = vmatpush1.msra.mxu0 0.0
        %5491 = vmatprep.subr.mxu0 0.0
        %5492 = vmatpush1.msra.mxu0 0.0
        %5493 = vmatprep.subr.mxu0 0.0
        %5494 = vmatpush1.msra.mxu0 0.0
        %5495 = vmatprep.subr.mxu0 0.0
        %5496 = vmatpush1.msra.mxu0 0.0
        %5497 = vmatprep.subr.mxu0 0.0
        %5498 = vmatpush1.msra.mxu0 0.0
        %5499 = vmatprep.subr.mxu0 0.0
        %5500 = vmatpush1.msra.mxu0 0.0
        %5501 = vmatprep.subr.mxu0 0.0
        %5502 = vmatpush1.msra.mxu0 0.0
        %5503 = vmatprep.subr.mxu0 0.0
        %5504 = vmatpush1.msra.mxu0 0.0
        %5505 = vmatprep.subr.mxu0 0.0
        %5506 = vmatpush1.msra.mxu0 0.0
        %5507 = vmatprep.subr.mxu0 0.0
        %5508 = vmatpush1.msra.mxu0 0.0
        %5509 = vmatprep.subr.mxu0 0.0
        %5510 = vmatpush1.msra.mxu0 0.0
        %5511 = vmatprep.mubr.f32.mxu0 0.0
        %5512 = vmatmul.mubr.f32.gmra.mrb[0].mxu0 %v5439
        %v5513 = vpop.f32.mrb[0].mxu0
        %v5514 = vadd.f32 %v5437, %v5513
        %v5515 = vpop.f32.mrb[0].mxu0
        %5516 = vmatprep.mubr.f32.mxu0 0.0
        %5517 = vmatmul.mubr.f32.gmra.mrb[0].mxu0 %v5442
        %v5518 = vpop.f32.mrb[0].mxu0
        %v5519 = vadd.f32 %v5437, %v5518
        %v5520 = vpop.f32.mrb[0].mxu0
        %5521 = vmatprep.mubr.f32.mxu0 0.0
        %5522 = vmatmul.mubr.f32.gmra.mrb[0].mxu0 %v5445
        %v5523 = vpop.f32.mrb[0].mxu0
        %v5524 = vadd.f32 %v5437, %v5523
        %v5525 = vpop.f32.mrb[0].mxu0
        %5526 = vdwg.mxu0
        %v5527 = vmax.f32 %v5514, 0.0
        %v5528 = vmax.f32 %v5519, 0.0
        %v5529 = vmax.f32 %v5524, 0.0
        %s5530 = scalar_lea.vmem %s6, 72
        %v5531 = vld [vmem:[%s5530] sm:$0xff]
        %v5532 = vld [vmem:[%s5530 + $0x8] sm:$0xff]
        %v5533 = vld [vmem:[%s5530 + $0x10] sm:$0xff]
        %v5534 = vld [vmem:[%s5530 + $0x18] sm:$0xff]
        %v5535 = vld [vmem:[%s5530 + $0x20] sm:$0xff]
        %v5536 = vld [vmem:[%s5530 + $0x28] sm:$0xff]
        %v5537 = vld [vmem:[%s5530 + $0x30] sm:$0xff]
        %v5538 = vld [vmem:[%s5530 + $0x38] sm:$0xff]
        %v5539 = vld [vmem:[%s5530 + $0x40] sm:$0x1]
        %v5540 = vlaneseq
        %v5541 = vshrl.u32 %v5540, 7
        %v5542 = vsub.s32 0, %v5541
        %v5543 = vrot.slane %v5539, %v5542
        %v5545 = vsel %vm317, %v5527, 0
        %v5548 = vsel %vm317, %v5528, 0
        %v5551 = vsel %vm317, %v5529, 0
        %5553 = vmatprep.subr.mxu0 0.0
        %5554 = vmatpush1.msra.mxu0 %v5531
        %5555 = vmatprep.subr.mxu0 0.0
        %5556 = vmatpush1.msra.mxu0 %v5532
        %5557 = vmatprep.subr.mxu0 0.0
        %5558 = vmatpush1.msra.mxu0 %v5533
        %5559 = vmatprep.subr.mxu0 0.0
        %5560 = vmatpush1.msra.mxu0 %v5534
        %5561 = vmatprep.subr.mxu0 0.0
        %5562 = vmatpush1.msra.mxu0 %v5535
        %5563 = vmatprep.subr.mxu0 0.0
        %5564 = vmatpush1.msra.mxu0 %v5536
        %5565 = vmatprep.subr.mxu0 0.0
        %5566 = vmatpush1.msra.mxu0 %v5537
        %5567 = vmatprep.subr.mxu0 0.0
        %5568 = vmatpush1.msra.mxu0 %v5538
        %5569 = vmatprep.subr.mxu0 0.0
        %5570 = vmatpush1.msra.mxu0 0.0
        %5571 = vmatprep.subr.mxu0 0.0
        %5572 = vmatpush1.msra.mxu0 0.0
        %5573 = vmatprep.subr.mxu0 0.0
        %5574 = vmatpush1.msra.mxu0 0.0
        %5575 = vmatprep.subr.mxu0 0.0
        %5576 = vmatpush1.msra.mxu0 0.0
        %5577 = vmatprep.subr.mxu0 0.0
        %5578 = vmatpush1.msra.mxu0 0.0
        %5579 = vmatprep.subr.mxu0 0.0
        %5580 = vmatpush1.msra.mxu0 0.0
        %5581 = vmatprep.subr.mxu0 0.0
        %5582 = vmatpush1.msra.mxu0 0.0
        %5583 = vmatprep.subr.mxu0 0.0
        %5584 = vmatpush1.msra.mxu0 0.0
        %5585 = vmatprep.subr.mxu0 0.0
        %5586 = vmatpush1.msra.mxu0 0.0
        %5587 = vmatprep.subr.mxu0 0.0
        %5588 = vmatpush1.msra.mxu0 0.0
        %5589 = vmatprep.subr.mxu0 0.0
        %5590 = vmatpush1.msra.mxu0 0.0
        %5591 = vmatprep.subr.mxu0 0.0
        %5592 = vmatpush1.msra.mxu0 0.0
        %5593 = vmatprep.subr.mxu0 0.0
        %5594 = vmatpush1.msra.mxu0 0.0
        %5595 = vmatprep.subr.mxu0 0.0
        %5596 = vmatpush1.msra.mxu0 0.0
        %5597 = vmatprep.subr.mxu0 0.0
        %5598 = vmatpush1.msra.mxu0 0.0
        %5599 = vmatprep.subr.mxu0 0.0
        %5600 = vmatpush1.msra.mxu0 0.0
        %5601 = vmatprep.subr.mxu0 0.0
        %5602 = vmatpush1.msra.mxu0 0.0
        %5603 = vmatprep.subr.mxu0 0.0
        %5604 = vmatpush1.msra.mxu0 0.0
        %5605 = vmatprep.subr.mxu0 0.0
        %5606 = vmatpush1.msra.mxu0 0.0
        %5607 = vmatprep.subr.mxu0 0.0
        %5608 = vmatpush1.msra.mxu0 0.0
        %5609 = vmatprep.subr.mxu0 0.0
        %5610 = vmatpush1.msra.mxu0 0.0
        %5611 = vmatprep.subr.mxu0 0.0
        %5612 = vmatpush1.msra.mxu0 0.0
        %5613 = vmatprep.subr.mxu0 0.0
        %5614 = vmatpush1.msra.mxu0 0.0
        %5615 = vmatprep.subr.mxu0 0.0
        %5616 = vmatpush1.msra.mxu0 0.0
        %5617 = vmatprep.mubr.f32.mxu0 0.0
        %5618 = vmatmul.mubr.f32.gmra.mrb[0].mxu0 %v5545
        %v5619 = vpop.f32.mrb[0].mxu0
        %v5620 = vadd.f32 %v5543, %v5619
        %v5621 = vpop.f32.mrb[0].mxu0
        %5622 = vmatprep.mubr.f32.mxu0 0.0
        %5623 = vmatmul.mubr.f32.gmra.mrb[0].mxu0 %v5548
        %v5624 = vpop.f32.mrb[0].mxu0
        %v5625 = vpop.f32.mrb[0].mxu0
        %5626 = vmatprep.mubr.f32.mxu0 0.0
        %5627 = vmatmul.mubr.f32.gmra.mrb[0].mxu0 %v5551
        %v5628 = vpop.f32.mrb[0].mxu0
        %v5629 = vpop.f32.mrb[0].mxu0
        %5630 = vdwg.mxu0
        %v5631 = vadd.f32 %v5425, %v5620
        %v5632 = vld [vmem:[%s4 + $0xb] sm:$0x1]
        %v5633 = vld [vmem:[%s4 + $0xc] sm:$0x1]
        %v5634 = vsel %vm420, %v5631, 0.0
        %5635 = vadd.xlane.f32.xlu0 %v5634
        %v5636 = vpop.xlane.xlu0 %5635
        %v5637 = vmul.f32 %v5636, %v2745
        %v5638 = vsub.f32 %v5631, %v5637
        %v5639 = vmul.f32 %v5638, %v5638
        %v5640 = vsel %vm420, %v5639, 0.0
        %5641 = vadd.xlane.f32.xlu0 %v5640
        %v5642 = vpop.xlane.xlu0 %5641
        %v5643 = vmul.f32 %v5642, %v2745
        %v5644 = vadd.f32 %v5643, 1e-05
        %v5645 = vrsqrt.pop %v5644
        %v5646 = vmul.f32 %v5638, %v5645
        %v5647 = vlaneseq
        %v5648 = vshrl.u32 %v5647, 7
        %v5649 = vsub.s32 0, %v5648
        %v5650 = vrot.slane %v5632, %v5649
        %v5651 = vmul.f32 %v5646, %v5650
        %v5652 = vlaneseq
        %v5653 = vshrl.u32 %v5652, 7
        %v5654 = vsub.s32 0, %v5653
        %v5655 = vrot.slane %v5633, %v5654
        %v5656 = vadd.f32 %v5651, %v5655
        %v5657 = vld [vmem:[%s4 + $0x5] sm:$0x1]
        %v5658 = vld [vmem:[%s4 + $0x6] sm:$0x1]
        %vm5659 = vcmask 253952
        %v5660 = vsel %vm5659, %v5656, 0.0
        %5661 = vadd.xlane.f32.xlu0 %v5660
        %v5662 = vpop.xlane.xlu0 %5661
        %v5663 = vmul.f32 %v5662, %v2745
        %v5664 = vsub.f32 %v5656, %v5663
        %v5665 = vmul.f32 %v5664, %v5664
        %v5666 = vsel %vm5659, %v5665, 0.0
        %5667 = vadd.xlane.f32.xlu0 %v5666
        %v5668 = vpop.xlane.xlu0 %5667
        %v5669 = vmul.f32 %v5668, %v2745
        %v5670 = vadd.f32 %v5669, 1e-05
        %v5671 = vrsqrt.pop %v5670
        %v5672 = vmul.f32 %v5664, %v5671
        %v5673 = vmul.f32 %v5672, %v5657
        %v5674 = vadd.f32 %v5673, %v5658
        %v5675 = vld [vmem:[%s7] sm:$0xff]
        %v5676 = vld [vmem:[%s7 + $0x8] sm:$0xff]
        %v5677 = vld [vmem:[%s7 + $0x10] sm:$0xff]
        %v5678 = vld [vmem:[%s7 + $0x18] sm:$0xff]
        %v5679 = vld [vmem:[%s7 + $0x20] sm:$0x1]
        %v5681 = vsel %vm420, %v5674, 0
        %5683 = vmatprep.subr.mxu0 0.0
        %5684 = vmatpush1.msra.mxu0 %v5675
        %5685 = vmatprep.subr.mxu0 0.0
        %5686 = vmatpush1.msra.mxu0 %v5676
        %5687 = vmatprep.subr.mxu0 0.0
        %5688 = vmatpush1.msra.mxu0 %v5677
        %5689 = vmatprep.subr.mxu0 0.0
        %5690 = vmatpush1.msra.mxu0 %v5678
        %5691 = vmatprep.subr.mxu0 0.0
        %5692 = vmatpush1.msra.mxu0 0.0
        %5693 = vmatprep.subr.mxu0 0.0
        %5694 = vmatpush1.msra.mxu0 0.0
        %5695 = vmatprep.subr.mxu0 0.0
        %5696 = vmatpush1.msra.mxu0 0.0
        %5697 = vmatprep.subr.mxu0 0.0
        %5698 = vmatpush1.msra.mxu0 0.0
        %5699 = vmatprep.subr.mxu0 0.0
        %5700 = vmatpush1.msra.mxu0 0.0
        %5701 = vmatprep.subr.mxu0 0.0
        %5702 = vmatpush1.msra.mxu0 0.0
        %5703 = vmatprep.subr.mxu0 0.0
        %5704 = vmatpush1.msra.mxu0 0.0
        %5705 = vmatprep.subr.mxu0 0.0
        %5706 = vmatpush1.msra.mxu0 0.0
        %5707 = vmatprep.subr.mxu0 0.0
        %5708 = vmatpush1.msra.mxu0 0.0
        %5709 = vmatprep.subr.mxu0 0.0
        %5710 = vmatpush1.msra.mxu0 0.0
        %5711 = vmatprep.subr.mxu0 0.0
        %5712 = vmatpush1.msra.mxu0 0.0
        %5713 = vmatprep.subr.mxu0 0.0
        %5714 = vmatpush1.msra.mxu0 0.0
        %5715 = vmatprep.subr.mxu0 0.0
        %5716 = vmatpush1.msra.mxu0 0.0
        %5717 = vmatprep.subr.mxu0 0.0
        %5718 = vmatpush1.msra.mxu0 0.0
        %5719 = vmatprep.subr.mxu0 0.0
        %5720 = vmatpush1.msra.mxu0 0.0
        %5721 = vmatprep.subr.mxu0 0.0
        %5722 = vmatpush1.msra.mxu0 0.0
        %5723 = vmatprep.subr.mxu0 0.0
        %5724 = vmatpush1.msra.mxu0 0.0
        %5725 = vmatprep.subr.mxu0 0.0
        %5726 = vmatpush1.msra.mxu0 0.0
        %5727 = vmatprep.subr.mxu0 0.0
        %5728 = vmatpush1.msra.mxu0 0.0
        %5729 = vmatprep.subr.mxu0 0.0
        %5730 = vmatpush1.msra.mxu0 0.0
        %5731 = vmatprep.subr.mxu0 0.0
        %5732 = vmatpush1.msra.mxu0 0.0
        %5733 = vmatprep.subr.mxu0 0.0
        %5734 = vmatpush1.msra.mxu0 0.0
        %5735 = vmatprep.subr.mxu0 0.0
        %5736 = vmatpush1.msra.mxu0 0.0
        %5737 = vmatprep.subr.mxu0 0.0
        %5738 = vmatpush1.msra.mxu0 0.0
        %5739 = vmatprep.subr.mxu0 0.0
        %5740 = vmatpush1.msra.mxu0 0.0
        %5741 = vmatprep.subr.mxu0 0.0
        %5742 = vmatpush1.msra.mxu0 0.0
        %5743 = vmatprep.subr.mxu0 0.0
        %5744 = vmatpush1.msra.mxu0 0.0
        %5745 = vmatprep.subr.mxu0 0.0
        %5746 = vmatpush1.msra.mxu0 0.0
        %5747 = vmatprep.mubr.f32.mxu0 0.0
        %5748 = vmatmul.mubr.f32.gmra.mrb[0].mxu0 %v5681
        %v5749 = vpop.f32.mrb[0].mxu0
        %v5750 = vadd.f32 %v5679, %v5749
        %v5751 = vpop.f32.mrb[0].mxu0
        %5752 = vdwg.mxu0
        %5753 = vst [vmem:[%s297] sm:$0x1] %v5750
        %s5754 = sand.u32 %s203, 1
        %s5755 = scalar_lea.sflag [#allocation3], %s5754
        %s5756 = sand.u32 %s203, 1
        %s5757 = scalar_lea.vmem [#allocation2], %s5756
        // Predicated region
        $region53: #{vit_forward.1} parent=51 // pred_check
          %p5758 = pneg %p213
        $region54: #{vit_forward.1} parent=51 // pred_check_branch
          %5760 = sbr.rel (%p5758) target = $region56
        $region55: #{vit_forward.1} parent=51 // pred_region
          %s5762 = ssub.s32 16, 16
          %5763 = vsyncadd %s5755, %s5762
          %s5764 = smul.addr %s22, 16
          %s5765 = scalar_lea.hbm %s8, %s5764
          %s5767 = sshll.u32 %s5757, 4
          %s5768 = int_to_ptr.vmem [resolvable:$true] %s5767
          %5770 = dma.vmem_to_hbm [thread:$0]  %s5768, 16, %s5765, %s5755
        $region56: #{vit_forward.1} parent=51 // pred_fallthru
          _
      $region52: #{vit_forward.1} parent=5 // pred_fallthru
        _
      %p5771 = scmp.le.s32.totalorder 2, %s17
      // Predicated region
      $region57: #{vit_forward.1} parent=5 // pred_check
        %p5772 = pneg %p5771
      $region58: #{vit_forward.1} parent=5 // pred_check_branch
        %5774 = sbr.rel (%p5772) target = $region60
      $region59: #{vit_forward.1} parent=5 // pred_region
        %s5775 = ssub.s32 %s17, 2
        // Predicated region
        $region61: #{vit_forward.1} parent=59 // pred_check
          %p5776 = pneg %p219
        $region62: #{vit_forward.1} parent=59 // pred_check_branch
          %5778 = sbr.rel (%p5776) target = $region64
        $region63: #{vit_forward.1} parent=59 // pred_region
          %s5779 = sand.u32 %s204, 1
          %s5780 = scalar_lea.sflag [#allocation3], %s5779
          %s5781 = sand.u32 %s204, 1
          %s5782 = scalar_lea.vmem [#allocation2], %s5781
          %5783 = dma.done %s5780, 16
        $region64: #{vit_forward.1} parent=59 // pred_fallthru
          _
      $region60: #{vit_forward.1} parent=5 // pred_fallthru
        _
    $region6: #{vit_forward.1} parent=1 // loop_footer
      %s21 = sadd.s32 1, %s17
    $region7: #{vit_forward.1} parent=1 // loop_footer_branch
      %16 = sbr.rel target = $region3
    $region8: #{vit_forward.1} parent=1 // loop_exit
      _
    %5784 = vsyncpa [#allocation3], 1
    %s5785 = scalar_lea.sflag [#allocation3], 1
    %5786 = vsyncpa %s5785, 1

</llo_original>
